<compile_context>
chip_gen: v7x
topology: tpu7x:2x2x1
jax: 0.10.0
libtpu: 0.0.40
codegen_flags: <defaults>
</compile_context>

<pallas_src>
import functools

import jax
import jax.numpy as jnp
import numpy as np
from jax.experimental import pallas as pl
from jax.experimental.pallas import tpu as pltpu

BN_EPS = 1e-5
LANE = 128           # vreg lane width
BF16_SUBLANE = 16    # bf16 sublane packing

_VMEM = pl.BlockSpec(memory_space=pltpu.MemorySpace.VMEM)


def _round_up(x, m):
    return ((x + m - 1) // m) * m


def _out_hw(h, k, s):
    return (h - k) // s + 1


# ----------------------------------------------------------------------------
# Fused Pallas kernel
# ----------------------------------------------------------------------------
def _bn_relu(y, gamma, beta, inv_r):
    """Training-mode BatchNorm2d + ReLU on a channel-major activation y [C, B].
    Only the first 1/inv_r columns are real; padded columns are exactly zero, so the
    lane-axis sums already equal the sums over the real columns.  Variance uses
    E[y^2] - E[y]^2 so the two reductions are independent (no serialized 2nd pass);
    rsqrt goes to the EUP slot."""
    mean = jnp.sum(y, axis=-1, keepdims=True) * inv_r
    mean_sq = jnp.sum(y * y, axis=-1, keepdims=True) * inv_r
    var = jnp.maximum(mean_sq - mean * mean, 0.0)
    y_hat = (y - mean) * jax.lax.rsqrt(var + BN_EPS)
    return jnp.maximum(y_hat * gamma + beta, 0.0)


def _conv_gather_deep(act_bf16, s_cat_ref, w_deep_ref, kk, blk):
    """One conv layer on a channel-major activation as TWO MXU pushes:
       1) wide gather GEMM against the lane-concatenated 0/1 im2col matrix
          (act [Cin, Bin] @ S_cat [Bin, kk*blk]  -> per-offset patch blocks),
       2) deep-K channel mix: blocks restacked along sublanes to [kk*Cin, blk] and
          multiplied once by W [Cout, kk*Cin]."""
    p = jnp.dot(act_bf16, s_cat_ref[...], preferred_element_type=jnp.float32)
    # 128-aligned lane slices; f32 sublane tile (8) divides Cin, so the sublane concat
    # is tile-aligned.  Cast to bf16 afterwards (values came from bf16 -> exact).
    p_deep = jnp.concatenate([p[:, k * blk:(k + 1) * blk] for k in range(kk)],
                             axis=0).astype(jnp.bfloat16)
    return jnp.dot(w_deep_ref[...], p_deep, preferred_element_type=jnp.float32)


def dqn_fused_kernel(p1_ref, w1_ref, g1_ref, b1_ref,
                     w2_ref, s2_ref, g2_ref, b2_ref,
                     w3_ref, s3_ref, g3_ref, b3_ref,
                     wf1_ref, bf1_ref, wf2_ref, bf2_ref,
                     o_ref, *, inv_r1, inv_r2, inv_r3, kk2, blk2, kk3, blk3):
    # ---- layer 1: one GEMM on pre-extracted channel-major patches ----
    y1 = jnp.dot(w1_ref[...], p1_ref[...], preferred_element_type=jnp.float32)   # [C1,B1]
    a1 = _bn_relu(y1, g1_ref[...], b1_ref[...], inv_r1).astype(jnp.bfloat16)

    # ---- layers 2/3: wide gather GEMM + deep-K channel mix (2 MXU pushes each) ----
    y2 = _conv_gather_deep(a1, s2_ref, w2_ref, kk2, blk2)                         # [C2,B2]
    a2 = _bn_relu(y2, g2_ref[...], b2_ref[...], inv_r2).astype(jnp.bfloat16)
    y3 = _conv_gather_deep(a2, s3_ref, w3_ref, kk3, blk3)                         # [C3,B3]
    a3 = _bn_relu(y3, g3_ref[...], b3_ref[...], inv_r3).astype(jnp.bfloat16)      # 1x1 spatial

    # ---- fused FC head, kept transposed ([features, batch-block]) ----
    h1 = jnp.maximum(
        jnp.dot(wf1_ref[...], a3, preferred_element_type=jnp.float32) + bf1_ref[...], 0.0)
    o_ref[...] = jnp.maximum(
        jnp.dot(wf2_ref[...], h1.astype(jnp.bfloat16),
                preferred_element_type=jnp.float32) + bf2_ref[...], 0.0)


# ----------------------------------------------------------------------------
# Static prep: gather matrices, padded weight reshapes, layer-1 im2col
# ----------------------------------------------------------------------------
def _gather_cat(n, h, w, k, stride, b_in, b_out):
    """Lane-concatenated 0/1 im2col matrix [b_in, k*k*b_out]:
    act[:, :n*h*w] @ S_cat drops, for each kernel offset kpos, the gathered patch
    columns into lane block [kpos*b_out, kpos*b_out + n*oh*ow).  Rows >= n*h*w and
    per-block columns >= n*oh*ow stay zero, so lane padding / padded-lane BN garbage
    never propagates."""
    oh, ow = _out_hw(h, k, stride), _out_hw(w, k, stride)
    s = np.zeros((b_in, k * k * b_out), np.float32)
    for ki in range(k):
        for kj in range(k):
            kpos = ki * k + kj
            for nn in range(n):
                for oi in range(oh):
                    for oj in range(ow):
                        src = nn * h * w + (stride * oi + ki) * w + (stride * oj + kj)
                        dst = kpos * b_out + nn * oh * ow + oi * ow + oj
                        s[src, dst] = 1.0
    return s


def im2col_T(x, k, stride, oh, ow):
    """x [N,C,H,W] -> patches^T [C*k*k, N*OH*OW]; rows ordered (cin, ki, kj) to match
    torch_weight.reshape(Cout, Cin*k*k), columns ordered (n, oi, oj)."""
    n, c = x.shape[0], x.shape[1]
    cols = []
    for ki in range(k):
        for kj in range(k):
            cols.append(x[:, :, ki:ki + stride * oh:stride, kj:kj + stride * ow:stride])
    p = jnp.stack(cols, axis=2)          # [N, C, k*k, OH, OW]
    p = p.transpose(1, 2, 0, 3, 4)       # [C, k*k, N, OH, OW]
    return p.reshape(c * k * k, n * oh * ow)


def prepare_operands(params, n, h, w):
    """Build static, (sublane,lane)-pre-padded bf16 kernel operands.
    The conv bias is intentionally dropped - BN's mean subtraction cancels it exactly."""
    (w1, _b1, g1, be1, k1, s1) = params["conv"][0]
    (w2, _b2, g2, be2, k2, s2) = params["conv"][1]
    (w3, _b3, g3, be3, k3, s3) = params["conv"][2]
    oh1, ow1 = _out_hw(h, k1, s1), _out_hw(w, k1, s1)
    oh2, ow2 = _out_hw(oh1, k2, s2), _out_hw(ow1, k2, s2)
    oh3, ow3 = _out_hw(oh2, k3, s3), _out_hw(ow2, k3, s3)
    assert oh3 == 1 and ow3 == 1, "FC head assumes conv3 output is 1x1 spatial"
    r1, r2, r3 = n * oh1 * ow1, n * oh2 * ow2, n * oh3 * ow3
    b1, b2, b3 = _round_up(r1, LANE), _round_up(r2, LANE), _round_up(r3, LANE)

    c1, cin = w1.shape[0], w1.shape[1]
    ck1 = cin * k1 * k1
    ck1_pad = _round_up(ck1, BF16_SUBLANE)
    w1_mat = np.zeros((c1, ck1_pad), np.float32)
    w1_mat[:, :ck1] = np.asarray(w1).reshape(c1, -1)

    # Deep-K channel-mix weights [Cout, k*k*Cin]; row order (kpos, cin) matches the
    # sublane-stacked gather blocks.
    w2_deep = np.asarray(w2).transpose(0, 2, 3, 1).reshape(w2.shape[0], -1)
    w3_deep = np.asarray(w3).transpose(0, 2, 3, 1).reshape(w3.shape[0], -1)

    (wf1, bf1), (wf2, bf2) = params["fc"]
    ops = dict(
        w1=jnp.asarray(w1_mat, jnp.bfloat16),
        g1=jnp.asarray(g1, jnp.float32).reshape(-1, 1),
        be1=jnp.asarray(be1, jnp.float32).reshape(-1, 1),
        w2=jnp.asarray(w2_deep, jnp.bfloat16),
        s2=jnp.asarray(_gather_cat(n, oh1, ow1, k2, s2, b1, b2), jnp.bfloat16),
        g2=jnp.asarray(g2, jnp.float32).reshape(-1, 1),
        be2=jnp.asarray(be2, jnp.float32).reshape(-1, 1),
        w3=jnp.asarray(w3_deep, jnp.bfloat16),
        s3=jnp.asarray(_gather_cat(n, oh2, ow2, k3, s3, b2, b3), jnp.bfloat16),
        g3=jnp.asarray(g3, jnp.float32).reshape(-1, 1),
        be3=jnp.asarray(be3, jnp.float32).reshape(-1, 1),
        wf1=jnp.asarray(wf1, jnp.bfloat16),
        bf1=jnp.asarray(bf1, jnp.float32).reshape(-1, 1),
        wf2=jnp.asarray(wf2, jnp.bfloat16),
        bf2=jnp.asarray(bf2, jnp.float32).reshape(-1, 1),
    )
    geom = dict(n=n, h=h, w=w, k1=k1, s1=s1, oh1=oh1, ow1=ow1,
                ck1=ck1, ck1_pad=ck1_pad, r1=r1, r2=r2, r3=r3,
                b1=b1, b2=b2, b3=b3, kk2=k2 * k2, kk3=k3 * k3)
    return ops, geom


def _cost_estimate(ops, geom, p1_nbytes, out_nbytes):
    c1, c2, c3 = ops["w1"].shape[0], ops["w2"].shape[0], ops["w3"].shape[0]
    b1, b2, b3 = geom["b1"], geom["b2"], geom["b3"]
    flops = 2 * (c1 * ops["w1"].shape[1] * b1            # conv1 GEMM
                 + c1 * b1 * ops["s2"].shape[1]          # layer-2 gather GEMM
                 + c2 * ops["w2"].shape[1] * b2          # layer-2 deep-K mix
                 + c2 * b2 * ops["s3"].shape[1]          # layer-3 gather GEMM
                 + c3 * ops["w3"].shape[1] * b3          # layer-3 deep-K mix
                 + ops["wf1"].shape[0] * ops["wf1"].shape[1] * b3
                 + ops["wf2"].shape[0] * ops["wf2"].shape[1] * b3)
    transcendentals = c1 + c2 + c3                       # one rsqrt per BN channel
    bytes_accessed = int(p1_nbytes + out_nbytes
                         + sum(int(v.size) * v.dtype.itemsize for v in ops.values()))
    return pl.CostEstimate(flops=int(flops), transcendentals=int(transcendentals),
                           bytes_accessed=bytes_accessed)


def dqn_forward(x, ops, geom):
    n = geom["n"]
    assert x.shape[0] == n and x.shape[2] == geom["h"] and x.shape[3] == geom["w"], (
        "operands are specialized to (N,H,W)=(%d,%d,%d); rebuild via prepare_operands"
        % (n, geom["h"], geom["w"]))
    actions = ops["wf2"].shape[0]

    # Layer-1 im2col in the wrapper (input lives in HBM anyway), padded to the
    # (16,128)-aligned channel-major block the kernel expects.
    # TODO(synk): move this in-kernel via strided reads when scaling (v5e HBM traffic).
    p1 = im2col_T(x, geom["k1"], geom["s1"], geom["oh1"], geom["ow1"])
    p1 = jnp.pad(p1, ((0, geom["ck1_pad"] - p1.shape[0]),
                      (0, geom["b1"] - p1.shape[1]))).astype(jnp.bfloat16)

    kernel = functools.partial(
        dqn_fused_kernel,
        inv_r1=1.0 / geom["r1"], inv_r2=1.0 / geom["r2"], inv_r3=1.0 / geom["r3"],
        kk2=geom["kk2"], blk2=geom["b2"], kk3=geom["kk3"], blk3=geom["b3"])

    out_pad = pl.pallas_call(
        kernel,
        out_shape=jax.ShapeDtypeStruct((actions, geom["b3"]), jnp.float32),
        in_specs=[_VMEM] * 16,
        out_specs=_VMEM,
        cost_estimate=_cost_estimate(ops, geom,
                                     int(p1.size) * p1.dtype.itemsize,
                                     actions * geom["b3"] * 4),
    )(p1,
      ops["w1"], ops["g1"], ops["be1"],
      ops["w2"], ops["s2"], ops["g2"], ops["be2"],
      ops["w3"], ops["s3"], ops["g3"], ops["be3"],
      ops["wf1"], ops["bf1"], ops["wf2"], ops["bf2"])
    return out_pad[:, :n].T                               # [N, actions]


# ----------------------------------------------------------------------------
# Parameter init + pure-f32 JAX reference (for correctness check)
# ----------------------------------------------------------------------------
def init_params(key, shape_cfg, fc_cfg, actions):
    params = {"conv": [], "fc": []}
    for (cin, cout, k, stride) in shape_cfg:
        key, k1, k2 = jax.random.split(key, 3)
        fan_in = cin * k * k
        w = jax.random.normal(k1, (cout, cin, k, k), jnp.float32) / np.sqrt(fan_in)
        b = jax.random.uniform(k2, (cout,), jnp.float32, -0.1, 0.1)
        gamma = jnp.ones((cout,), jnp.float32)
        beta = jnp.zeros((cout,), jnp.float32)
        params["conv"].append((w, b, gamma, beta, k, stride))
    dims = [fc_cfg[0], fc_cfg[1], actions]
    for fin, fout in zip(dims[:-1], dims[1:]):
        key, k1, k2 = jax.random.split(key, 3)
        w = jax.random.normal(k1, (fout, fin), jnp.float32) / np.sqrt(fin)
        b = jax.random.uniform(k2, (fout,), jnp.float32, -0.1, 0.1)
        params["fc"].append((w, b))
    return params


def dqn_forward_ref(x, params):
    for (w, b, gamma, beta, k, stride) in params["conv"]:
        y = jax.lax.conv_general_dilated(
            x, w, window_strides=(stride, stride), padding="VALID",
            dimension_numbers=("NCHW", "OIHW", "NCHW"))
        y = y + b[None, :, None, None]            # bias kept in reference (BN cancels it)
        mean = y.mean(axis=(0, 2, 3), keepdims=True)
        var = ((y - mean) ** 2).mean(axis=(0, 2, 3), keepdims=True)
        y = (y - mean) * jax.lax.rsqrt(var + BN_EPS)
        y = y * gamma[None, :, None, None] + beta[None, :, None, None]
        x = jnp.maximum(y, 0.0)
    flat = x.reshape(x.shape[0], -1)
    for (w, b) in params["fc"]:
        flat = jnp.maximum(flat @ w.T + b, 0.0)   # module applies ReLU after BOTH FCs
    return flat


if __name__ == "__main__":
    # DQN(actions=4, shape=[(4,8,3,2),(8,16,3,2),(16,16,3,1)], fc=(16,32))
    shape_cfg = [(4, 8, 3, 2), (8, 16, 3, 2), (16, 16, 3, 1)]
    fc_cfg = (16, 32)
    actions = 4

    key = jax.random.PRNGKey(0)
    key, kx, kp = jax.random.split(key, 3)
    # Batch 16 (vs. 2 previously), per perf review: every GEMM and the output store is
    # now lane-dense (R1=784, conv widths padded to 128-lane blocks, FC head width 128).
    n, cin, hw = 16, 4, 16
    x = jax.random.normal(kx, (n, cin, hw, hw), jnp.float32)   # NCHW
    params = init_params(kp, shape_cfg, fc_cfg, actions)

    ops, geom = prepare_operands(params, n=n, h=hw, w=hw)

    out = jax.block_until_ready(dqn_forward(x, ops, geom))
    ref = jax.block_until_ready(dqn_forward_ref(x, params))

    assert out.shape == (n, actions), out.shape
    # bf16 MXU operands through a 5-matmul / 3-batch-norm chain => ~1e-2-level relative
    # error vs. the pure-f32 reference; tolerance loosened accordingly (was 2e-4 in f32).
    np.testing.assert_allclose(np.asarray(out), np.asarray(ref), rtol=5e-2, atol=5e-2)
    print("KERNEL_OK")
</pallas_src>

<mosaic_0001>
module attributes {stable_mosaic.version = 11 : i64} {
  func.func @dqn_fused_kernel(%arg0: memref<48x896xbf16, #tpu.memory_space<vmem>>, %arg1: memref<8x48xbf16, #tpu.memory_space<vmem>>, %arg2: memref<8x1xf32, #tpu.memory_space<vmem>>, %arg3: memref<8x1xf32, #tpu.memory_space<vmem>>, %arg4: memref<16x72xbf16, #tpu.memory_space<vmem>>, %arg5: memref<896x2304xbf16, #tpu.memory_space<vmem>>, %arg6: memref<16x1xf32, #tpu.memory_space<vmem>>, %arg7: memref<16x1xf32, #tpu.memory_space<vmem>>, %arg8: memref<16x144xbf16, #tpu.memory_space<vmem>>, %arg9: memref<256x1152xbf16, #tpu.memory_space<vmem>>, %arg10: memref<16x1xf32, #tpu.memory_space<vmem>>, %arg11: memref<16x1xf32, #tpu.memory_space<vmem>>, %arg12: memref<32x16xbf16, #tpu.memory_space<vmem>>, %arg13: memref<32x1xf32, #tpu.memory_space<vmem>>, %arg14: memref<4x32xbf16, #tpu.memory_space<vmem>>, %arg15: memref<4x1xf32, #tpu.memory_space<vmem>>, %arg16: memref<4x128xf32, #tpu.memory_space<vmem>>) attributes {dimension_semantics = [], scalar_prefetch = 0 : i64, scratch_operands = 0 : i64, tpu.core_type = #tpu.core_type<tc>} {
    %c0 = arith.constant 0 : index
    %c0_0 = arith.constant 0 : index
    %0 = vector.load %arg1[%c0, %c0_0] : memref<8x48xbf16, #tpu.memory_space<vmem>>, vector<8x48xbf16>
    %c0_1 = arith.constant 0 : index
    %c0_2 = arith.constant 0 : index
    %1 = vector.load %arg0[%c0_1, %c0_2] : memref<48x896xbf16, #tpu.memory_space<vmem>>, vector<48x896xbf16>
    %cst = arith.constant dense<0.000000e+00> : vector<8x896xf32>
    %2 = tpu.matmul %0, %1, %cst {dimension_numbers = #tpu.dot_dimension_numbers<[1], [0], [0], [1], [0, 0, 1, 1], [], []>} : vector<8x48xbf16>, vector<48x896xbf16>, vector<8x896xf32> -> vector<8x896xf32>
    %c0_3 = arith.constant 0 : index
    %c0_4 = arith.constant 0 : index
    %3 = vector.load %arg2[%c0_3, %c0_4] : memref<8x1xf32, #tpu.memory_space<vmem>>, vector<8x1xf32>
    %c0_5 = arith.constant 0 : index
    %c0_6 = arith.constant 0 : index
    %4 = vector.load %arg3[%c0_5, %c0_6] : memref<8x1xf32, #tpu.memory_space<vmem>>, vector<8x1xf32>
    %cst_7 = arith.constant dense<0.000000e+00> : vector<8xf32>
    %5 = vector.multi_reduction <add>, %2, %cst_7 [1] : vector<8x896xf32> to vector<8xf32>
    %6 = vector.shape_cast %5 : vector<8xf32> to vector<8x1xf32>
    %cst_8 = arith.constant 0.00127551018 : f32
    %7 = vector.broadcast %cst_8 : f32 to vector<8x1xf32>
    %8 = arith.mulf %6, %7 : vector<8x1xf32>
    %9 = arith.mulf %2, %2 : vector<8x896xf32>
    %cst_9 = arith.constant dense<0.000000e+00> : vector<8xf32>
    %10 = vector.multi_reduction <add>, %9, %cst_9 [1] : vector<8x896xf32> to vector<8xf32>
    %11 = vector.shape_cast %10 : vector<8xf32> to vector<8x1xf32>
    %cst_10 = arith.constant 0.00127551018 : f32
    %12 = vector.broadcast %cst_10 : f32 to vector<8x1xf32>
    %13 = arith.mulf %11, %12 : vector<8x1xf32>
    %14 = arith.mulf %8, %8 : vector<8x1xf32>
    %15 = arith.subf %13, %14 : vector<8x1xf32>
    %cst_11 = arith.constant 0.000000e+00 : f32
    %16 = vector.broadcast %cst_11 : f32 to vector<8x1xf32>
    %17 = arith.maximumf %15, %16 : vector<8x1xf32>
    %18 = vector.broadcast %8 : vector<8x1xf32> to vector<8x896xf32>
    %19 = arith.subf %2, %18 : vector<8x896xf32>
    %cst_12 = arith.constant 9.99999974E-6 : f32
    %20 = vector.broadcast %cst_12 : f32 to vector<8x1xf32>
    %21 = arith.addf %17, %20 : vector<8x1xf32>
    %22 = math.rsqrt %21 : vector<8x1xf32>
    %23 = vector.broadcast %22 : vector<8x1xf32> to vector<8x896xf32>
    %24 = arith.mulf %19, %23 : vector<8x896xf32>
    %25 = vector.broadcast %3 : vector<8x1xf32> to vector<8x896xf32>
    %26 = arith.mulf %24, %25 : vector<8x896xf32>
    %27 = vector.broadcast %4 : vector<8x1xf32> to vector<8x896xf32>
    %28 = arith.addf %26, %27 : vector<8x896xf32>
    %cst_13 = arith.constant 0.000000e+00 : f32
    %29 = vector.broadcast %cst_13 : f32 to vector<8x896xf32>
    %30 = arith.maximumf %28, %29 : vector<8x896xf32>
    %31 = arith.truncf %30 : vector<8x896xf32> to vector<8x896xbf16>
    %c0_14 = arith.constant 0 : index
    %c0_15 = arith.constant 0 : index
    %32 = vector.load %arg5[%c0_14, %c0_15] : memref<896x2304xbf16, #tpu.memory_space<vmem>>, vector<896x2304xbf16>
    %cst_16 = arith.constant dense<0.000000e+00> : vector<8x2304xf32>
    %33 = tpu.matmul %31, %32, %cst_16 {dimension_numbers = #tpu.dot_dimension_numbers<[1], [0], [0], [1], [0, 0, 1, 1], [], []>} : vector<8x896xbf16>, vector<896x2304xbf16>, vector<8x2304xf32> -> vector<8x2304xf32>
    %34 = vector.extract_strided_slice %33 {offsets = [0, 0], sizes = [8, 256], strides = [1, 1]} : vector<8x2304xf32> to vector<8x256xf32>
    %35 = vector.extract_strided_slice %33 {offsets = [0, 256], sizes = [8, 256], strides = [1, 1]} : vector<8x2304xf32> to vector<8x256xf32>
    %36 = vector.extract_strided_slice %33 {offsets = [0, 512], sizes = [8, 256], strides = [1, 1]} : vector<8x2304xf32> to vector<8x256xf32>
    %37 = vector.extract_strided_slice %33 {offsets = [0, 768], sizes = [8, 256], strides = [1, 1]} : vector<8x2304xf32> to vector<8x256xf32>
    %38 = vector.extract_strided_slice %33 {offsets = [0, 1024], sizes = [8, 256], strides = [1, 1]} : vector<8x2304xf32> to vector<8x256xf32>
    %39 = vector.extract_strided_slice %33 {offsets = [0, 1280], sizes = [8, 256], strides = [1, 1]} : vector<8x2304xf32> to vector<8x256xf32>
    %40 = vector.extract_strided_slice %33 {offsets = [0, 1536], sizes = [8, 256], strides = [1, 1]} : vector<8x2304xf32> to vector<8x256xf32>
    %41 = vector.extract_strided_slice %33 {offsets = [0, 1792], sizes = [8, 256], strides = [1, 1]} : vector<8x2304xf32> to vector<8x256xf32>
    %42 = vector.extract_strided_slice %33 {offsets = [0, 2048], sizes = [8, 256], strides = [1, 1]} : vector<8x2304xf32> to vector<8x256xf32>
    %43 = tpu.concatenate %34, %35, %36, %37, %38, %39, %40, %41, %42 in 0 : vector<8x256xf32>, vector<8x256xf32>, vector<8x256xf32>, vector<8x256xf32>, vector<8x256xf32>, vector<8x256xf32>, vector<8x256xf32>, vector<8x256xf32>, vector<8x256xf32> -> vector<72x256xf32>
    %44 = arith.truncf %43 : vector<72x256xf32> to vector<72x256xbf16>
    %c0_17 = arith.constant 0 : index
    %c0_18 = arith.constant 0 : index
    %45 = vector.load %arg4[%c0_17, %c0_18] : memref<16x72xbf16, #tpu.memory_space<vmem>>, vector<16x72xbf16>
    %cst_19 = arith.constant dense<0.000000e+00> : vector<16x256xf32>
    %46 = tpu.matmul %45, %44, %cst_19 {dimension_numbers = #tpu.dot_dimension_numbers<[1], [0], [0], [1], [0, 0, 1, 1], [], []>} : vector<16x72xbf16>, vector<72x256xbf16>, vector<16x256xf32> -> vector<16x256xf32>
    %c0_20 = arith.constant 0 : index
    %c0_21 = arith.constant 0 : index
    %47 = vector.load %arg6[%c0_20, %c0_21] : memref<16x1xf32, #tpu.memory_space<vmem>>, vector<16x1xf32>
    %c0_22 = arith.constant 0 : index
    %c0_23 = arith.constant 0 : index
    %48 = vector.load %arg7[%c0_22, %c0_23] : memref<16x1xf32, #tpu.memory_space<vmem>>, vector<16x1xf32>
    %cst_24 = arith.constant dense<0.000000e+00> : vector<16xf32>
    %49 = vector.multi_reduction <add>, %46, %cst_24 [1] : vector<16x256xf32> to vector<16xf32>
    %50 = vector.shape_cast %49 : vector<16xf32> to vector<16x1xf32>
    %cst_25 = arith.constant 0.0069444445 : f32
    %51 = vector.broadcast %cst_25 : f32 to vector<16x1xf32>
    %52 = arith.mulf %50, %51 : vector<16x1xf32>
    %53 = arith.mulf %46, %46 : vector<16x256xf32>
    %cst_26 = arith.constant dense<0.000000e+00> : vector<16xf32>
    %54 = vector.multi_reduction <add>, %53, %cst_26 [1] : vector<16x256xf32> to vector<16xf32>
    %55 = vector.shape_cast %54 : vector<16xf32> to vector<16x1xf32>
    %cst_27 = arith.constant 0.0069444445 : f32
    %56 = vector.broadcast %cst_27 : f32 to vector<16x1xf32>
    %57 = arith.mulf %55, %56 : vector<16x1xf32>
    %58 = arith.mulf %52, %52 : vector<16x1xf32>
    %59 = arith.subf %57, %58 : vector<16x1xf32>
    %cst_28 = arith.constant 0.000000e+00 : f32
    %60 = vector.broadcast %cst_28 : f32 to vector<16x1xf32>
    %61 = arith.maximumf %59, %60 : vector<16x1xf32>
    %62 = vector.broadcast %52 : vector<16x1xf32> to vector<16x256xf32>
    %63 = arith.subf %46, %62 : vector<16x256xf32>
    %cst_29 = arith.constant 9.99999974E-6 : f32
    %64 = vector.broadcast %cst_29 : f32 to vector<16x1xf32>
    %65 = arith.addf %61, %64 : vector<16x1xf32>
    %66 = math.rsqrt %65 : vector<16x1xf32>
    %67 = vector.broadcast %66 : vector<16x1xf32> to vector<16x256xf32>
    %68 = arith.mulf %63, %67 : vector<16x256xf32>
    %69 = vector.broadcast %47 : vector<16x1xf32> to vector<16x256xf32>
    %70 = arith.mulf %68, %69 : vector<16x256xf32>
    %71 = vector.broadcast %48 : vector<16x1xf32> to vector<16x256xf32>
    %72 = arith.addf %70, %71 : vector<16x256xf32>
    %cst_30 = arith.constant 0.000000e+00 : f32
    %73 = vector.broadcast %cst_30 : f32 to vector<16x256xf32>
    %74 = arith.maximumf %72, %73 : vector<16x256xf32>
    %75 = arith.truncf %74 : vector<16x256xf32> to vector<16x256xbf16>
    %c0_31 = arith.constant 0 : index
    %c0_32 = arith.constant 0 : index
    %76 = vector.load %arg9[%c0_31, %c0_32] : memref<256x1152xbf16, #tpu.memory_space<vmem>>, vector<256x1152xbf16>
    %cst_33 = arith.constant dense<0.000000e+00> : vector<16x1152xf32>
    %77 = tpu.matmul %75, %76, %cst_33 {dimension_numbers = #tpu.dot_dimension_numbers<[1], [0], [0], [1], [0, 0, 1, 1], [], []>} : vector<16x256xbf16>, vector<256x1152xbf16>, vector<16x1152xf32> -> vector<16x1152xf32>
    %78 = vector.extract_strided_slice %77 {offsets = [0, 0], sizes = [16, 128], strides = [1, 1]} : vector<16x1152xf32> to vector<16x128xf32>
    %79 = vector.extract_strided_slice %77 {offsets = [0, 128], sizes = [16, 128], strides = [1, 1]} : vector<16x1152xf32> to vector<16x128xf32>
    %80 = vector.extract_strided_slice %77 {offsets = [0, 256], sizes = [16, 128], strides = [1, 1]} : vector<16x1152xf32> to vector<16x128xf32>
    %81 = vector.extract_strided_slice %77 {offsets = [0, 384], sizes = [16, 128], strides = [1, 1]} : vector<16x1152xf32> to vector<16x128xf32>
    %82 = vector.extract_strided_slice %77 {offsets = [0, 512], sizes = [16, 128], strides = [1, 1]} : vector<16x1152xf32> to vector<16x128xf32>
    %83 = vector.extract_strided_slice %77 {offsets = [0, 640], sizes = [16, 128], strides = [1, 1]} : vector<16x1152xf32> to vector<16x128xf32>
    %84 = vector.extract_strided_slice %77 {offsets = [0, 768], sizes = [16, 128], strides = [1, 1]} : vector<16x1152xf32> to vector<16x128xf32>
    %85 = vector.extract_strided_slice %77 {offsets = [0, 896], sizes = [16, 128], strides = [1, 1]} : vector<16x1152xf32> to vector<16x128xf32>
    %86 = vector.extract_strided_slice %77 {offsets = [0, 1024], sizes = [16, 128], strides = [1, 1]} : vector<16x1152xf32> to vector<16x128xf32>
    %87 = tpu.concatenate %78, %79, %80, %81, %82, %83, %84, %85, %86 in 0 : vector<16x128xf32>, vector<16x128xf32>, vector<16x128xf32>, vector<16x128xf32>, vector<16x128xf32>, vector<16x128xf32>, vector<16x128xf32>, vector<16x128xf32>, vector<16x128xf32> -> vector<144x128xf32>
    %88 = arith.truncf %87 : vector<144x128xf32> to vector<144x128xbf16>
    %c0_34 = arith.constant 0 : index
    %c0_35 = arith.constant 0 : index
    %89 = vector.load %arg8[%c0_34, %c0_35] : memref<16x144xbf16, #tpu.memory_space<vmem>>, vector<16x144xbf16>
    %cst_36 = arith.constant dense<0.000000e+00> : vector<16x128xf32>
    %90 = tpu.matmul %89, %88, %cst_36 {dimension_numbers = #tpu.dot_dimension_numbers<[1], [0], [0], [1], [0, 0, 1, 1], [], []>} : vector<16x144xbf16>, vector<144x128xbf16>, vector<16x128xf32> -> vector<16x128xf32>
    %c0_37 = arith.constant 0 : index
    %c0_38 = arith.constant 0 : index
    %91 = vector.load %arg10[%c0_37, %c0_38] : memref<16x1xf32, #tpu.memory_space<vmem>>, vector<16x1xf32>
    %c0_39 = arith.constant 0 : index
    %c0_40 = arith.constant 0 : index
    %92 = vector.load %arg11[%c0_39, %c0_40] : memref<16x1xf32, #tpu.memory_space<vmem>>, vector<16x1xf32>
    %cst_41 = arith.constant dense<0.000000e+00> : vector<16xf32>
    %93 = vector.multi_reduction <add>, %90, %cst_41 [1] : vector<16x128xf32> to vector<16xf32>
    %94 = vector.shape_cast %93 : vector<16xf32> to vector<16x1xf32>
    %cst_42 = arith.constant 6.250000e-02 : f32
    %95 = vector.broadcast %cst_42 : f32 to vector<16x1xf32>
    %96 = arith.mulf %94, %95 : vector<16x1xf32>
    %97 = arith.mulf %90, %90 : vector<16x128xf32>
    %cst_43 = arith.constant dense<0.000000e+00> : vector<16xf32>
    %98 = vector.multi_reduction <add>, %97, %cst_43 [1] : vector<16x128xf32> to vector<16xf32>
    %99 = vector.shape_cast %98 : vector<16xf32> to vector<16x1xf32>
    %cst_44 = arith.constant 6.250000e-02 : f32
    %100 = vector.broadcast %cst_44 : f32 to vector<16x1xf32>
    %101 = arith.mulf %99, %100 : vector<16x1xf32>
    %102 = arith.mulf %96, %96 : vector<16x1xf32>
    %103 = arith.subf %101, %102 : vector<16x1xf32>
    %cst_45 = arith.constant 0.000000e+00 : f32
    %104 = vector.broadcast %cst_45 : f32 to vector<16x1xf32>
    %105 = arith.maximumf %103, %104 : vector<16x1xf32>
    %106 = vector.broadcast %96 : vector<16x1xf32> to vector<16x128xf32>
    %107 = arith.subf %90, %106 : vector<16x128xf32>
    %cst_46 = arith.constant 9.99999974E-6 : f32
    %108 = vector.broadcast %cst_46 : f32 to vector<16x1xf32>
    %109 = arith.addf %105, %108 : vector<16x1xf32>
    %110 = math.rsqrt %109 : vector<16x1xf32>
    %111 = vector.broadcast %110 : vector<16x1xf32> to vector<16x128xf32>
    %112 = arith.mulf %107, %111 : vector<16x128xf32>
    %113 = vector.broadcast %91 : vector<16x1xf32> to vector<16x128xf32>
    %114 = arith.mulf %112, %113 : vector<16x128xf32>
    %115 = vector.broadcast %92 : vector<16x1xf32> to vector<16x128xf32>
    %116 = arith.addf %114, %115 : vector<16x128xf32>
    %cst_47 = arith.constant 0.000000e+00 : f32
    %117 = vector.broadcast %cst_47 : f32 to vector<16x128xf32>
    %118 = arith.maximumf %116, %117 : vector<16x128xf32>
    %119 = arith.truncf %118 : vector<16x128xf32> to vector<16x128xbf16>
    %c0_48 = arith.constant 0 : index
    %c0_49 = arith.constant 0 : index
    %120 = vector.load %arg12[%c0_48, %c0_49] : memref<32x16xbf16, #tpu.memory_space<vmem>>, vector<32x16xbf16>
    %cst_50 = arith.constant dense<0.000000e+00> : vector<32x128xf32>
    %121 = tpu.matmul %120, %119, %cst_50 {dimension_numbers = #tpu.dot_dimension_numbers<[1], [0], [0], [1], [0, 0, 1, 1], [], []>} : vector<32x16xbf16>, vector<16x128xbf16>, vector<32x128xf32> -> vector<32x128xf32>
    %c0_51 = arith.constant 0 : index
    %c0_52 = arith.constant 0 : index
    %122 = vector.load %arg13[%c0_51, %c0_52] : memref<32x1xf32, #tpu.memory_space<vmem>>, vector<32x1xf32>
    %123 = vector.broadcast %122 : vector<32x1xf32> to vector<32x128xf32>
    %124 = arith.addf %121, %123 : vector<32x128xf32>
    %cst_53 = arith.constant 0.000000e+00 : f32
    %125 = vector.broadcast %cst_53 : f32 to vector<32x128xf32>
    %126 = arith.maximumf %124, %125 : vector<32x128xf32>
    %c0_54 = arith.constant 0 : index
    %c0_55 = arith.constant 0 : index
    %127 = vector.load %arg14[%c0_54, %c0_55] : memref<4x32xbf16, #tpu.memory_space<vmem>>, vector<4x32xbf16>
    %128 = arith.truncf %126 : vector<32x128xf32> to vector<32x128xbf16>
    %cst_56 = arith.constant dense<0.000000e+00> : vector<4x128xf32>
    %129 = tpu.matmul %127, %128, %cst_56 {dimension_numbers = #tpu.dot_dimension_numbers<[1], [0], [0], [1], [0, 0, 1, 1], [], []>} : vector<4x32xbf16>, vector<32x128xbf16>, vector<4x128xf32> -> vector<4x128xf32>
    %c0_57 = arith.constant 0 : index
    %c0_58 = arith.constant 0 : index
    %130 = vector.load %arg15[%c0_57, %c0_58] : memref<4x1xf32, #tpu.memory_space<vmem>>, vector<4x1xf32>
    %131 = vector.broadcast %130 : vector<4x1xf32> to vector<4x128xf32>
    %132 = arith.addf %129, %131 : vector<4x128xf32>
    %cst_59 = arith.constant 0.000000e+00 : f32
    %133 = vector.broadcast %cst_59 : f32 to vector<4x128xf32>
    %134 = arith.maximumf %132, %133 : vector<4x128xf32>
    %c0_60 = arith.constant 0 : index
    %c0_61 = arith.constant 0 : index
    %135 = vector.load %arg16[%c0_60, %c0_61] : memref<4x128xf32, #tpu.memory_space<vmem>>, vector<4x128xf32>
    tpu.vector_store %arg16[%c0_60, %c0_61], %134 {strides = array<i32>} : memref<4x128xf32, #tpu.memory_space<vmem>>, vector<4x128xf32>,
    return
  }
}

</mosaic_0001>

<llo_original>
// kernel: tpu_custom_call.1
$region0: #{tpu_custom_call.1}
  #allocation0 [shape = 'u32[]', space=smem, size = 0x4, offset = 0x4, fixed_abs, tag = 'smem constant byte address 0x4 - core index']
  #allocation1 [shape = 'u32[144,128]{1,0:T(1,128)}', space=vmem, size = 0x12000, scoped, tag = 'internal scratch']
  %s0 = inlined_call_operand.hbm [shape: bf16[48,896], index: 0, kind: input, shape index: {}]
  %s1 = inlined_call_operand.hbm [shape: bf16[8,48], index: 1, kind: input, shape index: {}]
  %s2 = inlined_call_operand.vmem [shape: f32[8,1], index: 2, kind: input, shape index: {}]
  %s3 = inlined_call_operand.vmem [shape: f32[8,1], index: 3, kind: input, shape index: {}]
  %s4 = inlined_call_operand.hbm [shape: bf16[16,72], index: 4, kind: input, shape index: {}]
  %s5 = inlined_call_operand.hbm [shape: bf16[896,2304], index: 5, kind: input, shape index: {}]
  %s6 = inlined_call_operand.vmem [shape: f32[16,1], index: 6, kind: input, shape index: {}]
  %s7 = inlined_call_operand.vmem [shape: f32[16,1], index: 7, kind: input, shape index: {}]
  %s8 = inlined_call_operand.hbm [shape: bf16[16,144], index: 8, kind: input, shape index: {}]
  %s9 = inlined_call_operand.hbm [shape: bf16[256,1152], index: 9, kind: input, shape index: {}]
  %s10 = inlined_call_operand.vmem [shape: f32[16,1], index: 10, kind: input, shape index: {}]
  %s11 = inlined_call_operand.vmem [shape: f32[16,1], index: 11, kind: input, shape index: {}]
  %s12 = inlined_call_operand.vmem [shape: bf16[32,16], index: 12, kind: input, shape index: {}]
  %s13 = inlined_call_operand.vmem [shape: f32[32,1], index: 13, kind: input, shape index: {}]
  %s14 = inlined_call_operand.hbm [shape: bf16[4,32], index: 14, kind: input, shape index: {}]
  %s15 = inlined_call_operand.vmem [shape: f32[4,1], index: 15, kind: input, shape index: {}]
  %s16 = inlined_call_operand.hbm [shape: f32[4,128], index: 16, kind: output, shape index: {}]
  %s17 = sld [smem:[#allocation0]]
  $region102: #{tpu_custom_call.1} parent=0
    _
  %s19 = ssub.s32 1, %s17
  %s20 = scalar_select 0, %s19, %s17
  $region1: #{tpu_custom_call.1} parent=0
    #allocation2 [shape = 'u8[86016]{0}', space=vmem, size = 0x15000, scoped, tag = 'input window, operand 0, single buffered']
    #allocation3 [shape = 's32[1]{0}', space=sflag, size = 0x4, scoped, tag = 'scoped memory for tpu_custom_call.1']
    #allocation4 [shape = 's32[1]{0}', space=sflag, size = 0x4, scoped, tag = 'scoped memory for tpu_custom_call.1']
    #allocation5 [shape = 'u8[2048]{0}', space=vmem, size = 0x800, scoped, tag = 'input window, operand 1, single buffered']
    #allocation6 [shape = 's32[1]{0}', space=sflag, size = 0x4, scoped, tag = 'scoped memory for tpu_custom_call.1']
    #allocation7 [shape = 'u8[4096]{0}', space=vmem, size = 0x1000, scoped, tag = 'input window, operand 4, single buffered']
    #allocation8 [shape = 'u8[4128768]{0}', space=vmem, size = 0x3f0000, scoped, tag = 'input window, operand 5, single buffered']
    #allocation9 [shape = 's32[1]{0}', space=sflag, size = 0x4, scoped, tag = 'scoped memory for tpu_custom_call.1']
    #allocation10 [shape = 'u8[8192]{0}', space=vmem, size = 0x2000, scoped, tag = 'input window, operand 8, single buffered']
    #allocation11 [shape = 'u8[589824]{0}', space=vmem, size = 0x90000, scoped, tag = 'input window, operand 9, single buffered']
    #allocation12 [shape = 's32[1]{0}', space=sflag, size = 0x4, scoped, tag = 'scoped memory for tpu_custom_call.1']
    #allocation13 [shape = 'u8[1024]{0}', space=vmem, size = 0x400, scoped, tag = 'input window, operand 14, single buffered']
    #allocation14 [shape = 'u8[2048]{0}', space=vmem, size = 0x800, scoped, tag = 'output window, operand 0, single buffered']
    %21 = vsyncpa [#allocation3], 0
    %22 = vsyncpa [#allocation6], 0
    %23 = vsyncpa [#allocation9], 0
    %24 = vsyncpa [#allocation12], 0
    %25 = vsyncpa [#allocation4], 0
    // Predicated region
    $region2: #{tpu_custom_call.1} parent=1 // pred_check
      _
    $region3: #{tpu_custom_call.1} parent=1 // pred_check_branch
      %27 = sbr.rel (0) target = $region5
    $region4: #{tpu_custom_call.1} parent=1 // pred_region
      %s29 = ssub.s32 2688, 2688
      %30 = vsyncadd [#allocation3], %s29
      %s31 = sshll.u32 [#allocation2], 4
      %s32 = int_to_ptr.vmem [resolvable:$true] %s31
      %37 = dma.hbm_to_vmem [thread:$0]  %s0, 2688, %s32, [#allocation3], 448, 448, 28
    $region5: #{tpu_custom_call.1} parent=1 // pred_fallthru
      _
    // Predicated region
    $region6: #{tpu_custom_call.1} parent=1 // pred_check
      _
    $region7: #{tpu_custom_call.1} parent=1 // pred_check_branch
      %39 = sbr.rel (0) target = $region9
    $region8: #{tpu_custom_call.1} parent=1 // pred_region
      %s41 = ssub.s32 64, 64
      %42 = vsyncadd [#allocation6], %s41
      %s44 = sshll.u32 [#allocation5], 4
      %s45 = int_to_ptr.vmem [resolvable:$true] %s44
      %47 = dma.hbm_to_vmem [thread:$0]  %s1, 64, %s45, [#allocation6]
    $region9: #{tpu_custom_call.1} parent=1 // pred_fallthru
      _
    // Predicated region
    $region10: #{tpu_custom_call.1} parent=1 // pred_check
      _
    $region11: #{tpu_custom_call.1} parent=1 // pred_check_branch
      %49 = sbr.rel (0) target = $region13
    $region12: #{tpu_custom_call.1} parent=1 // pred_region
      _
    $region13: #{tpu_custom_call.1} parent=1 // pred_fallthru
      _
    // Predicated region
    $region14: #{tpu_custom_call.1} parent=1 // pred_check
      _
    $region15: #{tpu_custom_call.1} parent=1 // pred_check_branch
      %51 = sbr.rel (0) target = $region17
    $region16: #{tpu_custom_call.1} parent=1 // pred_region
      _
    $region17: #{tpu_custom_call.1} parent=1 // pred_fallthru
      _
    // Predicated region
    $region18: #{tpu_custom_call.1} parent=1 // pred_check
      _
    $region19: #{tpu_custom_call.1} parent=1 // pred_check_branch
      %53 = sbr.rel (0) target = $region21
    $region20: #{tpu_custom_call.1} parent=1 // pred_region
      %s55 = ssub.s32 128, 128
      %56 = vsyncadd [#allocation6], %s55
      %s57 = sshll.u32 [#allocation7], 4
      %s58 = int_to_ptr.vmem [resolvable:$true] %s57
      %63 = dma.hbm_to_vmem [thread:$0]  %s4, 128, %s58, [#allocation6], 64, 64, 4
    $region21: #{tpu_custom_call.1} parent=1 // pred_fallthru
      _
    // Predicated region
    $region22: #{tpu_custom_call.1} parent=1 // pred_check
      _
    $region23: #{tpu_custom_call.1} parent=1 // pred_check_branch
      %65 = sbr.rel (0) target = $region25
    $region24: #{tpu_custom_call.1} parent=1 // pred_region
      %s67 = ssub.s32 129024, 129024
      %68 = vsyncadd [#allocation9], %s67
      %s69 = sshll.u32 [#allocation8], 4
      %s70 = int_to_ptr.vmem [resolvable:$true] %s69
      %75 = dma.hbm_to_vmem [thread:$0]  %s5, 129024, %s70, [#allocation9], 1152, 1152, 72
    $region25: #{tpu_custom_call.1} parent=1 // pred_fallthru
      _
    // Predicated region
    $region26: #{tpu_custom_call.1} parent=1 // pred_check
      _
    $region27: #{tpu_custom_call.1} parent=1 // pred_check_branch
      %77 = sbr.rel (0) target = $region29
    $region28: #{tpu_custom_call.1} parent=1 // pred_region
      _
    $region29: #{tpu_custom_call.1} parent=1 // pred_fallthru
      _
    // Predicated region
    $region30: #{tpu_custom_call.1} parent=1 // pred_check
      _
    $region31: #{tpu_custom_call.1} parent=1 // pred_check_branch
      %79 = sbr.rel (0) target = $region33
    $region32: #{tpu_custom_call.1} parent=1 // pred_region
      _
    $region33: #{tpu_custom_call.1} parent=1 // pred_fallthru
      _
    // Predicated region
    $region34: #{tpu_custom_call.1} parent=1 // pred_check
      _
    $region35: #{tpu_custom_call.1} parent=1 // pred_check_branch
      %81 = sbr.rel (0) target = $region37
    $region36: #{tpu_custom_call.1} parent=1 // pred_region
      %s83 = ssub.s32 256, 256
      %84 = vsyncadd [#allocation9], %s83
      %s85 = sshll.u32 [#allocation10], 4
      %s86 = int_to_ptr.vmem [resolvable:$true] %s85
      %91 = dma.hbm_to_vmem [thread:$0]  %s8, 256, %s86, [#allocation9], 128, 128, 8
    $region37: #{tpu_custom_call.1} parent=1 // pred_fallthru
      _
    // Predicated region
    $region38: #{tpu_custom_call.1} parent=1 // pred_check
      _
    $region39: #{tpu_custom_call.1} parent=1 // pred_check_branch
      %93 = sbr.rel (0) target = $region41
    $region40: #{tpu_custom_call.1} parent=1 // pred_region
      %s95 = ssub.s32 18432, 18432
      %96 = vsyncadd [#allocation12], %s95
      %s97 = sshll.u32 [#allocation11], 4
      %s98 = int_to_ptr.vmem [resolvable:$true] %s97
      %103 = dma.hbm_to_vmem [thread:$0]  %s9, 18432, %s98, [#allocation12], 576, 576, 36
    $region41: #{tpu_custom_call.1} parent=1 // pred_fallthru
      _
    // Predicated region
    $region42: #{tpu_custom_call.1} parent=1 // pred_check
      _
    $region43: #{tpu_custom_call.1} parent=1 // pred_check_branch
      %105 = sbr.rel (0) target = $region45
    $region44: #{tpu_custom_call.1} parent=1 // pred_region
      _
    $region45: #{tpu_custom_call.1} parent=1 // pred_fallthru
      _
    // Predicated region
    $region46: #{tpu_custom_call.1} parent=1 // pred_check
      _
    $region47: #{tpu_custom_call.1} parent=1 // pred_check_branch
      %107 = sbr.rel (0) target = $region49
    $region48: #{tpu_custom_call.1} parent=1 // pred_region
      _
    $region49: #{tpu_custom_call.1} parent=1 // pred_fallthru
      _
    // Predicated region
    $region50: #{tpu_custom_call.1} parent=1 // pred_check
      _
    $region51: #{tpu_custom_call.1} parent=1 // pred_check_branch
      %109 = sbr.rel (0) target = $region53
    $region52: #{tpu_custom_call.1} parent=1 // pred_region
      _
    $region53: #{tpu_custom_call.1} parent=1 // pred_fallthru
      _
    // Predicated region
    $region54: #{tpu_custom_call.1} parent=1 // pred_check
      _
    $region55: #{tpu_custom_call.1} parent=1 // pred_check_branch
      %111 = sbr.rel (0) target = $region57
    $region56: #{tpu_custom_call.1} parent=1 // pred_region
      _
    $region57: #{tpu_custom_call.1} parent=1 // pred_fallthru
      _
    // Predicated region
    $region58: #{tpu_custom_call.1} parent=1 // pred_check
      _
    $region59: #{tpu_custom_call.1} parent=1 // pred_check_branch
      %113 = sbr.rel (0) target = $region61
    $region60: #{tpu_custom_call.1} parent=1 // pred_region
      %s115 = ssub.s32 32, 32
      %116 = vsyncadd [#allocation12], %s115
      %s118 = sshll.u32 [#allocation13], 4
      %s119 = int_to_ptr.vmem [resolvable:$true] %s118
      %121 = dma.hbm_to_vmem [thread:$0]  %s14, 32, %s119, [#allocation12]
    $region61: #{tpu_custom_call.1} parent=1 // pred_fallthru
      _
    // Predicated region
    $region62: #{tpu_custom_call.1} parent=1 // pred_check
      _
    $region63: #{tpu_custom_call.1} parent=1 // pred_check_branch
      %123 = sbr.rel (0) target = $region65
    $region64: #{tpu_custom_call.1} parent=1 // pred_region
      _
    $region65: #{tpu_custom_call.1} parent=1 // pred_fallthru
      _
    // Predicated region
    $region66: #{tpu_custom_call.1} parent=1 // pred_check
      _
    $region67: #{tpu_custom_call.1} parent=1 // pred_check_branch
      %125 = sbr.rel (0) target = $region69
    $region68: #{tpu_custom_call.1} parent=1 // pred_region
      %126 = dma.done [#allocation3], 2688
    $region69: #{tpu_custom_call.1} parent=1 // pred_fallthru
      _
    // Predicated region
    $region70: #{tpu_custom_call.1} parent=1 // pred_check
      _
    $region71: #{tpu_custom_call.1} parent=1 // pred_check_branch
      %128 = sbr.rel (0) target = $region73
    $region72: #{tpu_custom_call.1} parent=1 // pred_region
      %129 = dma.done [#allocation6], 64
    $region73: #{tpu_custom_call.1} parent=1 // pred_fallthru
      _
    // Predicated region
    $region74: #{tpu_custom_call.1} parent=1 // pred_check
      _
    $region75: #{tpu_custom_call.1} parent=1 // pred_check_branch
      %131 = sbr.rel (0) target = $region77
    $region76: #{tpu_custom_call.1} parent=1 // pred_region
      %132 = dma.done [#allocation6], 128
    $region77: #{tpu_custom_call.1} parent=1 // pred_fallthru
      _
    // Predicated region
    $region78: #{tpu_custom_call.1} parent=1 // pred_check
      _
    $region79: #{tpu_custom_call.1} parent=1 // pred_check_branch
      %134 = sbr.rel (0) target = $region81
    $region80: #{tpu_custom_call.1} parent=1 // pred_region
      %135 = dma.done [#allocation9], 129024
    $region81: #{tpu_custom_call.1} parent=1 // pred_fallthru
      _
    // Predicated region
    $region82: #{tpu_custom_call.1} parent=1 // pred_check
      _
    $region83: #{tpu_custom_call.1} parent=1 // pred_check_branch
      %137 = sbr.rel (0) target = $region85
    $region84: #{tpu_custom_call.1} parent=1 // pred_region
      %138 = dma.done [#allocation9], 256
    $region85: #{tpu_custom_call.1} parent=1 // pred_fallthru
      _
    // Predicated region
    $region86: #{tpu_custom_call.1} parent=1 // pred_check
      _
    $region87: #{tpu_custom_call.1} parent=1 // pred_check_branch
      %140 = sbr.rel (0) target = $region89
    $region88: #{tpu_custom_call.1} parent=1 // pred_region
      %141 = dma.done [#allocation12], 18432
    $region89: #{tpu_custom_call.1} parent=1 // pred_fallthru
      _
    // Predicated region
    $region90: #{tpu_custom_call.1} parent=1 // pred_check
      _
    $region91: #{tpu_custom_call.1} parent=1 // pred_check_branch
      %143 = sbr.rel (0) target = $region93
    $region92: #{tpu_custom_call.1} parent=1 // pred_region
      %144 = dma.done [#allocation12], 32
    $region93: #{tpu_custom_call.1} parent=1 // pred_fallthru
      _
    %v146 = vld [vmem:[#allocation5] sm:$0xf]
    %v147 = vld [vmem:[#allocation2] sm:$0xff]
    %v148 = vld [vmem:[#allocation2 + $0x8] sm:$0xff]
    %v149 = vld [vmem:[#allocation2 + $0x10] sm:$0xff]
    %v150 = vld [vmem:[#allocation2 + $0x18] sm:$0xf]
    %v151 = vld [vmem:[#allocation2 + $0x1c] sm:$0xff]
    %v152 = vld [vmem:[#allocation2 + $0x24] sm:$0xff]
    %v153 = vld [vmem:[#allocation2 + $0x2c] sm:$0xff]
    %v154 = vld [vmem:[#allocation2 + $0x34] sm:$0xf]
    %v155 = vld [vmem:[#allocation2 + $0x38] sm:$0xff]
    %v156 = vld [vmem:[#allocation2 + $0x40] sm:$0xff]
    %v157 = vld [vmem:[#allocation2 + $0x48] sm:$0xff]
    %v158 = vld [vmem:[#allocation2 + $0x50] sm:$0xf]
    %v159 = vld [vmem:[#allocation2 + $0x54] sm:$0xff]
    %v160 = vld [vmem:[#allocation2 + $0x5c] sm:$0xff]
    %v161 = vld [vmem:[#allocation2 + $0x64] sm:$0xff]
    %v162 = vld [vmem:[#allocation2 + $0x6c] sm:$0xf]
    %v163 = vld [vmem:[#allocation2 + $0x70] sm:$0xff]
    %v164 = vld [vmem:[#allocation2 + $0x78] sm:$0xff]
    %v165 = vld [vmem:[#allocation2 + $0x80] sm:$0xff]
    %v166 = vld [vmem:[#allocation2 + $0x88] sm:$0xf]
    %v167 = vld [vmem:[#allocation2 + $0x8c] sm:$0xff]
    %v168 = vld [vmem:[#allocation2 + $0x94] sm:$0xff]
    %v169 = vld [vmem:[#allocation2 + $0x9c] sm:$0xff]
    %v170 = vld [vmem:[#allocation2 + $0xa4] sm:$0xf]
    %v195 = vunpack.c.l.b16 %v147
    %v196 = vunpack.c.h.b16 %v147
    %v197 = vunpack.c.l.b16 %v148
    %v198 = vunpack.c.h.b16 %v148
    %v199 = vunpack.c.l.b16 %v149
    %v200 = vunpack.c.h.b16 %v149
    %v201 = vunpack.c.l.b16 %v150
    %v202 = vunpack.c.l.b16 %v151
    %v203 = vunpack.c.h.b16 %v151
    %v204 = vunpack.c.l.b16 %v152
    %v205 = vunpack.c.h.b16 %v152
    %v206 = vunpack.c.l.b16 %v153
    %v207 = vunpack.c.h.b16 %v153
    %v208 = vunpack.c.l.b16 %v154
    %v209 = vunpack.c.l.b16 %v155
    %v210 = vunpack.c.h.b16 %v155
    %v211 = vunpack.c.l.b16 %v156
    %v212 = vunpack.c.h.b16 %v156
    %v213 = vunpack.c.l.b16 %v157
    %v214 = vunpack.c.h.b16 %v157
    %v215 = vunpack.c.l.b16 %v158
    %v216 = vunpack.c.l.b16 %v159
    %v217 = vunpack.c.h.b16 %v159
    %v218 = vunpack.c.l.b16 %v160
    %v219 = vunpack.c.h.b16 %v160
    %v220 = vunpack.c.l.b16 %v161
    %v221 = vunpack.c.h.b16 %v161
    %v222 = vunpack.c.l.b16 %v162
    %v223 = vunpack.c.l.b16 %v163
    %v224 = vunpack.c.h.b16 %v163
    %v225 = vunpack.c.l.b16 %v164
    %v226 = vunpack.c.h.b16 %v164
    %v227 = vunpack.c.l.b16 %v165
    %v228 = vunpack.c.h.b16 %v165
    %v229 = vunpack.c.l.b16 %v166
    %v230 = vunpack.c.l.b16 %v167
    %v231 = vunpack.c.h.b16 %v167
    %v232 = vunpack.c.l.b16 %v168
    %v233 = vunpack.c.h.b16 %v168
    %v234 = vunpack.c.l.b16 %v169
    %v235 = vunpack.c.h.b16 %v169
    %v236 = vunpack.c.l.b16 %v170
    %v237 = vpack.c.b16 %v202, %v195
    %v238 = vpack.c.b16 %v203, %v196
    %v239 = vpack.c.b16 %v204, %v197
    %v240 = vpack.c.b16 %v205, %v198
    %v241 = vpack.c.b16 %v206, %v199
    %v242 = vpack.c.b16 %v207, %v200
    %v243 = vpack.c.b16 %v208, %v201
    %v244 = vpack.c.b16 %v216, %v209
    %v245 = vpack.c.b16 %v217, %v210
    %v246 = vpack.c.b16 %v218, %v211
    %v247 = vpack.c.b16 %v219, %v212
    %v248 = vpack.c.b16 %v220, %v213
    %v249 = vpack.c.b16 %v221, %v214
    %v250 = vpack.c.b16 %v222, %v215
    %v251 = vpack.c.b16 %v230, %v223
    %v252 = vpack.c.b16 %v231, %v224
    %v253 = vpack.c.b16 %v232, %v225
    %v254 = vpack.c.b16 %v233, %v226
    %v255 = vpack.c.b16 %v234, %v227
    %v256 = vpack.c.b16 %v235, %v228
    %v257 = vpack.c.b16 %v236, %v229
    %vm279 = vcmask 392192
    %v281 = vsel %vm279, %v146, 0
    %283 = vmatprep.subr.bf16.mxu0 %v238
    %284 = vmatpush1.bf16.msra.mxu0 %v237
    %285 = vmatprep.subr.bf16.mxu0 %v245
    %286 = vmatpush1.bf16.msra.mxu0 %v244
    %287 = vmatprep.subr.bf16.mxu0 %v252
    %288 = vmatpush1.bf16.msra.mxu0 %v251
    %289 = vmatprep.subr.bf16.mxu0 0
    %290 = vmatpush1.bf16.msra.mxu0 0
    %291 = vmatprep.subr.bf16.mxu0 0
    %292 = vmatpush1.bf16.msra.mxu0 0
    %293 = vmatprep.subr.bf16.mxu0 0
    %294 = vmatpush1.bf16.msra.mxu0 0
    %295 = vmatprep.subr.bf16.mxu0 0
    %296 = vmatpush1.bf16.msra.mxu0 0
    %297 = vmatprep.subr.bf16.mxu0 0
    %298 = vmatpush1.bf16.msra.mxu0 0
    %299 = vmatprep.subr.bf16.mxu0 0
    %300 = vmatpush1.bf16.msra.mxu0 0
    %301 = vmatprep.subr.bf16.mxu0 0
    %302 = vmatpush1.bf16.msra.mxu0 0
    %303 = vmatprep.subr.bf16.mxu0 0
    %304 = vmatpush1.bf16.msra.mxu0 0
    %305 = vmatprep.subr.bf16.mxu0 0
    %306 = vmatpush1.bf16.msra.mxu0 0
    %307 = vmatprep.subr.bf16.mxu0 0
    %308 = vmatpush1.bf16.msra.mxu0 0
    %309 = vmatprep.subr.bf16.mxu0 0
    %310 = vmatpush1.bf16.msra.mxu0 0
    %311 = vmatprep.subr.bf16.mxu0 0
    %312 = vmatpush1.bf16.msra.mxu0 0
    %313 = vmatprep.subr.bf16.mxu0 0
    %314 = vmatpush1.bf16.msra.mxu0 0
    %315 = vmatprep.mubr.bf16.mxu0 0
    %316 = vmatmul.mubr.bf16.gmra.mrb[0].mxu0 %v281
    %v317 = vpop.f32.mrb[0].mxu0
    %v318 = vadd.f32 0.0, %v317
    %v319 = vpop.f32.mrb[0].mxu0
    %v320 = vadd.f32 0.0, %v319
    %v321 = vpop.f32.mrb[0].mxu0
    %v322 = vpop.f32.mrb[0].mxu0
    %323 = vdwg.mxu0
    %324 = vmatprep.subr.bf16.mxu0 %v240
    %325 = vmatpush1.bf16.msra.mxu0 %v239
    %326 = vmatprep.subr.bf16.mxu0 %v247
    %327 = vmatpush1.bf16.msra.mxu0 %v246
    %328 = vmatprep.subr.bf16.mxu0 %v254
    %329 = vmatpush1.bf16.msra.mxu0 %v253
    %330 = vmatprep.subr.bf16.mxu0 0
    %331 = vmatpush1.bf16.msra.mxu0 0
    %332 = vmatprep.subr.bf16.mxu0 0
    %333 = vmatpush1.bf16.msra.mxu0 0
    %334 = vmatprep.subr.bf16.mxu0 0
    %335 = vmatpush1.bf16.msra.mxu0 0
    %336 = vmatprep.subr.bf16.mxu0 0
    %337 = vmatpush1.bf16.msra.mxu0 0
    %338 = vmatprep.subr.bf16.mxu0 0
    %339 = vmatpush1.bf16.msra.mxu0 0
    %340 = vmatprep.subr.bf16.mxu0 0
    %341 = vmatpush1.bf16.msra.mxu0 0
    %342 = vmatprep.subr.bf16.mxu0 0
    %343 = vmatpush1.bf16.msra.mxu0 0
    %344 = vmatprep.subr.bf16.mxu0 0
    %345 = vmatpush1.bf16.msra.mxu0 0
    %346 = vmatprep.subr.bf16.mxu0 0
    %347 = vmatpush1.bf16.msra.mxu0 0
    %348 = vmatprep.subr.bf16.mxu0 0
    %349 = vmatpush1.bf16.msra.mxu0 0
    %350 = vmatprep.subr.bf16.mxu0 0
    %351 = vmatpush1.bf16.msra.mxu0 0
    %352 = vmatprep.subr.bf16.mxu0 0
    %353 = vmatpush1.bf16.msra.mxu0 0
    %354 = vmatprep.subr.bf16.mxu0 0
    %355 = vmatpush1.bf16.msra.mxu0 0
    %356 = vmatprep.mubr.bf16.mxu0 0
    %357 = vmatmul.mubr.bf16.gmra.mrb[0].mxu0 %v281
    %v358 = vpop.f32.mrb[0].mxu0
    %v359 = vadd.f32 0.0, %v358
    %v360 = vpop.f32.mrb[0].mxu0
    %v361 = vadd.f32 0.0, %v360
    %v362 = vpop.f32.mrb[0].mxu0
    %v363 = vpop.f32.mrb[0].mxu0
    %364 = vdwg.mxu0
    %365 = vmatprep.subr.bf16.mxu0 %v242
    %366 = vmatpush1.bf16.msra.mxu0 %v241
    %367 = vmatprep.subr.bf16.mxu0 %v249
    %368 = vmatpush1.bf16.msra.mxu0 %v248
    %369 = vmatprep.subr.bf16.mxu0 %v256
    %370 = vmatpush1.bf16.msra.mxu0 %v255
    %371 = vmatprep.subr.bf16.mxu0 0
    %372 = vmatpush1.bf16.msra.mxu0 0
    %373 = vmatprep.subr.bf16.mxu0 0
    %374 = vmatpush1.bf16.msra.mxu0 0
    %375 = vmatprep.subr.bf16.mxu0 0
    %376 = vmatpush1.bf16.msra.mxu0 0
    %377 = vmatprep.subr.bf16.mxu0 0
    %378 = vmatpush1.bf16.msra.mxu0 0
    %379 = vmatprep.subr.bf16.mxu0 0
    %380 = vmatpush1.bf16.msra.mxu0 0
    %381 = vmatprep.subr.bf16.mxu0 0
    %382 = vmatpush1.bf16.msra.mxu0 0
    %383 = vmatprep.subr.bf16.mxu0 0
    %384 = vmatpush1.bf16.msra.mxu0 0
    %385 = vmatprep.subr.bf16.mxu0 0
    %386 = vmatpush1.bf16.msra.mxu0 0
    %387 = vmatprep.subr.bf16.mxu0 0
    %388 = vmatpush1.bf16.msra.mxu0 0
    %389 = vmatprep.subr.bf16.mxu0 0
    %390 = vmatpush1.bf16.msra.mxu0 0
    %391 = vmatprep.subr.bf16.mxu0 0
    %392 = vmatpush1.bf16.msra.mxu0 0
    %393 = vmatprep.subr.bf16.mxu0 0
    %394 = vmatpush1.bf16.msra.mxu0 0
    %395 = vmatprep.subr.bf16.mxu0 0
    %396 = vmatpush1.bf16.msra.mxu0 0
    %397 = vmatprep.mubr.bf16.mxu0 0
    %398 = vmatmul.mubr.bf16.gmra.mrb[0].mxu0 %v281
    %v399 = vpop.f32.mrb[0].mxu0
    %v400 = vadd.f32 0.0, %v399
    %v401 = vpop.f32.mrb[0].mxu0
    %v402 = vadd.f32 0.0, %v401
    %v403 = vpop.f32.mrb[0].mxu0
    %v404 = vpop.f32.mrb[0].mxu0
    %405 = vdwg.mxu0
    %406 = vmatprep.subr.bf16.mxu0 0
    %407 = vmatpush1.bf16.msra.mxu0 %v243
    %408 = vmatprep.subr.bf16.mxu0 0
    %409 = vmatpush1.bf16.msra.mxu0 %v250
    %410 = vmatprep.subr.bf16.mxu0 0
    %411 = vmatpush1.bf16.msra.mxu0 %v257
    %412 = vmatprep.subr.bf16.mxu0 0
    %413 = vmatpush1.bf16.msra.mxu0 0
    %414 = vmatprep.subr.bf16.mxu0 0
    %415 = vmatpush1.bf16.msra.mxu0 0
    %416 = vmatprep.subr.bf16.mxu0 0
    %417 = vmatpush1.bf16.msra.mxu0 0
    %418 = vmatprep.subr.bf16.mxu0 0
    %419 = vmatpush1.bf16.msra.mxu0 0
    %420 = vmatprep.subr.bf16.mxu0 0
    %421 = vmatpush1.bf16.msra.mxu0 0
    %422 = vmatprep.subr.bf16.mxu0 0
    %423 = vmatpush1.bf16.msra.mxu0 0
    %424 = vmatprep.subr.bf16.mxu0 0
    %425 = vmatpush1.bf16.msra.mxu0 0
    %426 = vmatprep.subr.bf16.mxu0 0
    %427 = vmatpush1.bf16.msra.mxu0 0
    %428 = vmatprep.subr.bf16.mxu0 0
    %429 = vmatpush1.bf16.msra.mxu0 0
    %430 = vmatprep.subr.bf16.mxu0 0
    %431 = vmatpush1.bf16.msra.mxu0 0
    %432 = vmatprep.subr.bf16.mxu0 0
    %433 = vmatpush1.bf16.msra.mxu0 0
    %434 = vmatprep.subr.bf16.mxu0 0
    %435 = vmatpush1.bf16.msra.mxu0 0
    %436 = vmatprep.subr.bf16.mxu0 0
    %437 = vmatpush1.bf16.msra.mxu0 0
    %438 = vmatprep.mubr.bf16.mxu0 0
    %439 = vmatmul.mubr.bf16.gmra.mrb[0].mxu0 %v281
    %v440 = vpop.f32.mrb[0].mxu0
    %v441 = vadd.f32 0.0, %v440
    %v442 = vpop.f32.mrb[0].mxu0
    %v443 = vpop.f32.mrb[0].mxu0
    %v444 = vpop.f32.mrb[0].mxu0
    %445 = vdwg.mxu0
    %v446 = vld [vmem:[%s2] sm:$0xff]
    %v447 = vld [vmem:[%s3] sm:$0xff]
    %v448 = vadd.f32 %v318, %v320
    %v449 = vadd.f32 %v448, %v359
    %v450 = vadd.f32 %v449, %v361
    %v451 = vadd.f32 %v450, %v400
    %v452 = vadd.f32 %v451, %v402
    %v453 = vadd.f32 %v452, %v441
    %454 = vadd.xlane.f32.xlu0 %v453
    %v455 = vpop.xlane.xlu0 %454
    %v456 = vmul.f32 %v455, 0.0012755102
    %v457 = vmul.f32 %v318, %v318
    %v458 = vmul.f32 %v320, %v320
    %v459 = vmul.f32 %v359, %v359
    %v460 = vmul.f32 %v361, %v361
    %v461 = vmul.f32 %v400, %v400
    %v462 = vmul.f32 %v402, %v402
    %v463 = vmul.f32 %v441, %v441
    %v464 = vadd.f32 %v457, %v458
    %v465 = vadd.f32 %v464, %v459
    %v466 = vadd.f32 %v465, %v460
    %v467 = vadd.f32 %v466, %v461
    %v468 = vadd.f32 %v467, %v462
    %v469 = vadd.f32 %v468, %v463
    %470 = vadd.xlane.f32.xlu0 %v469
    %v471 = vpop.xlane.xlu0 %470
    %v472 = vmul.f32 %v471, 0.0012755102
    %v473 = vmul.f32 %v456, %v456
    %v474 = vsub.f32 %v472, %v473
    %v475 = vmax.f32 %v474, 0.0
    %v476 = vsub.f32 %v318, %v456
    %v477 = vsub.f32 %v320, %v456
    %v478 = vsub.f32 %v359, %v456
    %v479 = vsub.f32 %v361, %v456
    %v480 = vsub.f32 %v400, %v456
    %v481 = vsub.f32 %v402, %v456
    %v482 = vsub.f32 %v441, %v456
    %v483 = vadd.f32 %v475, 1e-05
    %v484 = vrsqrt.pop %v483
    %v485 = vmul.f32 %v476, %v484
    %v486 = vmul.f32 %v477, %v484
    %v487 = vmul.f32 %v478, %v484
    %v488 = vmul.f32 %v479, %v484
    %v489 = vmul.f32 %v480, %v484
    %v490 = vmul.f32 %v481, %v484
    %v491 = vmul.f32 %v482, %v484
    %493 = vset.pattern.permute.xlu0 0
    %494 = vperm.xlu0 %493, %v446
    %v495 = vpop.permute.xlu0 %494
    %v497 = vmul.f32 %v485, %v495
    %v498 = vmul.f32 %v486, %v495
    %v499 = vmul.f32 %v487, %v495
    %v500 = vmul.f32 %v488, %v495
    %v501 = vmul.f32 %v489, %v495
    %v502 = vmul.f32 %v490, %v495
    %v503 = vmul.f32 %v491, %v495
    %505 = vset.pattern.permute.xlu0 0
    %506 = vperm.xlu0 %505, %v447
    %v507 = vpop.permute.xlu0 %506
    %v509 = vadd.f32 %v497, %v507
    %v510 = vadd.f32 %v498, %v507
    %v511 = vadd.f32 %v499, %v507
    %v512 = vadd.f32 %v500, %v507
    %v513 = vadd.f32 %v501, %v507
    %v514 = vadd.f32 %v502, %v507
    %v515 = vadd.f32 %v503, %v507
    %v516 = vmax.f32 %v509, 0.0
    %v517 = vmax.f32 %v510, 0.0
    %v518 = vmax.f32 %v511, 0.0
    %v519 = vmax.f32 %v512, 0.0
    %v520 = vmax.f32 %v513, 0.0
    %v521 = vmax.f32 %v514, 0.0
    %v522 = vmax.f32 %v515, 0.0
    %v523 = vpack.c.bf16 %v516, %v516
    %v524 = vpack.c.bf16 %v517, %v517
    %v525 = vpack.c.bf16 %v518, %v518
    %v526 = vpack.c.bf16 %v519, %v519
    %v527 = vpack.c.bf16 %v520, %v520
    %v528 = vpack.c.bf16 %v521, %v521
    %v529 = vpack.c.bf16 %v522, %v522
    %v530 = vld [vmem:[#allocation8] sm:$0xff]
    %v531 = vld [vmem:[#allocation8 + $0x8] sm:$0xff]
    %v532 = vld [vmem:[#allocation8 + $0x10] sm:$0xff]
    %v533 = vld [vmem:[#allocation8 + $0x18] sm:$0xff]
    %v534 = vld [vmem:[#allocation8 + $0x20] sm:$0xff]
    %v535 = vld [vmem:[#allocation8 + $0x28] sm:$0xff]
    %v536 = vld [vmem:[#allocation8 + $0x30] sm:$0xff]
    %v537 = vld [vmem:[#allocation8 + $0x38] sm:$0xff]
    %v538 = vld [vmem:[#allocation8 + $0x40] sm:$0xff]
    %v539 = vld [vmem:[#allocation8 + $0x48] sm:$0xff]
    %v540 = vld [vmem:[#allocation8 + $0x50] sm:$0xff]
    %v541 = vld [vmem:[#allocation8 + $0x58] sm:$0xff]
    %v542 = vld [vmem:[#allocation8 + $0x60] sm:$0xff]
    %v543 = vld [vmem:[#allocation8 + $0x68] sm:$0xff]
    %v544 = vld [vmem:[#allocation8 + $0x70] sm:$0xff]
    %v545 = vld [vmem:[#allocation8 + $0x78] sm:$0xff]
    %v546 = vld [vmem:[#allocation8 + $0x80] sm:$0xff]
    %v547 = vld [vmem:[#allocation8 + $0x88] sm:$0xff]
    %v548 = vld [vmem:[#allocation8 + $0x90] sm:$0xff]
    %v549 = vld [vmem:[#allocation8 + $0x98] sm:$0xff]
    %v550 = vld [vmem:[#allocation8 + $0xa0] sm:$0xff]
    %v551 = vld [vmem:[#allocation8 + $0xa8] sm:$0xff]
    %v552 = vld [vmem:[#allocation8 + $0xb0] sm:$0xff]
    %v553 = vld [vmem:[#allocation8 + $0xb8] sm:$0xff]
    %v554 = vld [vmem:[#allocation8 + $0xc0] sm:$0xff]
    %v555 = vld [vmem:[#allocation8 + $0xc8] sm:$0xff]
    %v556 = vld [vmem:[#allocation8 + $0xd0] sm:$0xff]
    %v557 = vld [vmem:[#allocation8 + $0xd8] sm:$0xff]
    %v558 = vld [vmem:[#allocation8 + $0xe0] sm:$0xff]
    %v559 = vld [vmem:[#allocation8 + $0xe8] sm:$0xff]
    %v560 = vld [vmem:[#allocation8 + $0xf0] sm:$0xff]
    %v561 = vld [vmem:[#allocation8 + $0xf8] sm:$0xff]
    %v562 = vld [vmem:[#allocation8 + $0x100] sm:$0xff]
    %v563 = vld [vmem:[#allocation8 + $0x108] sm:$0xff]
    %v564 = vld [vmem:[#allocation8 + $0x110] sm:$0xff]
    %v565 = vld [vmem:[#allocation8 + $0x118] sm:$0xff]
    %v566 = vld [vmem:[#allocation8 + $0x120] sm:$0xff]
    %v567 = vld [vmem:[#allocation8 + $0x128] sm:$0xff]
    %v568 = vld [vmem:[#allocation8 + $0x130] sm:$0xff]
    %v569 = vld [vmem:[#allocation8 + $0x138] sm:$0xff]
    %v570 = vld [vmem:[#allocation8 + $0x140] sm:$0xff]
    %v571 = vld [vmem:[#allocation8 + $0x148] sm:$0xff]
    %v572 = vld [vmem:[#allocation8 + $0x150] sm:$0xff]
    %v573 = vld [vmem:[#allocation8 + $0x158] sm:$0xff]
    %v574 = vld [vmem:[#allocation8 + $0x160] sm:$0xff]
    %v575 = vld [vmem:[#allocation8 + $0x168] sm:$0xff]
    %v576 = vld [vmem:[#allocation8 + $0x170] sm:$0xff]
    %v577 = vld [vmem:[#allocation8 + $0x178] sm:$0xff]
    %v578 = vld [vmem:[#allocation8 + $0x180] sm:$0xff]
    %v579 = vld [vmem:[#allocation8 + $0x188] sm:$0xff]
    %v580 = vld [vmem:[#allocation8 + $0x190] sm:$0xff]
    %v581 = vld [vmem:[#allocation8 + $0x198] sm:$0xff]
    %v582 = vld [vmem:[#allocation8 + $0x1a0] sm:$0xff]
    %v583 = vld [vmem:[#allocation8 + $0x1a8] sm:$0xff]
    %v584 = vld [vmem:[#allocation8 + $0x1b0] sm:$0xff]
    %v585 = vld [vmem:[#allocation8 + $0x1b8] sm:$0xff]
    %v586 = vld [vmem:[#allocation8 + $0x1c0] sm:$0xff]
    %v587 = vld [vmem:[#allocation8 + $0x1c8] sm:$0xff]
    %v588 = vld [vmem:[#allocation8 + $0x1d0] sm:$0xff]
    %v589 = vld [vmem:[#allocation8 + $0x1d8] sm:$0xff]
    %v590 = vld [vmem:[#allocation8 + $0x1e0] sm:$0xff]
    %v591 = vld [vmem:[#allocation8 + $0x1e8] sm:$0xff]
    %v592 = vld [vmem:[#allocation8 + $0x1f0] sm:$0xff]
    %v593 = vld [vmem:[#allocation8 + $0x1f8] sm:$0xff]
    %v594 = vld [vmem:[#allocation8 + $0x200] sm:$0xff]
    %v595 = vld [vmem:[#allocation8 + $0x208] sm:$0xff]
    %v596 = vld [vmem:[#allocation8 + $0x210] sm:$0xff]
    %v597 = vld [vmem:[#allocation8 + $0x218] sm:$0xff]
    %v598 = vld [vmem:[#allocation8 + $0x220] sm:$0xff]
    %v599 = vld [vmem:[#allocation8 + $0x228] sm:$0xff]
    %v600 = vld [vmem:[#allocation8 + $0x230] sm:$0xff]
    %v601 = vld [vmem:[#allocation8 + $0x238] sm:$0xff]
    %v602 = vld [vmem:[#allocation8 + $0x240] sm:$0xff]
    %v603 = vld [vmem:[#allocation8 + $0x248] sm:$0xff]
    %v604 = vld [vmem:[#allocation8 + $0x250] sm:$0xff]
    %v605 = vld [vmem:[#allocation8 + $0x258] sm:$0xff]
    %v606 = vld [vmem:[#allocation8 + $0x260] sm:$0xff]
    %v607 = vld [vmem:[#allocation8 + $0x268] sm:$0xff]
    %v608 = vld [vmem:[#allocation8 + $0x270] sm:$0xff]
    %v609 = vld [vmem:[#allocation8 + $0x278] sm:$0xff]
    %v610 = vld [vmem:[#allocation8 + $0x280] sm:$0xff]
    %v611 = vld [vmem:[#allocation8 + $0x288] sm:$0xff]
    %v612 = vld [vmem:[#allocation8 + $0x290] sm:$0xff]
    %v613 = vld [vmem:[#allocation8 + $0x298] sm:$0xff]
    %v614 = vld [vmem:[#allocation8 + $0x2a0] sm:$0xff]
    %v615 = vld [vmem:[#allocation8 + $0x2a8] sm:$0xff]
    %v616 = vld [vmem:[#allocation8 + $0x2b0] sm:$0xff]
    %v617 = vld [vmem:[#allocation8 + $0x2b8] sm:$0xff]
    %v618 = vld [vmem:[#allocation8 + $0x2c0] sm:$0xff]
    %v619 = vld [vmem:[#allocation8 + $0x2c8] sm:$0xff]
    %v620 = vld [vmem:[#allocation8 + $0x2d0] sm:$0xff]
    %v621 = vld [vmem:[#allocation8 + $0x2d8] sm:$0xff]
    %v622 = vld [vmem:[#allocation8 + $0x2e0] sm:$0xff]
    %v623 = vld [vmem:[#allocation8 + $0x2e8] sm:$0xff]
    %v624 = vld [vmem:[#allocation8 + $0x2f0] sm:$0xff]
    %v625 = vld [vmem:[#allocation8 + $0x2f8] sm:$0xff]
    %v626 = vld [vmem:[#allocation8 + $0x300] sm:$0xff]
    %v627 = vld [vmem:[#allocation8 + $0x308] sm:$0xff]
    %v628 = vld [vmem:[#allocation8 + $0x310] sm:$0xff]
    %v629 = vld [vmem:[#allocation8 + $0x318] sm:$0xff]
    %v630 = vld [vmem:[#allocation8 + $0x320] sm:$0xff]
    %v631 = vld [vmem:[#allocation8 + $0x328] sm:$0xff]
    %v632 = vld [vmem:[#allocation8 + $0x330] sm:$0xff]
    %v633 = vld [vmem:[#allocation8 + $0x338] sm:$0xff]
    %v634 = vld [vmem:[#allocation8 + $0x340] sm:$0xff]
    %v635 = vld [vmem:[#allocation8 + $0x348] sm:$0xff]
    %v636 = vld [vmem:[#allocation8 + $0x350] sm:$0xff]
    %v637 = vld [vmem:[#allocation8 + $0x358] sm:$0xff]
    %v638 = vld [vmem:[#allocation8 + $0x360] sm:$0xff]
    %v639 = vld [vmem:[#allocation8 + $0x368] sm:$0xff]
    %v640 = vld [vmem:[#allocation8 + $0x370] sm:$0xff]
    %v641 = vld [vmem:[#allocation8 + $0x378] sm:$0xff]
    %v642 = vld [vmem:[#allocation8 + $0x380] sm:$0xff]
    %v643 = vld [vmem:[#allocation8 + $0x388] sm:$0xff]
    %v644 = vld [vmem:[#allocation8 + $0x390] sm:$0xff]
    %v645 = vld [vmem:[#allocation8 + $0x398] sm:$0xff]
    %v646 = vld [vmem:[#allocation8 + $0x3a0] sm:$0xff]
    %v647 = vld [vmem:[#allocation8 + $0x3a8] sm:$0xff]
    %v648 = vld [vmem:[#allocation8 + $0x3b0] sm:$0xff]
    %v649 = vld [vmem:[#allocation8 + $0x3b8] sm:$0xff]
    %v650 = vld [vmem:[#allocation8 + $0x3c0] sm:$0xff]
    %v651 = vld [vmem:[#allocation8 + $0x3c8] sm:$0xff]
    %v652 = vld [vmem:[#allocation8 + $0x3d0] sm:$0xff]
    %v653 = vld [vmem:[#allocation8 + $0x3d8] sm:$0xff]
    %v654 = vld [vmem:[#allocation8 + $0x3e0] sm:$0xff]
    %v655 = vld [vmem:[#allocation8 + $0x3e8] sm:$0xff]
    %v656 = vld [vmem:[#allocation8 + $0x3f0] sm:$0xff]
    %v657 = vld [vmem:[#allocation8 + $0x3f8] sm:$0xff]
    %v658 = vld [vmem:[#allocation8 + $0x400] sm:$0xff]
    %v659 = vld [vmem:[#allocation8 + $0x408] sm:$0xff]
    %v660 = vld [vmem:[#allocation8 + $0x410] sm:$0xff]
    %v661 = vld [vmem:[#allocation8 + $0x418] sm:$0xff]
    %v662 = vld [vmem:[#allocation8 + $0x420] sm:$0xff]
    %v663 = vld [vmem:[#allocation8 + $0x428] sm:$0xff]
    %v664 = vld [vmem:[#allocation8 + $0x430] sm:$0xff]
    %v665 = vld [vmem:[#allocation8 + $0x438] sm:$0xff]
    %v666 = vld [vmem:[#allocation8 + $0x440] sm:$0xff]
    %v667 = vld [vmem:[#allocation8 + $0x448] sm:$0xff]
    %v668 = vld [vmem:[#allocation8 + $0x450] sm:$0xff]
    %v669 = vld [vmem:[#allocation8 + $0x458] sm:$0xff]
    %v670 = vld [vmem:[#allocation8 + $0x460] sm:$0xff]
    %v671 = vld [vmem:[#allocation8 + $0x468] sm:$0xff]
    %v672 = vld [vmem:[#allocation8 + $0x470] sm:$0xff]
    %v673 = vld [vmem:[#allocation8 + $0x478] sm:$0xff]
    %v674 = vld [vmem:[#allocation8 + $0x480] sm:$0xff]
    %v675 = vld [vmem:[#allocation8 + $0x488] sm:$0xff]
    %v676 = vld [vmem:[#allocation8 + $0x490] sm:$0xff]
    %v677 = vld [vmem:[#allocation8 + $0x498] sm:$0xff]
    %v678 = vld [vmem:[#allocation8 + $0x4a0] sm:$0xff]
    %v679 = vld [vmem:[#allocation8 + $0x4a8] sm:$0xff]
    %v680 = vld [vmem:[#allocation8 + $0x4b0] sm:$0xff]
    %v681 = vld [vmem:[#allocation8 + $0x4b8] sm:$0xff]
    %v682 = vld [vmem:[#allocation8 + $0x4c0] sm:$0xff]
    %v683 = vld [vmem:[#allocation8 + $0x4c8] sm:$0xff]
    %v684 = vld [vmem:[#allocation8 + $0x4d0] sm:$0xff]
    %v685 = vld [vmem:[#allocation8 + $0x4d8] sm:$0xff]
    %v686 = vld [vmem:[#allocation8 + $0x4e0] sm:$0xff]
    %v687 = vld [vmem:[#allocation8 + $0x4e8] sm:$0xff]
    %v688 = vld [vmem:[#allocation8 + $0x4f0] sm:$0xff]
    %v689 = vld [vmem:[#allocation8 + $0x4f8] sm:$0xff]
    %v690 = vld [vmem:[#allocation8 + $0x500] sm:$0xff]
    %v691 = vld [vmem:[#allocation8 + $0x508] sm:$0xff]
    %v692 = vld [vmem:[#allocation8 + $0x510] sm:$0xff]
    %v693 = vld [vmem:[#allocation8 + $0x518] sm:$0xff]
    %v694 = vld [vmem:[#allocation8 + $0x520] sm:$0xff]
    %v695 = vld [vmem:[#allocation8 + $0x528] sm:$0xff]
    %v696 = vld [vmem:[#allocation8 + $0x530] sm:$0xff]
    %v697 = vld [vmem:[#allocation8 + $0x538] sm:$0xff]
    %v698 = vld [vmem:[#allocation8 + $0x540] sm:$0xff]
    %v699 = vld [vmem:[#allocation8 + $0x548] sm:$0xff]
    %v700 = vld [vmem:[#allocation8 + $0x550] sm:$0xff]
    %v701 = vld [vmem:[#allocation8 + $0x558] sm:$0xff]
    %v702 = vld [vmem:[#allocation8 + $0x560] sm:$0xff]
    %v703 = vld [vmem:[#allocation8 + $0x568] sm:$0xff]
    %v704 = vld [vmem:[#allocation8 + $0x570] sm:$0xff]
    %v705 = vld [vmem:[#allocation8 + $0x578] sm:$0xff]
    %v706 = vld [vmem:[#allocation8 + $0x580] sm:$0xff]
    %v707 = vld [vmem:[#allocation8 + $0x588] sm:$0xff]
    %v708 = vld [vmem:[#allocation8 + $0x590] sm:$0xff]
    %v709 = vld [vmem:[#allocation8 + $0x598] sm:$0xff]
    %v710 = vld [vmem:[#allocation8 + $0x5a0] sm:$0xff]
    %v711 = vld [vmem:[#allocation8 + $0x5a8] sm:$0xff]
    %v712 = vld [vmem:[#allocation8 + $0x5b0] sm:$0xff]
    %v713 = vld [vmem:[#allocation8 + $0x5b8] sm:$0xff]
    %v714 = vld [vmem:[#allocation8 + $0x5c0] sm:$0xff]
    %v715 = vld [vmem:[#allocation8 + $0x5c8] sm:$0xff]
    %v716 = vld [vmem:[#allocation8 + $0x5d0] sm:$0xff]
    %v717 = vld [vmem:[#allocation8 + $0x5d8] sm:$0xff]
    %v718 = vld [vmem:[#allocation8 + $0x5e0] sm:$0xff]
    %v719 = vld [vmem:[#allocation8 + $0x5e8] sm:$0xff]
    %v720 = vld [vmem:[#allocation8 + $0x5f0] sm:$0xff]
    %v721 = vld [vmem:[#allocation8 + $0x5f8] sm:$0xff]
    %v722 = vld [vmem:[#allocation8 + $0x600] sm:$0xff]
    %v723 = vld [vmem:[#allocation8 + $0x608] sm:$0xff]
    %v724 = vld [vmem:[#allocation8 + $0x610] sm:$0xff]
    %v725 = vld [vmem:[#allocation8 + $0x618] sm:$0xff]
    %v726 = vld [vmem:[#allocation8 + $0x620] sm:$0xff]
    %v727 = vld [vmem:[#allocation8 + $0x628] sm:$0xff]
    %v728 = vld [vmem:[#allocation8 + $0x630] sm:$0xff]
    %v729 = vld [vmem:[#allocation8 + $0x638] sm:$0xff]
    %v730 = vld [vmem:[#allocation8 + $0x640] sm:$0xff]
    %v731 = vld [vmem:[#allocation8 + $0x648] sm:$0xff]
    %v732 = vld [vmem:[#allocation8 + $0x650] sm:$0xff]
    %v733 = vld [vmem:[#allocation8 + $0x658] sm:$0xff]
    %v734 = vld [vmem:[#allocation8 + $0x660] sm:$0xff]
    %v735 = vld [vmem:[#allocation8 + $0x668] sm:$0xff]
    %v736 = vld [vmem:[#allocation8 + $0x670] sm:$0xff]
    %v737 = vld [vmem:[#allocation8 + $0x678] sm:$0xff]
    %v738 = vld [vmem:[#allocation8 + $0x680] sm:$0xff]
    %v739 = vld [vmem:[#allocation8 + $0x688] sm:$0xff]
    %v740 = vld [vmem:[#allocation8 + $0x690] sm:$0xff]
    %v741 = vld [vmem:[#allocation8 + $0x698] sm:$0xff]
    %v742 = vld [vmem:[#allocation8 + $0x6a0] sm:$0xff]
    %v743 = vld [vmem:[#allocation8 + $0x6a8] sm:$0xff]
    %v744 = vld [vmem:[#allocation8 + $0x6b0] sm:$0xff]
    %v745 = vld [vmem:[#allocation8 + $0x6b8] sm:$0xff]
    %v746 = vld [vmem:[#allocation8 + $0x6c0] sm:$0xff]
    %v747 = vld [vmem:[#allocation8 + $0x6c8] sm:$0xff]
    %v748 = vld [vmem:[#allocation8 + $0x6d0] sm:$0xff]
    %v749 = vld [vmem:[#allocation8 + $0x6d8] sm:$0xff]
    %v750 = vld [vmem:[#allocation8 + $0x6e0] sm:$0xff]
    %v751 = vld [vmem:[#allocation8 + $0x6e8] sm:$0xff]
    %v752 = vld [vmem:[#allocation8 + $0x6f0] sm:$0xff]
    %v753 = vld [vmem:[#allocation8 + $0x6f8] sm:$0xff]
    %v754 = vld [vmem:[#allocation8 + $0x700] sm:$0xff]
    %v755 = vld [vmem:[#allocation8 + $0x708] sm:$0xff]
    %v756 = vld [vmem:[#allocation8 + $0x710] sm:$0xff]
    %v757 = vld [vmem:[#allocation8 + $0x718] sm:$0xff]
    %v758 = vld [vmem:[#allocation8 + $0x720] sm:$0xff]
    %v759 = vld [vmem:[#allocation8 + $0x728] sm:$0xff]
    %v760 = vld [vmem:[#allocation8 + $0x730] sm:$0xff]
    %v761 = vld [vmem:[#allocation8 + $0x738] sm:$0xff]
    %v762 = vld [vmem:[#allocation8 + $0x740] sm:$0xff]
    %v763 = vld [vmem:[#allocation8 + $0x748] sm:$0xff]
    %v764 = vld [vmem:[#allocation8 + $0x750] sm:$0xff]
    %v765 = vld [vmem:[#allocation8 + $0x758] sm:$0xff]
    %v766 = vld [vmem:[#allocation8 + $0x760] sm:$0xff]
    %v767 = vld [vmem:[#allocation8 + $0x768] sm:$0xff]
    %v768 = vld [vmem:[#allocation8 + $0x770] sm:$0xff]
    %v769 = vld [vmem:[#allocation8 + $0x778] sm:$0xff]
    %v770 = vld [vmem:[#allocation8 + $0x780] sm:$0xff]
    %v771 = vld [vmem:[#allocation8 + $0x788] sm:$0xff]
    %v772 = vld [vmem:[#allocation8 + $0x790] sm:$0xff]
    %v773 = vld [vmem:[#allocation8 + $0x798] sm:$0xff]
    %v774 = vld [vmem:[#allocation8 + $0x7a0] sm:$0xff]
    %v775 = vld [vmem:[#allocation8 + $0x7a8] sm:$0xff]
    %v776 = vld [vmem:[#allocation8 + $0x7b0] sm:$0xff]
    %v777 = vld [vmem:[#allocation8 + $0x7b8] sm:$0xff]
    %v778 = vld [vmem:[#allocation8 + $0x7c0] sm:$0xff]
    %v779 = vld [vmem:[#allocation8 + $0x7c8] sm:$0xff]
    %v780 = vld [vmem:[#allocation8 + $0x7d0] sm:$0xff]
    %v781 = vld [vmem:[#allocation8 + $0x7d8] sm:$0xff]
    %v782 = vld [vmem:[#allocation8 + $0x7e0] sm:$0xff]
    %v783 = vld [vmem:[#allocation8 + $0x7e8] sm:$0xff]
    %v784 = vld [vmem:[#allocation8 + $0x7f0] sm:$0xff]
    %v785 = vld [vmem:[#allocation8 + $0x7f8] sm:$0xff]
    %v786 = vld [vmem:[#allocation8 + $0x800] sm:$0xff]
    %v787 = vld [vmem:[#allocation8 + $0x808] sm:$0xff]
    %v788 = vld [vmem:[#allocation8 + $0x810] sm:$0xff]
    %v789 = vld [vmem:[#allocation8 + $0x818] sm:$0xff]
    %v790 = vld [vmem:[#allocation8 + $0x820] sm:$0xff]
    %v791 = vld [vmem:[#allocation8 + $0x828] sm:$0xff]
    %v792 = vld [vmem:[#allocation8 + $0x830] sm:$0xff]
    %v793 = vld [vmem:[#allocation8 + $0x838] sm:$0xff]
    %v794 = vld [vmem:[#allocation8 + $0x840] sm:$0xff]
    %v795 = vld [vmem:[#allocation8 + $0x848] sm:$0xff]
    %v796 = vld [vmem:[#allocation8 + $0x850] sm:$0xff]
    %v797 = vld [vmem:[#allocation8 + $0x858] sm:$0xff]
    %v798 = vld [vmem:[#allocation8 + $0x860] sm:$0xff]
    %v799 = vld [vmem:[#allocation8 + $0x868] sm:$0xff]
    %v800 = vld [vmem:[#allocation8 + $0x870] sm:$0xff]
    %v801 = vld [vmem:[#allocation8 + $0x878] sm:$0xff]
    %v802 = vld [vmem:[#allocation8 + $0x880] sm:$0xff]
    %v803 = vld [vmem:[#allocation8 + $0x888] sm:$0xff]
    %v804 = vld [vmem:[#allocation8 + $0x890] sm:$0xff]
    %v805 = vld [vmem:[#allocation8 + $0x898] sm:$0xff]
    %v806 = vld [vmem:[#allocation8 + $0x8a0] sm:$0xff]
    %v807 = vld [vmem:[#allocation8 + $0x8a8] sm:$0xff]
    %v808 = vld [vmem:[#allocation8 + $0x8b0] sm:$0xff]
    %v809 = vld [vmem:[#allocation8 + $0x8b8] sm:$0xff]
    %v810 = vld [vmem:[#allocation8 + $0x8c0] sm:$0xff]
    %v811 = vld [vmem:[#allocation8 + $0x8c8] sm:$0xff]
    %v812 = vld [vmem:[#allocation8 + $0x8d0] sm:$0xff]
    %v813 = vld [vmem:[#allocation8 + $0x8d8] sm:$0xff]
    %v814 = vld [vmem:[#allocation8 + $0x8e0] sm:$0xff]
    %v815 = vld [vmem:[#allocation8 + $0x8e8] sm:$0xff]
    %v816 = vld [vmem:[#allocation8 + $0x8f0] sm:$0xff]
    %v817 = vld [vmem:[#allocation8 + $0x8f8] sm:$0xff]
    %v818 = vld [vmem:[#allocation8 + $0x900] sm:$0xff]
    %v819 = vld [vmem:[#allocation8 + $0x908] sm:$0xff]
    %v820 = vld [vmem:[#allocation8 + $0x910] sm:$0xff]
    %v821 = vld [vmem:[#allocation8 + $0x918] sm:$0xff]
    %v822 = vld [vmem:[#allocation8 + $0x920] sm:$0xff]
    %v823 = vld [vmem:[#allocation8 + $0x928] sm:$0xff]
    %v824 = vld [vmem:[#allocation8 + $0x930] sm:$0xff]
    %v825 = vld [vmem:[#allocation8 + $0x938] sm:$0xff]
    %v826 = vld [vmem:[#allocation8 + $0x940] sm:$0xff]
    %v827 = vld [vmem:[#allocation8 + $0x948] sm:$0xff]
    %v828 = vld [vmem:[#allocation8 + $0x950] sm:$0xff]
    %v829 = vld [vmem:[#allocation8 + $0x958] sm:$0xff]
    %v830 = vld [vmem:[#allocation8 + $0x960] sm:$0xff]
    %v831 = vld [vmem:[#allocation8 + $0x968] sm:$0xff]
    %v832 = vld [vmem:[#allocation8 + $0x970] sm:$0xff]
    %v833 = vld [vmem:[#allocation8 + $0x978] sm:$0xff]
    %v834 = vld [vmem:[#allocation8 + $0x980] sm:$0xff]
    %v835 = vld [vmem:[#allocation8 + $0x988] sm:$0xff]
    %v836 = vld [vmem:[#allocation8 + $0x990] sm:$0xff]
    %v837 = vld [vmem:[#allocation8 + $0x998] sm:$0xff]
    %v838 = vld [vmem:[#allocation8 + $0x9a0] sm:$0xff]
    %v839 = vld [vmem:[#allocation8 + $0x9a8] sm:$0xff]
    %v840 = vld [vmem:[#allocation8 + $0x9b0] sm:$0xff]
    %v841 = vld [vmem:[#allocation8 + $0x9b8] sm:$0xff]
    %v842 = vld [vmem:[#allocation8 + $0x9c0] sm:$0xff]
    %v843 = vld [vmem:[#allocation8 + $0x9c8] sm:$0xff]
    %v844 = vld [vmem:[#allocation8 + $0x9d0] sm:$0xff]
    %v845 = vld [vmem:[#allocation8 + $0x9d8] sm:$0xff]
    %v846 = vld [vmem:[#allocation8 + $0x9e0] sm:$0xff]
    %v847 = vld [vmem:[#allocation8 + $0x9e8] sm:$0xff]
    %v848 = vld [vmem:[#allocation8 + $0x9f0] sm:$0xff]
    %v849 = vld [vmem:[#allocation8 + $0x9f8] sm:$0xff]
    %v850 = vld [vmem:[#allocation8 + $0xa00] sm:$0xff]
    %v851 = vld [vmem:[#allocation8 + $0xa08] sm:$0xff]
    %v852 = vld [vmem:[#allocation8 + $0xa10] sm:$0xff]
    %v853 = vld [vmem:[#allocation8 + $0xa18] sm:$0xff]
    %v854 = vld [vmem:[#allocation8 + $0xa20] sm:$0xff]
    %v855 = vld [vmem:[#allocation8 + $0xa28] sm:$0xff]
    %v856 = vld [vmem:[#allocation8 + $0xa30] sm:$0xff]
    %v857 = vld [vmem:[#allocation8 + $0xa38] sm:$0xff]
    %v858 = vld [vmem:[#allocation8 + $0xa40] sm:$0xff]
    %v859 = vld [vmem:[#allocation8 + $0xa48] sm:$0xff]
    %v860 = vld [vmem:[#allocation8 + $0xa50] sm:$0xff]
    %v861 = vld [vmem:[#allocation8 + $0xa58] sm:$0xff]
    %v862 = vld [vmem:[#allocation8 + $0xa60] sm:$0xff]
    %v863 = vld [vmem:[#allocation8 + $0xa68] sm:$0xff]
    %v864 = vld [vmem:[#allocation8 + $0xa70] sm:$0xff]
    %v865 = vld [vmem:[#allocation8 + $0xa78] sm:$0xff]
    %v866 = vld [vmem:[#allocation8 + $0xa80] sm:$0xff]
    %v867 = vld [vmem:[#allocation8 + $0xa88] sm:$0xff]
    %v868 = vld [vmem:[#allocation8 + $0xa90] sm:$0xff]
    %v869 = vld [vmem:[#allocation8 + $0xa98] sm:$0xff]
    %v870 = vld [vmem:[#allocation8 + $0xaa0] sm:$0xff]
    %v871 = vld [vmem:[#allocation8 + $0xaa8] sm:$0xff]
    %v872 = vld [vmem:[#allocation8 + $0xab0] sm:$0xff]
    %v873 = vld [vmem:[#allocation8 + $0xab8] sm:$0xff]
    %v874 = vld [vmem:[#allocation8 + $0xac0] sm:$0xff]
    %v875 = vld [vmem:[#allocation8 + $0xac8] sm:$0xff]
    %v876 = vld [vmem:[#allocation8 + $0xad0] sm:$0xff]
    %v877 = vld [vmem:[#allocation8 + $0xad8] sm:$0xff]
    %v878 = vld [vmem:[#allocation8 + $0xae0] sm:$0xff]
    %v879 = vld [vmem:[#allocation8 + $0xae8] sm:$0xff]
    %v880 = vld [vmem:[#allocation8 + $0xaf0] sm:$0xff]
    %v881 = vld [vmem:[#allocation8 + $0xaf8] sm:$0xff]
    %v882 = vld [vmem:[#allocation8 + $0xb00] sm:$0xff]
    %v883 = vld [vmem:[#allocation8 + $0xb08] sm:$0xff]
    %v884 = vld [vmem:[#allocation8 + $0xb10] sm:$0xff]
    %v885 = vld [vmem:[#allocation8 + $0xb18] sm:$0xff]
    %v886 = vld [vmem:[#allocation8 + $0xb20] sm:$0xff]
    %v887 = vld [vmem:[#allocation8 + $0xb28] sm:$0xff]
    %v888 = vld [vmem:[#allocation8 + $0xb30] sm:$0xff]
    %v889 = vld [vmem:[#allocation8 + $0xb38] sm:$0xff]
    %v890 = vld [vmem:[#allocation8 + $0xb40] sm:$0xff]
    %v891 = vld [vmem:[#allocation8 + $0xb48] sm:$0xff]
    %v892 = vld [vmem:[#allocation8 + $0xb50] sm:$0xff]
    %v893 = vld [vmem:[#allocation8 + $0xb58] sm:$0xff]
    %v894 = vld [vmem:[#allocation8 + $0xb60] sm:$0xff]
    %v895 = vld [vmem:[#allocation8 + $0xb68] sm:$0xff]
    %v896 = vld [vmem:[#allocation8 + $0xb70] sm:$0xff]
    %v897 = vld [vmem:[#allocation8 + $0xb78] sm:$0xff]
    %v898 = vld [vmem:[#allocation8 + $0xb80] sm:$0xff]
    %v899 = vld [vmem:[#allocation8 + $0xb88] sm:$0xff]
    %v900 = vld [vmem:[#allocation8 + $0xb90] sm:$0xff]
    %v901 = vld [vmem:[#allocation8 + $0xb98] sm:$0xff]
    %v902 = vld [vmem:[#allocation8 + $0xba0] sm:$0xff]
    %v903 = vld [vmem:[#allocation8 + $0xba8] sm:$0xff]
    %v904 = vld [vmem:[#allocation8 + $0xbb0] sm:$0xff]
    %v905 = vld [vmem:[#allocation8 + $0xbb8] sm:$0xff]
    %v906 = vld [vmem:[#allocation8 + $0xbc0] sm:$0xff]
    %v907 = vld [vmem:[#allocation8 + $0xbc8] sm:$0xff]
    %v908 = vld [vmem:[#allocation8 + $0xbd0] sm:$0xff]
    %v909 = vld [vmem:[#allocation8 + $0xbd8] sm:$0xff]
    %v910 = vld [vmem:[#allocation8 + $0xbe0] sm:$0xff]
    %v911 = vld [vmem:[#allocation8 + $0xbe8] sm:$0xff]
    %v912 = vld [vmem:[#allocation8 + $0xbf0] sm:$0xff]
    %v913 = vld [vmem:[#allocation8 + $0xbf8] sm:$0xff]
    %v914 = vld [vmem:[#allocation8 + $0xc00] sm:$0xff]
    %v915 = vld [vmem:[#allocation8 + $0xc08] sm:$0xff]
    %v916 = vld [vmem:[#allocation8 + $0xc10] sm:$0xff]
    %v917 = vld [vmem:[#allocation8 + $0xc18] sm:$0xff]
    %v918 = vld [vmem:[#allocation8 + $0xc20] sm:$0xff]
    %v919 = vld [vmem:[#allocation8 + $0xc28] sm:$0xff]
    %v920 = vld [vmem:[#allocation8 + $0xc30] sm:$0xff]
    %v921 = vld [vmem:[#allocation8 + $0xc38] sm:$0xff]
    %v922 = vld [vmem:[#allocation8 + $0xc40] sm:$0xff]
    %v923 = vld [vmem:[#allocation8 + $0xc48] sm:$0xff]
    %v924 = vld [vmem:[#allocation8 + $0xc50] sm:$0xff]
    %v925 = vld [vmem:[#allocation8 + $0xc58] sm:$0xff]
    %v926 = vld [vmem:[#allocation8 + $0xc60] sm:$0xff]
    %v927 = vld [vmem:[#allocation8 + $0xc68] sm:$0xff]
    %v928 = vld [vmem:[#allocation8 + $0xc70] sm:$0xff]
    %v929 = vld [vmem:[#allocation8 + $0xc78] sm:$0xff]
    %v930 = vld [vmem:[#allocation8 + $0xc80] sm:$0xff]
    %v931 = vld [vmem:[#allocation8 + $0xc88] sm:$0xff]
    %v932 = vld [vmem:[#allocation8 + $0xc90] sm:$0xff]
    %v933 = vld [vmem:[#allocation8 + $0xc98] sm:$0xff]
    %v934 = vld [vmem:[#allocation8 + $0xca0] sm:$0xff]
    %v935 = vld [vmem:[#allocation8 + $0xca8] sm:$0xff]
    %v936 = vld [vmem:[#allocation8 + $0xcb0] sm:$0xff]
    %v937 = vld [vmem:[#allocation8 + $0xcb8] sm:$0xff]
    %v938 = vld [vmem:[#allocation8 + $0xcc0] sm:$0xff]
    %v939 = vld [vmem:[#allocation8 + $0xcc8] sm:$0xff]
    %v940 = vld [vmem:[#allocation8 + $0xcd0] sm:$0xff]
    %v941 = vld [vmem:[#allocation8 + $0xcd8] sm:$0xff]
    %v942 = vld [vmem:[#allocation8 + $0xce0] sm:$0xff]
    %v943 = vld [vmem:[#allocation8 + $0xce8] sm:$0xff]
    %v944 = vld [vmem:[#allocation8 + $0xcf0] sm:$0xff]
    %v945 = vld [vmem:[#allocation8 + $0xcf8] sm:$0xff]
    %v946 = vld [vmem:[#allocation8 + $0xd00] sm:$0xff]
    %v947 = vld [vmem:[#allocation8 + $0xd08] sm:$0xff]
    %v948 = vld [vmem:[#allocation8 + $0xd10] sm:$0xff]
    %v949 = vld [vmem:[#allocation8 + $0xd18] sm:$0xff]
    %v950 = vld [vmem:[#allocation8 + $0xd20] sm:$0xff]
    %v951 = vld [vmem:[#allocation8 + $0xd28] sm:$0xff]
    %v952 = vld [vmem:[#allocation8 + $0xd30] sm:$0xff]
    %v953 = vld [vmem:[#allocation8 + $0xd38] sm:$0xff]
    %v954 = vld [vmem:[#allocation8 + $0xd40] sm:$0xff]
    %v955 = vld [vmem:[#allocation8 + $0xd48] sm:$0xff]
    %v956 = vld [vmem:[#allocation8 + $0xd50] sm:$0xff]
    %v957 = vld [vmem:[#allocation8 + $0xd58] sm:$0xff]
    %v958 = vld [vmem:[#allocation8 + $0xd60] sm:$0xff]
    %v959 = vld [vmem:[#allocation8 + $0xd68] sm:$0xff]
    %v960 = vld [vmem:[#allocation8 + $0xd70] sm:$0xff]
    %v961 = vld [vmem:[#allocation8 + $0xd78] sm:$0xff]
    %v962 = vld [vmem:[#allocation8 + $0xd80] sm:$0xff]
    %v963 = vld [vmem:[#allocation8 + $0xd88] sm:$0xff]
    %v964 = vld [vmem:[#allocation8 + $0xd90] sm:$0xff]
    %v965 = vld [vmem:[#allocation8 + $0xd98] sm:$0xff]
    %v966 = vld [vmem:[#allocation8 + $0xda0] sm:$0xff]
    %v967 = vld [vmem:[#allocation8 + $0xda8] sm:$0xff]
    %v968 = vld [vmem:[#allocation8 + $0xdb0] sm:$0xff]
    %v969 = vld [vmem:[#allocation8 + $0xdb8] sm:$0xff]
    %v970 = vld [vmem:[#allocation8 + $0xdc0] sm:$0xff]
    %v971 = vld [vmem:[#allocation8 + $0xdc8] sm:$0xff]
    %v972 = vld [vmem:[#allocation8 + $0xdd0] sm:$0xff]
    %v973 = vld [vmem:[#allocation8 + $0xdd8] sm:$0xff]
    %v974 = vld [vmem:[#allocation8 + $0xde0] sm:$0xff]
    %v975 = vld [vmem:[#allocation8 + $0xde8] sm:$0xff]
    %v976 = vld [vmem:[#allocation8 + $0xdf0] sm:$0xff]
    %v977 = vld [vmem:[#allocation8 + $0xdf8] sm:$0xff]
    %v978 = vld [vmem:[#allocation8 + $0xe00] sm:$0xff]
    %v979 = vld [vmem:[#allocation8 + $0xe08] sm:$0xff]
    %v980 = vld [vmem:[#allocation8 + $0xe10] sm:$0xff]
    %v981 = vld [vmem:[#allocation8 + $0xe18] sm:$0xff]
    %v982 = vld [vmem:[#allocation8 + $0xe20] sm:$0xff]
    %v983 = vld [vmem:[#allocation8 + $0xe28] sm:$0xff]
    %v984 = vld [vmem:[#allocation8 + $0xe30] sm:$0xff]
    %v985 = vld [vmem:[#allocation8 + $0xe38] sm:$0xff]
    %v986 = vld [vmem:[#allocation8 + $0xe40] sm:$0xff]
    %v987 = vld [vmem:[#allocation8 + $0xe48] sm:$0xff]
    %v988 = vld [vmem:[#allocation8 + $0xe50] sm:$0xff]
    %v989 = vld [vmem:[#allocation8 + $0xe58] sm:$0xff]
    %v990 = vld [vmem:[#allocation8 + $0xe60] sm:$0xff]
    %v991 = vld [vmem:[#allocation8 + $0xe68] sm:$0xff]
    %v992 = vld [vmem:[#allocation8 + $0xe70] sm:$0xff]
    %v993 = vld [vmem:[#allocation8 + $0xe78] sm:$0xff]
    %v994 = vld [vmem:[#allocation8 + $0xe80] sm:$0xff]
    %v995 = vld [vmem:[#allocation8 + $0xe88] sm:$0xff]
    %v996 = vld [vmem:[#allocation8 + $0xe90] sm:$0xff]
    %v997 = vld [vmem:[#allocation8 + $0xe98] sm:$0xff]
    %v998 = vld [vmem:[#allocation8 + $0xea0] sm:$0xff]
    %v999 = vld [vmem:[#allocation8 + $0xea8] sm:$0xff]
    %v1000 = vld [vmem:[#allocation8 + $0xeb0] sm:$0xff]
    %v1001 = vld [vmem:[#allocation8 + $0xeb8] sm:$0xff]
    %v1002 = vld [vmem:[#allocation8 + $0xec0] sm:$0xff]
    %v1003 = vld [vmem:[#allocation8 + $0xec8] sm:$0xff]
    %v1004 = vld [vmem:[#allocation8 + $0xed0] sm:$0xff]
    %v1005 = vld [vmem:[#allocation8 + $0xed8] sm:$0xff]
    %v1006 = vld [vmem:[#allocation8 + $0xee0] sm:$0xff]
    %v1007 = vld [vmem:[#allocation8 + $0xee8] sm:$0xff]
    %v1008 = vld [vmem:[#allocation8 + $0xef0] sm:$0xff]
    %v1009 = vld [vmem:[#allocation8 + $0xef8] sm:$0xff]
    %v1010 = vld [vmem:[#allocation8 + $0xf00] sm:$0xff]
    %v1011 = vld [vmem:[#allocation8 + $0xf08] sm:$0xff]
    %v1012 = vld [vmem:[#allocation8 + $0xf10] sm:$0xff]
    %v1013 = vld [vmem:[#allocation8 + $0xf18] sm:$0xff]
    %v1014 = vld [vmem:[#allocation8 + $0xf20] sm:$0xff]
    %v1015 = vld [vmem:[#allocation8 + $0xf28] sm:$0xff]
    %v1016 = vld [vmem:[#allocation8 + $0xf30] sm:$0xff]
    %v1017 = vld [vmem:[#allocation8 + $0xf38] sm:$0xff]
    %v1018 = vld [vmem:[#allocation8 + $0xf40] sm:$0xff]
    %v1019 = vld [vmem:[#allocation8 + $0xf48] sm:$0xff]
    %v1020 = vld [vmem:[#allocation8 + $0xf50] sm:$0xff]
    %v1021 = vld [vmem:[#allocation8 + $0xf58] sm:$0xff]
    %v1022 = vld [vmem:[#allocation8 + $0xf60] sm:$0xff]
    %v1023 = vld [vmem:[#allocation8 + $0xf68] sm:$0xff]
    %v1024 = vld [vmem:[#allocation8 + $0xf70] sm:$0xff]
    %v1025 = vld [vmem:[#allocation8 + $0xf78] sm:$0xff]
    %v1026 = vld [vmem:[#allocation8 + $0xf80] sm:$0xff]
    %v1027 = vld [vmem:[#allocation8 + $0xf88] sm:$0xff]
    %v1028 = vld [vmem:[#allocation8 + $0xf90] sm:$0xff]
    %v1029 = vld [vmem:[#allocation8 + $0xf98] sm:$0xff]
    %v1030 = vld [vmem:[#allocation8 + $0xfa0] sm:$0xff]
    %v1031 = vld [vmem:[#allocation8 + $0xfa8] sm:$0xff]
    %v1032 = vld [vmem:[#allocation8 + $0xfb0] sm:$0xff]
    %v1033 = vld [vmem:[#allocation8 + $0xfb8] sm:$0xff]
    %v1034 = vld [vmem:[#allocation8 + $0xfc0] sm:$0xff]
    %v1035 = vld [vmem:[#allocation8 + $0xfc8] sm:$0xff]
    %v1036 = vld [vmem:[#allocation8 + $0xfd0] sm:$0xff]
    %v1037 = vld [vmem:[#allocation8 + $0xfd8] sm:$0xff]
    %v1038 = vld [vmem:[#allocation8 + $0xfe0] sm:$0xff]
    %v1039 = vld [vmem:[#allocation8 + $0xfe8] sm:$0xff]
    %v1040 = vld [vmem:[#allocation8 + $0xff0] sm:$0xff]
    %v1041 = vld [vmem:[#allocation8 + $0xff8] sm:$0xff]
    %v1042 = vld [vmem:[#allocation8 + $0x1000] sm:$0xff]
    %v1043 = vld [vmem:[#allocation8 + $0x1008] sm:$0xff]
    %v1044 = vld [vmem:[#allocation8 + $0x1010] sm:$0xff]
    %v1045 = vld [vmem:[#allocation8 + $0x1018] sm:$0xff]
    %v1046 = vld [vmem:[#allocation8 + $0x1020] sm:$0xff]
    %v1047 = vld [vmem:[#allocation8 + $0x1028] sm:$0xff]
    %v1048 = vld [vmem:[#allocation8 + $0x1030] sm:$0xff]
    %v1049 = vld [vmem:[#allocation8 + $0x1038] sm:$0xff]
    %v1050 = vld [vmem:[#allocation8 + $0x1040] sm:$0xff]
    %v1051 = vld [vmem:[#allocation8 + $0x1048] sm:$0xff]
    %v1052 = vld [vmem:[#allocation8 + $0x1050] sm:$0xff]
    %v1053 = vld [vmem:[#allocation8 + $0x1058] sm:$0xff]
    %v1054 = vld [vmem:[#allocation8 + $0x1060] sm:$0xff]
    %v1055 = vld [vmem:[#allocation8 + $0x1068] sm:$0xff]
    %v1056 = vld [vmem:[#allocation8 + $0x1070] sm:$0xff]
    %v1057 = vld [vmem:[#allocation8 + $0x1078] sm:$0xff]
    %v1058 = vld [vmem:[#allocation8 + $0x1080] sm:$0xff]
    %v1059 = vld [vmem:[#allocation8 + $0x1088] sm:$0xff]
    %v1060 = vld [vmem:[#allocation8 + $0x1090] sm:$0xff]
    %v1061 = vld [vmem:[#allocation8 + $0x1098] sm:$0xff]
    %v1062 = vld [vmem:[#allocation8 + $0x10a0] sm:$0xff]
    %v1063 = vld [vmem:[#allocation8 + $0x10a8] sm:$0xff]
    %v1064 = vld [vmem:[#allocation8 + $0x10b0] sm:$0xff]
    %v1065 = vld [vmem:[#allocation8 + $0x10b8] sm:$0xff]
    %v1066 = vld [vmem:[#allocation8 + $0x10c0] sm:$0xff]
    %v1067 = vld [vmem:[#allocation8 + $0x10c8] sm:$0xff]
    %v1068 = vld [vmem:[#allocation8 + $0x10d0] sm:$0xff]
    %v1069 = vld [vmem:[#allocation8 + $0x10d8] sm:$0xff]
    %v1070 = vld [vmem:[#allocation8 + $0x10e0] sm:$0xff]
    %v1071 = vld [vmem:[#allocation8 + $0x10e8] sm:$0xff]
    %v1072 = vld [vmem:[#allocation8 + $0x10f0] sm:$0xff]
    %v1073 = vld [vmem:[#allocation8 + $0x10f8] sm:$0xff]
    %v1074 = vld [vmem:[#allocation8 + $0x1100] sm:$0xff]
    %v1075 = vld [vmem:[#allocation8 + $0x1108] sm:$0xff]
    %v1076 = vld [vmem:[#allocation8 + $0x1110] sm:$0xff]
    %v1077 = vld [vmem:[#allocation8 + $0x1118] sm:$0xff]
    %v1078 = vld [vmem:[#allocation8 + $0x1120] sm:$0xff]
    %v1079 = vld [vmem:[#allocation8 + $0x1128] sm:$0xff]
    %v1080 = vld [vmem:[#allocation8 + $0x1130] sm:$0xff]
    %v1081 = vld [vmem:[#allocation8 + $0x1138] sm:$0xff]
    %v1082 = vld [vmem:[#allocation8 + $0x1140] sm:$0xff]
    %v1083 = vld [vmem:[#allocation8 + $0x1148] sm:$0xff]
    %v1084 = vld [vmem:[#allocation8 + $0x1150] sm:$0xff]
    %v1085 = vld [vmem:[#allocation8 + $0x1158] sm:$0xff]
    %v1086 = vld [vmem:[#allocation8 + $0x1160] sm:$0xff]
    %v1087 = vld [vmem:[#allocation8 + $0x1168] sm:$0xff]
    %v1088 = vld [vmem:[#allocation8 + $0x1170] sm:$0xff]
    %v1089 = vld [vmem:[#allocation8 + $0x1178] sm:$0xff]
    %v1090 = vld [vmem:[#allocation8 + $0x1180] sm:$0xff]
    %v1091 = vld [vmem:[#allocation8 + $0x1188] sm:$0xff]
    %v1092 = vld [vmem:[#allocation8 + $0x1190] sm:$0xff]
    %v1093 = vld [vmem:[#allocation8 + $0x1198] sm:$0xff]
    %v1094 = vld [vmem:[#allocation8 + $0x11a0] sm:$0xff]
    %v1095 = vld [vmem:[#allocation8 + $0x11a8] sm:$0xff]
    %v1096 = vld [vmem:[#allocation8 + $0x11b0] sm:$0xff]
    %v1097 = vld [vmem:[#allocation8 + $0x11b8] sm:$0xff]
    %v1098 = vld [vmem:[#allocation8 + $0x11c0] sm:$0xff]
    %v1099 = vld [vmem:[#allocation8 + $0x11c8] sm:$0xff]
    %v1100 = vld [vmem:[#allocation8 + $0x11d0] sm:$0xff]
    %v1101 = vld [vmem:[#allocation8 + $0x11d8] sm:$0xff]
    %v1102 = vld [vmem:[#allocation8 + $0x11e0] sm:$0xff]
    %v1103 = vld [vmem:[#allocation8 + $0x11e8] sm:$0xff]
    %v1104 = vld [vmem:[#allocation8 + $0x11f0] sm:$0xff]
    %v1105 = vld [vmem:[#allocation8 + $0x11f8] sm:$0xff]
    %v1106 = vld [vmem:[#allocation8 + $0x1200] sm:$0xff]
    %v1107 = vld [vmem:[#allocation8 + $0x1208] sm:$0xff]
    %v1108 = vld [vmem:[#allocation8 + $0x1210] sm:$0xff]
    %v1109 = vld [vmem:[#allocation8 + $0x1218] sm:$0xff]
    %v1110 = vld [vmem:[#allocation8 + $0x1220] sm:$0xff]
    %v1111 = vld [vmem:[#allocation8 + $0x1228] sm:$0xff]
    %v1112 = vld [vmem:[#allocation8 + $0x1230] sm:$0xff]
    %v1113 = vld [vmem:[#allocation8 + $0x1238] sm:$0xff]
    %v1114 = vld [vmem:[#allocation8 + $0x1240] sm:$0xff]
    %v1115 = vld [vmem:[#allocation8 + $0x1248] sm:$0xff]
    %v1116 = vld [vmem:[#allocation8 + $0x1250] sm:$0xff]
    %v1117 = vld [vmem:[#allocation8 + $0x1258] sm:$0xff]
    %v1118 = vld [vmem:[#allocation8 + $0x1260] sm:$0xff]
    %v1119 = vld [vmem:[#allocation8 + $0x1268] sm:$0xff]
    %v1120 = vld [vmem:[#allocation8 + $0x1270] sm:$0xff]
    %v1121 = vld [vmem:[#allocation8 + $0x1278] sm:$0xff]
    %v1122 = vld [vmem:[#allocation8 + $0x1280] sm:$0xff]
    %v1123 = vld [vmem:[#allocation8 + $0x1288] sm:$0xff]
    %v1124 = vld [vmem:[#allocation8 + $0x1290] sm:$0xff]
    %v1125 = vld [vmem:[#allocation8 + $0x1298] sm:$0xff]
    %v1126 = vld [vmem:[#allocation8 + $0x12a0] sm:$0xff]
    %v1127 = vld [vmem:[#allocation8 + $0x12a8] sm:$0xff]
    %v1128 = vld [vmem:[#allocation8 + $0x12b0] sm:$0xff]
    %v1129 = vld [vmem:[#allocation8 + $0x12b8] sm:$0xff]
    %v1130 = vld [vmem:[#allocation8 + $0x12c0] sm:$0xff]
    %v1131 = vld [vmem:[#allocation8 + $0x12c8] sm:$0xff]
    %v1132 = vld [vmem:[#allocation8 + $0x12d0] sm:$0xff]
    %v1133 = vld [vmem:[#allocation8 + $0x12d8] sm:$0xff]
    %v1134 = vld [vmem:[#allocation8 + $0x12e0] sm:$0xff]
    %v1135 = vld [vmem:[#allocation8 + $0x12e8] sm:$0xff]
    %v1136 = vld [vmem:[#allocation8 + $0x12f0] sm:$0xff]
    %v1137 = vld [vmem:[#allocation8 + $0x12f8] sm:$0xff]
    %v1138 = vld [vmem:[#allocation8 + $0x1300] sm:$0xff]
    %v1139 = vld [vmem:[#allocation8 + $0x1308] sm:$0xff]
    %v1140 = vld [vmem:[#allocation8 + $0x1310] sm:$0xff]
    %v1141 = vld [vmem:[#allocation8 + $0x1318] sm:$0xff]
    %v1142 = vld [vmem:[#allocation8 + $0x1320] sm:$0xff]
    %v1143 = vld [vmem:[#allocation8 + $0x1328] sm:$0xff]
    %v1144 = vld [vmem:[#allocation8 + $0x1330] sm:$0xff]
    %v1145 = vld [vmem:[#allocation8 + $0x1338] sm:$0xff]
    %v1146 = vld [vmem:[#allocation8 + $0x1340] sm:$0xff]
    %v1147 = vld [vmem:[#allocation8 + $0x1348] sm:$0xff]
    %v1148 = vld [vmem:[#allocation8 + $0x1350] sm:$0xff]
    %v1149 = vld [vmem:[#allocation8 + $0x1358] sm:$0xff]
    %v1150 = vld [vmem:[#allocation8 + $0x1360] sm:$0xff]
    %v1151 = vld [vmem:[#allocation8 + $0x1368] sm:$0xff]
    %v1152 = vld [vmem:[#allocation8 + $0x1370] sm:$0xff]
    %v1153 = vld [vmem:[#allocation8 + $0x1378] sm:$0xff]
    %v1154 = vld [vmem:[#allocation8 + $0x1380] sm:$0xff]
    %v1155 = vld [vmem:[#allocation8 + $0x1388] sm:$0xff]
    %v1156 = vld [vmem:[#allocation8 + $0x1390] sm:$0xff]
    %v1157 = vld [vmem:[#allocation8 + $0x1398] sm:$0xff]
    %v1158 = vld [vmem:[#allocation8 + $0x13a0] sm:$0xff]
    %v1159 = vld [vmem:[#allocation8 + $0x13a8] sm:$0xff]
    %v1160 = vld [vmem:[#allocation8 + $0x13b0] sm:$0xff]
    %v1161 = vld [vmem:[#allocation8 + $0x13b8] sm:$0xff]
    %v1162 = vld [vmem:[#allocation8 + $0x13c0] sm:$0xff]
    %v1163 = vld [vmem:[#allocation8 + $0x13c8] sm:$0xff]
    %v1164 = vld [vmem:[#allocation8 + $0x13d0] sm:$0xff]
    %v1165 = vld [vmem:[#allocation8 + $0x13d8] sm:$0xff]
    %v1166 = vld [vmem:[#allocation8 + $0x13e0] sm:$0xff]
    %v1167 = vld [vmem:[#allocation8 + $0x13e8] sm:$0xff]
    %v1168 = vld [vmem:[#allocation8 + $0x13f0] sm:$0xff]
    %v1169 = vld [vmem:[#allocation8 + $0x13f8] sm:$0xff]
    %v1170 = vld [vmem:[#allocation8 + $0x1400] sm:$0xff]
    %v1171 = vld [vmem:[#allocation8 + $0x1408] sm:$0xff]
    %v1172 = vld [vmem:[#allocation8 + $0x1410] sm:$0xff]
    %v1173 = vld [vmem:[#allocation8 + $0x1418] sm:$0xff]
    %v1174 = vld [vmem:[#allocation8 + $0x1420] sm:$0xff]
    %v1175 = vld [vmem:[#allocation8 + $0x1428] sm:$0xff]
    %v1176 = vld [vmem:[#allocation8 + $0x1430] sm:$0xff]
    %v1177 = vld [vmem:[#allocation8 + $0x1438] sm:$0xff]
    %v1178 = vld [vmem:[#allocation8 + $0x1440] sm:$0xff]
    %v1179 = vld [vmem:[#allocation8 + $0x1448] sm:$0xff]
    %v1180 = vld [vmem:[#allocation8 + $0x1450] sm:$0xff]
    %v1181 = vld [vmem:[#allocation8 + $0x1458] sm:$0xff]
    %v1182 = vld [vmem:[#allocation8 + $0x1460] sm:$0xff]
    %v1183 = vld [vmem:[#allocation8 + $0x1468] sm:$0xff]
    %v1184 = vld [vmem:[#allocation8 + $0x1470] sm:$0xff]
    %v1185 = vld [vmem:[#allocation8 + $0x1478] sm:$0xff]
    %v1186 = vld [vmem:[#allocation8 + $0x1480] sm:$0xff]
    %v1187 = vld [vmem:[#allocation8 + $0x1488] sm:$0xff]
    %v1188 = vld [vmem:[#allocation8 + $0x1490] sm:$0xff]
    %v1189 = vld [vmem:[#allocation8 + $0x1498] sm:$0xff]
    %v1190 = vld [vmem:[#allocation8 + $0x14a0] sm:$0xff]
    %v1191 = vld [vmem:[#allocation8 + $0x14a8] sm:$0xff]
    %v1192 = vld [vmem:[#allocation8 + $0x14b0] sm:$0xff]
    %v1193 = vld [vmem:[#allocation8 + $0x14b8] sm:$0xff]
    %v1194 = vld [vmem:[#allocation8 + $0x14c0] sm:$0xff]
    %v1195 = vld [vmem:[#allocation8 + $0x14c8] sm:$0xff]
    %v1196 = vld [vmem:[#allocation8 + $0x14d0] sm:$0xff]
    %v1197 = vld [vmem:[#allocation8 + $0x14d8] sm:$0xff]
    %v1198 = vld [vmem:[#allocation8 + $0x14e0] sm:$0xff]
    %v1199 = vld [vmem:[#allocation8 + $0x14e8] sm:$0xff]
    %v1200 = vld [vmem:[#allocation8 + $0x14f0] sm:$0xff]
    %v1201 = vld [vmem:[#allocation8 + $0x14f8] sm:$0xff]
    %v1202 = vld [vmem:[#allocation8 + $0x1500] sm:$0xff]
    %v1203 = vld [vmem:[#allocation8 + $0x1508] sm:$0xff]
    %v1204 = vld [vmem:[#allocation8 + $0x1510] sm:$0xff]
    %v1205 = vld [vmem:[#allocation8 + $0x1518] sm:$0xff]
    %v1206 = vld [vmem:[#allocation8 + $0x1520] sm:$0xff]
    %v1207 = vld [vmem:[#allocation8 + $0x1528] sm:$0xff]
    %v1208 = vld [vmem:[#allocation8 + $0x1530] sm:$0xff]
    %v1209 = vld [vmem:[#allocation8 + $0x1538] sm:$0xff]
    %v1210 = vld [vmem:[#allocation8 + $0x1540] sm:$0xff]
    %v1211 = vld [vmem:[#allocation8 + $0x1548] sm:$0xff]
    %v1212 = vld [vmem:[#allocation8 + $0x1550] sm:$0xff]
    %v1213 = vld [vmem:[#allocation8 + $0x1558] sm:$0xff]
    %v1214 = vld [vmem:[#allocation8 + $0x1560] sm:$0xff]
    %v1215 = vld [vmem:[#allocation8 + $0x1568] sm:$0xff]
    %v1216 = vld [vmem:[#allocation8 + $0x1570] sm:$0xff]
    %v1217 = vld [vmem:[#allocation8 + $0x1578] sm:$0xff]
    %v1218 = vld [vmem:[#allocation8 + $0x1580] sm:$0xff]
    %v1219 = vld [vmem:[#allocation8 + $0x1588] sm:$0xff]
    %v1220 = vld [vmem:[#allocation8 + $0x1590] sm:$0xff]
    %v1221 = vld [vmem:[#allocation8 + $0x1598] sm:$0xff]
    %v1222 = vld [vmem:[#allocation8 + $0x15a0] sm:$0xff]
    %v1223 = vld [vmem:[#allocation8 + $0x15a8] sm:$0xff]
    %v1224 = vld [vmem:[#allocation8 + $0x15b0] sm:$0xff]
    %v1225 = vld [vmem:[#allocation8 + $0x15b8] sm:$0xff]
    %v1226 = vld [vmem:[#allocation8 + $0x15c0] sm:$0xff]
    %v1227 = vld [vmem:[#allocation8 + $0x15c8] sm:$0xff]
    %v1228 = vld [vmem:[#allocation8 + $0x15d0] sm:$0xff]
    %v1229 = vld [vmem:[#allocation8 + $0x15d8] sm:$0xff]
    %v1230 = vld [vmem:[#allocation8 + $0x15e0] sm:$0xff]
    %v1231 = vld [vmem:[#allocation8 + $0x15e8] sm:$0xff]
    %v1232 = vld [vmem:[#allocation8 + $0x15f0] sm:$0xff]
    %v1233 = vld [vmem:[#allocation8 + $0x15f8] sm:$0xff]
    %v1234 = vld [vmem:[#allocation8 + $0x1600] sm:$0xff]
    %v1235 = vld [vmem:[#allocation8 + $0x1608] sm:$0xff]
    %v1236 = vld [vmem:[#allocation8 + $0x1610] sm:$0xff]
    %v1237 = vld [vmem:[#allocation8 + $0x1618] sm:$0xff]
    %v1238 = vld [vmem:[#allocation8 + $0x1620] sm:$0xff]
    %v1239 = vld [vmem:[#allocation8 + $0x1628] sm:$0xff]
    %v1240 = vld [vmem:[#allocation8 + $0x1630] sm:$0xff]
    %v1241 = vld [vmem:[#allocation8 + $0x1638] sm:$0xff]
    %v1242 = vld [vmem:[#allocation8 + $0x1640] sm:$0xff]
    %v1243 = vld [vmem:[#allocation8 + $0x1648] sm:$0xff]
    %v1244 = vld [vmem:[#allocation8 + $0x1650] sm:$0xff]
    %v1245 = vld [vmem:[#allocation8 + $0x1658] sm:$0xff]
    %v1246 = vld [vmem:[#allocation8 + $0x1660] sm:$0xff]
    %v1247 = vld [vmem:[#allocation8 + $0x1668] sm:$0xff]
    %v1248 = vld [vmem:[#allocation8 + $0x1670] sm:$0xff]
    %v1249 = vld [vmem:[#allocation8 + $0x1678] sm:$0xff]
    %v1250 = vld [vmem:[#allocation8 + $0x1680] sm:$0xff]
    %v1251 = vld [vmem:[#allocation8 + $0x1688] sm:$0xff]
    %v1252 = vld [vmem:[#allocation8 + $0x1690] sm:$0xff]
    %v1253 = vld [vmem:[#allocation8 + $0x1698] sm:$0xff]
    %v1254 = vld [vmem:[#allocation8 + $0x16a0] sm:$0xff]
    %v1255 = vld [vmem:[#allocation8 + $0x16a8] sm:$0xff]
    %v1256 = vld [vmem:[#allocation8 + $0x16b0] sm:$0xff]
    %v1257 = vld [vmem:[#allocation8 + $0x16b8] sm:$0xff]
    %v1258 = vld [vmem:[#allocation8 + $0x16c0] sm:$0xff]
    %v1259 = vld [vmem:[#allocation8 + $0x16c8] sm:$0xff]
    %v1260 = vld [vmem:[#allocation8 + $0x16d0] sm:$0xff]
    %v1261 = vld [vmem:[#allocation8 + $0x16d8] sm:$0xff]
    %v1262 = vld [vmem:[#allocation8 + $0x16e0] sm:$0xff]
    %v1263 = vld [vmem:[#allocation8 + $0x16e8] sm:$0xff]
    %v1264 = vld [vmem:[#allocation8 + $0x16f0] sm:$0xff]
    %v1265 = vld [vmem:[#allocation8 + $0x16f8] sm:$0xff]
    %v1266 = vld [vmem:[#allocation8 + $0x1700] sm:$0xff]
    %v1267 = vld [vmem:[#allocation8 + $0x1708] sm:$0xff]
    %v1268 = vld [vmem:[#allocation8 + $0x1710] sm:$0xff]
    %v1269 = vld [vmem:[#allocation8 + $0x1718] sm:$0xff]
    %v1270 = vld [vmem:[#allocation8 + $0x1720] sm:$0xff]
    %v1271 = vld [vmem:[#allocation8 + $0x1728] sm:$0xff]
    %v1272 = vld [vmem:[#allocation8 + $0x1730] sm:$0xff]
    %v1273 = vld [vmem:[#allocation8 + $0x1738] sm:$0xff]
    %v1274 = vld [vmem:[#allocation8 + $0x1740] sm:$0xff]
    %v1275 = vld [vmem:[#allocation8 + $0x1748] sm:$0xff]
    %v1276 = vld [vmem:[#allocation8 + $0x1750] sm:$0xff]
    %v1277 = vld [vmem:[#allocation8 + $0x1758] sm:$0xff]
    %v1278 = vld [vmem:[#allocation8 + $0x1760] sm:$0xff]
    %v1279 = vld [vmem:[#allocation8 + $0x1768] sm:$0xff]
    %v1280 = vld [vmem:[#allocation8 + $0x1770] sm:$0xff]
    %v1281 = vld [vmem:[#allocation8 + $0x1778] sm:$0xff]
    %v1282 = vld [vmem:[#allocation8 + $0x1780] sm:$0xff]
    %v1283 = vld [vmem:[#allocation8 + $0x1788] sm:$0xff]
    %v1284 = vld [vmem:[#allocation8 + $0x1790] sm:$0xff]
    %v1285 = vld [vmem:[#allocation8 + $0x1798] sm:$0xff]
    %v1286 = vld [vmem:[#allocation8 + $0x17a0] sm:$0xff]
    %v1287 = vld [vmem:[#allocation8 + $0x17a8] sm:$0xff]
    %v1288 = vld [vmem:[#allocation8 + $0x17b0] sm:$0xff]
    %v1289 = vld [vmem:[#allocation8 + $0x17b8] sm:$0xff]
    %v1290 = vld [vmem:[#allocation8 + $0x17c0] sm:$0xff]
    %v1291 = vld [vmem:[#allocation8 + $0x17c8] sm:$0xff]
    %v1292 = vld [vmem:[#allocation8 + $0x17d0] sm:$0xff]
    %v1293 = vld [vmem:[#allocation8 + $0x17d8] sm:$0xff]
    %v1294 = vld [vmem:[#allocation8 + $0x17e0] sm:$0xff]
    %v1295 = vld [vmem:[#allocation8 + $0x17e8] sm:$0xff]
    %v1296 = vld [vmem:[#allocation8 + $0x17f0] sm:$0xff]
    %v1297 = vld [vmem:[#allocation8 + $0x17f8] sm:$0xff]
    %v1298 = vld [vmem:[#allocation8 + $0x1800] sm:$0xff]
    %v1299 = vld [vmem:[#allocation8 + $0x1808] sm:$0xff]
    %v1300 = vld [vmem:[#allocation8 + $0x1810] sm:$0xff]
    %v1301 = vld [vmem:[#allocation8 + $0x1818] sm:$0xff]
    %v1302 = vld [vmem:[#allocation8 + $0x1820] sm:$0xff]
    %v1303 = vld [vmem:[#allocation8 + $0x1828] sm:$0xff]
    %v1304 = vld [vmem:[#allocation8 + $0x1830] sm:$0xff]
    %v1305 = vld [vmem:[#allocation8 + $0x1838] sm:$0xff]
    %v1306 = vld [vmem:[#allocation8 + $0x1840] sm:$0xff]
    %v1307 = vld [vmem:[#allocation8 + $0x1848] sm:$0xff]
    %v1308 = vld [vmem:[#allocation8 + $0x1850] sm:$0xff]
    %v1309 = vld [vmem:[#allocation8 + $0x1858] sm:$0xff]
    %v1310 = vld [vmem:[#allocation8 + $0x1860] sm:$0xff]
    %v1311 = vld [vmem:[#allocation8 + $0x1868] sm:$0xff]
    %v1312 = vld [vmem:[#allocation8 + $0x1870] sm:$0xff]
    %v1313 = vld [vmem:[#allocation8 + $0x1878] sm:$0xff]
    %v1314 = vld [vmem:[#allocation8 + $0x1880] sm:$0xff]
    %v1315 = vld [vmem:[#allocation8 + $0x1888] sm:$0xff]
    %v1316 = vld [vmem:[#allocation8 + $0x1890] sm:$0xff]
    %v1317 = vld [vmem:[#allocation8 + $0x1898] sm:$0xff]
    %v1318 = vld [vmem:[#allocation8 + $0x18a0] sm:$0xff]
    %v1319 = vld [vmem:[#allocation8 + $0x18a8] sm:$0xff]
    %v1320 = vld [vmem:[#allocation8 + $0x18b0] sm:$0xff]
    %v1321 = vld [vmem:[#allocation8 + $0x18b8] sm:$0xff]
    %v1322 = vld [vmem:[#allocation8 + $0x18c0] sm:$0xff]
    %v1323 = vld [vmem:[#allocation8 + $0x18c8] sm:$0xff]
    %v1324 = vld [vmem:[#allocation8 + $0x18d0] sm:$0xff]
    %v1325 = vld [vmem:[#allocation8 + $0x18d8] sm:$0xff]
    %v1326 = vld [vmem:[#allocation8 + $0x18e0] sm:$0xff]
    %v1327 = vld [vmem:[#allocation8 + $0x18e8] sm:$0xff]
    %v1328 = vld [vmem:[#allocation8 + $0x18f0] sm:$0xff]
    %v1329 = vld [vmem:[#allocation8 + $0x18f8] sm:$0xff]
    %v1330 = vld [vmem:[#allocation8 + $0x1900] sm:$0xff]
    %v1331 = vld [vmem:[#allocation8 + $0x1908] sm:$0xff]
    %v1332 = vld [vmem:[#allocation8 + $0x1910] sm:$0xff]
    %v1333 = vld [vmem:[#allocation8 + $0x1918] sm:$0xff]
    %v1334 = vld [vmem:[#allocation8 + $0x1920] sm:$0xff]
    %v1335 = vld [vmem:[#allocation8 + $0x1928] sm:$0xff]
    %v1336 = vld [vmem:[#allocation8 + $0x1930] sm:$0xff]
    %v1337 = vld [vmem:[#allocation8 + $0x1938] sm:$0xff]
    %v1338 = vld [vmem:[#allocation8 + $0x1940] sm:$0xff]
    %v1339 = vld [vmem:[#allocation8 + $0x1948] sm:$0xff]
    %v1340 = vld [vmem:[#allocation8 + $0x1950] sm:$0xff]
    %v1341 = vld [vmem:[#allocation8 + $0x1958] sm:$0xff]
    %v1342 = vld [vmem:[#allocation8 + $0x1960] sm:$0xff]
    %v1343 = vld [vmem:[#allocation8 + $0x1968] sm:$0xff]
    %v1344 = vld [vmem:[#allocation8 + $0x1970] sm:$0xff]
    %v1345 = vld [vmem:[#allocation8 + $0x1978] sm:$0xff]
    %v1346 = vld [vmem:[#allocation8 + $0x1980] sm:$0xff]
    %v1347 = vld [vmem:[#allocation8 + $0x1988] sm:$0xff]
    %v1348 = vld [vmem:[#allocation8 + $0x1990] sm:$0xff]
    %v1349 = vld [vmem:[#allocation8 + $0x1998] sm:$0xff]
    %v1350 = vld [vmem:[#allocation8 + $0x19a0] sm:$0xff]
    %v1351 = vld [vmem:[#allocation8 + $0x19a8] sm:$0xff]
    %v1352 = vld [vmem:[#allocation8 + $0x19b0] sm:$0xff]
    %v1353 = vld [vmem:[#allocation8 + $0x19b8] sm:$0xff]
    %v1354 = vld [vmem:[#allocation8 + $0x19c0] sm:$0xff]
    %v1355 = vld [vmem:[#allocation8 + $0x19c8] sm:$0xff]
    %v1356 = vld [vmem:[#allocation8 + $0x19d0] sm:$0xff]
    %v1357 = vld [vmem:[#allocation8 + $0x19d8] sm:$0xff]
    %v1358 = vld [vmem:[#allocation8 + $0x19e0] sm:$0xff]
    %v1359 = vld [vmem:[#allocation8 + $0x19e8] sm:$0xff]
    %v1360 = vld [vmem:[#allocation8 + $0x19f0] sm:$0xff]
    %v1361 = vld [vmem:[#allocation8 + $0x19f8] sm:$0xff]
    %v1362 = vld [vmem:[#allocation8 + $0x1a00] sm:$0xff]
    %v1363 = vld [vmem:[#allocation8 + $0x1a08] sm:$0xff]
    %v1364 = vld [vmem:[#allocation8 + $0x1a10] sm:$0xff]
    %v1365 = vld [vmem:[#allocation8 + $0x1a18] sm:$0xff]
    %v1366 = vld [vmem:[#allocation8 + $0x1a20] sm:$0xff]
    %v1367 = vld [vmem:[#allocation8 + $0x1a28] sm:$0xff]
    %v1368 = vld [vmem:[#allocation8 + $0x1a30] sm:$0xff]
    %v1369 = vld [vmem:[#allocation8 + $0x1a38] sm:$0xff]
    %v1370 = vld [vmem:[#allocation8 + $0x1a40] sm:$0xff]
    %v1371 = vld [vmem:[#allocation8 + $0x1a48] sm:$0xff]
    %v1372 = vld [vmem:[#allocation8 + $0x1a50] sm:$0xff]
    %v1373 = vld [vmem:[#allocation8 + $0x1a58] sm:$0xff]
    %v1374 = vld [vmem:[#allocation8 + $0x1a60] sm:$0xff]
    %v1375 = vld [vmem:[#allocation8 + $0x1a68] sm:$0xff]
    %v1376 = vld [vmem:[#allocation8 + $0x1a70] sm:$0xff]
    %v1377 = vld [vmem:[#allocation8 + $0x1a78] sm:$0xff]
    %v1378 = vld [vmem:[#allocation8 + $0x1a80] sm:$0xff]
    %v1379 = vld [vmem:[#allocation8 + $0x1a88] sm:$0xff]
    %v1380 = vld [vmem:[#allocation8 + $0x1a90] sm:$0xff]
    %v1381 = vld [vmem:[#allocation8 + $0x1a98] sm:$0xff]
    %v1382 = vld [vmem:[#allocation8 + $0x1aa0] sm:$0xff]
    %v1383 = vld [vmem:[#allocation8 + $0x1aa8] sm:$0xff]
    %v1384 = vld [vmem:[#allocation8 + $0x1ab0] sm:$0xff]
    %v1385 = vld [vmem:[#allocation8 + $0x1ab8] sm:$0xff]
    %v1386 = vld [vmem:[#allocation8 + $0x1ac0] sm:$0xff]
    %v1387 = vld [vmem:[#allocation8 + $0x1ac8] sm:$0xff]
    %v1388 = vld [vmem:[#allocation8 + $0x1ad0] sm:$0xff]
    %v1389 = vld [vmem:[#allocation8 + $0x1ad8] sm:$0xff]
    %v1390 = vld [vmem:[#allocation8 + $0x1ae0] sm:$0xff]
    %v1391 = vld [vmem:[#allocation8 + $0x1ae8] sm:$0xff]
    %v1392 = vld [vmem:[#allocation8 + $0x1af0] sm:$0xff]
    %v1393 = vld [vmem:[#allocation8 + $0x1af8] sm:$0xff]
    %v1394 = vld [vmem:[#allocation8 + $0x1b00] sm:$0xff]
    %v1395 = vld [vmem:[#allocation8 + $0x1b08] sm:$0xff]
    %v1396 = vld [vmem:[#allocation8 + $0x1b10] sm:$0xff]
    %v1397 = vld [vmem:[#allocation8 + $0x1b18] sm:$0xff]
    %v1398 = vld [vmem:[#allocation8 + $0x1b20] sm:$0xff]
    %v1399 = vld [vmem:[#allocation8 + $0x1b28] sm:$0xff]
    %v1400 = vld [vmem:[#allocation8 + $0x1b30] sm:$0xff]
    %v1401 = vld [vmem:[#allocation8 + $0x1b38] sm:$0xff]
    %v1402 = vld [vmem:[#allocation8 + $0x1b40] sm:$0xff]
    %v1403 = vld [vmem:[#allocation8 + $0x1b48] sm:$0xff]
    %v1404 = vld [vmem:[#allocation8 + $0x1b50] sm:$0xff]
    %v1405 = vld [vmem:[#allocation8 + $0x1b58] sm:$0xff]
    %v1406 = vld [vmem:[#allocation8 + $0x1b60] sm:$0xff]
    %v1407 = vld [vmem:[#allocation8 + $0x1b68] sm:$0xff]
    %v1408 = vld [vmem:[#allocation8 + $0x1b70] sm:$0xff]
    %v1409 = vld [vmem:[#allocation8 + $0x1b78] sm:$0xff]
    %v1410 = vld [vmem:[#allocation8 + $0x1b80] sm:$0xff]
    %v1411 = vld [vmem:[#allocation8 + $0x1b88] sm:$0xff]
    %v1412 = vld [vmem:[#allocation8 + $0x1b90] sm:$0xff]
    %v1413 = vld [vmem:[#allocation8 + $0x1b98] sm:$0xff]
    %v1414 = vld [vmem:[#allocation8 + $0x1ba0] sm:$0xff]
    %v1415 = vld [vmem:[#allocation8 + $0x1ba8] sm:$0xff]
    %v1416 = vld [vmem:[#allocation8 + $0x1bb0] sm:$0xff]
    %v1417 = vld [vmem:[#allocation8 + $0x1bb8] sm:$0xff]
    %v1418 = vld [vmem:[#allocation8 + $0x1bc0] sm:$0xff]
    %v1419 = vld [vmem:[#allocation8 + $0x1bc8] sm:$0xff]
    %v1420 = vld [vmem:[#allocation8 + $0x1bd0] sm:$0xff]
    %v1421 = vld [vmem:[#allocation8 + $0x1bd8] sm:$0xff]
    %v1422 = vld [vmem:[#allocation8 + $0x1be0] sm:$0xff]
    %v1423 = vld [vmem:[#allocation8 + $0x1be8] sm:$0xff]
    %v1424 = vld [vmem:[#allocation8 + $0x1bf0] sm:$0xff]
    %v1425 = vld [vmem:[#allocation8 + $0x1bf8] sm:$0xff]
    %v1426 = vld [vmem:[#allocation8 + $0x1c00] sm:$0xff]
    %v1427 = vld [vmem:[#allocation8 + $0x1c08] sm:$0xff]
    %v1428 = vld [vmem:[#allocation8 + $0x1c10] sm:$0xff]
    %v1429 = vld [vmem:[#allocation8 + $0x1c18] sm:$0xff]
    %v1430 = vld [vmem:[#allocation8 + $0x1c20] sm:$0xff]
    %v1431 = vld [vmem:[#allocation8 + $0x1c28] sm:$0xff]
    %v1432 = vld [vmem:[#allocation8 + $0x1c30] sm:$0xff]
    %v1433 = vld [vmem:[#allocation8 + $0x1c38] sm:$0xff]
    %v1434 = vld [vmem:[#allocation8 + $0x1c40] sm:$0xff]
    %v1435 = vld [vmem:[#allocation8 + $0x1c48] sm:$0xff]
    %v1436 = vld [vmem:[#allocation8 + $0x1c50] sm:$0xff]
    %v1437 = vld [vmem:[#allocation8 + $0x1c58] sm:$0xff]
    %v1438 = vld [vmem:[#allocation8 + $0x1c60] sm:$0xff]
    %v1439 = vld [vmem:[#allocation8 + $0x1c68] sm:$0xff]
    %v1440 = vld [vmem:[#allocation8 + $0x1c70] sm:$0xff]
    %v1441 = vld [vmem:[#allocation8 + $0x1c78] sm:$0xff]
    %v1442 = vld [vmem:[#allocation8 + $0x1c80] sm:$0xff]
    %v1443 = vld [vmem:[#allocation8 + $0x1c88] sm:$0xff]
    %v1444 = vld [vmem:[#allocation8 + $0x1c90] sm:$0xff]
    %v1445 = vld [vmem:[#allocation8 + $0x1c98] sm:$0xff]
    %v1446 = vld [vmem:[#allocation8 + $0x1ca0] sm:$0xff]
    %v1447 = vld [vmem:[#allocation8 + $0x1ca8] sm:$0xff]
    %v1448 = vld [vmem:[#allocation8 + $0x1cb0] sm:$0xff]
    %v1449 = vld [vmem:[#allocation8 + $0x1cb8] sm:$0xff]
    %v1450 = vld [vmem:[#allocation8 + $0x1cc0] sm:$0xff]
    %v1451 = vld [vmem:[#allocation8 + $0x1cc8] sm:$0xff]
    %v1452 = vld [vmem:[#allocation8 + $0x1cd0] sm:$0xff]
    %v1453 = vld [vmem:[#allocation8 + $0x1cd8] sm:$0xff]
    %v1454 = vld [vmem:[#allocation8 + $0x1ce0] sm:$0xff]
    %v1455 = vld [vmem:[#allocation8 + $0x1ce8] sm:$0xff]
    %v1456 = vld [vmem:[#allocation8 + $0x1cf0] sm:$0xff]
    %v1457 = vld [vmem:[#allocation8 + $0x1cf8] sm:$0xff]
    %v1458 = vld [vmem:[#allocation8 + $0x1d00] sm:$0xff]
    %v1459 = vld [vmem:[#allocation8 + $0x1d08] sm:$0xff]
    %v1460 = vld [vmem:[#allocation8 + $0x1d10] sm:$0xff]
    %v1461 = vld [vmem:[#allocation8 + $0x1d18] sm:$0xff]
    %v1462 = vld [vmem:[#allocation8 + $0x1d20] sm:$0xff]
    %v1463 = vld [vmem:[#allocation8 + $0x1d28] sm:$0xff]
    %v1464 = vld [vmem:[#allocation8 + $0x1d30] sm:$0xff]
    %v1465 = vld [vmem:[#allocation8 + $0x1d38] sm:$0xff]
    %v1466 = vld [vmem:[#allocation8 + $0x1d40] sm:$0xff]
    %v1467 = vld [vmem:[#allocation8 + $0x1d48] sm:$0xff]
    %v1468 = vld [vmem:[#allocation8 + $0x1d50] sm:$0xff]
    %v1469 = vld [vmem:[#allocation8 + $0x1d58] sm:$0xff]
    %v1470 = vld [vmem:[#allocation8 + $0x1d60] sm:$0xff]
    %v1471 = vld [vmem:[#allocation8 + $0x1d68] sm:$0xff]
    %v1472 = vld [vmem:[#allocation8 + $0x1d70] sm:$0xff]
    %v1473 = vld [vmem:[#allocation8 + $0x1d78] sm:$0xff]
    %v1474 = vld [vmem:[#allocation8 + $0x1d80] sm:$0xff]
    %v1475 = vld [vmem:[#allocation8 + $0x1d88] sm:$0xff]
    %v1476 = vld [vmem:[#allocation8 + $0x1d90] sm:$0xff]
    %v1477 = vld [vmem:[#allocation8 + $0x1d98] sm:$0xff]
    %v1478 = vld [vmem:[#allocation8 + $0x1da0] sm:$0xff]
    %v1479 = vld [vmem:[#allocation8 + $0x1da8] sm:$0xff]
    %v1480 = vld [vmem:[#allocation8 + $0x1db0] sm:$0xff]
    %v1481 = vld [vmem:[#allocation8 + $0x1db8] sm:$0xff]
    %v1482 = vld [vmem:[#allocation8 + $0x1dc0] sm:$0xff]
    %v1483 = vld [vmem:[#allocation8 + $0x1dc8] sm:$0xff]
    %v1484 = vld [vmem:[#allocation8 + $0x1dd0] sm:$0xff]
    %v1485 = vld [vmem:[#allocation8 + $0x1dd8] sm:$0xff]
    %v1486 = vld [vmem:[#allocation8 + $0x1de0] sm:$0xff]
    %v1487 = vld [vmem:[#allocation8 + $0x1de8] sm:$0xff]
    %v1488 = vld [vmem:[#allocation8 + $0x1df0] sm:$0xff]
    %v1489 = vld [vmem:[#allocation8 + $0x1df8] sm:$0xff]
    %v1490 = vld [vmem:[#allocation8 + $0x1e00] sm:$0xff]
    %v1491 = vld [vmem:[#allocation8 + $0x1e08] sm:$0xff]
    %v1492 = vld [vmem:[#allocation8 + $0x1e10] sm:$0xff]
    %v1493 = vld [vmem:[#allocation8 + $0x1e18] sm:$0xff]
    %v1494 = vld [vmem:[#allocation8 + $0x1e20] sm:$0xff]
    %v1495 = vld [vmem:[#allocation8 + $0x1e28] sm:$0xff]
    %v1496 = vld [vmem:[#allocation8 + $0x1e30] sm:$0xff]
    %v1497 = vld [vmem:[#allocation8 + $0x1e38] sm:$0xff]
    %v1498 = vld [vmem:[#allocation8 + $0x1e40] sm:$0xff]
    %v1499 = vld [vmem:[#allocation8 + $0x1e48] sm:$0xff]
    %v1500 = vld [vmem:[#allocation8 + $0x1e50] sm:$0xff]
    %v1501 = vld [vmem:[#allocation8 + $0x1e58] sm:$0xff]
    %v1502 = vld [vmem:[#allocation8 + $0x1e60] sm:$0xff]
    %v1503 = vld [vmem:[#allocation8 + $0x1e68] sm:$0xff]
    %v1504 = vld [vmem:[#allocation8 + $0x1e70] sm:$0xff]
    %v1505 = vld [vmem:[#allocation8 + $0x1e78] sm:$0xff]
    %v1506 = vld [vmem:[#allocation8 + $0x1e80] sm:$0xff]
    %v1507 = vld [vmem:[#allocation8 + $0x1e88] sm:$0xff]
    %v1508 = vld [vmem:[#allocation8 + $0x1e90] sm:$0xff]
    %v1509 = vld [vmem:[#allocation8 + $0x1e98] sm:$0xff]
    %v1510 = vld [vmem:[#allocation8 + $0x1ea0] sm:$0xff]
    %v1511 = vld [vmem:[#allocation8 + $0x1ea8] sm:$0xff]
    %v1512 = vld [vmem:[#allocation8 + $0x1eb0] sm:$0xff]
    %v1513 = vld [vmem:[#allocation8 + $0x1eb8] sm:$0xff]
    %v1514 = vld [vmem:[#allocation8 + $0x1ec0] sm:$0xff]
    %v1515 = vld [vmem:[#allocation8 + $0x1ec8] sm:$0xff]
    %v1516 = vld [vmem:[#allocation8 + $0x1ed0] sm:$0xff]
    %v1517 = vld [vmem:[#allocation8 + $0x1ed8] sm:$0xff]
    %v1518 = vld [vmem:[#allocation8 + $0x1ee0] sm:$0xff]
    %v1519 = vld [vmem:[#allocation8 + $0x1ee8] sm:$0xff]
    %v1520 = vld [vmem:[#allocation8 + $0x1ef0] sm:$0xff]
    %v1521 = vld [vmem:[#allocation8 + $0x1ef8] sm:$0xff]
    %v1522 = vld [vmem:[#allocation8 + $0x1f00] sm:$0xff]
    %v1523 = vld [vmem:[#allocation8 + $0x1f08] sm:$0xff]
    %v1524 = vld [vmem:[#allocation8 + $0x1f10] sm:$0xff]
    %v1525 = vld [vmem:[#allocation8 + $0x1f18] sm:$0xff]
    %v1526 = vld [vmem:[#allocation8 + $0x1f20] sm:$0xff]
    %v1527 = vld [vmem:[#allocation8 + $0x1f28] sm:$0xff]
    %v1528 = vld [vmem:[#allocation8 + $0x1f30] sm:$0xff]
    %v1529 = vld [vmem:[#allocation8 + $0x1f38] sm:$0xff]
    %v1530 = vld [vmem:[#allocation8 + $0x1f40] sm:$0xff]
    %v1531 = vld [vmem:[#allocation8 + $0x1f48] sm:$0xff]
    %v1532 = vld [vmem:[#allocation8 + $0x1f50] sm:$0xff]
    %v1533 = vld [vmem:[#allocation8 + $0x1f58] sm:$0xff]
    %v1534 = vld [vmem:[#allocation8 + $0x1f60] sm:$0xff]
    %v1535 = vld [vmem:[#allocation8 + $0x1f68] sm:$0xff]
    %v1536 = vld [vmem:[#allocation8 + $0x1f70] sm:$0xff]
    %v1537 = vld [vmem:[#allocation8 + $0x1f78] sm:$0xff]
    %v2546 = vunpack.c.l.b16 %v530
    %v2547 = vunpack.c.h.b16 %v530
    %v2548 = vunpack.c.l.b16 %v531
    %v2549 = vunpack.c.h.b16 %v531
    %v2550 = vunpack.c.l.b16 %v532
    %v2551 = vunpack.c.h.b16 %v532
    %v2552 = vunpack.c.l.b16 %v533
    %v2553 = vunpack.c.h.b16 %v533
    %v2554 = vunpack.c.l.b16 %v534
    %v2555 = vunpack.c.h.b16 %v534
    %v2556 = vunpack.c.l.b16 %v535
    %v2557 = vunpack.c.h.b16 %v535
    %v2558 = vunpack.c.l.b16 %v536
    %v2559 = vunpack.c.h.b16 %v536
    %v2560 = vunpack.c.l.b16 %v537
    %v2561 = vunpack.c.h.b16 %v537
    %v2562 = vunpack.c.l.b16 %v538
    %v2563 = vunpack.c.h.b16 %v538
    %v2564 = vunpack.c.l.b16 %v539
    %v2565 = vunpack.c.h.b16 %v539
    %v2566 = vunpack.c.l.b16 %v540
    %v2567 = vunpack.c.h.b16 %v540
    %v2568 = vunpack.c.l.b16 %v541
    %v2569 = vunpack.c.h.b16 %v541
    %v2570 = vunpack.c.l.b16 %v542
    %v2571 = vunpack.c.h.b16 %v542
    %v2572 = vunpack.c.l.b16 %v543
    %v2573 = vunpack.c.h.b16 %v543
    %v2574 = vunpack.c.l.b16 %v544
    %v2575 = vunpack.c.h.b16 %v544
    %v2576 = vunpack.c.l.b16 %v545
    %v2577 = vunpack.c.h.b16 %v545
    %v2578 = vunpack.c.l.b16 %v546
    %v2579 = vunpack.c.h.b16 %v546
    %v2580 = vunpack.c.l.b16 %v547
    %v2581 = vunpack.c.h.b16 %v547
    %v2582 = vunpack.c.l.b16 %v548
    %v2583 = vunpack.c.h.b16 %v548
    %v2584 = vunpack.c.l.b16 %v549
    %v2585 = vunpack.c.h.b16 %v549
    %v2586 = vunpack.c.l.b16 %v550
    %v2587 = vunpack.c.h.b16 %v550
    %v2588 = vunpack.c.l.b16 %v551
    %v2589 = vunpack.c.h.b16 %v551
    %v2590 = vunpack.c.l.b16 %v552
    %v2591 = vunpack.c.h.b16 %v552
    %v2592 = vunpack.c.l.b16 %v553
    %v2593 = vunpack.c.h.b16 %v553
    %v2594 = vunpack.c.l.b16 %v554
    %v2595 = vunpack.c.h.b16 %v554
    %v2596 = vunpack.c.l.b16 %v555
    %v2597 = vunpack.c.h.b16 %v555
    %v2598 = vunpack.c.l.b16 %v556
    %v2599 = vunpack.c.h.b16 %v556
    %v2600 = vunpack.c.l.b16 %v557
    %v2601 = vunpack.c.h.b16 %v557
    %v2602 = vunpack.c.l.b16 %v558
    %v2603 = vunpack.c.h.b16 %v558
    %v2604 = vunpack.c.l.b16 %v559
    %v2605 = vunpack.c.h.b16 %v559
    %v2606 = vunpack.c.l.b16 %v560
    %v2607 = vunpack.c.h.b16 %v560
    %v2608 = vunpack.c.l.b16 %v561
    %v2609 = vunpack.c.h.b16 %v561
    %v2610 = vunpack.c.l.b16 %v562
    %v2611 = vunpack.c.h.b16 %v562
    %v2612 = vunpack.c.l.b16 %v563
    %v2613 = vunpack.c.h.b16 %v563
    %v2614 = vunpack.c.l.b16 %v564
    %v2615 = vunpack.c.h.b16 %v564
    %v2616 = vunpack.c.l.b16 %v565
    %v2617 = vunpack.c.h.b16 %v565
    %v2618 = vunpack.c.l.b16 %v566
    %v2619 = vunpack.c.h.b16 %v566
    %v2620 = vunpack.c.l.b16 %v567
    %v2621 = vunpack.c.h.b16 %v567
    %v2622 = vunpack.c.l.b16 %v568
    %v2623 = vunpack.c.h.b16 %v568
    %v2624 = vunpack.c.l.b16 %v569
    %v2625 = vunpack.c.h.b16 %v569
    %v2626 = vunpack.c.l.b16 %v570
    %v2627 = vunpack.c.h.b16 %v570
    %v2628 = vunpack.c.l.b16 %v571
    %v2629 = vunpack.c.h.b16 %v571
    %v2630 = vunpack.c.l.b16 %v572
    %v2631 = vunpack.c.h.b16 %v572
    %v2632 = vunpack.c.l.b16 %v573
    %v2633 = vunpack.c.h.b16 %v573
    %v2634 = vunpack.c.l.b16 %v574
    %v2635 = vunpack.c.h.b16 %v574
    %v2636 = vunpack.c.l.b16 %v575
    %v2637 = vunpack.c.h.b16 %v575
    %v2638 = vunpack.c.l.b16 %v576
    %v2639 = vunpack.c.h.b16 %v576
    %v2640 = vunpack.c.l.b16 %v577
    %v2641 = vunpack.c.h.b16 %v577
    %v2642 = vunpack.c.l.b16 %v578
    %v2643 = vunpack.c.h.b16 %v578
    %v2644 = vunpack.c.l.b16 %v579
    %v2645 = vunpack.c.h.b16 %v579
    %v2646 = vunpack.c.l.b16 %v580
    %v2647 = vunpack.c.h.b16 %v580
    %v2648 = vunpack.c.l.b16 %v581
    %v2649 = vunpack.c.h.b16 %v581
    %v2650 = vunpack.c.l.b16 %v582
    %v2651 = vunpack.c.h.b16 %v582
    %v2652 = vunpack.c.l.b16 %v583
    %v2653 = vunpack.c.h.b16 %v583
    %v2654 = vunpack.c.l.b16 %v584
    %v2655 = vunpack.c.h.b16 %v584
    %v2656 = vunpack.c.l.b16 %v585
    %v2657 = vunpack.c.h.b16 %v585
    %v2658 = vunpack.c.l.b16 %v586
    %v2659 = vunpack.c.h.b16 %v586
    %v2660 = vunpack.c.l.b16 %v587
    %v2661 = vunpack.c.h.b16 %v587
    %v2662 = vunpack.c.l.b16 %v588
    %v2663 = vunpack.c.h.b16 %v588
    %v2664 = vunpack.c.l.b16 %v589
    %v2665 = vunpack.c.h.b16 %v589
    %v2666 = vunpack.c.l.b16 %v590
    %v2667 = vunpack.c.h.b16 %v590
    %v2668 = vunpack.c.l.b16 %v591
    %v2669 = vunpack.c.h.b16 %v591
    %v2670 = vunpack.c.l.b16 %v592
    %v2671 = vunpack.c.h.b16 %v592
    %v2672 = vunpack.c.l.b16 %v593
    %v2673 = vunpack.c.h.b16 %v593
    %v2674 = vunpack.c.l.b16 %v594
    %v2675 = vunpack.c.h.b16 %v594
    %v2676 = vunpack.c.l.b16 %v595
    %v2677 = vunpack.c.h.b16 %v595
    %v2678 = vunpack.c.l.b16 %v596
    %v2679 = vunpack.c.h.b16 %v596
    %v2680 = vunpack.c.l.b16 %v597
    %v2681 = vunpack.c.h.b16 %v597
    %v2682 = vunpack.c.l.b16 %v598
    %v2683 = vunpack.c.h.b16 %v598
    %v2684 = vunpack.c.l.b16 %v599
    %v2685 = vunpack.c.h.b16 %v599
    %v2686 = vunpack.c.l.b16 %v600
    %v2687 = vunpack.c.h.b16 %v600
    %v2688 = vunpack.c.l.b16 %v601
    %v2689 = vunpack.c.h.b16 %v601
    %v2690 = vunpack.c.l.b16 %v602
    %v2691 = vunpack.c.h.b16 %v602
    %v2692 = vunpack.c.l.b16 %v603
    %v2693 = vunpack.c.h.b16 %v603
    %v2694 = vunpack.c.l.b16 %v604
    %v2695 = vunpack.c.h.b16 %v604
    %v2696 = vunpack.c.l.b16 %v605
    %v2697 = vunpack.c.h.b16 %v605
    %v2698 = vunpack.c.l.b16 %v606
    %v2699 = vunpack.c.h.b16 %v606
    %v2700 = vunpack.c.l.b16 %v607
    %v2701 = vunpack.c.h.b16 %v607
    %v2702 = vunpack.c.l.b16 %v608
    %v2703 = vunpack.c.h.b16 %v608
    %v2704 = vunpack.c.l.b16 %v609
    %v2705 = vunpack.c.h.b16 %v609
    %v2706 = vunpack.c.l.b16 %v610
    %v2707 = vunpack.c.h.b16 %v610
    %v2708 = vunpack.c.l.b16 %v611
    %v2709 = vunpack.c.h.b16 %v611
    %v2710 = vunpack.c.l.b16 %v612
    %v2711 = vunpack.c.h.b16 %v612
    %v2712 = vunpack.c.l.b16 %v613
    %v2713 = vunpack.c.h.b16 %v613
    %v2714 = vunpack.c.l.b16 %v614
    %v2715 = vunpack.c.h.b16 %v614
    %v2716 = vunpack.c.l.b16 %v615
    %v2717 = vunpack.c.h.b16 %v615
    %v2718 = vunpack.c.l.b16 %v616
    %v2719 = vunpack.c.h.b16 %v616
    %v2720 = vunpack.c.l.b16 %v617
    %v2721 = vunpack.c.h.b16 %v617
    %v2722 = vunpack.c.l.b16 %v618
    %v2723 = vunpack.c.h.b16 %v618
    %v2724 = vunpack.c.l.b16 %v619
    %v2725 = vunpack.c.h.b16 %v619
    %v2726 = vunpack.c.l.b16 %v620
    %v2727 = vunpack.c.h.b16 %v620
    %v2728 = vunpack.c.l.b16 %v621
    %v2729 = vunpack.c.h.b16 %v621
    %v2730 = vunpack.c.l.b16 %v622
    %v2731 = vunpack.c.h.b16 %v622
    %v2732 = vunpack.c.l.b16 %v623
    %v2733 = vunpack.c.h.b16 %v623
    %v2734 = vunpack.c.l.b16 %v624
    %v2735 = vunpack.c.h.b16 %v624
    %v2736 = vunpack.c.l.b16 %v625
    %v2737 = vunpack.c.h.b16 %v625
    %v2738 = vunpack.c.l.b16 %v626
    %v2739 = vunpack.c.h.b16 %v626
    %v2740 = vunpack.c.l.b16 %v627
    %v2741 = vunpack.c.h.b16 %v627
    %v2742 = vunpack.c.l.b16 %v628
    %v2743 = vunpack.c.h.b16 %v628
    %v2744 = vunpack.c.l.b16 %v629
    %v2745 = vunpack.c.h.b16 %v629
    %v2746 = vunpack.c.l.b16 %v630
    %v2747 = vunpack.c.h.b16 %v630
    %v2748 = vunpack.c.l.b16 %v631
    %v2749 = vunpack.c.h.b16 %v631
    %v2750 = vunpack.c.l.b16 %v632
    %v2751 = vunpack.c.h.b16 %v632
    %v2752 = vunpack.c.l.b16 %v633
    %v2753 = vunpack.c.h.b16 %v633
    %v2754 = vunpack.c.l.b16 %v634
    %v2755 = vunpack.c.h.b16 %v634
    %v2756 = vunpack.c.l.b16 %v635
    %v2757 = vunpack.c.h.b16 %v635
    %v2758 = vunpack.c.l.b16 %v636
    %v2759 = vunpack.c.h.b16 %v636
    %v2760 = vunpack.c.l.b16 %v637
    %v2761 = vunpack.c.h.b16 %v637
    %v2762 = vunpack.c.l.b16 %v638
    %v2763 = vunpack.c.h.b16 %v638
    %v2764 = vunpack.c.l.b16 %v639
    %v2765 = vunpack.c.h.b16 %v639
    %v2766 = vunpack.c.l.b16 %v640
    %v2767 = vunpack.c.h.b16 %v640
    %v2768 = vunpack.c.l.b16 %v641
    %v2769 = vunpack.c.h.b16 %v641
    %v2770 = vunpack.c.l.b16 %v642
    %v2771 = vunpack.c.h.b16 %v642
    %v2772 = vunpack.c.l.b16 %v643
    %v2773 = vunpack.c.h.b16 %v643
    %v2774 = vunpack.c.l.b16 %v644
    %v2775 = vunpack.c.h.b16 %v644
    %v2776 = vunpack.c.l.b16 %v645
    %v2777 = vunpack.c.h.b16 %v645
    %v2778 = vunpack.c.l.b16 %v646
    %v2779 = vunpack.c.h.b16 %v646
    %v2780 = vunpack.c.l.b16 %v647
    %v2781 = vunpack.c.h.b16 %v647
    %v2782 = vunpack.c.l.b16 %v648
    %v2783 = vunpack.c.h.b16 %v648
    %v2784 = vunpack.c.l.b16 %v649
    %v2785 = vunpack.c.h.b16 %v649
    %v2786 = vunpack.c.l.b16 %v650
    %v2787 = vunpack.c.h.b16 %v650
    %v2788 = vunpack.c.l.b16 %v651
    %v2789 = vunpack.c.h.b16 %v651
    %v2790 = vunpack.c.l.b16 %v652
    %v2791 = vunpack.c.h.b16 %v652
    %v2792 = vunpack.c.l.b16 %v653
    %v2793 = vunpack.c.h.b16 %v653
    %v2794 = vunpack.c.l.b16 %v654
    %v2795 = vunpack.c.h.b16 %v654
    %v2796 = vunpack.c.l.b16 %v655
    %v2797 = vunpack.c.h.b16 %v655
    %v2798 = vunpack.c.l.b16 %v656
    %v2799 = vunpack.c.h.b16 %v656
    %v2800 = vunpack.c.l.b16 %v657
    %v2801 = vunpack.c.h.b16 %v657
    %v2802 = vunpack.c.l.b16 %v658
    %v2803 = vunpack.c.h.b16 %v658
    %v2804 = vunpack.c.l.b16 %v659
    %v2805 = vunpack.c.h.b16 %v659
    %v2806 = vunpack.c.l.b16 %v660
    %v2807 = vunpack.c.h.b16 %v660
    %v2808 = vunpack.c.l.b16 %v661
    %v2809 = vunpack.c.h.b16 %v661
    %v2810 = vunpack.c.l.b16 %v662
    %v2811 = vunpack.c.h.b16 %v662
    %v2812 = vunpack.c.l.b16 %v663
    %v2813 = vunpack.c.h.b16 %v663
    %v2814 = vunpack.c.l.b16 %v664
    %v2815 = vunpack.c.h.b16 %v664
    %v2816 = vunpack.c.l.b16 %v665
    %v2817 = vunpack.c.h.b16 %v665
    %v2818 = vunpack.c.l.b16 %v666
    %v2819 = vunpack.c.h.b16 %v666
    %v2820 = vunpack.c.l.b16 %v667
    %v2821 = vunpack.c.h.b16 %v667
    %v2822 = vunpack.c.l.b16 %v668
    %v2823 = vunpack.c.h.b16 %v668
    %v2824 = vunpack.c.l.b16 %v669
    %v2825 = vunpack.c.h.b16 %v669
    %v2826 = vunpack.c.l.b16 %v670
    %v2827 = vunpack.c.h.b16 %v670
    %v2828 = vunpack.c.l.b16 %v671
    %v2829 = vunpack.c.h.b16 %v671
    %v2830 = vunpack.c.l.b16 %v672
    %v2831 = vunpack.c.h.b16 %v672
    %v2832 = vunpack.c.l.b16 %v673
    %v2833 = vunpack.c.h.b16 %v673
    %v2834 = vunpack.c.l.b16 %v674
    %v2835 = vunpack.c.h.b16 %v674
    %v2836 = vunpack.c.l.b16 %v675
    %v2837 = vunpack.c.h.b16 %v675
    %v2838 = vunpack.c.l.b16 %v676
    %v2839 = vunpack.c.h.b16 %v676
    %v2840 = vunpack.c.l.b16 %v677
    %v2841 = vunpack.c.h.b16 %v677
    %v2842 = vunpack.c.l.b16 %v678
    %v2843 = vunpack.c.h.b16 %v678
    %v2844 = vunpack.c.l.b16 %v679
    %v2845 = vunpack.c.h.b16 %v679
    %v2846 = vunpack.c.l.b16 %v680
    %v2847 = vunpack.c.h.b16 %v680
    %v2848 = vunpack.c.l.b16 %v681
    %v2849 = vunpack.c.h.b16 %v681
    %v2850 = vunpack.c.l.b16 %v682
    %v2851 = vunpack.c.h.b16 %v682
    %v2852 = vunpack.c.l.b16 %v683
    %v2853 = vunpack.c.h.b16 %v683
    %v2854 = vunpack.c.l.b16 %v684
    %v2855 = vunpack.c.h.b16 %v684
    %v2856 = vunpack.c.l.b16 %v685
    %v2857 = vunpack.c.h.b16 %v685
    %v2858 = vunpack.c.l.b16 %v686
    %v2859 = vunpack.c.h.b16 %v686
    %v2860 = vunpack.c.l.b16 %v687
    %v2861 = vunpack.c.h.b16 %v687
    %v2862 = vunpack.c.l.b16 %v688
    %v2863 = vunpack.c.h.b16 %v688
    %v2864 = vunpack.c.l.b16 %v689
    %v2865 = vunpack.c.h.b16 %v689
    %v2866 = vunpack.c.l.b16 %v690
    %v2867 = vunpack.c.h.b16 %v690
    %v2868 = vunpack.c.l.b16 %v691
    %v2869 = vunpack.c.h.b16 %v691
    %v2870 = vunpack.c.l.b16 %v692
    %v2871 = vunpack.c.h.b16 %v692
    %v2872 = vunpack.c.l.b16 %v693
    %v2873 = vunpack.c.h.b16 %v693
    %v2874 = vunpack.c.l.b16 %v694
    %v2875 = vunpack.c.h.b16 %v694
    %v2876 = vunpack.c.l.b16 %v695
    %v2877 = vunpack.c.h.b16 %v695
    %v2878 = vunpack.c.l.b16 %v696
    %v2879 = vunpack.c.h.b16 %v696
    %v2880 = vunpack.c.l.b16 %v697
    %v2881 = vunpack.c.h.b16 %v697
    %v2882 = vunpack.c.l.b16 %v698
    %v2883 = vunpack.c.h.b16 %v698
    %v2884 = vunpack.c.l.b16 %v699
    %v2885 = vunpack.c.h.b16 %v699
    %v2886 = vunpack.c.l.b16 %v700
    %v2887 = vunpack.c.h.b16 %v700
    %v2888 = vunpack.c.l.b16 %v701
    %v2889 = vunpack.c.h.b16 %v701
    %v2890 = vunpack.c.l.b16 %v702
    %v2891 = vunpack.c.h.b16 %v702
    %v2892 = vunpack.c.l.b16 %v703
    %v2893 = vunpack.c.h.b16 %v703
    %v2894 = vunpack.c.l.b16 %v704
    %v2895 = vunpack.c.h.b16 %v704
    %v2896 = vunpack.c.l.b16 %v705
    %v2897 = vunpack.c.h.b16 %v705
    %v2898 = vunpack.c.l.b16 %v706
    %v2899 = vunpack.c.h.b16 %v706
    %v2900 = vunpack.c.l.b16 %v707
    %v2901 = vunpack.c.h.b16 %v707
    %v2902 = vunpack.c.l.b16 %v708
    %v2903 = vunpack.c.h.b16 %v708
    %v2904 = vunpack.c.l.b16 %v709
    %v2905 = vunpack.c.h.b16 %v709
    %v2906 = vunpack.c.l.b16 %v710
    %v2907 = vunpack.c.h.b16 %v710
    %v2908 = vunpack.c.l.b16 %v711
    %v2909 = vunpack.c.h.b16 %v711
    %v2910 = vunpack.c.l.b16 %v712
    %v2911 = vunpack.c.h.b16 %v712
    %v2912 = vunpack.c.l.b16 %v713
    %v2913 = vunpack.c.h.b16 %v713
    %v2914 = vunpack.c.l.b16 %v714
    %v2915 = vunpack.c.h.b16 %v714
    %v2916 = vunpack.c.l.b16 %v715
    %v2917 = vunpack.c.h.b16 %v715
    %v2918 = vunpack.c.l.b16 %v716
    %v2919 = vunpack.c.h.b16 %v716
    %v2920 = vunpack.c.l.b16 %v717
    %v2921 = vunpack.c.h.b16 %v717
    %v2922 = vunpack.c.l.b16 %v718
    %v2923 = vunpack.c.h.b16 %v718
    %v2924 = vunpack.c.l.b16 %v719
    %v2925 = vunpack.c.h.b16 %v719
    %v2926 = vunpack.c.l.b16 %v720
    %v2927 = vunpack.c.h.b16 %v720
    %v2928 = vunpack.c.l.b16 %v721
    %v2929 = vunpack.c.h.b16 %v721
    %v2930 = vunpack.c.l.b16 %v722
    %v2931 = vunpack.c.h.b16 %v722
    %v2932 = vunpack.c.l.b16 %v723
    %v2933 = vunpack.c.h.b16 %v723
    %v2934 = vunpack.c.l.b16 %v724
    %v2935 = vunpack.c.h.b16 %v724
    %v2936 = vunpack.c.l.b16 %v725
    %v2937 = vunpack.c.h.b16 %v725
    %v2938 = vunpack.c.l.b16 %v726
    %v2939 = vunpack.c.h.b16 %v726
    %v2940 = vunpack.c.l.b16 %v727
    %v2941 = vunpack.c.h.b16 %v727
    %v2942 = vunpack.c.l.b16 %v728
    %v2943 = vunpack.c.h.b16 %v728
    %v2944 = vunpack.c.l.b16 %v729
    %v2945 = vunpack.c.h.b16 %v729
    %v2946 = vunpack.c.l.b16 %v730
    %v2947 = vunpack.c.h.b16 %v730
    %v2948 = vunpack.c.l.b16 %v731
    %v2949 = vunpack.c.h.b16 %v731
    %v2950 = vunpack.c.l.b16 %v732
    %v2951 = vunpack.c.h.b16 %v732
    %v2952 = vunpack.c.l.b16 %v733
    %v2953 = vunpack.c.h.b16 %v733
    %v2954 = vunpack.c.l.b16 %v734
    %v2955 = vunpack.c.h.b16 %v734
    %v2956 = vunpack.c.l.b16 %v735
    %v2957 = vunpack.c.h.b16 %v735
    %v2958 = vunpack.c.l.b16 %v736
    %v2959 = vunpack.c.h.b16 %v736
    %v2960 = vunpack.c.l.b16 %v737
    %v2961 = vunpack.c.h.b16 %v737
    %v2962 = vunpack.c.l.b16 %v738
    %v2963 = vunpack.c.h.b16 %v738
    %v2964 = vunpack.c.l.b16 %v739
    %v2965 = vunpack.c.h.b16 %v739
    %v2966 = vunpack.c.l.b16 %v740
    %v2967 = vunpack.c.h.b16 %v740
    %v2968 = vunpack.c.l.b16 %v741
    %v2969 = vunpack.c.h.b16 %v741
    %v2970 = vunpack.c.l.b16 %v742
    %v2971 = vunpack.c.h.b16 %v742
    %v2972 = vunpack.c.l.b16 %v743
    %v2973 = vunpack.c.h.b16 %v743
    %v2974 = vunpack.c.l.b16 %v744
    %v2975 = vunpack.c.h.b16 %v744
    %v2976 = vunpack.c.l.b16 %v745
    %v2977 = vunpack.c.h.b16 %v745
    %v2978 = vunpack.c.l.b16 %v746
    %v2979 = vunpack.c.h.b16 %v746
    %v2980 = vunpack.c.l.b16 %v747
    %v2981 = vunpack.c.h.b16 %v747
    %v2982 = vunpack.c.l.b16 %v748
    %v2983 = vunpack.c.h.b16 %v748
    %v2984 = vunpack.c.l.b16 %v749
    %v2985 = vunpack.c.h.b16 %v749
    %v2986 = vunpack.c.l.b16 %v750
    %v2987 = vunpack.c.h.b16 %v750
    %v2988 = vunpack.c.l.b16 %v751
    %v2989 = vunpack.c.h.b16 %v751
    %v2990 = vunpack.c.l.b16 %v752
    %v2991 = vunpack.c.h.b16 %v752
    %v2992 = vunpack.c.l.b16 %v753
    %v2993 = vunpack.c.h.b16 %v753
    %v2994 = vunpack.c.l.b16 %v754
    %v2995 = vunpack.c.h.b16 %v754
    %v2996 = vunpack.c.l.b16 %v755
    %v2997 = vunpack.c.h.b16 %v755
    %v2998 = vunpack.c.l.b16 %v756
    %v2999 = vunpack.c.h.b16 %v756
    %v3000 = vunpack.c.l.b16 %v757
    %v3001 = vunpack.c.h.b16 %v757
    %v3002 = vunpack.c.l.b16 %v758
    %v3003 = vunpack.c.h.b16 %v758
    %v3004 = vunpack.c.l.b16 %v759
    %v3005 = vunpack.c.h.b16 %v759
    %v3006 = vunpack.c.l.b16 %v760
    %v3007 = vunpack.c.h.b16 %v760
    %v3008 = vunpack.c.l.b16 %v761
    %v3009 = vunpack.c.h.b16 %v761
    %v3010 = vunpack.c.l.b16 %v762
    %v3011 = vunpack.c.h.b16 %v762
    %v3012 = vunpack.c.l.b16 %v763
    %v3013 = vunpack.c.h.b16 %v763
    %v3014 = vunpack.c.l.b16 %v764
    %v3015 = vunpack.c.h.b16 %v764
    %v3016 = vunpack.c.l.b16 %v765
    %v3017 = vunpack.c.h.b16 %v765
    %v3018 = vunpack.c.l.b16 %v766
    %v3019 = vunpack.c.h.b16 %v766
    %v3020 = vunpack.c.l.b16 %v767
    %v3021 = vunpack.c.h.b16 %v767
    %v3022 = vunpack.c.l.b16 %v768
    %v3023 = vunpack.c.h.b16 %v768
    %v3024 = vunpack.c.l.b16 %v769
    %v3025 = vunpack.c.h.b16 %v769
    %v3026 = vunpack.c.l.b16 %v770
    %v3027 = vunpack.c.h.b16 %v770
    %v3028 = vunpack.c.l.b16 %v771
    %v3029 = vunpack.c.h.b16 %v771
    %v3030 = vunpack.c.l.b16 %v772
    %v3031 = vunpack.c.h.b16 %v772
    %v3032 = vunpack.c.l.b16 %v773
    %v3033 = vunpack.c.h.b16 %v773
    %v3034 = vunpack.c.l.b16 %v774
    %v3035 = vunpack.c.h.b16 %v774
    %v3036 = vunpack.c.l.b16 %v775
    %v3037 = vunpack.c.h.b16 %v775
    %v3038 = vunpack.c.l.b16 %v776
    %v3039 = vunpack.c.h.b16 %v776
    %v3040 = vunpack.c.l.b16 %v777
    %v3041 = vunpack.c.h.b16 %v777
    %v3042 = vunpack.c.l.b16 %v778
    %v3043 = vunpack.c.h.b16 %v778
    %v3044 = vunpack.c.l.b16 %v779
    %v3045 = vunpack.c.h.b16 %v779
    %v3046 = vunpack.c.l.b16 %v780
    %v3047 = vunpack.c.h.b16 %v780
    %v3048 = vunpack.c.l.b16 %v781
    %v3049 = vunpack.c.h.b16 %v781
    %v3050 = vunpack.c.l.b16 %v782
    %v3051 = vunpack.c.h.b16 %v782
    %v3052 = vunpack.c.l.b16 %v783
    %v3053 = vunpack.c.h.b16 %v783
    %v3054 = vunpack.c.l.b16 %v784
    %v3055 = vunpack.c.h.b16 %v784
    %v3056 = vunpack.c.l.b16 %v785
    %v3057 = vunpack.c.h.b16 %v785
    %v3058 = vunpack.c.l.b16 %v786
    %v3059 = vunpack.c.h.b16 %v786
    %v3060 = vunpack.c.l.b16 %v787
    %v3061 = vunpack.c.h.b16 %v787
    %v3062 = vunpack.c.l.b16 %v788
    %v3063 = vunpack.c.h.b16 %v788
    %v3064 = vunpack.c.l.b16 %v789
    %v3065 = vunpack.c.h.b16 %v789
    %v3066 = vunpack.c.l.b16 %v790
    %v3067 = vunpack.c.h.b16 %v790
    %v3068 = vunpack.c.l.b16 %v791
    %v3069 = vunpack.c.h.b16 %v791
    %v3070 = vunpack.c.l.b16 %v792
    %v3071 = vunpack.c.h.b16 %v792
    %v3072 = vunpack.c.l.b16 %v793
    %v3073 = vunpack.c.h.b16 %v793
    %v3074 = vunpack.c.l.b16 %v794
    %v3075 = vunpack.c.h.b16 %v794
    %v3076 = vunpack.c.l.b16 %v795
    %v3077 = vunpack.c.h.b16 %v795
    %v3078 = vunpack.c.l.b16 %v796
    %v3079 = vunpack.c.h.b16 %v796
    %v3080 = vunpack.c.l.b16 %v797
    %v3081 = vunpack.c.h.b16 %v797
    %v3082 = vunpack.c.l.b16 %v798
    %v3083 = vunpack.c.h.b16 %v798
    %v3084 = vunpack.c.l.b16 %v799
    %v3085 = vunpack.c.h.b16 %v799
    %v3086 = vunpack.c.l.b16 %v800
    %v3087 = vunpack.c.h.b16 %v800
    %v3088 = vunpack.c.l.b16 %v801
    %v3089 = vunpack.c.h.b16 %v801
    %v3090 = vunpack.c.l.b16 %v802
    %v3091 = vunpack.c.h.b16 %v802
    %v3092 = vunpack.c.l.b16 %v803
    %v3093 = vunpack.c.h.b16 %v803
    %v3094 = vunpack.c.l.b16 %v804
    %v3095 = vunpack.c.h.b16 %v804
    %v3096 = vunpack.c.l.b16 %v805
    %v3097 = vunpack.c.h.b16 %v805
    %v3098 = vunpack.c.l.b16 %v806
    %v3099 = vunpack.c.h.b16 %v806
    %v3100 = vunpack.c.l.b16 %v807
    %v3101 = vunpack.c.h.b16 %v807
    %v3102 = vunpack.c.l.b16 %v808
    %v3103 = vunpack.c.h.b16 %v808
    %v3104 = vunpack.c.l.b16 %v809
    %v3105 = vunpack.c.h.b16 %v809
    %v3106 = vunpack.c.l.b16 %v810
    %v3107 = vunpack.c.h.b16 %v810
    %v3108 = vunpack.c.l.b16 %v811
    %v3109 = vunpack.c.h.b16 %v811
    %v3110 = vunpack.c.l.b16 %v812
    %v3111 = vunpack.c.h.b16 %v812
    %v3112 = vunpack.c.l.b16 %v813
    %v3113 = vunpack.c.h.b16 %v813
    %v3114 = vunpack.c.l.b16 %v814
    %v3115 = vunpack.c.h.b16 %v814
    %v3116 = vunpack.c.l.b16 %v815
    %v3117 = vunpack.c.h.b16 %v815
    %v3118 = vunpack.c.l.b16 %v816
    %v3119 = vunpack.c.h.b16 %v816
    %v3120 = vunpack.c.l.b16 %v817
    %v3121 = vunpack.c.h.b16 %v817
    %v3122 = vunpack.c.l.b16 %v818
    %v3123 = vunpack.c.h.b16 %v818
    %v3124 = vunpack.c.l.b16 %v819
    %v3125 = vunpack.c.h.b16 %v819
    %v3126 = vunpack.c.l.b16 %v820
    %v3127 = vunpack.c.h.b16 %v820
    %v3128 = vunpack.c.l.b16 %v821
    %v3129 = vunpack.c.h.b16 %v821
    %v3130 = vunpack.c.l.b16 %v822
    %v3131 = vunpack.c.h.b16 %v822
    %v3132 = vunpack.c.l.b16 %v823
    %v3133 = vunpack.c.h.b16 %v823
    %v3134 = vunpack.c.l.b16 %v824
    %v3135 = vunpack.c.h.b16 %v824
    %v3136 = vunpack.c.l.b16 %v825
    %v3137 = vunpack.c.h.b16 %v825
    %v3138 = vunpack.c.l.b16 %v826
    %v3139 = vunpack.c.h.b16 %v826
    %v3140 = vunpack.c.l.b16 %v827
    %v3141 = vunpack.c.h.b16 %v827
    %v3142 = vunpack.c.l.b16 %v828
    %v3143 = vunpack.c.h.b16 %v828
    %v3144 = vunpack.c.l.b16 %v829
    %v3145 = vunpack.c.h.b16 %v829
    %v3146 = vunpack.c.l.b16 %v830
    %v3147 = vunpack.c.h.b16 %v830
    %v3148 = vunpack.c.l.b16 %v831
    %v3149 = vunpack.c.h.b16 %v831
    %v3150 = vunpack.c.l.b16 %v832
    %v3151 = vunpack.c.h.b16 %v832
    %v3152 = vunpack.c.l.b16 %v833
    %v3153 = vunpack.c.h.b16 %v833
    %v3154 = vunpack.c.l.b16 %v834
    %v3155 = vunpack.c.h.b16 %v834
    %v3156 = vunpack.c.l.b16 %v835
    %v3157 = vunpack.c.h.b16 %v835
    %v3158 = vunpack.c.l.b16 %v836
    %v3159 = vunpack.c.h.b16 %v836
    %v3160 = vunpack.c.l.b16 %v837
    %v3161 = vunpack.c.h.b16 %v837
    %v3162 = vunpack.c.l.b16 %v838
    %v3163 = vunpack.c.h.b16 %v838
    %v3164 = vunpack.c.l.b16 %v839
    %v3165 = vunpack.c.h.b16 %v839
    %v3166 = vunpack.c.l.b16 %v840
    %v3167 = vunpack.c.h.b16 %v840
    %v3168 = vunpack.c.l.b16 %v841
    %v3169 = vunpack.c.h.b16 %v841
    %v3170 = vunpack.c.l.b16 %v842
    %v3171 = vunpack.c.h.b16 %v842
    %v3172 = vunpack.c.l.b16 %v843
    %v3173 = vunpack.c.h.b16 %v843
    %v3174 = vunpack.c.l.b16 %v844
    %v3175 = vunpack.c.h.b16 %v844
    %v3176 = vunpack.c.l.b16 %v845
    %v3177 = vunpack.c.h.b16 %v845
    %v3178 = vunpack.c.l.b16 %v846
    %v3179 = vunpack.c.h.b16 %v846
    %v3180 = vunpack.c.l.b16 %v847
    %v3181 = vunpack.c.h.b16 %v847
    %v3182 = vunpack.c.l.b16 %v848
    %v3183 = vunpack.c.h.b16 %v848
    %v3184 = vunpack.c.l.b16 %v849
    %v3185 = vunpack.c.h.b16 %v849
    %v3186 = vunpack.c.l.b16 %v850
    %v3187 = vunpack.c.h.b16 %v850
    %v3188 = vunpack.c.l.b16 %v851
    %v3189 = vunpack.c.h.b16 %v851
    %v3190 = vunpack.c.l.b16 %v852
    %v3191 = vunpack.c.h.b16 %v852
    %v3192 = vunpack.c.l.b16 %v853
    %v3193 = vunpack.c.h.b16 %v853
    %v3194 = vunpack.c.l.b16 %v854
    %v3195 = vunpack.c.h.b16 %v854
    %v3196 = vunpack.c.l.b16 %v855
    %v3197 = vunpack.c.h.b16 %v855
    %v3198 = vunpack.c.l.b16 %v856
    %v3199 = vunpack.c.h.b16 %v856
    %v3200 = vunpack.c.l.b16 %v857
    %v3201 = vunpack.c.h.b16 %v857
    %v3202 = vunpack.c.l.b16 %v858
    %v3203 = vunpack.c.h.b16 %v858
    %v3204 = vunpack.c.l.b16 %v859
    %v3205 = vunpack.c.h.b16 %v859
    %v3206 = vunpack.c.l.b16 %v860
    %v3207 = vunpack.c.h.b16 %v860
    %v3208 = vunpack.c.l.b16 %v861
    %v3209 = vunpack.c.h.b16 %v861
    %v3210 = vunpack.c.l.b16 %v862
    %v3211 = vunpack.c.h.b16 %v862
    %v3212 = vunpack.c.l.b16 %v863
    %v3213 = vunpack.c.h.b16 %v863
    %v3214 = vunpack.c.l.b16 %v864
    %v3215 = vunpack.c.h.b16 %v864
    %v3216 = vunpack.c.l.b16 %v865
    %v3217 = vunpack.c.h.b16 %v865
    %v3218 = vunpack.c.l.b16 %v866
    %v3219 = vunpack.c.h.b16 %v866
    %v3220 = vunpack.c.l.b16 %v867
    %v3221 = vunpack.c.h.b16 %v867
    %v3222 = vunpack.c.l.b16 %v868
    %v3223 = vunpack.c.h.b16 %v868
    %v3224 = vunpack.c.l.b16 %v869
    %v3225 = vunpack.c.h.b16 %v869
    %v3226 = vunpack.c.l.b16 %v870
    %v3227 = vunpack.c.h.b16 %v870
    %v3228 = vunpack.c.l.b16 %v871
    %v3229 = vunpack.c.h.b16 %v871
    %v3230 = vunpack.c.l.b16 %v872
    %v3231 = vunpack.c.h.b16 %v872
    %v3232 = vunpack.c.l.b16 %v873
    %v3233 = vunpack.c.h.b16 %v873
    %v3234 = vunpack.c.l.b16 %v874
    %v3235 = vunpack.c.h.b16 %v874
    %v3236 = vunpack.c.l.b16 %v875
    %v3237 = vunpack.c.h.b16 %v875
    %v3238 = vunpack.c.l.b16 %v876
    %v3239 = vunpack.c.h.b16 %v876
    %v3240 = vunpack.c.l.b16 %v877
    %v3241 = vunpack.c.h.b16 %v877
    %v3242 = vunpack.c.l.b16 %v878
    %v3243 = vunpack.c.h.b16 %v878
    %v3244 = vunpack.c.l.b16 %v879
    %v3245 = vunpack.c.h.b16 %v879
    %v3246 = vunpack.c.l.b16 %v880
    %v3247 = vunpack.c.h.b16 %v880
    %v3248 = vunpack.c.l.b16 %v881
    %v3249 = vunpack.c.h.b16 %v881
    %v3250 = vunpack.c.l.b16 %v882
    %v3251 = vunpack.c.h.b16 %v882
    %v3252 = vunpack.c.l.b16 %v883
    %v3253 = vunpack.c.h.b16 %v883
    %v3254 = vunpack.c.l.b16 %v884
    %v3255 = vunpack.c.h.b16 %v884
    %v3256 = vunpack.c.l.b16 %v885
    %v3257 = vunpack.c.h.b16 %v885
    %v3258 = vunpack.c.l.b16 %v886
    %v3259 = vunpack.c.h.b16 %v886
    %v3260 = vunpack.c.l.b16 %v887
    %v3261 = vunpack.c.h.b16 %v887
    %v3262 = vunpack.c.l.b16 %v888
    %v3263 = vunpack.c.h.b16 %v888
    %v3264 = vunpack.c.l.b16 %v889
    %v3265 = vunpack.c.h.b16 %v889
    %v3266 = vunpack.c.l.b16 %v890
    %v3267 = vunpack.c.h.b16 %v890
    %v3268 = vunpack.c.l.b16 %v891
    %v3269 = vunpack.c.h.b16 %v891
    %v3270 = vunpack.c.l.b16 %v892
    %v3271 = vunpack.c.h.b16 %v892
    %v3272 = vunpack.c.l.b16 %v893
    %v3273 = vunpack.c.h.b16 %v893
    %v3274 = vunpack.c.l.b16 %v894
    %v3275 = vunpack.c.h.b16 %v894
    %v3276 = vunpack.c.l.b16 %v895
    %v3277 = vunpack.c.h.b16 %v895
    %v3278 = vunpack.c.l.b16 %v896
    %v3279 = vunpack.c.h.b16 %v896
    %v3280 = vunpack.c.l.b16 %v897
    %v3281 = vunpack.c.h.b16 %v897
    %v3282 = vunpack.c.l.b16 %v898
    %v3283 = vunpack.c.h.b16 %v898
    %v3284 = vunpack.c.l.b16 %v899
    %v3285 = vunpack.c.h.b16 %v899
    %v3286 = vunpack.c.l.b16 %v900
    %v3287 = vunpack.c.h.b16 %v900
    %v3288 = vunpack.c.l.b16 %v901
    %v3289 = vunpack.c.h.b16 %v901
    %v3290 = vunpack.c.l.b16 %v902
    %v3291 = vunpack.c.h.b16 %v902
    %v3292 = vunpack.c.l.b16 %v903
    %v3293 = vunpack.c.h.b16 %v903
    %v3294 = vunpack.c.l.b16 %v904
    %v3295 = vunpack.c.h.b16 %v904
    %v3296 = vunpack.c.l.b16 %v905
    %v3297 = vunpack.c.h.b16 %v905
    %v3298 = vunpack.c.l.b16 %v906
    %v3299 = vunpack.c.h.b16 %v906
    %v3300 = vunpack.c.l.b16 %v907
    %v3301 = vunpack.c.h.b16 %v907
    %v3302 = vunpack.c.l.b16 %v908
    %v3303 = vunpack.c.h.b16 %v908
    %v3304 = vunpack.c.l.b16 %v909
    %v3305 = vunpack.c.h.b16 %v909
    %v3306 = vunpack.c.l.b16 %v910
    %v3307 = vunpack.c.h.b16 %v910
    %v3308 = vunpack.c.l.b16 %v911
    %v3309 = vunpack.c.h.b16 %v911
    %v3310 = vunpack.c.l.b16 %v912
    %v3311 = vunpack.c.h.b16 %v912
    %v3312 = vunpack.c.l.b16 %v913
    %v3313 = vunpack.c.h.b16 %v913
    %v3314 = vunpack.c.l.b16 %v914
    %v3315 = vunpack.c.h.b16 %v914
    %v3316 = vunpack.c.l.b16 %v915
    %v3317 = vunpack.c.h.b16 %v915
    %v3318 = vunpack.c.l.b16 %v916
    %v3319 = vunpack.c.h.b16 %v916
    %v3320 = vunpack.c.l.b16 %v917
    %v3321 = vunpack.c.h.b16 %v917
    %v3322 = vunpack.c.l.b16 %v918
    %v3323 = vunpack.c.h.b16 %v918
    %v3324 = vunpack.c.l.b16 %v919
    %v3325 = vunpack.c.h.b16 %v919
    %v3326 = vunpack.c.l.b16 %v920
    %v3327 = vunpack.c.h.b16 %v920
    %v3328 = vunpack.c.l.b16 %v921
    %v3329 = vunpack.c.h.b16 %v921
    %v3330 = vunpack.c.l.b16 %v922
    %v3331 = vunpack.c.h.b16 %v922
    %v3332 = vunpack.c.l.b16 %v923
    %v3333 = vunpack.c.h.b16 %v923
    %v3334 = vunpack.c.l.b16 %v924
    %v3335 = vunpack.c.h.b16 %v924
    %v3336 = vunpack.c.l.b16 %v925
    %v3337 = vunpack.c.h.b16 %v925
    %v3338 = vunpack.c.l.b16 %v926
    %v3339 = vunpack.c.h.b16 %v926
    %v3340 = vunpack.c.l.b16 %v927
    %v3341 = vunpack.c.h.b16 %v927
    %v3342 = vunpack.c.l.b16 %v928
    %v3343 = vunpack.c.h.b16 %v928
    %v3344 = vunpack.c.l.b16 %v929
    %v3345 = vunpack.c.h.b16 %v929
    %v3346 = vunpack.c.l.b16 %v930
    %v3347 = vunpack.c.h.b16 %v930
    %v3348 = vunpack.c.l.b16 %v931
    %v3349 = vunpack.c.h.b16 %v931
    %v3350 = vunpack.c.l.b16 %v932
    %v3351 = vunpack.c.h.b16 %v932
    %v3352 = vunpack.c.l.b16 %v933
    %v3353 = vunpack.c.h.b16 %v933
    %v3354 = vunpack.c.l.b16 %v934
    %v3355 = vunpack.c.h.b16 %v934
    %v3356 = vunpack.c.l.b16 %v935
    %v3357 = vunpack.c.h.b16 %v935
    %v3358 = vunpack.c.l.b16 %v936
    %v3359 = vunpack.c.h.b16 %v936
    %v3360 = vunpack.c.l.b16 %v937
    %v3361 = vunpack.c.h.b16 %v937
    %v3362 = vunpack.c.l.b16 %v938
    %v3363 = vunpack.c.h.b16 %v938
    %v3364 = vunpack.c.l.b16 %v939
    %v3365 = vunpack.c.h.b16 %v939
    %v3366 = vunpack.c.l.b16 %v940
    %v3367 = vunpack.c.h.b16 %v940
    %v3368 = vunpack.c.l.b16 %v941
    %v3369 = vunpack.c.h.b16 %v941
    %v3370 = vunpack.c.l.b16 %v942
    %v3371 = vunpack.c.h.b16 %v942
    %v3372 = vunpack.c.l.b16 %v943
    %v3373 = vunpack.c.h.b16 %v943
    %v3374 = vunpack.c.l.b16 %v944
    %v3375 = vunpack.c.h.b16 %v944
    %v3376 = vunpack.c.l.b16 %v945
    %v3377 = vunpack.c.h.b16 %v945
    %v3378 = vunpack.c.l.b16 %v946
    %v3379 = vunpack.c.h.b16 %v946
    %v3380 = vunpack.c.l.b16 %v947
    %v3381 = vunpack.c.h.b16 %v947
    %v3382 = vunpack.c.l.b16 %v948
    %v3383 = vunpack.c.h.b16 %v948
    %v3384 = vunpack.c.l.b16 %v949
    %v3385 = vunpack.c.h.b16 %v949
    %v3386 = vunpack.c.l.b16 %v950
    %v3387 = vunpack.c.h.b16 %v950
    %v3388 = vunpack.c.l.b16 %v951
    %v3389 = vunpack.c.h.b16 %v951
    %v3390 = vunpack.c.l.b16 %v952
    %v3391 = vunpack.c.h.b16 %v952
    %v3392 = vunpack.c.l.b16 %v953
    %v3393 = vunpack.c.h.b16 %v953
    %v3394 = vunpack.c.l.b16 %v954
    %v3395 = vunpack.c.h.b16 %v954
    %v3396 = vunpack.c.l.b16 %v955
    %v3397 = vunpack.c.h.b16 %v955
    %v3398 = vunpack.c.l.b16 %v956
    %v3399 = vunpack.c.h.b16 %v956
    %v3400 = vunpack.c.l.b16 %v957
    %v3401 = vunpack.c.h.b16 %v957
    %v3402 = vunpack.c.l.b16 %v958
    %v3403 = vunpack.c.h.b16 %v958
    %v3404 = vunpack.c.l.b16 %v959
    %v3405 = vunpack.c.h.b16 %v959
    %v3406 = vunpack.c.l.b16 %v960
    %v3407 = vunpack.c.h.b16 %v960
    %v3408 = vunpack.c.l.b16 %v961
    %v3409 = vunpack.c.h.b16 %v961
    %v3410 = vunpack.c.l.b16 %v962
    %v3411 = vunpack.c.h.b16 %v962
    %v3412 = vunpack.c.l.b16 %v963
    %v3413 = vunpack.c.h.b16 %v963
    %v3414 = vunpack.c.l.b16 %v964
    %v3415 = vunpack.c.h.b16 %v964
    %v3416 = vunpack.c.l.b16 %v965
    %v3417 = vunpack.c.h.b16 %v965
    %v3418 = vunpack.c.l.b16 %v966
    %v3419 = vunpack.c.h.b16 %v966
    %v3420 = vunpack.c.l.b16 %v967
    %v3421 = vunpack.c.h.b16 %v967
    %v3422 = vunpack.c.l.b16 %v968
    %v3423 = vunpack.c.h.b16 %v968
    %v3424 = vunpack.c.l.b16 %v969
    %v3425 = vunpack.c.h.b16 %v969
    %v3426 = vunpack.c.l.b16 %v970
    %v3427 = vunpack.c.h.b16 %v970
    %v3428 = vunpack.c.l.b16 %v971
    %v3429 = vunpack.c.h.b16 %v971
    %v3430 = vunpack.c.l.b16 %v972
    %v3431 = vunpack.c.h.b16 %v972
    %v3432 = vunpack.c.l.b16 %v973
    %v3433 = vunpack.c.h.b16 %v973
    %v3434 = vunpack.c.l.b16 %v974
    %v3435 = vunpack.c.h.b16 %v974
    %v3436 = vunpack.c.l.b16 %v975
    %v3437 = vunpack.c.h.b16 %v975
    %v3438 = vunpack.c.l.b16 %v976
    %v3439 = vunpack.c.h.b16 %v976
    %v3440 = vunpack.c.l.b16 %v977
    %v3441 = vunpack.c.h.b16 %v977
    %v3442 = vunpack.c.l.b16 %v978
    %v3443 = vunpack.c.h.b16 %v978
    %v3444 = vunpack.c.l.b16 %v979
    %v3445 = vunpack.c.h.b16 %v979
    %v3446 = vunpack.c.l.b16 %v980
    %v3447 = vunpack.c.h.b16 %v980
    %v3448 = vunpack.c.l.b16 %v981
    %v3449 = vunpack.c.h.b16 %v981
    %v3450 = vunpack.c.l.b16 %v982
    %v3451 = vunpack.c.h.b16 %v982
    %v3452 = vunpack.c.l.b16 %v983
    %v3453 = vunpack.c.h.b16 %v983
    %v3454 = vunpack.c.l.b16 %v984
    %v3455 = vunpack.c.h.b16 %v984
    %v3456 = vunpack.c.l.b16 %v985
    %v3457 = vunpack.c.h.b16 %v985
    %v3458 = vunpack.c.l.b16 %v986
    %v3459 = vunpack.c.h.b16 %v986
    %v3460 = vunpack.c.l.b16 %v987
    %v3461 = vunpack.c.h.b16 %v987
    %v3462 = vunpack.c.l.b16 %v988
    %v3463 = vunpack.c.h.b16 %v988
    %v3464 = vunpack.c.l.b16 %v989
    %v3465 = vunpack.c.h.b16 %v989
    %v3466 = vunpack.c.l.b16 %v990
    %v3467 = vunpack.c.h.b16 %v990
    %v3468 = vunpack.c.l.b16 %v991
    %v3469 = vunpack.c.h.b16 %v991
    %v3470 = vunpack.c.l.b16 %v992
    %v3471 = vunpack.c.h.b16 %v992
    %v3472 = vunpack.c.l.b16 %v993
    %v3473 = vunpack.c.h.b16 %v993
    %v3474 = vunpack.c.l.b16 %v994
    %v3475 = vunpack.c.h.b16 %v994
    %v3476 = vunpack.c.l.b16 %v995
    %v3477 = vunpack.c.h.b16 %v995
    %v3478 = vunpack.c.l.b16 %v996
    %v3479 = vunpack.c.h.b16 %v996
    %v3480 = vunpack.c.l.b16 %v997
    %v3481 = vunpack.c.h.b16 %v997
    %v3482 = vunpack.c.l.b16 %v998
    %v3483 = vunpack.c.h.b16 %v998
    %v3484 = vunpack.c.l.b16 %v999
    %v3485 = vunpack.c.h.b16 %v999
    %v3486 = vunpack.c.l.b16 %v1000
    %v3487 = vunpack.c.h.b16 %v1000
    %v3488 = vunpack.c.l.b16 %v1001
    %v3489 = vunpack.c.h.b16 %v1001
    %v3490 = vunpack.c.l.b16 %v1002
    %v3491 = vunpack.c.h.b16 %v1002
    %v3492 = vunpack.c.l.b16 %v1003
    %v3493 = vunpack.c.h.b16 %v1003
    %v3494 = vunpack.c.l.b16 %v1004
    %v3495 = vunpack.c.h.b16 %v1004
    %v3496 = vunpack.c.l.b16 %v1005
    %v3497 = vunpack.c.h.b16 %v1005
    %v3498 = vunpack.c.l.b16 %v1006
    %v3499 = vunpack.c.h.b16 %v1006
    %v3500 = vunpack.c.l.b16 %v1007
    %v3501 = vunpack.c.h.b16 %v1007
    %v3502 = vunpack.c.l.b16 %v1008
    %v3503 = vunpack.c.h.b16 %v1008
    %v3504 = vunpack.c.l.b16 %v1009
    %v3505 = vunpack.c.h.b16 %v1009
    %v3506 = vunpack.c.l.b16 %v1010
    %v3507 = vunpack.c.h.b16 %v1010
    %v3508 = vunpack.c.l.b16 %v1011
    %v3509 = vunpack.c.h.b16 %v1011
    %v3510 = vunpack.c.l.b16 %v1012
    %v3511 = vunpack.c.h.b16 %v1012
    %v3512 = vunpack.c.l.b16 %v1013
    %v3513 = vunpack.c.h.b16 %v1013
    %v3514 = vunpack.c.l.b16 %v1014
    %v3515 = vunpack.c.h.b16 %v1014
    %v3516 = vunpack.c.l.b16 %v1015
    %v3517 = vunpack.c.h.b16 %v1015
    %v3518 = vunpack.c.l.b16 %v1016
    %v3519 = vunpack.c.h.b16 %v1016
    %v3520 = vunpack.c.l.b16 %v1017
    %v3521 = vunpack.c.h.b16 %v1017
    %v3522 = vunpack.c.l.b16 %v1018
    %v3523 = vunpack.c.h.b16 %v1018
    %v3524 = vunpack.c.l.b16 %v1019
    %v3525 = vunpack.c.h.b16 %v1019
    %v3526 = vunpack.c.l.b16 %v1020
    %v3527 = vunpack.c.h.b16 %v1020
    %v3528 = vunpack.c.l.b16 %v1021
    %v3529 = vunpack.c.h.b16 %v1021
    %v3530 = vunpack.c.l.b16 %v1022
    %v3531 = vunpack.c.h.b16 %v1022
    %v3532 = vunpack.c.l.b16 %v1023
    %v3533 = vunpack.c.h.b16 %v1023
    %v3534 = vunpack.c.l.b16 %v1024
    %v3535 = vunpack.c.h.b16 %v1024
    %v3536 = vunpack.c.l.b16 %v1025
    %v3537 = vunpack.c.h.b16 %v1025
    %v3538 = vunpack.c.l.b16 %v1026
    %v3539 = vunpack.c.h.b16 %v1026
    %v3540 = vunpack.c.l.b16 %v1027
    %v3541 = vunpack.c.h.b16 %v1027
    %v3542 = vunpack.c.l.b16 %v1028
    %v3543 = vunpack.c.h.b16 %v1028
    %v3544 = vunpack.c.l.b16 %v1029
    %v3545 = vunpack.c.h.b16 %v1029
    %v3546 = vunpack.c.l.b16 %v1030
    %v3547 = vunpack.c.h.b16 %v1030
    %v3548 = vunpack.c.l.b16 %v1031
    %v3549 = vunpack.c.h.b16 %v1031
    %v3550 = vunpack.c.l.b16 %v1032
    %v3551 = vunpack.c.h.b16 %v1032
    %v3552 = vunpack.c.l.b16 %v1033
    %v3553 = vunpack.c.h.b16 %v1033
    %v3554 = vunpack.c.l.b16 %v1034
    %v3555 = vunpack.c.h.b16 %v1034
    %v3556 = vunpack.c.l.b16 %v1035
    %v3557 = vunpack.c.h.b16 %v1035
    %v3558 = vunpack.c.l.b16 %v1036
    %v3559 = vunpack.c.h.b16 %v1036
    %v3560 = vunpack.c.l.b16 %v1037
    %v3561 = vunpack.c.h.b16 %v1037
    %v3562 = vunpack.c.l.b16 %v1038
    %v3563 = vunpack.c.h.b16 %v1038
    %v3564 = vunpack.c.l.b16 %v1039
    %v3565 = vunpack.c.h.b16 %v1039
    %v3566 = vunpack.c.l.b16 %v1040
    %v3567 = vunpack.c.h.b16 %v1040
    %v3568 = vunpack.c.l.b16 %v1041
    %v3569 = vunpack.c.h.b16 %v1041
    %v3570 = vunpack.c.l.b16 %v1042
    %v3571 = vunpack.c.h.b16 %v1042
    %v3572 = vunpack.c.l.b16 %v1043
    %v3573 = vunpack.c.h.b16 %v1043
    %v3574 = vunpack.c.l.b16 %v1044
    %v3575 = vunpack.c.h.b16 %v1044
    %v3576 = vunpack.c.l.b16 %v1045
    %v3577 = vunpack.c.h.b16 %v1045
    %v3578 = vunpack.c.l.b16 %v1046
    %v3579 = vunpack.c.h.b16 %v1046
    %v3580 = vunpack.c.l.b16 %v1047
    %v3581 = vunpack.c.h.b16 %v1047
    %v3582 = vunpack.c.l.b16 %v1048
    %v3583 = vunpack.c.h.b16 %v1048
    %v3584 = vunpack.c.l.b16 %v1049
    %v3585 = vunpack.c.h.b16 %v1049
    %v3586 = vunpack.c.l.b16 %v1050
    %v3587 = vunpack.c.h.b16 %v1050
    %v3588 = vunpack.c.l.b16 %v1051
    %v3589 = vunpack.c.h.b16 %v1051
    %v3590 = vunpack.c.l.b16 %v1052
    %v3591 = vunpack.c.h.b16 %v1052
    %v3592 = vunpack.c.l.b16 %v1053
    %v3593 = vunpack.c.h.b16 %v1053
    %v3594 = vunpack.c.l.b16 %v1054
    %v3595 = vunpack.c.h.b16 %v1054
    %v3596 = vunpack.c.l.b16 %v1055
    %v3597 = vunpack.c.h.b16 %v1055
    %v3598 = vunpack.c.l.b16 %v1056
    %v3599 = vunpack.c.h.b16 %v1056
    %v3600 = vunpack.c.l.b16 %v1057
    %v3601 = vunpack.c.h.b16 %v1057
    %v3602 = vunpack.c.l.b16 %v1058
    %v3603 = vunpack.c.h.b16 %v1058
    %v3604 = vunpack.c.l.b16 %v1059
    %v3605 = vunpack.c.h.b16 %v1059
    %v3606 = vunpack.c.l.b16 %v1060
    %v3607 = vunpack.c.h.b16 %v1060
    %v3608 = vunpack.c.l.b16 %v1061
    %v3609 = vunpack.c.h.b16 %v1061
    %v3610 = vunpack.c.l.b16 %v1062
    %v3611 = vunpack.c.h.b16 %v1062
    %v3612 = vunpack.c.l.b16 %v1063
    %v3613 = vunpack.c.h.b16 %v1063
    %v3614 = vunpack.c.l.b16 %v1064
    %v3615 = vunpack.c.h.b16 %v1064
    %v3616 = vunpack.c.l.b16 %v1065
    %v3617 = vunpack.c.h.b16 %v1065
    %v3618 = vunpack.c.l.b16 %v1066
    %v3619 = vunpack.c.h.b16 %v1066
    %v3620 = vunpack.c.l.b16 %v1067
    %v3621 = vunpack.c.h.b16 %v1067
    %v3622 = vunpack.c.l.b16 %v1068
    %v3623 = vunpack.c.h.b16 %v1068
    %v3624 = vunpack.c.l.b16 %v1069
    %v3625 = vunpack.c.h.b16 %v1069
    %v3626 = vunpack.c.l.b16 %v1070
    %v3627 = vunpack.c.h.b16 %v1070
    %v3628 = vunpack.c.l.b16 %v1071
    %v3629 = vunpack.c.h.b16 %v1071
    %v3630 = vunpack.c.l.b16 %v1072
    %v3631 = vunpack.c.h.b16 %v1072
    %v3632 = vunpack.c.l.b16 %v1073
    %v3633 = vunpack.c.h.b16 %v1073
    %v3634 = vunpack.c.l.b16 %v1074
    %v3635 = vunpack.c.h.b16 %v1074
    %v3636 = vunpack.c.l.b16 %v1075
    %v3637 = vunpack.c.h.b16 %v1075
    %v3638 = vunpack.c.l.b16 %v1076
    %v3639 = vunpack.c.h.b16 %v1076
    %v3640 = vunpack.c.l.b16 %v1077
    %v3641 = vunpack.c.h.b16 %v1077
    %v3642 = vunpack.c.l.b16 %v1078
    %v3643 = vunpack.c.h.b16 %v1078
    %v3644 = vunpack.c.l.b16 %v1079
    %v3645 = vunpack.c.h.b16 %v1079
    %v3646 = vunpack.c.l.b16 %v1080
    %v3647 = vunpack.c.h.b16 %v1080
    %v3648 = vunpack.c.l.b16 %v1081
    %v3649 = vunpack.c.h.b16 %v1081
    %v3650 = vunpack.c.l.b16 %v1082
    %v3651 = vunpack.c.h.b16 %v1082
    %v3652 = vunpack.c.l.b16 %v1083
    %v3653 = vunpack.c.h.b16 %v1083
    %v3654 = vunpack.c.l.b16 %v1084
    %v3655 = vunpack.c.h.b16 %v1084
    %v3656 = vunpack.c.l.b16 %v1085
    %v3657 = vunpack.c.h.b16 %v1085
    %v3658 = vunpack.c.l.b16 %v1086
    %v3659 = vunpack.c.h.b16 %v1086
    %v3660 = vunpack.c.l.b16 %v1087
    %v3661 = vunpack.c.h.b16 %v1087
    %v3662 = vunpack.c.l.b16 %v1088
    %v3663 = vunpack.c.h.b16 %v1088
    %v3664 = vunpack.c.l.b16 %v1089
    %v3665 = vunpack.c.h.b16 %v1089
    %v3666 = vunpack.c.l.b16 %v1090
    %v3667 = vunpack.c.h.b16 %v1090
    %v3668 = vunpack.c.l.b16 %v1091
    %v3669 = vunpack.c.h.b16 %v1091
    %v3670 = vunpack.c.l.b16 %v1092
    %v3671 = vunpack.c.h.b16 %v1092
    %v3672 = vunpack.c.l.b16 %v1093
    %v3673 = vunpack.c.h.b16 %v1093
    %v3674 = vunpack.c.l.b16 %v1094
    %v3675 = vunpack.c.h.b16 %v1094
    %v3676 = vunpack.c.l.b16 %v1095
    %v3677 = vunpack.c.h.b16 %v1095
    %v3678 = vunpack.c.l.b16 %v1096
    %v3679 = vunpack.c.h.b16 %v1096
    %v3680 = vunpack.c.l.b16 %v1097
    %v3681 = vunpack.c.h.b16 %v1097
    %v3682 = vunpack.c.l.b16 %v1098
    %v3683 = vunpack.c.h.b16 %v1098
    %v3684 = vunpack.c.l.b16 %v1099
    %v3685 = vunpack.c.h.b16 %v1099
    %v3686 = vunpack.c.l.b16 %v1100
    %v3687 = vunpack.c.h.b16 %v1100
    %v3688 = vunpack.c.l.b16 %v1101
    %v3689 = vunpack.c.h.b16 %v1101
    %v3690 = vunpack.c.l.b16 %v1102
    %v3691 = vunpack.c.h.b16 %v1102
    %v3692 = vunpack.c.l.b16 %v1103
    %v3693 = vunpack.c.h.b16 %v1103
    %v3694 = vunpack.c.l.b16 %v1104
    %v3695 = vunpack.c.h.b16 %v1104
    %v3696 = vunpack.c.l.b16 %v1105
    %v3697 = vunpack.c.h.b16 %v1105
    %v3698 = vunpack.c.l.b16 %v1106
    %v3699 = vunpack.c.h.b16 %v1106
    %v3700 = vunpack.c.l.b16 %v1107
    %v3701 = vunpack.c.h.b16 %v1107
    %v3702 = vunpack.c.l.b16 %v1108
    %v3703 = vunpack.c.h.b16 %v1108
    %v3704 = vunpack.c.l.b16 %v1109
    %v3705 = vunpack.c.h.b16 %v1109
    %v3706 = vunpack.c.l.b16 %v1110
    %v3707 = vunpack.c.h.b16 %v1110
    %v3708 = vunpack.c.l.b16 %v1111
    %v3709 = vunpack.c.h.b16 %v1111
    %v3710 = vunpack.c.l.b16 %v1112
    %v3711 = vunpack.c.h.b16 %v1112
    %v3712 = vunpack.c.l.b16 %v1113
    %v3713 = vunpack.c.h.b16 %v1113
    %v3714 = vunpack.c.l.b16 %v1114
    %v3715 = vunpack.c.h.b16 %v1114
    %v3716 = vunpack.c.l.b16 %v1115
    %v3717 = vunpack.c.h.b16 %v1115
    %v3718 = vunpack.c.l.b16 %v1116
    %v3719 = vunpack.c.h.b16 %v1116
    %v3720 = vunpack.c.l.b16 %v1117
    %v3721 = vunpack.c.h.b16 %v1117
    %v3722 = vunpack.c.l.b16 %v1118
    %v3723 = vunpack.c.h.b16 %v1118
    %v3724 = vunpack.c.l.b16 %v1119
    %v3725 = vunpack.c.h.b16 %v1119
    %v3726 = vunpack.c.l.b16 %v1120
    %v3727 = vunpack.c.h.b16 %v1120
    %v3728 = vunpack.c.l.b16 %v1121
    %v3729 = vunpack.c.h.b16 %v1121
    %v3730 = vunpack.c.l.b16 %v1122
    %v3731 = vunpack.c.h.b16 %v1122
    %v3732 = vunpack.c.l.b16 %v1123
    %v3733 = vunpack.c.h.b16 %v1123
    %v3734 = vunpack.c.l.b16 %v1124
    %v3735 = vunpack.c.h.b16 %v1124
    %v3736 = vunpack.c.l.b16 %v1125
    %v3737 = vunpack.c.h.b16 %v1125
    %v3738 = vunpack.c.l.b16 %v1126
    %v3739 = vunpack.c.h.b16 %v1126
    %v3740 = vunpack.c.l.b16 %v1127
    %v3741 = vunpack.c.h.b16 %v1127
    %v3742 = vunpack.c.l.b16 %v1128
    %v3743 = vunpack.c.h.b16 %v1128
    %v3744 = vunpack.c.l.b16 %v1129
    %v3745 = vunpack.c.h.b16 %v1129
    %v3746 = vunpack.c.l.b16 %v1130
    %v3747 = vunpack.c.h.b16 %v1130
    %v3748 = vunpack.c.l.b16 %v1131
    %v3749 = vunpack.c.h.b16 %v1131
    %v3750 = vunpack.c.l.b16 %v1132
    %v3751 = vunpack.c.h.b16 %v1132
    %v3752 = vunpack.c.l.b16 %v1133
    %v3753 = vunpack.c.h.b16 %v1133
    %v3754 = vunpack.c.l.b16 %v1134
    %v3755 = vunpack.c.h.b16 %v1134
    %v3756 = vunpack.c.l.b16 %v1135
    %v3757 = vunpack.c.h.b16 %v1135
    %v3758 = vunpack.c.l.b16 %v1136
    %v3759 = vunpack.c.h.b16 %v1136
    %v3760 = vunpack.c.l.b16 %v1137
    %v3761 = vunpack.c.h.b16 %v1137
    %v3762 = vunpack.c.l.b16 %v1138
    %v3763 = vunpack.c.h.b16 %v1138
    %v3764 = vunpack.c.l.b16 %v1139
    %v3765 = vunpack.c.h.b16 %v1139
    %v3766 = vunpack.c.l.b16 %v1140
    %v3767 = vunpack.c.h.b16 %v1140
    %v3768 = vunpack.c.l.b16 %v1141
    %v3769 = vunpack.c.h.b16 %v1141
    %v3770 = vunpack.c.l.b16 %v1142
    %v3771 = vunpack.c.h.b16 %v1142
    %v3772 = vunpack.c.l.b16 %v1143
    %v3773 = vunpack.c.h.b16 %v1143
    %v3774 = vunpack.c.l.b16 %v1144
    %v3775 = vunpack.c.h.b16 %v1144
    %v3776 = vunpack.c.l.b16 %v1145
    %v3777 = vunpack.c.h.b16 %v1145
    %v3778 = vunpack.c.l.b16 %v1146
    %v3779 = vunpack.c.h.b16 %v1146
    %v3780 = vunpack.c.l.b16 %v1147
    %v3781 = vunpack.c.h.b16 %v1147
    %v3782 = vunpack.c.l.b16 %v1148
    %v3783 = vunpack.c.h.b16 %v1148
    %v3784 = vunpack.c.l.b16 %v1149
    %v3785 = vunpack.c.h.b16 %v1149
    %v3786 = vunpack.c.l.b16 %v1150
    %v3787 = vunpack.c.h.b16 %v1150
    %v3788 = vunpack.c.l.b16 %v1151
    %v3789 = vunpack.c.h.b16 %v1151
    %v3790 = vunpack.c.l.b16 %v1152
    %v3791 = vunpack.c.h.b16 %v1152
    %v3792 = vunpack.c.l.b16 %v1153
    %v3793 = vunpack.c.h.b16 %v1153
    %v3794 = vunpack.c.l.b16 %v1154
    %v3795 = vunpack.c.h.b16 %v1154
    %v3796 = vunpack.c.l.b16 %v1155
    %v3797 = vunpack.c.h.b16 %v1155
    %v3798 = vunpack.c.l.b16 %v1156
    %v3799 = vunpack.c.h.b16 %v1156
    %v3800 = vunpack.c.l.b16 %v1157
    %v3801 = vunpack.c.h.b16 %v1157
    %v3802 = vunpack.c.l.b16 %v1158
    %v3803 = vunpack.c.h.b16 %v1158
    %v3804 = vunpack.c.l.b16 %v1159
    %v3805 = vunpack.c.h.b16 %v1159
    %v3806 = vunpack.c.l.b16 %v1160
    %v3807 = vunpack.c.h.b16 %v1160
    %v3808 = vunpack.c.l.b16 %v1161
    %v3809 = vunpack.c.h.b16 %v1161
    %v3810 = vunpack.c.l.b16 %v1162
    %v3811 = vunpack.c.h.b16 %v1162
    %v3812 = vunpack.c.l.b16 %v1163
    %v3813 = vunpack.c.h.b16 %v1163
    %v3814 = vunpack.c.l.b16 %v1164
    %v3815 = vunpack.c.h.b16 %v1164
    %v3816 = vunpack.c.l.b16 %v1165
    %v3817 = vunpack.c.h.b16 %v1165
    %v3818 = vunpack.c.l.b16 %v1166
    %v3819 = vunpack.c.h.b16 %v1166
    %v3820 = vunpack.c.l.b16 %v1167
    %v3821 = vunpack.c.h.b16 %v1167
    %v3822 = vunpack.c.l.b16 %v1168
    %v3823 = vunpack.c.h.b16 %v1168
    %v3824 = vunpack.c.l.b16 %v1169
    %v3825 = vunpack.c.h.b16 %v1169
    %v3826 = vunpack.c.l.b16 %v1170
    %v3827 = vunpack.c.h.b16 %v1170
    %v3828 = vunpack.c.l.b16 %v1171
    %v3829 = vunpack.c.h.b16 %v1171
    %v3830 = vunpack.c.l.b16 %v1172
    %v3831 = vunpack.c.h.b16 %v1172
    %v3832 = vunpack.c.l.b16 %v1173
    %v3833 = vunpack.c.h.b16 %v1173
    %v3834 = vunpack.c.l.b16 %v1174
    %v3835 = vunpack.c.h.b16 %v1174
    %v3836 = vunpack.c.l.b16 %v1175
    %v3837 = vunpack.c.h.b16 %v1175
    %v3838 = vunpack.c.l.b16 %v1176
    %v3839 = vunpack.c.h.b16 %v1176
    %v3840 = vunpack.c.l.b16 %v1177
    %v3841 = vunpack.c.h.b16 %v1177
    %v3842 = vunpack.c.l.b16 %v1178
    %v3843 = vunpack.c.h.b16 %v1178
    %v3844 = vunpack.c.l.b16 %v1179
    %v3845 = vunpack.c.h.b16 %v1179
    %v3846 = vunpack.c.l.b16 %v1180
    %v3847 = vunpack.c.h.b16 %v1180
    %v3848 = vunpack.c.l.b16 %v1181
    %v3849 = vunpack.c.h.b16 %v1181
    %v3850 = vunpack.c.l.b16 %v1182
    %v3851 = vunpack.c.h.b16 %v1182
    %v3852 = vunpack.c.l.b16 %v1183
    %v3853 = vunpack.c.h.b16 %v1183
    %v3854 = vunpack.c.l.b16 %v1184
    %v3855 = vunpack.c.h.b16 %v1184
    %v3856 = vunpack.c.l.b16 %v1185
    %v3857 = vunpack.c.h.b16 %v1185
    %v3858 = vunpack.c.l.b16 %v1186
    %v3859 = vunpack.c.h.b16 %v1186
    %v3860 = vunpack.c.l.b16 %v1187
    %v3861 = vunpack.c.h.b16 %v1187
    %v3862 = vunpack.c.l.b16 %v1188
    %v3863 = vunpack.c.h.b16 %v1188
    %v3864 = vunpack.c.l.b16 %v1189
    %v3865 = vunpack.c.h.b16 %v1189
    %v3866 = vunpack.c.l.b16 %v1190
    %v3867 = vunpack.c.h.b16 %v1190
    %v3868 = vunpack.c.l.b16 %v1191
    %v3869 = vunpack.c.h.b16 %v1191
    %v3870 = vunpack.c.l.b16 %v1192
    %v3871 = vunpack.c.h.b16 %v1192
    %v3872 = vunpack.c.l.b16 %v1193
    %v3873 = vunpack.c.h.b16 %v1193
    %v3874 = vunpack.c.l.b16 %v1194
    %v3875 = vunpack.c.h.b16 %v1194
    %v3876 = vunpack.c.l.b16 %v1195
    %v3877 = vunpack.c.h.b16 %v1195
    %v3878 = vunpack.c.l.b16 %v1196
    %v3879 = vunpack.c.h.b16 %v1196
    %v3880 = vunpack.c.l.b16 %v1197
    %v3881 = vunpack.c.h.b16 %v1197
    %v3882 = vunpack.c.l.b16 %v1198
    %v3883 = vunpack.c.h.b16 %v1198
    %v3884 = vunpack.c.l.b16 %v1199
    %v3885 = vunpack.c.h.b16 %v1199
    %v3886 = vunpack.c.l.b16 %v1200
    %v3887 = vunpack.c.h.b16 %v1200
    %v3888 = vunpack.c.l.b16 %v1201
    %v3889 = vunpack.c.h.b16 %v1201
    %v3890 = vunpack.c.l.b16 %v1202
    %v3891 = vunpack.c.h.b16 %v1202
    %v3892 = vunpack.c.l.b16 %v1203
    %v3893 = vunpack.c.h.b16 %v1203
    %v3894 = vunpack.c.l.b16 %v1204
    %v3895 = vunpack.c.h.b16 %v1204
    %v3896 = vunpack.c.l.b16 %v1205
    %v3897 = vunpack.c.h.b16 %v1205
    %v3898 = vunpack.c.l.b16 %v1206
    %v3899 = vunpack.c.h.b16 %v1206
    %v3900 = vunpack.c.l.b16 %v1207
    %v3901 = vunpack.c.h.b16 %v1207
    %v3902 = vunpack.c.l.b16 %v1208
    %v3903 = vunpack.c.h.b16 %v1208
    %v3904 = vunpack.c.l.b16 %v1209
    %v3905 = vunpack.c.h.b16 %v1209
    %v3906 = vunpack.c.l.b16 %v1210
    %v3907 = vunpack.c.h.b16 %v1210
    %v3908 = vunpack.c.l.b16 %v1211
    %v3909 = vunpack.c.h.b16 %v1211
    %v3910 = vunpack.c.l.b16 %v1212
    %v3911 = vunpack.c.h.b16 %v1212
    %v3912 = vunpack.c.l.b16 %v1213
    %v3913 = vunpack.c.h.b16 %v1213
    %v3914 = vunpack.c.l.b16 %v1214
    %v3915 = vunpack.c.h.b16 %v1214
    %v3916 = vunpack.c.l.b16 %v1215
    %v3917 = vunpack.c.h.b16 %v1215
    %v3918 = vunpack.c.l.b16 %v1216
    %v3919 = vunpack.c.h.b16 %v1216
    %v3920 = vunpack.c.l.b16 %v1217
    %v3921 = vunpack.c.h.b16 %v1217
    %v3922 = vunpack.c.l.b16 %v1218
    %v3923 = vunpack.c.h.b16 %v1218
    %v3924 = vunpack.c.l.b16 %v1219
    %v3925 = vunpack.c.h.b16 %v1219
    %v3926 = vunpack.c.l.b16 %v1220
    %v3927 = vunpack.c.h.b16 %v1220
    %v3928 = vunpack.c.l.b16 %v1221
    %v3929 = vunpack.c.h.b16 %v1221
    %v3930 = vunpack.c.l.b16 %v1222
    %v3931 = vunpack.c.h.b16 %v1222
    %v3932 = vunpack.c.l.b16 %v1223
    %v3933 = vunpack.c.h.b16 %v1223
    %v3934 = vunpack.c.l.b16 %v1224
    %v3935 = vunpack.c.h.b16 %v1224
    %v3936 = vunpack.c.l.b16 %v1225
    %v3937 = vunpack.c.h.b16 %v1225
    %v3938 = vunpack.c.l.b16 %v1226
    %v3939 = vunpack.c.h.b16 %v1226
    %v3940 = vunpack.c.l.b16 %v1227
    %v3941 = vunpack.c.h.b16 %v1227
    %v3942 = vunpack.c.l.b16 %v1228
    %v3943 = vunpack.c.h.b16 %v1228
    %v3944 = vunpack.c.l.b16 %v1229
    %v3945 = vunpack.c.h.b16 %v1229
    %v3946 = vunpack.c.l.b16 %v1230
    %v3947 = vunpack.c.h.b16 %v1230
    %v3948 = vunpack.c.l.b16 %v1231
    %v3949 = vunpack.c.h.b16 %v1231
    %v3950 = vunpack.c.l.b16 %v1232
    %v3951 = vunpack.c.h.b16 %v1232
    %v3952 = vunpack.c.l.b16 %v1233
    %v3953 = vunpack.c.h.b16 %v1233
    %v3954 = vunpack.c.l.b16 %v1234
    %v3955 = vunpack.c.h.b16 %v1234
    %v3956 = vunpack.c.l.b16 %v1235
    %v3957 = vunpack.c.h.b16 %v1235
    %v3958 = vunpack.c.l.b16 %v1236
    %v3959 = vunpack.c.h.b16 %v1236
    %v3960 = vunpack.c.l.b16 %v1237
    %v3961 = vunpack.c.h.b16 %v1237
    %v3962 = vunpack.c.l.b16 %v1238
    %v3963 = vunpack.c.h.b16 %v1238
    %v3964 = vunpack.c.l.b16 %v1239
    %v3965 = vunpack.c.h.b16 %v1239
    %v3966 = vunpack.c.l.b16 %v1240
    %v3967 = vunpack.c.h.b16 %v1240
    %v3968 = vunpack.c.l.b16 %v1241
    %v3969 = vunpack.c.h.b16 %v1241
    %v3970 = vunpack.c.l.b16 %v1242
    %v3971 = vunpack.c.h.b16 %v1242
    %v3972 = vunpack.c.l.b16 %v1243
    %v3973 = vunpack.c.h.b16 %v1243
    %v3974 = vunpack.c.l.b16 %v1244
    %v3975 = vunpack.c.h.b16 %v1244
    %v3976 = vunpack.c.l.b16 %v1245
    %v3977 = vunpack.c.h.b16 %v1245
    %v3978 = vunpack.c.l.b16 %v1246
    %v3979 = vunpack.c.h.b16 %v1246
    %v3980 = vunpack.c.l.b16 %v1247
    %v3981 = vunpack.c.h.b16 %v1247
    %v3982 = vunpack.c.l.b16 %v1248
    %v3983 = vunpack.c.h.b16 %v1248
    %v3984 = vunpack.c.l.b16 %v1249
    %v3985 = vunpack.c.h.b16 %v1249
    %v3986 = vunpack.c.l.b16 %v1250
    %v3987 = vunpack.c.h.b16 %v1250
    %v3988 = vunpack.c.l.b16 %v1251
    %v3989 = vunpack.c.h.b16 %v1251
    %v3990 = vunpack.c.l.b16 %v1252
    %v3991 = vunpack.c.h.b16 %v1252
    %v3992 = vunpack.c.l.b16 %v1253
    %v3993 = vunpack.c.h.b16 %v1253
    %v3994 = vunpack.c.l.b16 %v1254
    %v3995 = vunpack.c.h.b16 %v1254
    %v3996 = vunpack.c.l.b16 %v1255
    %v3997 = vunpack.c.h.b16 %v1255
    %v3998 = vunpack.c.l.b16 %v1256
    %v3999 = vunpack.c.h.b16 %v1256
    %v4000 = vunpack.c.l.b16 %v1257
    %v4001 = vunpack.c.h.b16 %v1257
    %v4002 = vunpack.c.l.b16 %v1258
    %v4003 = vunpack.c.h.b16 %v1258
    %v4004 = vunpack.c.l.b16 %v1259
    %v4005 = vunpack.c.h.b16 %v1259
    %v4006 = vunpack.c.l.b16 %v1260
    %v4007 = vunpack.c.h.b16 %v1260
    %v4008 = vunpack.c.l.b16 %v1261
    %v4009 = vunpack.c.h.b16 %v1261
    %v4010 = vunpack.c.l.b16 %v1262
    %v4011 = vunpack.c.h.b16 %v1262
    %v4012 = vunpack.c.l.b16 %v1263
    %v4013 = vunpack.c.h.b16 %v1263
    %v4014 = vunpack.c.l.b16 %v1264
    %v4015 = vunpack.c.h.b16 %v1264
    %v4016 = vunpack.c.l.b16 %v1265
    %v4017 = vunpack.c.h.b16 %v1265
    %v4018 = vunpack.c.l.b16 %v1266
    %v4019 = vunpack.c.h.b16 %v1266
    %v4020 = vunpack.c.l.b16 %v1267
    %v4021 = vunpack.c.h.b16 %v1267
    %v4022 = vunpack.c.l.b16 %v1268
    %v4023 = vunpack.c.h.b16 %v1268
    %v4024 = vunpack.c.l.b16 %v1269
    %v4025 = vunpack.c.h.b16 %v1269
    %v4026 = vunpack.c.l.b16 %v1270
    %v4027 = vunpack.c.h.b16 %v1270
    %v4028 = vunpack.c.l.b16 %v1271
    %v4029 = vunpack.c.h.b16 %v1271
    %v4030 = vunpack.c.l.b16 %v1272
    %v4031 = vunpack.c.h.b16 %v1272
    %v4032 = vunpack.c.l.b16 %v1273
    %v4033 = vunpack.c.h.b16 %v1273
    %v4034 = vunpack.c.l.b16 %v1274
    %v4035 = vunpack.c.h.b16 %v1274
    %v4036 = vunpack.c.l.b16 %v1275
    %v4037 = vunpack.c.h.b16 %v1275
    %v4038 = vunpack.c.l.b16 %v1276
    %v4039 = vunpack.c.h.b16 %v1276
    %v4040 = vunpack.c.l.b16 %v1277
    %v4041 = vunpack.c.h.b16 %v1277
    %v4042 = vunpack.c.l.b16 %v1278
    %v4043 = vunpack.c.h.b16 %v1278
    %v4044 = vunpack.c.l.b16 %v1279
    %v4045 = vunpack.c.h.b16 %v1279
    %v4046 = vunpack.c.l.b16 %v1280
    %v4047 = vunpack.c.h.b16 %v1280
    %v4048 = vunpack.c.l.b16 %v1281
    %v4049 = vunpack.c.h.b16 %v1281
    %v4050 = vunpack.c.l.b16 %v1282
    %v4051 = vunpack.c.h.b16 %v1282
    %v4052 = vunpack.c.l.b16 %v1283
    %v4053 = vunpack.c.h.b16 %v1283
    %v4054 = vunpack.c.l.b16 %v1284
    %v4055 = vunpack.c.h.b16 %v1284
    %v4056 = vunpack.c.l.b16 %v1285
    %v4057 = vunpack.c.h.b16 %v1285
    %v4058 = vunpack.c.l.b16 %v1286
    %v4059 = vunpack.c.h.b16 %v1286
    %v4060 = vunpack.c.l.b16 %v1287
    %v4061 = vunpack.c.h.b16 %v1287
    %v4062 = vunpack.c.l.b16 %v1288
    %v4063 = vunpack.c.h.b16 %v1288
    %v4064 = vunpack.c.l.b16 %v1289
    %v4065 = vunpack.c.h.b16 %v1289
    %v4066 = vunpack.c.l.b16 %v1290
    %v4067 = vunpack.c.h.b16 %v1290
    %v4068 = vunpack.c.l.b16 %v1291
    %v4069 = vunpack.c.h.b16 %v1291
    %v4070 = vunpack.c.l.b16 %v1292
    %v4071 = vunpack.c.h.b16 %v1292
    %v4072 = vunpack.c.l.b16 %v1293
    %v4073 = vunpack.c.h.b16 %v1293
    %v4074 = vunpack.c.l.b16 %v1294
    %v4075 = vunpack.c.h.b16 %v1294
    %v4076 = vunpack.c.l.b16 %v1295
    %v4077 = vunpack.c.h.b16 %v1295
    %v4078 = vunpack.c.l.b16 %v1296
    %v4079 = vunpack.c.h.b16 %v1296
    %v4080 = vunpack.c.l.b16 %v1297
    %v4081 = vunpack.c.h.b16 %v1297
    %v4082 = vunpack.c.l.b16 %v1298
    %v4083 = vunpack.c.h.b16 %v1298
    %v4084 = vunpack.c.l.b16 %v1299
    %v4085 = vunpack.c.h.b16 %v1299
    %v4086 = vunpack.c.l.b16 %v1300
    %v4087 = vunpack.c.h.b16 %v1300
    %v4088 = vunpack.c.l.b16 %v1301
    %v4089 = vunpack.c.h.b16 %v1301
    %v4090 = vunpack.c.l.b16 %v1302
    %v4091 = vunpack.c.h.b16 %v1302
    %v4092 = vunpack.c.l.b16 %v1303
    %v4093 = vunpack.c.h.b16 %v1303
    %v4094 = vunpack.c.l.b16 %v1304
    %v4095 = vunpack.c.h.b16 %v1304
    %v4096 = vunpack.c.l.b16 %v1305
    %v4097 = vunpack.c.h.b16 %v1305
    %v4098 = vunpack.c.l.b16 %v1306
    %v4099 = vunpack.c.h.b16 %v1306
    %v4100 = vunpack.c.l.b16 %v1307
    %v4101 = vunpack.c.h.b16 %v1307
    %v4102 = vunpack.c.l.b16 %v1308
    %v4103 = vunpack.c.h.b16 %v1308
    %v4104 = vunpack.c.l.b16 %v1309
    %v4105 = vunpack.c.h.b16 %v1309
    %v4106 = vunpack.c.l.b16 %v1310
    %v4107 = vunpack.c.h.b16 %v1310
    %v4108 = vunpack.c.l.b16 %v1311
    %v4109 = vunpack.c.h.b16 %v1311
    %v4110 = vunpack.c.l.b16 %v1312
    %v4111 = vunpack.c.h.b16 %v1312
    %v4112 = vunpack.c.l.b16 %v1313
    %v4113 = vunpack.c.h.b16 %v1313
    %v4114 = vunpack.c.l.b16 %v1314
    %v4115 = vunpack.c.h.b16 %v1314
    %v4116 = vunpack.c.l.b16 %v1315
    %v4117 = vunpack.c.h.b16 %v1315
    %v4118 = vunpack.c.l.b16 %v1316
    %v4119 = vunpack.c.h.b16 %v1316
    %v4120 = vunpack.c.l.b16 %v1317
    %v4121 = vunpack.c.h.b16 %v1317
    %v4122 = vunpack.c.l.b16 %v1318
    %v4123 = vunpack.c.h.b16 %v1318
    %v4124 = vunpack.c.l.b16 %v1319
    %v4125 = vunpack.c.h.b16 %v1319
    %v4126 = vunpack.c.l.b16 %v1320
    %v4127 = vunpack.c.h.b16 %v1320
    %v4128 = vunpack.c.l.b16 %v1321
    %v4129 = vunpack.c.h.b16 %v1321
    %v4130 = vunpack.c.l.b16 %v1322
    %v4131 = vunpack.c.h.b16 %v1322
    %v4132 = vunpack.c.l.b16 %v1323
    %v4133 = vunpack.c.h.b16 %v1323
    %v4134 = vunpack.c.l.b16 %v1324
    %v4135 = vunpack.c.h.b16 %v1324
    %v4136 = vunpack.c.l.b16 %v1325
    %v4137 = vunpack.c.h.b16 %v1325
    %v4138 = vunpack.c.l.b16 %v1326
    %v4139 = vunpack.c.h.b16 %v1326
    %v4140 = vunpack.c.l.b16 %v1327
    %v4141 = vunpack.c.h.b16 %v1327
    %v4142 = vunpack.c.l.b16 %v1328
    %v4143 = vunpack.c.h.b16 %v1328
    %v4144 = vunpack.c.l.b16 %v1329
    %v4145 = vunpack.c.h.b16 %v1329
    %v4146 = vunpack.c.l.b16 %v1330
    %v4147 = vunpack.c.h.b16 %v1330
    %v4148 = vunpack.c.l.b16 %v1331
    %v4149 = vunpack.c.h.b16 %v1331
    %v4150 = vunpack.c.l.b16 %v1332
    %v4151 = vunpack.c.h.b16 %v1332
    %v4152 = vunpack.c.l.b16 %v1333
    %v4153 = vunpack.c.h.b16 %v1333
    %v4154 = vunpack.c.l.b16 %v1334
    %v4155 = vunpack.c.h.b16 %v1334
    %v4156 = vunpack.c.l.b16 %v1335
    %v4157 = vunpack.c.h.b16 %v1335
    %v4158 = vunpack.c.l.b16 %v1336
    %v4159 = vunpack.c.h.b16 %v1336
    %v4160 = vunpack.c.l.b16 %v1337
    %v4161 = vunpack.c.h.b16 %v1337
    %v4162 = vunpack.c.l.b16 %v1338
    %v4163 = vunpack.c.h.b16 %v1338
    %v4164 = vunpack.c.l.b16 %v1339
    %v4165 = vunpack.c.h.b16 %v1339
    %v4166 = vunpack.c.l.b16 %v1340
    %v4167 = vunpack.c.h.b16 %v1340
    %v4168 = vunpack.c.l.b16 %v1341
    %v4169 = vunpack.c.h.b16 %v1341
    %v4170 = vunpack.c.l.b16 %v1342
    %v4171 = vunpack.c.h.b16 %v1342
    %v4172 = vunpack.c.l.b16 %v1343
    %v4173 = vunpack.c.h.b16 %v1343
    %v4174 = vunpack.c.l.b16 %v1344
    %v4175 = vunpack.c.h.b16 %v1344
    %v4176 = vunpack.c.l.b16 %v1345
    %v4177 = vunpack.c.h.b16 %v1345
    %v4178 = vunpack.c.l.b16 %v1346
    %v4179 = vunpack.c.h.b16 %v1346
    %v4180 = vunpack.c.l.b16 %v1347
    %v4181 = vunpack.c.h.b16 %v1347
    %v4182 = vunpack.c.l.b16 %v1348
    %v4183 = vunpack.c.h.b16 %v1348
    %v4184 = vunpack.c.l.b16 %v1349
    %v4185 = vunpack.c.h.b16 %v1349
    %v4186 = vunpack.c.l.b16 %v1350
    %v4187 = vunpack.c.h.b16 %v1350
    %v4188 = vunpack.c.l.b16 %v1351
    %v4189 = vunpack.c.h.b16 %v1351
    %v4190 = vunpack.c.l.b16 %v1352
    %v4191 = vunpack.c.h.b16 %v1352
    %v4192 = vunpack.c.l.b16 %v1353
    %v4193 = vunpack.c.h.b16 %v1353
    %v4194 = vunpack.c.l.b16 %v1354
    %v4195 = vunpack.c.h.b16 %v1354
    %v4196 = vunpack.c.l.b16 %v1355
    %v4197 = vunpack.c.h.b16 %v1355
    %v4198 = vunpack.c.l.b16 %v1356
    %v4199 = vunpack.c.h.b16 %v1356
    %v4200 = vunpack.c.l.b16 %v1357
    %v4201 = vunpack.c.h.b16 %v1357
    %v4202 = vunpack.c.l.b16 %v1358
    %v4203 = vunpack.c.h.b16 %v1358
    %v4204 = vunpack.c.l.b16 %v1359
    %v4205 = vunpack.c.h.b16 %v1359
    %v4206 = vunpack.c.l.b16 %v1360
    %v4207 = vunpack.c.h.b16 %v1360
    %v4208 = vunpack.c.l.b16 %v1361
    %v4209 = vunpack.c.h.b16 %v1361
    %v4210 = vunpack.c.l.b16 %v1362
    %v4211 = vunpack.c.h.b16 %v1362
    %v4212 = vunpack.c.l.b16 %v1363
    %v4213 = vunpack.c.h.b16 %v1363
    %v4214 = vunpack.c.l.b16 %v1364
    %v4215 = vunpack.c.h.b16 %v1364
    %v4216 = vunpack.c.l.b16 %v1365
    %v4217 = vunpack.c.h.b16 %v1365
    %v4218 = vunpack.c.l.b16 %v1366
    %v4219 = vunpack.c.h.b16 %v1366
    %v4220 = vunpack.c.l.b16 %v1367
    %v4221 = vunpack.c.h.b16 %v1367
    %v4222 = vunpack.c.l.b16 %v1368
    %v4223 = vunpack.c.h.b16 %v1368
    %v4224 = vunpack.c.l.b16 %v1369
    %v4225 = vunpack.c.h.b16 %v1369
    %v4226 = vunpack.c.l.b16 %v1370
    %v4227 = vunpack.c.h.b16 %v1370
    %v4228 = vunpack.c.l.b16 %v1371
    %v4229 = vunpack.c.h.b16 %v1371
    %v4230 = vunpack.c.l.b16 %v1372
    %v4231 = vunpack.c.h.b16 %v1372
    %v4232 = vunpack.c.l.b16 %v1373
    %v4233 = vunpack.c.h.b16 %v1373
    %v4234 = vunpack.c.l.b16 %v1374
    %v4235 = vunpack.c.h.b16 %v1374
    %v4236 = vunpack.c.l.b16 %v1375
    %v4237 = vunpack.c.h.b16 %v1375
    %v4238 = vunpack.c.l.b16 %v1376
    %v4239 = vunpack.c.h.b16 %v1376
    %v4240 = vunpack.c.l.b16 %v1377
    %v4241 = vunpack.c.h.b16 %v1377
    %v4242 = vunpack.c.l.b16 %v1378
    %v4243 = vunpack.c.h.b16 %v1378
    %v4244 = vunpack.c.l.b16 %v1379
    %v4245 = vunpack.c.h.b16 %v1379
    %v4246 = vunpack.c.l.b16 %v1380
    %v4247 = vunpack.c.h.b16 %v1380
    %v4248 = vunpack.c.l.b16 %v1381
    %v4249 = vunpack.c.h.b16 %v1381
    %v4250 = vunpack.c.l.b16 %v1382
    %v4251 = vunpack.c.h.b16 %v1382
    %v4252 = vunpack.c.l.b16 %v1383
    %v4253 = vunpack.c.h.b16 %v1383
    %v4254 = vunpack.c.l.b16 %v1384
    %v4255 = vunpack.c.h.b16 %v1384
    %v4256 = vunpack.c.l.b16 %v1385
    %v4257 = vunpack.c.h.b16 %v1385
    %v4258 = vunpack.c.l.b16 %v1386
    %v4259 = vunpack.c.h.b16 %v1386
    %v4260 = vunpack.c.l.b16 %v1387
    %v4261 = vunpack.c.h.b16 %v1387
    %v4262 = vunpack.c.l.b16 %v1388
    %v4263 = vunpack.c.h.b16 %v1388
    %v4264 = vunpack.c.l.b16 %v1389
    %v4265 = vunpack.c.h.b16 %v1389
    %v4266 = vunpack.c.l.b16 %v1390
    %v4267 = vunpack.c.h.b16 %v1390
    %v4268 = vunpack.c.l.b16 %v1391
    %v4269 = vunpack.c.h.b16 %v1391
    %v4270 = vunpack.c.l.b16 %v1392
    %v4271 = vunpack.c.h.b16 %v1392
    %v4272 = vunpack.c.l.b16 %v1393
    %v4273 = vunpack.c.h.b16 %v1393
    %v4274 = vunpack.c.l.b16 %v1394
    %v4275 = vunpack.c.h.b16 %v1394
    %v4276 = vunpack.c.l.b16 %v1395
    %v4277 = vunpack.c.h.b16 %v1395
    %v4278 = vunpack.c.l.b16 %v1396
    %v4279 = vunpack.c.h.b16 %v1396
    %v4280 = vunpack.c.l.b16 %v1397
    %v4281 = vunpack.c.h.b16 %v1397
    %v4282 = vunpack.c.l.b16 %v1398
    %v4283 = vunpack.c.h.b16 %v1398
    %v4284 = vunpack.c.l.b16 %v1399
    %v4285 = vunpack.c.h.b16 %v1399
    %v4286 = vunpack.c.l.b16 %v1400
    %v4287 = vunpack.c.h.b16 %v1400
    %v4288 = vunpack.c.l.b16 %v1401
    %v4289 = vunpack.c.h.b16 %v1401
    %v4290 = vunpack.c.l.b16 %v1402
    %v4291 = vunpack.c.h.b16 %v1402
    %v4292 = vunpack.c.l.b16 %v1403
    %v4293 = vunpack.c.h.b16 %v1403
    %v4294 = vunpack.c.l.b16 %v1404
    %v4295 = vunpack.c.h.b16 %v1404
    %v4296 = vunpack.c.l.b16 %v1405
    %v4297 = vunpack.c.h.b16 %v1405
    %v4298 = vunpack.c.l.b16 %v1406
    %v4299 = vunpack.c.h.b16 %v1406
    %v4300 = vunpack.c.l.b16 %v1407
    %v4301 = vunpack.c.h.b16 %v1407
    %v4302 = vunpack.c.l.b16 %v1408
    %v4303 = vunpack.c.h.b16 %v1408
    %v4304 = vunpack.c.l.b16 %v1409
    %v4305 = vunpack.c.h.b16 %v1409
    %v4306 = vunpack.c.l.b16 %v1410
    %v4307 = vunpack.c.h.b16 %v1410
    %v4308 = vunpack.c.l.b16 %v1411
    %v4309 = vunpack.c.h.b16 %v1411
    %v4310 = vunpack.c.l.b16 %v1412
    %v4311 = vunpack.c.h.b16 %v1412
    %v4312 = vunpack.c.l.b16 %v1413
    %v4313 = vunpack.c.h.b16 %v1413
    %v4314 = vunpack.c.l.b16 %v1414
    %v4315 = vunpack.c.h.b16 %v1414
    %v4316 = vunpack.c.l.b16 %v1415
    %v4317 = vunpack.c.h.b16 %v1415
    %v4318 = vunpack.c.l.b16 %v1416
    %v4319 = vunpack.c.h.b16 %v1416
    %v4320 = vunpack.c.l.b16 %v1417
    %v4321 = vunpack.c.h.b16 %v1417
    %v4322 = vunpack.c.l.b16 %v1418
    %v4323 = vunpack.c.h.b16 %v1418
    %v4324 = vunpack.c.l.b16 %v1419
    %v4325 = vunpack.c.h.b16 %v1419
    %v4326 = vunpack.c.l.b16 %v1420
    %v4327 = vunpack.c.h.b16 %v1420
    %v4328 = vunpack.c.l.b16 %v1421
    %v4329 = vunpack.c.h.b16 %v1421
    %v4330 = vunpack.c.l.b16 %v1422
    %v4331 = vunpack.c.h.b16 %v1422
    %v4332 = vunpack.c.l.b16 %v1423
    %v4333 = vunpack.c.h.b16 %v1423
    %v4334 = vunpack.c.l.b16 %v1424
    %v4335 = vunpack.c.h.b16 %v1424
    %v4336 = vunpack.c.l.b16 %v1425
    %v4337 = vunpack.c.h.b16 %v1425
    %v4338 = vunpack.c.l.b16 %v1426
    %v4339 = vunpack.c.h.b16 %v1426
    %v4340 = vunpack.c.l.b16 %v1427
    %v4341 = vunpack.c.h.b16 %v1427
    %v4342 = vunpack.c.l.b16 %v1428
    %v4343 = vunpack.c.h.b16 %v1428
    %v4344 = vunpack.c.l.b16 %v1429
    %v4345 = vunpack.c.h.b16 %v1429
    %v4346 = vunpack.c.l.b16 %v1430
    %v4347 = vunpack.c.h.b16 %v1430
    %v4348 = vunpack.c.l.b16 %v1431
    %v4349 = vunpack.c.h.b16 %v1431
    %v4350 = vunpack.c.l.b16 %v1432
    %v4351 = vunpack.c.h.b16 %v1432
    %v4352 = vunpack.c.l.b16 %v1433
    %v4353 = vunpack.c.h.b16 %v1433
    %v4354 = vunpack.c.l.b16 %v1434
    %v4355 = vunpack.c.h.b16 %v1434
    %v4356 = vunpack.c.l.b16 %v1435
    %v4357 = vunpack.c.h.b16 %v1435
    %v4358 = vunpack.c.l.b16 %v1436
    %v4359 = vunpack.c.h.b16 %v1436
    %v4360 = vunpack.c.l.b16 %v1437
    %v4361 = vunpack.c.h.b16 %v1437
    %v4362 = vunpack.c.l.b16 %v1438
    %v4363 = vunpack.c.h.b16 %v1438
    %v4364 = vunpack.c.l.b16 %v1439
    %v4365 = vunpack.c.h.b16 %v1439
    %v4366 = vunpack.c.l.b16 %v1440
    %v4367 = vunpack.c.h.b16 %v1440
    %v4368 = vunpack.c.l.b16 %v1441
    %v4369 = vunpack.c.h.b16 %v1441
    %v4370 = vunpack.c.l.b16 %v1442
    %v4371 = vunpack.c.h.b16 %v1442
    %v4372 = vunpack.c.l.b16 %v1443
    %v4373 = vunpack.c.h.b16 %v1443
    %v4374 = vunpack.c.l.b16 %v1444
    %v4375 = vunpack.c.h.b16 %v1444
    %v4376 = vunpack.c.l.b16 %v1445
    %v4377 = vunpack.c.h.b16 %v1445
    %v4378 = vunpack.c.l.b16 %v1446
    %v4379 = vunpack.c.h.b16 %v1446
    %v4380 = vunpack.c.l.b16 %v1447
    %v4381 = vunpack.c.h.b16 %v1447
    %v4382 = vunpack.c.l.b16 %v1448
    %v4383 = vunpack.c.h.b16 %v1448
    %v4384 = vunpack.c.l.b16 %v1449
    %v4385 = vunpack.c.h.b16 %v1449
    %v4386 = vunpack.c.l.b16 %v1450
    %v4387 = vunpack.c.h.b16 %v1450
    %v4388 = vunpack.c.l.b16 %v1451
    %v4389 = vunpack.c.h.b16 %v1451
    %v4390 = vunpack.c.l.b16 %v1452
    %v4391 = vunpack.c.h.b16 %v1452
    %v4392 = vunpack.c.l.b16 %v1453
    %v4393 = vunpack.c.h.b16 %v1453
    %v4394 = vunpack.c.l.b16 %v1454
    %v4395 = vunpack.c.h.b16 %v1454
    %v4396 = vunpack.c.l.b16 %v1455
    %v4397 = vunpack.c.h.b16 %v1455
    %v4398 = vunpack.c.l.b16 %v1456
    %v4399 = vunpack.c.h.b16 %v1456
    %v4400 = vunpack.c.l.b16 %v1457
    %v4401 = vunpack.c.h.b16 %v1457
    %v4402 = vunpack.c.l.b16 %v1458
    %v4403 = vunpack.c.h.b16 %v1458
    %v4404 = vunpack.c.l.b16 %v1459
    %v4405 = vunpack.c.h.b16 %v1459
    %v4406 = vunpack.c.l.b16 %v1460
    %v4407 = vunpack.c.h.b16 %v1460
    %v4408 = vunpack.c.l.b16 %v1461
    %v4409 = vunpack.c.h.b16 %v1461
    %v4410 = vunpack.c.l.b16 %v1462
    %v4411 = vunpack.c.h.b16 %v1462
    %v4412 = vunpack.c.l.b16 %v1463
    %v4413 = vunpack.c.h.b16 %v1463
    %v4414 = vunpack.c.l.b16 %v1464
    %v4415 = vunpack.c.h.b16 %v1464
    %v4416 = vunpack.c.l.b16 %v1465
    %v4417 = vunpack.c.h.b16 %v1465
    %v4418 = vunpack.c.l.b16 %v1466
    %v4419 = vunpack.c.h.b16 %v1466
    %v4420 = vunpack.c.l.b16 %v1467
    %v4421 = vunpack.c.h.b16 %v1467
    %v4422 = vunpack.c.l.b16 %v1468
    %v4423 = vunpack.c.h.b16 %v1468
    %v4424 = vunpack.c.l.b16 %v1469
    %v4425 = vunpack.c.h.b16 %v1469
    %v4426 = vunpack.c.l.b16 %v1470
    %v4427 = vunpack.c.h.b16 %v1470
    %v4428 = vunpack.c.l.b16 %v1471
    %v4429 = vunpack.c.h.b16 %v1471
    %v4430 = vunpack.c.l.b16 %v1472
    %v4431 = vunpack.c.h.b16 %v1472
    %v4432 = vunpack.c.l.b16 %v1473
    %v4433 = vunpack.c.h.b16 %v1473
    %v4434 = vunpack.c.l.b16 %v1474
    %v4435 = vunpack.c.h.b16 %v1474
    %v4436 = vunpack.c.l.b16 %v1475
    %v4437 = vunpack.c.h.b16 %v1475
    %v4438 = vunpack.c.l.b16 %v1476
    %v4439 = vunpack.c.h.b16 %v1476
    %v4440 = vunpack.c.l.b16 %v1477
    %v4441 = vunpack.c.h.b16 %v1477
    %v4442 = vunpack.c.l.b16 %v1478
    %v4443 = vunpack.c.h.b16 %v1478
    %v4444 = vunpack.c.l.b16 %v1479
    %v4445 = vunpack.c.h.b16 %v1479
    %v4446 = vunpack.c.l.b16 %v1480
    %v4447 = vunpack.c.h.b16 %v1480
    %v4448 = vunpack.c.l.b16 %v1481
    %v4449 = vunpack.c.h.b16 %v1481
    %v4450 = vunpack.c.l.b16 %v1482
    %v4451 = vunpack.c.h.b16 %v1482
    %v4452 = vunpack.c.l.b16 %v1483
    %v4453 = vunpack.c.h.b16 %v1483
    %v4454 = vunpack.c.l.b16 %v1484
    %v4455 = vunpack.c.h.b16 %v1484
    %v4456 = vunpack.c.l.b16 %v1485
    %v4457 = vunpack.c.h.b16 %v1485
    %v4458 = vunpack.c.l.b16 %v1486
    %v4459 = vunpack.c.h.b16 %v1486
    %v4460 = vunpack.c.l.b16 %v1487
    %v4461 = vunpack.c.h.b16 %v1487
    %v4462 = vunpack.c.l.b16 %v1488
    %v4463 = vunpack.c.h.b16 %v1488
    %v4464 = vunpack.c.l.b16 %v1489
    %v4465 = vunpack.c.h.b16 %v1489
    %v4466 = vunpack.c.l.b16 %v1490
    %v4467 = vunpack.c.h.b16 %v1490
    %v4468 = vunpack.c.l.b16 %v1491
    %v4469 = vunpack.c.h.b16 %v1491
    %v4470 = vunpack.c.l.b16 %v1492
    %v4471 = vunpack.c.h.b16 %v1492
    %v4472 = vunpack.c.l.b16 %v1493
    %v4473 = vunpack.c.h.b16 %v1493
    %v4474 = vunpack.c.l.b16 %v1494
    %v4475 = vunpack.c.h.b16 %v1494
    %v4476 = vunpack.c.l.b16 %v1495
    %v4477 = vunpack.c.h.b16 %v1495
    %v4478 = vunpack.c.l.b16 %v1496
    %v4479 = vunpack.c.h.b16 %v1496
    %v4480 = vunpack.c.l.b16 %v1497
    %v4481 = vunpack.c.h.b16 %v1497
    %v4482 = vunpack.c.l.b16 %v1498
    %v4483 = vunpack.c.h.b16 %v1498
    %v4484 = vunpack.c.l.b16 %v1499
    %v4485 = vunpack.c.h.b16 %v1499
    %v4486 = vunpack.c.l.b16 %v1500
    %v4487 = vunpack.c.h.b16 %v1500
    %v4488 = vunpack.c.l.b16 %v1501
    %v4489 = vunpack.c.h.b16 %v1501
    %v4490 = vunpack.c.l.b16 %v1502
    %v4491 = vunpack.c.h.b16 %v1502
    %v4492 = vunpack.c.l.b16 %v1503
    %v4493 = vunpack.c.h.b16 %v1503
    %v4494 = vunpack.c.l.b16 %v1504
    %v4495 = vunpack.c.h.b16 %v1504
    %v4496 = vunpack.c.l.b16 %v1505
    %v4497 = vunpack.c.h.b16 %v1505
    %v4498 = vunpack.c.l.b16 %v1506
    %v4499 = vunpack.c.h.b16 %v1506
    %v4500 = vunpack.c.l.b16 %v1507
    %v4501 = vunpack.c.h.b16 %v1507
    %v4502 = vunpack.c.l.b16 %v1508
    %v4503 = vunpack.c.h.b16 %v1508
    %v4504 = vunpack.c.l.b16 %v1509
    %v4505 = vunpack.c.h.b16 %v1509
    %v4506 = vunpack.c.l.b16 %v1510
    %v4507 = vunpack.c.h.b16 %v1510
    %v4508 = vunpack.c.l.b16 %v1511
    %v4509 = vunpack.c.h.b16 %v1511
    %v4510 = vunpack.c.l.b16 %v1512
    %v4511 = vunpack.c.h.b16 %v1512
    %v4512 = vunpack.c.l.b16 %v1513
    %v4513 = vunpack.c.h.b16 %v1513
    %v4514 = vunpack.c.l.b16 %v1514
    %v4515 = vunpack.c.h.b16 %v1514
    %v4516 = vunpack.c.l.b16 %v1515
    %v4517 = vunpack.c.h.b16 %v1515
    %v4518 = vunpack.c.l.b16 %v1516
    %v4519 = vunpack.c.h.b16 %v1516
    %v4520 = vunpack.c.l.b16 %v1517
    %v4521 = vunpack.c.h.b16 %v1517
    %v4522 = vunpack.c.l.b16 %v1518
    %v4523 = vunpack.c.h.b16 %v1518
    %v4524 = vunpack.c.l.b16 %v1519
    %v4525 = vunpack.c.h.b16 %v1519
    %v4526 = vunpack.c.l.b16 %v1520
    %v4527 = vunpack.c.h.b16 %v1520
    %v4528 = vunpack.c.l.b16 %v1521
    %v4529 = vunpack.c.h.b16 %v1521
    %v4530 = vunpack.c.l.b16 %v1522
    %v4531 = vunpack.c.h.b16 %v1522
    %v4532 = vunpack.c.l.b16 %v1523
    %v4533 = vunpack.c.h.b16 %v1523
    %v4534 = vunpack.c.l.b16 %v1524
    %v4535 = vunpack.c.h.b16 %v1524
    %v4536 = vunpack.c.l.b16 %v1525
    %v4537 = vunpack.c.h.b16 %v1525
    %v4538 = vunpack.c.l.b16 %v1526
    %v4539 = vunpack.c.h.b16 %v1526
    %v4540 = vunpack.c.l.b16 %v1527
    %v4541 = vunpack.c.h.b16 %v1527
    %v4542 = vunpack.c.l.b16 %v1528
    %v4543 = vunpack.c.h.b16 %v1528
    %v4544 = vunpack.c.l.b16 %v1529
    %v4545 = vunpack.c.h.b16 %v1529
    %v4546 = vunpack.c.l.b16 %v1530
    %v4547 = vunpack.c.h.b16 %v1530
    %v4548 = vunpack.c.l.b16 %v1531
    %v4549 = vunpack.c.h.b16 %v1531
    %v4550 = vunpack.c.l.b16 %v1532
    %v4551 = vunpack.c.h.b16 %v1532
    %v4552 = vunpack.c.l.b16 %v1533
    %v4553 = vunpack.c.h.b16 %v1533
    %v4554 = vunpack.c.l.b16 %v1534
    %v4555 = vunpack.c.h.b16 %v1534
    %v4556 = vunpack.c.l.b16 %v1535
    %v4557 = vunpack.c.h.b16 %v1535
    %v4558 = vunpack.c.l.b16 %v1536
    %v4559 = vunpack.c.h.b16 %v1536
    %v4560 = vunpack.c.l.b16 %v1537
    %v4561 = vunpack.c.h.b16 %v1537
    %v4562 = vpack.c.b16 %v2564, %v2546
    %v4563 = vpack.c.b16 %v2565, %v2547
    %v4564 = vpack.c.b16 %v2566, %v2548
    %v4565 = vpack.c.b16 %v2567, %v2549
    %v4566 = vpack.c.b16 %v2568, %v2550
    %v4567 = vpack.c.b16 %v2569, %v2551
    %v4568 = vpack.c.b16 %v2570, %v2552
    %v4569 = vpack.c.b16 %v2571, %v2553
    %v4570 = vpack.c.b16 %v2572, %v2554
    %v4571 = vpack.c.b16 %v2573, %v2555
    %v4572 = vpack.c.b16 %v2574, %v2556
    %v4573 = vpack.c.b16 %v2575, %v2557
    %v4574 = vpack.c.b16 %v2576, %v2558
    %v4575 = vpack.c.b16 %v2577, %v2559
    %v4576 = vpack.c.b16 %v2578, %v2560
    %v4577 = vpack.c.b16 %v2579, %v2561
    %v4578 = vpack.c.b16 %v2580, %v2562
    %v4579 = vpack.c.b16 %v2581, %v2563
    %v4580 = vpack.c.b16 %v2600, %v2582
    %v4581 = vpack.c.b16 %v2601, %v2583
    %v4582 = vpack.c.b16 %v2602, %v2584
    %v4583 = vpack.c.b16 %v2603, %v2585
    %v4584 = vpack.c.b16 %v2604, %v2586
    %v4585 = vpack.c.b16 %v2605, %v2587
    %v4586 = vpack.c.b16 %v2606, %v2588
    %v4587 = vpack.c.b16 %v2607, %v2589
    %v4588 = vpack.c.b16 %v2608, %v2590
    %v4589 = vpack.c.b16 %v2609, %v2591
    %v4590 = vpack.c.b16 %v2610, %v2592
    %v4591 = vpack.c.b16 %v2611, %v2593
    %v4592 = vpack.c.b16 %v2612, %v2594
    %v4593 = vpack.c.b16 %v2613, %v2595
    %v4594 = vpack.c.b16 %v2614, %v2596
    %v4595 = vpack.c.b16 %v2615, %v2597
    %v4596 = vpack.c.b16 %v2616, %v2598
    %v4597 = vpack.c.b16 %v2617, %v2599
    %v4598 = vpack.c.b16 %v2636, %v2618
    %v4599 = vpack.c.b16 %v2637, %v2619
    %v4600 = vpack.c.b16 %v2638, %v2620
    %v4601 = vpack.c.b16 %v2639, %v2621
    %v4602 = vpack.c.b16 %v2640, %v2622
    %v4603 = vpack.c.b16 %v2641, %v2623
    %v4604 = vpack.c.b16 %v2642, %v2624
    %v4605 = vpack.c.b16 %v2643, %v2625
    %v4606 = vpack.c.b16 %v2644, %v2626
    %v4607 = vpack.c.b16 %v2645, %v2627
    %v4608 = vpack.c.b16 %v2646, %v2628
    %v4609 = vpack.c.b16 %v2647, %v2629
    %v4610 = vpack.c.b16 %v2648, %v2630
    %v4611 = vpack.c.b16 %v2649, %v2631
    %v4612 = vpack.c.b16 %v2650, %v2632
    %v4613 = vpack.c.b16 %v2651, %v2633
    %v4614 = vpack.c.b16 %v2652, %v2634
    %v4615 = vpack.c.b16 %v2653, %v2635
    %v4616 = vpack.c.b16 %v2672, %v2654
    %v4617 = vpack.c.b16 %v2673, %v2655
    %v4618 = vpack.c.b16 %v2674, %v2656
    %v4619 = vpack.c.b16 %v2675, %v2657
    %v4620 = vpack.c.b16 %v2676, %v2658
    %v4621 = vpack.c.b16 %v2677, %v2659
    %v4622 = vpack.c.b16 %v2678, %v2660
    %v4623 = vpack.c.b16 %v2679, %v2661
    %v4624 = vpack.c.b16 %v2680, %v2662
    %v4625 = vpack.c.b16 %v2681, %v2663
    %v4626 = vpack.c.b16 %v2682, %v2664
    %v4627 = vpack.c.b16 %v2683, %v2665
    %v4628 = vpack.c.b16 %v2684, %v2666
    %v4629 = vpack.c.b16 %v2685, %v2667
    %v4630 = vpack.c.b16 %v2686, %v2668
    %v4631 = vpack.c.b16 %v2687, %v2669
    %v4632 = vpack.c.b16 %v2688, %v2670
    %v4633 = vpack.c.b16 %v2689, %v2671
    %v4634 = vpack.c.b16 %v2708, %v2690
    %v4635 = vpack.c.b16 %v2709, %v2691
    %v4636 = vpack.c.b16 %v2710, %v2692
    %v4637 = vpack.c.b16 %v2711, %v2693
    %v4638 = vpack.c.b16 %v2712, %v2694
    %v4639 = vpack.c.b16 %v2713, %v2695
    %v4640 = vpack.c.b16 %v2714, %v2696
    %v4641 = vpack.c.b16 %v2715, %v2697
    %v4642 = vpack.c.b16 %v2716, %v2698
    %v4643 = vpack.c.b16 %v2717, %v2699
    %v4644 = vpack.c.b16 %v2718, %v2700
    %v4645 = vpack.c.b16 %v2719, %v2701
    %v4646 = vpack.c.b16 %v2720, %v2702
    %v4647 = vpack.c.b16 %v2721, %v2703
    %v4648 = vpack.c.b16 %v2722, %v2704
    %v4649 = vpack.c.b16 %v2723, %v2705
    %v4650 = vpack.c.b16 %v2724, %v2706
    %v4651 = vpack.c.b16 %v2725, %v2707
    %v4652 = vpack.c.b16 %v2744, %v2726
    %v4653 = vpack.c.b16 %v2745, %v2727
    %v4654 = vpack.c.b16 %v2746, %v2728
    %v4655 = vpack.c.b16 %v2747, %v2729
    %v4656 = vpack.c.b16 %v2748, %v2730
    %v4657 = vpack.c.b16 %v2749, %v2731
    %v4658 = vpack.c.b16 %v2750, %v2732
    %v4659 = vpack.c.b16 %v2751, %v2733
    %v4660 = vpack.c.b16 %v2752, %v2734
    %v4661 = vpack.c.b16 %v2753, %v2735
    %v4662 = vpack.c.b16 %v2754, %v2736
    %v4663 = vpack.c.b16 %v2755, %v2737
    %v4664 = vpack.c.b16 %v2756, %v2738
    %v4665 = vpack.c.b16 %v2757, %v2739
    %v4666 = vpack.c.b16 %v2758, %v2740
    %v4667 = vpack.c.b16 %v2759, %v2741
    %v4668 = vpack.c.b16 %v2760, %v2742
    %v4669 = vpack.c.b16 %v2761, %v2743
    %v4670 = vpack.c.b16 %v2780, %v2762
    %v4671 = vpack.c.b16 %v2781, %v2763
    %v4672 = vpack.c.b16 %v2782, %v2764
    %v4673 = vpack.c.b16 %v2783, %v2765
    %v4674 = vpack.c.b16 %v2784, %v2766
    %v4675 = vpack.c.b16 %v2785, %v2767
    %v4676 = vpack.c.b16 %v2786, %v2768
    %v4677 = vpack.c.b16 %v2787, %v2769
    %v4678 = vpack.c.b16 %v2788, %v2770
    %v4679 = vpack.c.b16 %v2789, %v2771
    %v4680 = vpack.c.b16 %v2790, %v2772
    %v4681 = vpack.c.b16 %v2791, %v2773
    %v4682 = vpack.c.b16 %v2792, %v2774
    %v4683 = vpack.c.b16 %v2793, %v2775
    %v4684 = vpack.c.b16 %v2794, %v2776
    %v4685 = vpack.c.b16 %v2795, %v2777
    %v4686 = vpack.c.b16 %v2796, %v2778
    %v4687 = vpack.c.b16 %v2797, %v2779
    %v4688 = vpack.c.b16 %v2816, %v2798
    %v4689 = vpack.c.b16 %v2817, %v2799
    %v4690 = vpack.c.b16 %v2818, %v2800
    %v4691 = vpack.c.b16 %v2819, %v2801
    %v4692 = vpack.c.b16 %v2820, %v2802
    %v4693 = vpack.c.b16 %v2821, %v2803
    %v4694 = vpack.c.b16 %v2822, %v2804
    %v4695 = vpack.c.b16 %v2823, %v2805
    %v4696 = vpack.c.b16 %v2824, %v2806
    %v4697 = vpack.c.b16 %v2825, %v2807
    %v4698 = vpack.c.b16 %v2826, %v2808
    %v4699 = vpack.c.b16 %v2827, %v2809
    %v4700 = vpack.c.b16 %v2828, %v2810
    %v4701 = vpack.c.b16 %v2829, %v2811
    %v4702 = vpack.c.b16 %v2830, %v2812
    %v4703 = vpack.c.b16 %v2831, %v2813
    %v4704 = vpack.c.b16 %v2832, %v2814
    %v4705 = vpack.c.b16 %v2833, %v2815
    %v4706 = vpack.c.b16 %v2852, %v2834
    %v4707 = vpack.c.b16 %v2853, %v2835
    %v4708 = vpack.c.b16 %v2854, %v2836
    %v4709 = vpack.c.b16 %v2855, %v2837
    %v4710 = vpack.c.b16 %v2856, %v2838
    %v4711 = vpack.c.b16 %v2857, %v2839
    %v4712 = vpack.c.b16 %v2858, %v2840
    %v4713 = vpack.c.b16 %v2859, %v2841
    %v4714 = vpack.c.b16 %v2860, %v2842
    %v4715 = vpack.c.b16 %v2861, %v2843
    %v4716 = vpack.c.b16 %v2862, %v2844
    %v4717 = vpack.c.b16 %v2863, %v2845
    %v4718 = vpack.c.b16 %v2864, %v2846
    %v4719 = vpack.c.b16 %v2865, %v2847
    %v4720 = vpack.c.b16 %v2866, %v2848
    %v4721 = vpack.c.b16 %v2867, %v2849
    %v4722 = vpack.c.b16 %v2868, %v2850
    %v4723 = vpack.c.b16 %v2869, %v2851
    %v4724 = vpack.c.b16 %v2888, %v2870
    %v4725 = vpack.c.b16 %v2889, %v2871
    %v4726 = vpack.c.b16 %v2890, %v2872
    %v4727 = vpack.c.b16 %v2891, %v2873
    %v4728 = vpack.c.b16 %v2892, %v2874
    %v4729 = vpack.c.b16 %v2893, %v2875
    %v4730 = vpack.c.b16 %v2894, %v2876
    %v4731 = vpack.c.b16 %v2895, %v2877
    %v4732 = vpack.c.b16 %v2896, %v2878
    %v4733 = vpack.c.b16 %v2897, %v2879
    %v4734 = vpack.c.b16 %v2898, %v2880
    %v4735 = vpack.c.b16 %v2899, %v2881
    %v4736 = vpack.c.b16 %v2900, %v2882
    %v4737 = vpack.c.b16 %v2901, %v2883
    %v4738 = vpack.c.b16 %v2902, %v2884
    %v4739 = vpack.c.b16 %v2903, %v2885
    %v4740 = vpack.c.b16 %v2904, %v2886
    %v4741 = vpack.c.b16 %v2905, %v2887
    %v4742 = vpack.c.b16 %v2924, %v2906
    %v4743 = vpack.c.b16 %v2925, %v2907
    %v4744 = vpack.c.b16 %v2926, %v2908
    %v4745 = vpack.c.b16 %v2927, %v2909
    %v4746 = vpack.c.b16 %v2928, %v2910
    %v4747 = vpack.c.b16 %v2929, %v2911
    %v4748 = vpack.c.b16 %v2930, %v2912
    %v4749 = vpack.c.b16 %v2931, %v2913
    %v4750 = vpack.c.b16 %v2932, %v2914
    %v4751 = vpack.c.b16 %v2933, %v2915
    %v4752 = vpack.c.b16 %v2934, %v2916
    %v4753 = vpack.c.b16 %v2935, %v2917
    %v4754 = vpack.c.b16 %v2936, %v2918
    %v4755 = vpack.c.b16 %v2937, %v2919
    %v4756 = vpack.c.b16 %v2938, %v2920
    %v4757 = vpack.c.b16 %v2939, %v2921
    %v4758 = vpack.c.b16 %v2940, %v2922
    %v4759 = vpack.c.b16 %v2941, %v2923
    %v4760 = vpack.c.b16 %v2960, %v2942
    %v4761 = vpack.c.b16 %v2961, %v2943
    %v4762 = vpack.c.b16 %v2962, %v2944
    %v4763 = vpack.c.b16 %v2963, %v2945
    %v4764 = vpack.c.b16 %v2964, %v2946
    %v4765 = vpack.c.b16 %v2965, %v2947
    %v4766 = vpack.c.b16 %v2966, %v2948
    %v4767 = vpack.c.b16 %v2967, %v2949
    %v4768 = vpack.c.b16 %v2968, %v2950
    %v4769 = vpack.c.b16 %v2969, %v2951
    %v4770 = vpack.c.b16 %v2970, %v2952
    %v4771 = vpack.c.b16 %v2971, %v2953
    %v4772 = vpack.c.b16 %v2972, %v2954
    %v4773 = vpack.c.b16 %v2973, %v2955
    %v4774 = vpack.c.b16 %v2974, %v2956
    %v4775 = vpack.c.b16 %v2975, %v2957
    %v4776 = vpack.c.b16 %v2976, %v2958
    %v4777 = vpack.c.b16 %v2977, %v2959
    %v4778 = vpack.c.b16 %v2996, %v2978
    %v4779 = vpack.c.b16 %v2997, %v2979
    %v4780 = vpack.c.b16 %v2998, %v2980
    %v4781 = vpack.c.b16 %v2999, %v2981
    %v4782 = vpack.c.b16 %v3000, %v2982
    %v4783 = vpack.c.b16 %v3001, %v2983
    %v4784 = vpack.c.b16 %v3002, %v2984
    %v4785 = vpack.c.b16 %v3003, %v2985
    %v4786 = vpack.c.b16 %v3004, %v2986
    %v4787 = vpack.c.b16 %v3005, %v2987
    %v4788 = vpack.c.b16 %v3006, %v2988
    %v4789 = vpack.c.b16 %v3007, %v2989
    %v4790 = vpack.c.b16 %v3008, %v2990
    %v4791 = vpack.c.b16 %v3009, %v2991
    %v4792 = vpack.c.b16 %v3010, %v2992
    %v4793 = vpack.c.b16 %v3011, %v2993
    %v4794 = vpack.c.b16 %v3012, %v2994
    %v4795 = vpack.c.b16 %v3013, %v2995
    %v4796 = vpack.c.b16 %v3032, %v3014
    %v4797 = vpack.c.b16 %v3033, %v3015
    %v4798 = vpack.c.b16 %v3034, %v3016
    %v4799 = vpack.c.b16 %v3035, %v3017
    %v4800 = vpack.c.b16 %v3036, %v3018
    %v4801 = vpack.c.b16 %v3037, %v3019
    %v4802 = vpack.c.b16 %v3038, %v3020
    %v4803 = vpack.c.b16 %v3039, %v3021
    %v4804 = vpack.c.b16 %v3040, %v3022
    %v4805 = vpack.c.b16 %v3041, %v3023
    %v4806 = vpack.c.b16 %v3042, %v3024
    %v4807 = vpack.c.b16 %v3043, %v3025
    %v4808 = vpack.c.b16 %v3044, %v3026
    %v4809 = vpack.c.b16 %v3045, %v3027
    %v4810 = vpack.c.b16 %v3046, %v3028
    %v4811 = vpack.c.b16 %v3047, %v3029
    %v4812 = vpack.c.b16 %v3048, %v3030
    %v4813 = vpack.c.b16 %v3049, %v3031
    %v4814 = vpack.c.b16 %v3068, %v3050
    %v4815 = vpack.c.b16 %v3069, %v3051
    %v4816 = vpack.c.b16 %v3070, %v3052
    %v4817 = vpack.c.b16 %v3071, %v3053
    %v4818 = vpack.c.b16 %v3072, %v3054
    %v4819 = vpack.c.b16 %v3073, %v3055
    %v4820 = vpack.c.b16 %v3074, %v3056
    %v4821 = vpack.c.b16 %v3075, %v3057
    %v4822 = vpack.c.b16 %v3076, %v3058
    %v4823 = vpack.c.b16 %v3077, %v3059
    %v4824 = vpack.c.b16 %v3078, %v3060
    %v4825 = vpack.c.b16 %v3079, %v3061
    %v4826 = vpack.c.b16 %v3080, %v3062
    %v4827 = vpack.c.b16 %v3081, %v3063
    %v4828 = vpack.c.b16 %v3082, %v3064
    %v4829 = vpack.c.b16 %v3083, %v3065
    %v4830 = vpack.c.b16 %v3084, %v3066
    %v4831 = vpack.c.b16 %v3085, %v3067
    %v4832 = vpack.c.b16 %v3104, %v3086
    %v4833 = vpack.c.b16 %v3105, %v3087
    %v4834 = vpack.c.b16 %v3106, %v3088
    %v4835 = vpack.c.b16 %v3107, %v3089
    %v4836 = vpack.c.b16 %v3108, %v3090
    %v4837 = vpack.c.b16 %v3109, %v3091
    %v4838 = vpack.c.b16 %v3110, %v3092
    %v4839 = vpack.c.b16 %v3111, %v3093
    %v4840 = vpack.c.b16 %v3112, %v3094
    %v4841 = vpack.c.b16 %v3113, %v3095
    %v4842 = vpack.c.b16 %v3114, %v3096
    %v4843 = vpack.c.b16 %v3115, %v3097
    %v4844 = vpack.c.b16 %v3116, %v3098
    %v4845 = vpack.c.b16 %v3117, %v3099
    %v4846 = vpack.c.b16 %v3118, %v3100
    %v4847 = vpack.c.b16 %v3119, %v3101
    %v4848 = vpack.c.b16 %v3120, %v3102
    %v4849 = vpack.c.b16 %v3121, %v3103
    %v4850 = vpack.c.b16 %v3140, %v3122
    %v4851 = vpack.c.b16 %v3141, %v3123
    %v4852 = vpack.c.b16 %v3142, %v3124
    %v4853 = vpack.c.b16 %v3143, %v3125
    %v4854 = vpack.c.b16 %v3144, %v3126
    %v4855 = vpack.c.b16 %v3145, %v3127
    %v4856 = vpack.c.b16 %v3146, %v3128
    %v4857 = vpack.c.b16 %v3147, %v3129
    %v4858 = vpack.c.b16 %v3148, %v3130
    %v4859 = vpack.c.b16 %v3149, %v3131
    %v4860 = vpack.c.b16 %v3150, %v3132
    %v4861 = vpack.c.b16 %v3151, %v3133
    %v4862 = vpack.c.b16 %v3152, %v3134
    %v4863 = vpack.c.b16 %v3153, %v3135
    %v4864 = vpack.c.b16 %v3154, %v3136
    %v4865 = vpack.c.b16 %v3155, %v3137
    %v4866 = vpack.c.b16 %v3156, %v3138
    %v4867 = vpack.c.b16 %v3157, %v3139
    %v4868 = vpack.c.b16 %v3176, %v3158
    %v4869 = vpack.c.b16 %v3177, %v3159
    %v4870 = vpack.c.b16 %v3178, %v3160
    %v4871 = vpack.c.b16 %v3179, %v3161
    %v4872 = vpack.c.b16 %v3180, %v3162
    %v4873 = vpack.c.b16 %v3181, %v3163
    %v4874 = vpack.c.b16 %v3182, %v3164
    %v4875 = vpack.c.b16 %v3183, %v3165
    %v4876 = vpack.c.b16 %v3184, %v3166
    %v4877 = vpack.c.b16 %v3185, %v3167
    %v4878 = vpack.c.b16 %v3186, %v3168
    %v4879 = vpack.c.b16 %v3187, %v3169
    %v4880 = vpack.c.b16 %v3188, %v3170
    %v4881 = vpack.c.b16 %v3189, %v3171
    %v4882 = vpack.c.b16 %v3190, %v3172
    %v4883 = vpack.c.b16 %v3191, %v3173
    %v4884 = vpack.c.b16 %v3192, %v3174
    %v4885 = vpack.c.b16 %v3193, %v3175
    %v4886 = vpack.c.b16 %v3212, %v3194
    %v4887 = vpack.c.b16 %v3213, %v3195
    %v4888 = vpack.c.b16 %v3214, %v3196
    %v4889 = vpack.c.b16 %v3215, %v3197
    %v4890 = vpack.c.b16 %v3216, %v3198
    %v4891 = vpack.c.b16 %v3217, %v3199
    %v4892 = vpack.c.b16 %v3218, %v3200
    %v4893 = vpack.c.b16 %v3219, %v3201
    %v4894 = vpack.c.b16 %v3220, %v3202
    %v4895 = vpack.c.b16 %v3221, %v3203
    %v4896 = vpack.c.b16 %v3222, %v3204
    %v4897 = vpack.c.b16 %v3223, %v3205
    %v4898 = vpack.c.b16 %v3224, %v3206
    %v4899 = vpack.c.b16 %v3225, %v3207
    %v4900 = vpack.c.b16 %v3226, %v3208
    %v4901 = vpack.c.b16 %v3227, %v3209
    %v4902 = vpack.c.b16 %v3228, %v3210
    %v4903 = vpack.c.b16 %v3229, %v3211
    %v4904 = vpack.c.b16 %v3248, %v3230
    %v4905 = vpack.c.b16 %v3249, %v3231
    %v4906 = vpack.c.b16 %v3250, %v3232
    %v4907 = vpack.c.b16 %v3251, %v3233
    %v4908 = vpack.c.b16 %v3252, %v3234
    %v4909 = vpack.c.b16 %v3253, %v3235
    %v4910 = vpack.c.b16 %v3254, %v3236
    %v4911 = vpack.c.b16 %v3255, %v3237
    %v4912 = vpack.c.b16 %v3256, %v3238
    %v4913 = vpack.c.b16 %v3257, %v3239
    %v4914 = vpack.c.b16 %v3258, %v3240
    %v4915 = vpack.c.b16 %v3259, %v3241
    %v4916 = vpack.c.b16 %v3260, %v3242
    %v4917 = vpack.c.b16 %v3261, %v3243
    %v4918 = vpack.c.b16 %v3262, %v3244
    %v4919 = vpack.c.b16 %v3263, %v3245
    %v4920 = vpack.c.b16 %v3264, %v3246
    %v4921 = vpack.c.b16 %v3265, %v3247
    %v4922 = vpack.c.b16 %v3284, %v3266
    %v4923 = vpack.c.b16 %v3285, %v3267
    %v4924 = vpack.c.b16 %v3286, %v3268
    %v4925 = vpack.c.b16 %v3287, %v3269
    %v4926 = vpack.c.b16 %v3288, %v3270
    %v4927 = vpack.c.b16 %v3289, %v3271
    %v4928 = vpack.c.b16 %v3290, %v3272
    %v4929 = vpack.c.b16 %v3291, %v3273
    %v4930 = vpack.c.b16 %v3292, %v3274
    %v4931 = vpack.c.b16 %v3293, %v3275
    %v4932 = vpack.c.b16 %v3294, %v3276
    %v4933 = vpack.c.b16 %v3295, %v3277
    %v4934 = vpack.c.b16 %v3296, %v3278
    %v4935 = vpack.c.b16 %v3297, %v3279
    %v4936 = vpack.c.b16 %v3298, %v3280
    %v4937 = vpack.c.b16 %v3299, %v3281
    %v4938 = vpack.c.b16 %v3300, %v3282
    %v4939 = vpack.c.b16 %v3301, %v3283
    %v4940 = vpack.c.b16 %v3320, %v3302
    %v4941 = vpack.c.b16 %v3321, %v3303
    %v4942 = vpack.c.b16 %v3322, %v3304
    %v4943 = vpack.c.b16 %v3323, %v3305
    %v4944 = vpack.c.b16 %v3324, %v3306
    %v4945 = vpack.c.b16 %v3325, %v3307
    %v4946 = vpack.c.b16 %v3326, %v3308
    %v4947 = vpack.c.b16 %v3327, %v3309
    %v4948 = vpack.c.b16 %v3328, %v3310
    %v4949 = vpack.c.b16 %v3329, %v3311
    %v4950 = vpack.c.b16 %v3330, %v3312
    %v4951 = vpack.c.b16 %v3331, %v3313
    %v4952 = vpack.c.b16 %v3332, %v3314
    %v4953 = vpack.c.b16 %v3333, %v3315
    %v4954 = vpack.c.b16 %v3334, %v3316
    %v4955 = vpack.c.b16 %v3335, %v3317
    %v4956 = vpack.c.b16 %v3336, %v3318
    %v4957 = vpack.c.b16 %v3337, %v3319
    %v4958 = vpack.c.b16 %v3356, %v3338
    %v4959 = vpack.c.b16 %v3357, %v3339
    %v4960 = vpack.c.b16 %v3358, %v3340
    %v4961 = vpack.c.b16 %v3359, %v3341
    %v4962 = vpack.c.b16 %v3360, %v3342
    %v4963 = vpack.c.b16 %v3361, %v3343
    %v4964 = vpack.c.b16 %v3362, %v3344
    %v4965 = vpack.c.b16 %v3363, %v3345
    %v4966 = vpack.c.b16 %v3364, %v3346
    %v4967 = vpack.c.b16 %v3365, %v3347
    %v4968 = vpack.c.b16 %v3366, %v3348
    %v4969 = vpack.c.b16 %v3367, %v3349
    %v4970 = vpack.c.b16 %v3368, %v3350
    %v4971 = vpack.c.b16 %v3369, %v3351
    %v4972 = vpack.c.b16 %v3370, %v3352
    %v4973 = vpack.c.b16 %v3371, %v3353
    %v4974 = vpack.c.b16 %v3372, %v3354
    %v4975 = vpack.c.b16 %v3373, %v3355
    %v4976 = vpack.c.b16 %v3392, %v3374
    %v4977 = vpack.c.b16 %v3393, %v3375
    %v4978 = vpack.c.b16 %v3394, %v3376
    %v4979 = vpack.c.b16 %v3395, %v3377
    %v4980 = vpack.c.b16 %v3396, %v3378
    %v4981 = vpack.c.b16 %v3397, %v3379
    %v4982 = vpack.c.b16 %v3398, %v3380
    %v4983 = vpack.c.b16 %v3399, %v3381
    %v4984 = vpack.c.b16 %v3400, %v3382
    %v4985 = vpack.c.b16 %v3401, %v3383
    %v4986 = vpack.c.b16 %v3402, %v3384
    %v4987 = vpack.c.b16 %v3403, %v3385
    %v4988 = vpack.c.b16 %v3404, %v3386
    %v4989 = vpack.c.b16 %v3405, %v3387
    %v4990 = vpack.c.b16 %v3406, %v3388
    %v4991 = vpack.c.b16 %v3407, %v3389
    %v4992 = vpack.c.b16 %v3408, %v3390
    %v4993 = vpack.c.b16 %v3409, %v3391
    %v4994 = vpack.c.b16 %v3428, %v3410
    %v4995 = vpack.c.b16 %v3429, %v3411
    %v4996 = vpack.c.b16 %v3430, %v3412
    %v4997 = vpack.c.b16 %v3431, %v3413
    %v4998 = vpack.c.b16 %v3432, %v3414
    %v4999 = vpack.c.b16 %v3433, %v3415
    %v5000 = vpack.c.b16 %v3434, %v3416
    %v5001 = vpack.c.b16 %v3435, %v3417
    %v5002 = vpack.c.b16 %v3436, %v3418
    %v5003 = vpack.c.b16 %v3437, %v3419
    %v5004 = vpack.c.b16 %v3438, %v3420
    %v5005 = vpack.c.b16 %v3439, %v3421
    %v5006 = vpack.c.b16 %v3440, %v3422
    %v5007 = vpack.c.b16 %v3441, %v3423
    %v5008 = vpack.c.b16 %v3442, %v3424
    %v5009 = vpack.c.b16 %v3443, %v3425
    %v5010 = vpack.c.b16 %v3444, %v3426
    %v5011 = vpack.c.b16 %v3445, %v3427
    %v5012 = vpack.c.b16 %v3464, %v3446
    %v5013 = vpack.c.b16 %v3465, %v3447
    %v5014 = vpack.c.b16 %v3466, %v3448
    %v5015 = vpack.c.b16 %v3467, %v3449
    %v5016 = vpack.c.b16 %v3468, %v3450
    %v5017 = vpack.c.b16 %v3469, %v3451
    %v5018 = vpack.c.b16 %v3470, %v3452
    %v5019 = vpack.c.b16 %v3471, %v3453
    %v5020 = vpack.c.b16 %v3472, %v3454
    %v5021 = vpack.c.b16 %v3473, %v3455
    %v5022 = vpack.c.b16 %v3474, %v3456
    %v5023 = vpack.c.b16 %v3475, %v3457
    %v5024 = vpack.c.b16 %v3476, %v3458
    %v5025 = vpack.c.b16 %v3477, %v3459
    %v5026 = vpack.c.b16 %v3478, %v3460
    %v5027 = vpack.c.b16 %v3479, %v3461
    %v5028 = vpack.c.b16 %v3480, %v3462
    %v5029 = vpack.c.b16 %v3481, %v3463
    %v5030 = vpack.c.b16 %v3500, %v3482
    %v5031 = vpack.c.b16 %v3501, %v3483
    %v5032 = vpack.c.b16 %v3502, %v3484
    %v5033 = vpack.c.b16 %v3503, %v3485
    %v5034 = vpack.c.b16 %v3504, %v3486
    %v5035 = vpack.c.b16 %v3505, %v3487
    %v5036 = vpack.c.b16 %v3506, %v3488
    %v5037 = vpack.c.b16 %v3507, %v3489
    %v5038 = vpack.c.b16 %v3508, %v3490
    %v5039 = vpack.c.b16 %v3509, %v3491
    %v5040 = vpack.c.b16 %v3510, %v3492
    %v5041 = vpack.c.b16 %v3511, %v3493
    %v5042 = vpack.c.b16 %v3512, %v3494
    %v5043 = vpack.c.b16 %v3513, %v3495
    %v5044 = vpack.c.b16 %v3514, %v3496
    %v5045 = vpack.c.b16 %v3515, %v3497
    %v5046 = vpack.c.b16 %v3516, %v3498
    %v5047 = vpack.c.b16 %v3517, %v3499
    %v5048 = vpack.c.b16 %v3536, %v3518
    %v5049 = vpack.c.b16 %v3537, %v3519
    %v5050 = vpack.c.b16 %v3538, %v3520
    %v5051 = vpack.c.b16 %v3539, %v3521
    %v5052 = vpack.c.b16 %v3540, %v3522
    %v5053 = vpack.c.b16 %v3541, %v3523
    %v5054 = vpack.c.b16 %v3542, %v3524
    %v5055 = vpack.c.b16 %v3543, %v3525
    %v5056 = vpack.c.b16 %v3544, %v3526
    %v5057 = vpack.c.b16 %v3545, %v3527
    %v5058 = vpack.c.b16 %v3546, %v3528
    %v5059 = vpack.c.b16 %v3547, %v3529
    %v5060 = vpack.c.b16 %v3548, %v3530
    %v5061 = vpack.c.b16 %v3549, %v3531
    %v5062 = vpack.c.b16 %v3550, %v3532
    %v5063 = vpack.c.b16 %v3551, %v3533
    %v5064 = vpack.c.b16 %v3552, %v3534
    %v5065 = vpack.c.b16 %v3553, %v3535
    %v5066 = vpack.c.b16 %v3572, %v3554
    %v5067 = vpack.c.b16 %v3573, %v3555
    %v5068 = vpack.c.b16 %v3574, %v3556
    %v5069 = vpack.c.b16 %v3575, %v3557
    %v5070 = vpack.c.b16 %v3576, %v3558
    %v5071 = vpack.c.b16 %v3577, %v3559
    %v5072 = vpack.c.b16 %v3578, %v3560
    %v5073 = vpack.c.b16 %v3579, %v3561
    %v5074 = vpack.c.b16 %v3580, %v3562
    %v5075 = vpack.c.b16 %v3581, %v3563
    %v5076 = vpack.c.b16 %v3582, %v3564
    %v5077 = vpack.c.b16 %v3583, %v3565
    %v5078 = vpack.c.b16 %v3584, %v3566
    %v5079 = vpack.c.b16 %v3585, %v3567
    %v5080 = vpack.c.b16 %v3586, %v3568
    %v5081 = vpack.c.b16 %v3587, %v3569
    %v5082 = vpack.c.b16 %v3588, %v3570
    %v5083 = vpack.c.b16 %v3589, %v3571
    %v5084 = vpack.c.b16 %v3608, %v3590
    %v5085 = vpack.c.b16 %v3609, %v3591
    %v5086 = vpack.c.b16 %v3610, %v3592
    %v5087 = vpack.c.b16 %v3611, %v3593
    %v5088 = vpack.c.b16 %v3612, %v3594
    %v5089 = vpack.c.b16 %v3613, %v3595
    %v5090 = vpack.c.b16 %v3614, %v3596
    %v5091 = vpack.c.b16 %v3615, %v3597
    %v5092 = vpack.c.b16 %v3616, %v3598
    %v5093 = vpack.c.b16 %v3617, %v3599
    %v5094 = vpack.c.b16 %v3618, %v3600
    %v5095 = vpack.c.b16 %v3619, %v3601
    %v5096 = vpack.c.b16 %v3620, %v3602
    %v5097 = vpack.c.b16 %v3621, %v3603
    %v5098 = vpack.c.b16 %v3622, %v3604
    %v5099 = vpack.c.b16 %v3623, %v3605
    %v5100 = vpack.c.b16 %v3624, %v3606
    %v5101 = vpack.c.b16 %v3625, %v3607
    %v5102 = vpack.c.b16 %v3644, %v3626
    %v5103 = vpack.c.b16 %v3645, %v3627
    %v5104 = vpack.c.b16 %v3646, %v3628
    %v5105 = vpack.c.b16 %v3647, %v3629
    %v5106 = vpack.c.b16 %v3648, %v3630
    %v5107 = vpack.c.b16 %v3649, %v3631
    %v5108 = vpack.c.b16 %v3650, %v3632
    %v5109 = vpack.c.b16 %v3651, %v3633
    %v5110 = vpack.c.b16 %v3652, %v3634
    %v5111 = vpack.c.b16 %v3653, %v3635
    %v5112 = vpack.c.b16 %v3654, %v3636
    %v5113 = vpack.c.b16 %v3655, %v3637
    %v5114 = vpack.c.b16 %v3656, %v3638
    %v5115 = vpack.c.b16 %v3657, %v3639
    %v5116 = vpack.c.b16 %v3658, %v3640
    %v5117 = vpack.c.b16 %v3659, %v3641
    %v5118 = vpack.c.b16 %v3660, %v3642
    %v5119 = vpack.c.b16 %v3661, %v3643
    %v5120 = vpack.c.b16 %v3680, %v3662
    %v5121 = vpack.c.b16 %v3681, %v3663
    %v5122 = vpack.c.b16 %v3682, %v3664
    %v5123 = vpack.c.b16 %v3683, %v3665
    %v5124 = vpack.c.b16 %v3684, %v3666
    %v5125 = vpack.c.b16 %v3685, %v3667
    %v5126 = vpack.c.b16 %v3686, %v3668
    %v5127 = vpack.c.b16 %v3687, %v3669
    %v5128 = vpack.c.b16 %v3688, %v3670
    %v5129 = vpack.c.b16 %v3689, %v3671
    %v5130 = vpack.c.b16 %v3690, %v3672
    %v5131 = vpack.c.b16 %v3691, %v3673
    %v5132 = vpack.c.b16 %v3692, %v3674
    %v5133 = vpack.c.b16 %v3693, %v3675
    %v5134 = vpack.c.b16 %v3694, %v3676
    %v5135 = vpack.c.b16 %v3695, %v3677
    %v5136 = vpack.c.b16 %v3696, %v3678
    %v5137 = vpack.c.b16 %v3697, %v3679
    %v5138 = vpack.c.b16 %v3716, %v3698
    %v5139 = vpack.c.b16 %v3717, %v3699
    %v5140 = vpack.c.b16 %v3718, %v3700
    %v5141 = vpack.c.b16 %v3719, %v3701
    %v5142 = vpack.c.b16 %v3720, %v3702
    %v5143 = vpack.c.b16 %v3721, %v3703
    %v5144 = vpack.c.b16 %v3722, %v3704
    %v5145 = vpack.c.b16 %v3723, %v3705
    %v5146 = vpack.c.b16 %v3724, %v3706
    %v5147 = vpack.c.b16 %v3725, %v3707
    %v5148 = vpack.c.b16 %v3726, %v3708
    %v5149 = vpack.c.b16 %v3727, %v3709
    %v5150 = vpack.c.b16 %v3728, %v3710
    %v5151 = vpack.c.b16 %v3729, %v3711
    %v5152 = vpack.c.b16 %v3730, %v3712
    %v5153 = vpack.c.b16 %v3731, %v3713
    %v5154 = vpack.c.b16 %v3732, %v3714
    %v5155 = vpack.c.b16 %v3733, %v3715
    %v5156 = vpack.c.b16 %v3752, %v3734
    %v5157 = vpack.c.b16 %v3753, %v3735
    %v5158 = vpack.c.b16 %v3754, %v3736
    %v5159 = vpack.c.b16 %v3755, %v3737
    %v5160 = vpack.c.b16 %v3756, %v3738
    %v5161 = vpack.c.b16 %v3757, %v3739
    %v5162 = vpack.c.b16 %v3758, %v3740
    %v5163 = vpack.c.b16 %v3759, %v3741
    %v5164 = vpack.c.b16 %v3760, %v3742
    %v5165 = vpack.c.b16 %v3761, %v3743
    %v5166 = vpack.c.b16 %v3762, %v3744
    %v5167 = vpack.c.b16 %v3763, %v3745
    %v5168 = vpack.c.b16 %v3764, %v3746
    %v5169 = vpack.c.b16 %v3765, %v3747
    %v5170 = vpack.c.b16 %v3766, %v3748
    %v5171 = vpack.c.b16 %v3767, %v3749
    %v5172 = vpack.c.b16 %v3768, %v3750
    %v5173 = vpack.c.b16 %v3769, %v3751
    %v5174 = vpack.c.b16 %v3788, %v3770
    %v5175 = vpack.c.b16 %v3789, %v3771
    %v5176 = vpack.c.b16 %v3790, %v3772
    %v5177 = vpack.c.b16 %v3791, %v3773
    %v5178 = vpack.c.b16 %v3792, %v3774
    %v5179 = vpack.c.b16 %v3793, %v3775
    %v5180 = vpack.c.b16 %v3794, %v3776
    %v5181 = vpack.c.b16 %v3795, %v3777
    %v5182 = vpack.c.b16 %v3796, %v3778
    %v5183 = vpack.c.b16 %v3797, %v3779
    %v5184 = vpack.c.b16 %v3798, %v3780
    %v5185 = vpack.c.b16 %v3799, %v3781
    %v5186 = vpack.c.b16 %v3800, %v3782
    %v5187 = vpack.c.b16 %v3801, %v3783
    %v5188 = vpack.c.b16 %v3802, %v3784
    %v5189 = vpack.c.b16 %v3803, %v3785
    %v5190 = vpack.c.b16 %v3804, %v3786
    %v5191 = vpack.c.b16 %v3805, %v3787
    %v5192 = vpack.c.b16 %v3824, %v3806
    %v5193 = vpack.c.b16 %v3825, %v3807
    %v5194 = vpack.c.b16 %v3826, %v3808
    %v5195 = vpack.c.b16 %v3827, %v3809
    %v5196 = vpack.c.b16 %v3828, %v3810
    %v5197 = vpack.c.b16 %v3829, %v3811
    %v5198 = vpack.c.b16 %v3830, %v3812
    %v5199 = vpack.c.b16 %v3831, %v3813
    %v5200 = vpack.c.b16 %v3832, %v3814
    %v5201 = vpack.c.b16 %v3833, %v3815
    %v5202 = vpack.c.b16 %v3834, %v3816
    %v5203 = vpack.c.b16 %v3835, %v3817
    %v5204 = vpack.c.b16 %v3836, %v3818
    %v5205 = vpack.c.b16 %v3837, %v3819
    %v5206 = vpack.c.b16 %v3838, %v3820
    %v5207 = vpack.c.b16 %v3839, %v3821
    %v5208 = vpack.c.b16 %v3840, %v3822
    %v5209 = vpack.c.b16 %v3841, %v3823
    %v5210 = vpack.c.b16 %v3860, %v3842
    %v5211 = vpack.c.b16 %v3861, %v3843
    %v5212 = vpack.c.b16 %v3862, %v3844
    %v5213 = vpack.c.b16 %v3863, %v3845
    %v5214 = vpack.c.b16 %v3864, %v3846
    %v5215 = vpack.c.b16 %v3865, %v3847
    %v5216 = vpack.c.b16 %v3866, %v3848
    %v5217 = vpack.c.b16 %v3867, %v3849
    %v5218 = vpack.c.b16 %v3868, %v3850
    %v5219 = vpack.c.b16 %v3869, %v3851
    %v5220 = vpack.c.b16 %v3870, %v3852
    %v5221 = vpack.c.b16 %v3871, %v3853
    %v5222 = vpack.c.b16 %v3872, %v3854
    %v5223 = vpack.c.b16 %v3873, %v3855
    %v5224 = vpack.c.b16 %v3874, %v3856
    %v5225 = vpack.c.b16 %v3875, %v3857
    %v5226 = vpack.c.b16 %v3876, %v3858
    %v5227 = vpack.c.b16 %v3877, %v3859
    %v5228 = vpack.c.b16 %v3896, %v3878
    %v5229 = vpack.c.b16 %v3897, %v3879
    %v5230 = vpack.c.b16 %v3898, %v3880
    %v5231 = vpack.c.b16 %v3899, %v3881
    %v5232 = vpack.c.b16 %v3900, %v3882
    %v5233 = vpack.c.b16 %v3901, %v3883
    %v5234 = vpack.c.b16 %v3902, %v3884
    %v5235 = vpack.c.b16 %v3903, %v3885
    %v5236 = vpack.c.b16 %v3904, %v3886
    %v5237 = vpack.c.b16 %v3905, %v3887
    %v5238 = vpack.c.b16 %v3906, %v3888
    %v5239 = vpack.c.b16 %v3907, %v3889
    %v5240 = vpack.c.b16 %v3908, %v3890
    %v5241 = vpack.c.b16 %v3909, %v3891
    %v5242 = vpack.c.b16 %v3910, %v3892
    %v5243 = vpack.c.b16 %v3911, %v3893
    %v5244 = vpack.c.b16 %v3912, %v3894
    %v5245 = vpack.c.b16 %v3913, %v3895
    %v5246 = vpack.c.b16 %v3932, %v3914
    %v5247 = vpack.c.b16 %v3933, %v3915
    %v5248 = vpack.c.b16 %v3934, %v3916
    %v5249 = vpack.c.b16 %v3935, %v3917
    %v5250 = vpack.c.b16 %v3936, %v3918
    %v5251 = vpack.c.b16 %v3937, %v3919
    %v5252 = vpack.c.b16 %v3938, %v3920
    %v5253 = vpack.c.b16 %v3939, %v3921
    %v5254 = vpack.c.b16 %v3940, %v3922
    %v5255 = vpack.c.b16 %v3941, %v3923
    %v5256 = vpack.c.b16 %v3942, %v3924
    %v5257 = vpack.c.b16 %v3943, %v3925
    %v5258 = vpack.c.b16 %v3944, %v3926
    %v5259 = vpack.c.b16 %v3945, %v3927
    %v5260 = vpack.c.b16 %v3946, %v3928
    %v5261 = vpack.c.b16 %v3947, %v3929
    %v5262 = vpack.c.b16 %v3948, %v3930
    %v5263 = vpack.c.b16 %v3949, %v3931
    %v5264 = vpack.c.b16 %v3968, %v3950
    %v5265 = vpack.c.b16 %v3969, %v3951
    %v5266 = vpack.c.b16 %v3970, %v3952
    %v5267 = vpack.c.b16 %v3971, %v3953
    %v5268 = vpack.c.b16 %v3972, %v3954
    %v5269 = vpack.c.b16 %v3973, %v3955
    %v5270 = vpack.c.b16 %v3974, %v3956
    %v5271 = vpack.c.b16 %v3975, %v3957
    %v5272 = vpack.c.b16 %v3976, %v3958
    %v5273 = vpack.c.b16 %v3977, %v3959
    %v5274 = vpack.c.b16 %v3978, %v3960
    %v5275 = vpack.c.b16 %v3979, %v3961
    %v5276 = vpack.c.b16 %v3980, %v3962
    %v5277 = vpack.c.b16 %v3981, %v3963
    %v5278 = vpack.c.b16 %v3982, %v3964
    %v5279 = vpack.c.b16 %v3983, %v3965
    %v5280 = vpack.c.b16 %v3984, %v3966
    %v5281 = vpack.c.b16 %v3985, %v3967
    %v5282 = vpack.c.b16 %v4004, %v3986
    %v5283 = vpack.c.b16 %v4005, %v3987
    %v5284 = vpack.c.b16 %v4006, %v3988
    %v5285 = vpack.c.b16 %v4007, %v3989
    %v5286 = vpack.c.b16 %v4008, %v3990
    %v5287 = vpack.c.b16 %v4009, %v3991
    %v5288 = vpack.c.b16 %v4010, %v3992
    %v5289 = vpack.c.b16 %v4011, %v3993
    %v5290 = vpack.c.b16 %v4012, %v3994
    %v5291 = vpack.c.b16 %v4013, %v3995
    %v5292 = vpack.c.b16 %v4014, %v3996
    %v5293 = vpack.c.b16 %v4015, %v3997
    %v5294 = vpack.c.b16 %v4016, %v3998
    %v5295 = vpack.c.b16 %v4017, %v3999
    %v5296 = vpack.c.b16 %v4018, %v4000
    %v5297 = vpack.c.b16 %v4019, %v4001
    %v5298 = vpack.c.b16 %v4020, %v4002
    %v5299 = vpack.c.b16 %v4021, %v4003
    %v5300 = vpack.c.b16 %v4040, %v4022
    %v5301 = vpack.c.b16 %v4041, %v4023
    %v5302 = vpack.c.b16 %v4042, %v4024
    %v5303 = vpack.c.b16 %v4043, %v4025
    %v5304 = vpack.c.b16 %v4044, %v4026
    %v5305 = vpack.c.b16 %v4045, %v4027
    %v5306 = vpack.c.b16 %v4046, %v4028
    %v5307 = vpack.c.b16 %v4047, %v4029
    %v5308 = vpack.c.b16 %v4048, %v4030
    %v5309 = vpack.c.b16 %v4049, %v4031
    %v5310 = vpack.c.b16 %v4050, %v4032
    %v5311 = vpack.c.b16 %v4051, %v4033
    %v5312 = vpack.c.b16 %v4052, %v4034
    %v5313 = vpack.c.b16 %v4053, %v4035
    %v5314 = vpack.c.b16 %v4054, %v4036
    %v5315 = vpack.c.b16 %v4055, %v4037
    %v5316 = vpack.c.b16 %v4056, %v4038
    %v5317 = vpack.c.b16 %v4057, %v4039
    %v5318 = vpack.c.b16 %v4076, %v4058
    %v5319 = vpack.c.b16 %v4077, %v4059
    %v5320 = vpack.c.b16 %v4078, %v4060
    %v5321 = vpack.c.b16 %v4079, %v4061
    %v5322 = vpack.c.b16 %v4080, %v4062
    %v5323 = vpack.c.b16 %v4081, %v4063
    %v5324 = vpack.c.b16 %v4082, %v4064
    %v5325 = vpack.c.b16 %v4083, %v4065
    %v5326 = vpack.c.b16 %v4084, %v4066
    %v5327 = vpack.c.b16 %v4085, %v4067
    %v5328 = vpack.c.b16 %v4086, %v4068
    %v5329 = vpack.c.b16 %v4087, %v4069
    %v5330 = vpack.c.b16 %v4088, %v4070
    %v5331 = vpack.c.b16 %v4089, %v4071
    %v5332 = vpack.c.b16 %v4090, %v4072
    %v5333 = vpack.c.b16 %v4091, %v4073
    %v5334 = vpack.c.b16 %v4092, %v4074
    %v5335 = vpack.c.b16 %v4093, %v4075
    %v5336 = vpack.c.b16 %v4112, %v4094
    %v5337 = vpack.c.b16 %v4113, %v4095
    %v5338 = vpack.c.b16 %v4114, %v4096
    %v5339 = vpack.c.b16 %v4115, %v4097
    %v5340 = vpack.c.b16 %v4116, %v4098
    %v5341 = vpack.c.b16 %v4117, %v4099
    %v5342 = vpack.c.b16 %v4118, %v4100
    %v5343 = vpack.c.b16 %v4119, %v4101
    %v5344 = vpack.c.b16 %v4120, %v4102
    %v5345 = vpack.c.b16 %v4121, %v4103
    %v5346 = vpack.c.b16 %v4122, %v4104
    %v5347 = vpack.c.b16 %v4123, %v4105
    %v5348 = vpack.c.b16 %v4124, %v4106
    %v5349 = vpack.c.b16 %v4125, %v4107
    %v5350 = vpack.c.b16 %v4126, %v4108
    %v5351 = vpack.c.b16 %v4127, %v4109
    %v5352 = vpack.c.b16 %v4128, %v4110
    %v5353 = vpack.c.b16 %v4129, %v4111
    %v5354 = vpack.c.b16 %v4148, %v4130
    %v5355 = vpack.c.b16 %v4149, %v4131
    %v5356 = vpack.c.b16 %v4150, %v4132
    %v5357 = vpack.c.b16 %v4151, %v4133
    %v5358 = vpack.c.b16 %v4152, %v4134
    %v5359 = vpack.c.b16 %v4153, %v4135
    %v5360 = vpack.c.b16 %v4154, %v4136
    %v5361 = vpack.c.b16 %v4155, %v4137
    %v5362 = vpack.c.b16 %v4156, %v4138
    %v5363 = vpack.c.b16 %v4157, %v4139
    %v5364 = vpack.c.b16 %v4158, %v4140
    %v5365 = vpack.c.b16 %v4159, %v4141
    %v5366 = vpack.c.b16 %v4160, %v4142
    %v5367 = vpack.c.b16 %v4161, %v4143
    %v5368 = vpack.c.b16 %v4162, %v4144
    %v5369 = vpack.c.b16 %v4163, %v4145
    %v5370 = vpack.c.b16 %v4164, %v4146
    %v5371 = vpack.c.b16 %v4165, %v4147
    %v5372 = vpack.c.b16 %v4184, %v4166
    %v5373 = vpack.c.b16 %v4185, %v4167
    %v5374 = vpack.c.b16 %v4186, %v4168
    %v5375 = vpack.c.b16 %v4187, %v4169
    %v5376 = vpack.c.b16 %v4188, %v4170
    %v5377 = vpack.c.b16 %v4189, %v4171
    %v5378 = vpack.c.b16 %v4190, %v4172
    %v5379 = vpack.c.b16 %v4191, %v4173
    %v5380 = vpack.c.b16 %v4192, %v4174
    %v5381 = vpack.c.b16 %v4193, %v4175
    %v5382 = vpack.c.b16 %v4194, %v4176
    %v5383 = vpack.c.b16 %v4195, %v4177
    %v5384 = vpack.c.b16 %v4196, %v4178
    %v5385 = vpack.c.b16 %v4197, %v4179
    %v5386 = vpack.c.b16 %v4198, %v4180
    %v5387 = vpack.c.b16 %v4199, %v4181
    %v5388 = vpack.c.b16 %v4200, %v4182
    %v5389 = vpack.c.b16 %v4201, %v4183
    %v5390 = vpack.c.b16 %v4220, %v4202
    %v5391 = vpack.c.b16 %v4221, %v4203
    %v5392 = vpack.c.b16 %v4222, %v4204
    %v5393 = vpack.c.b16 %v4223, %v4205
    %v5394 = vpack.c.b16 %v4224, %v4206
    %v5395 = vpack.c.b16 %v4225, %v4207
    %v5396 = vpack.c.b16 %v4226, %v4208
    %v5397 = vpack.c.b16 %v4227, %v4209
    %v5398 = vpack.c.b16 %v4228, %v4210
    %v5399 = vpack.c.b16 %v4229, %v4211
    %v5400 = vpack.c.b16 %v4230, %v4212
    %v5401 = vpack.c.b16 %v4231, %v4213
    %v5402 = vpack.c.b16 %v4232, %v4214
    %v5403 = vpack.c.b16 %v4233, %v4215
    %v5404 = vpack.c.b16 %v4234, %v4216
    %v5405 = vpack.c.b16 %v4235, %v4217
    %v5406 = vpack.c.b16 %v4236, %v4218
    %v5407 = vpack.c.b16 %v4237, %v4219
    %v5408 = vpack.c.b16 %v4256, %v4238
    %v5409 = vpack.c.b16 %v4257, %v4239
    %v5410 = vpack.c.b16 %v4258, %v4240
    %v5411 = vpack.c.b16 %v4259, %v4241
    %v5412 = vpack.c.b16 %v4260, %v4242
    %v5413 = vpack.c.b16 %v4261, %v4243
    %v5414 = vpack.c.b16 %v4262, %v4244
    %v5415 = vpack.c.b16 %v4263, %v4245
    %v5416 = vpack.c.b16 %v4264, %v4246
    %v5417 = vpack.c.b16 %v4265, %v4247
    %v5418 = vpack.c.b16 %v4266, %v4248
    %v5419 = vpack.c.b16 %v4267, %v4249
    %v5420 = vpack.c.b16 %v4268, %v4250
    %v5421 = vpack.c.b16 %v4269, %v4251
    %v5422 = vpack.c.b16 %v4270, %v4252
    %v5423 = vpack.c.b16 %v4271, %v4253
    %v5424 = vpack.c.b16 %v4272, %v4254
    %v5425 = vpack.c.b16 %v4273, %v4255
    %v5426 = vpack.c.b16 %v4292, %v4274
    %v5427 = vpack.c.b16 %v4293, %v4275
    %v5428 = vpack.c.b16 %v4294, %v4276
    %v5429 = vpack.c.b16 %v4295, %v4277
    %v5430 = vpack.c.b16 %v4296, %v4278
    %v5431 = vpack.c.b16 %v4297, %v4279
    %v5432 = vpack.c.b16 %v4298, %v4280
    %v5433 = vpack.c.b16 %v4299, %v4281
    %v5434 = vpack.c.b16 %v4300, %v4282
    %v5435 = vpack.c.b16 %v4301, %v4283
    %v5436 = vpack.c.b16 %v4302, %v4284
    %v5437 = vpack.c.b16 %v4303, %v4285
    %v5438 = vpack.c.b16 %v4304, %v4286
    %v5439 = vpack.c.b16 %v4305, %v4287
    %v5440 = vpack.c.b16 %v4306, %v4288
    %v5441 = vpack.c.b16 %v4307, %v4289
    %v5442 = vpack.c.b16 %v4308, %v4290
    %v5443 = vpack.c.b16 %v4309, %v4291
    %v5444 = vpack.c.b16 %v4328, %v4310
    %v5445 = vpack.c.b16 %v4329, %v4311
    %v5446 = vpack.c.b16 %v4330, %v4312
    %v5447 = vpack.c.b16 %v4331, %v4313
    %v5448 = vpack.c.b16 %v4332, %v4314
    %v5449 = vpack.c.b16 %v4333, %v4315
    %v5450 = vpack.c.b16 %v4334, %v4316
    %v5451 = vpack.c.b16 %v4335, %v4317
    %v5452 = vpack.c.b16 %v4336, %v4318
    %v5453 = vpack.c.b16 %v4337, %v4319
    %v5454 = vpack.c.b16 %v4338, %v4320
    %v5455 = vpack.c.b16 %v4339, %v4321
    %v5456 = vpack.c.b16 %v4340, %v4322
    %v5457 = vpack.c.b16 %v4341, %v4323
    %v5458 = vpack.c.b16 %v4342, %v4324
    %v5459 = vpack.c.b16 %v4343, %v4325
    %v5460 = vpack.c.b16 %v4344, %v4326
    %v5461 = vpack.c.b16 %v4345, %v4327
    %v5462 = vpack.c.b16 %v4364, %v4346
    %v5463 = vpack.c.b16 %v4365, %v4347
    %v5464 = vpack.c.b16 %v4366, %v4348
    %v5465 = vpack.c.b16 %v4367, %v4349
    %v5466 = vpack.c.b16 %v4368, %v4350
    %v5467 = vpack.c.b16 %v4369, %v4351
    %v5468 = vpack.c.b16 %v4370, %v4352
    %v5469 = vpack.c.b16 %v4371, %v4353
    %v5470 = vpack.c.b16 %v4372, %v4354
    %v5471 = vpack.c.b16 %v4373, %v4355
    %v5472 = vpack.c.b16 %v4374, %v4356
    %v5473 = vpack.c.b16 %v4375, %v4357
    %v5474 = vpack.c.b16 %v4376, %v4358
    %v5475 = vpack.c.b16 %v4377, %v4359
    %v5476 = vpack.c.b16 %v4378, %v4360
    %v5477 = vpack.c.b16 %v4379, %v4361
    %v5478 = vpack.c.b16 %v4380, %v4362
    %v5479 = vpack.c.b16 %v4381, %v4363
    %v5480 = vpack.c.b16 %v4400, %v4382
    %v5481 = vpack.c.b16 %v4401, %v4383
    %v5482 = vpack.c.b16 %v4402, %v4384
    %v5483 = vpack.c.b16 %v4403, %v4385
    %v5484 = vpack.c.b16 %v4404, %v4386
    %v5485 = vpack.c.b16 %v4405, %v4387
    %v5486 = vpack.c.b16 %v4406, %v4388
    %v5487 = vpack.c.b16 %v4407, %v4389
    %v5488 = vpack.c.b16 %v4408, %v4390
    %v5489 = vpack.c.b16 %v4409, %v4391
    %v5490 = vpack.c.b16 %v4410, %v4392
    %v5491 = vpack.c.b16 %v4411, %v4393
    %v5492 = vpack.c.b16 %v4412, %v4394
    %v5493 = vpack.c.b16 %v4413, %v4395
    %v5494 = vpack.c.b16 %v4414, %v4396
    %v5495 = vpack.c.b16 %v4415, %v4397
    %v5496 = vpack.c.b16 %v4416, %v4398
    %v5497 = vpack.c.b16 %v4417, %v4399
    %v5498 = vpack.c.b16 %v4436, %v4418
    %v5499 = vpack.c.b16 %v4437, %v4419
    %v5500 = vpack.c.b16 %v4438, %v4420
    %v5501 = vpack.c.b16 %v4439, %v4421
    %v5502 = vpack.c.b16 %v4440, %v4422
    %v5503 = vpack.c.b16 %v4441, %v4423
    %v5504 = vpack.c.b16 %v4442, %v4424
    %v5505 = vpack.c.b16 %v4443, %v4425
    %v5506 = vpack.c.b16 %v4444, %v4426
    %v5507 = vpack.c.b16 %v4445, %v4427
    %v5508 = vpack.c.b16 %v4446, %v4428
    %v5509 = vpack.c.b16 %v4447, %v4429
    %v5510 = vpack.c.b16 %v4448, %v4430
    %v5511 = vpack.c.b16 %v4449, %v4431
    %v5512 = vpack.c.b16 %v4450, %v4432
    %v5513 = vpack.c.b16 %v4451, %v4433
    %v5514 = vpack.c.b16 %v4452, %v4434
    %v5515 = vpack.c.b16 %v4453, %v4435
    %v5516 = vpack.c.b16 %v4472, %v4454
    %v5517 = vpack.c.b16 %v4473, %v4455
    %v5518 = vpack.c.b16 %v4474, %v4456
    %v5519 = vpack.c.b16 %v4475, %v4457
    %v5520 = vpack.c.b16 %v4476, %v4458
    %v5521 = vpack.c.b16 %v4477, %v4459
    %v5522 = vpack.c.b16 %v4478, %v4460
    %v5523 = vpack.c.b16 %v4479, %v4461
    %v5524 = vpack.c.b16 %v4480, %v4462
    %v5525 = vpack.c.b16 %v4481, %v4463
    %v5526 = vpack.c.b16 %v4482, %v4464
    %v5527 = vpack.c.b16 %v4483, %v4465
    %v5528 = vpack.c.b16 %v4484, %v4466
    %v5529 = vpack.c.b16 %v4485, %v4467
    %v5530 = vpack.c.b16 %v4486, %v4468
    %v5531 = vpack.c.b16 %v4487, %v4469
    %v5532 = vpack.c.b16 %v4488, %v4470
    %v5533 = vpack.c.b16 %v4489, %v4471
    %v5534 = vpack.c.b16 %v4508, %v4490
    %v5535 = vpack.c.b16 %v4509, %v4491
    %v5536 = vpack.c.b16 %v4510, %v4492
    %v5537 = vpack.c.b16 %v4511, %v4493
    %v5538 = vpack.c.b16 %v4512, %v4494
    %v5539 = vpack.c.b16 %v4513, %v4495
    %v5540 = vpack.c.b16 %v4514, %v4496
    %v5541 = vpack.c.b16 %v4515, %v4497
    %v5542 = vpack.c.b16 %v4516, %v4498
    %v5543 = vpack.c.b16 %v4517, %v4499
    %v5544 = vpack.c.b16 %v4518, %v4500
    %v5545 = vpack.c.b16 %v4519, %v4501
    %v5546 = vpack.c.b16 %v4520, %v4502
    %v5547 = vpack.c.b16 %v4521, %v4503
    %v5548 = vpack.c.b16 %v4522, %v4504
    %v5549 = vpack.c.b16 %v4523, %v4505
    %v5550 = vpack.c.b16 %v4524, %v4506
    %v5551 = vpack.c.b16 %v4525, %v4507
    %v5552 = vpack.c.b16 %v4544, %v4526
    %v5553 = vpack.c.b16 %v4545, %v4527
    %v5554 = vpack.c.b16 %v4546, %v4528
    %v5555 = vpack.c.b16 %v4547, %v4529
    %v5556 = vpack.c.b16 %v4548, %v4530
    %v5557 = vpack.c.b16 %v4549, %v4531
    %v5558 = vpack.c.b16 %v4550, %v4532
    %v5559 = vpack.c.b16 %v4551, %v4533
    %v5560 = vpack.c.b16 %v4552, %v4534
    %v5561 = vpack.c.b16 %v4553, %v4535
    %v5562 = vpack.c.b16 %v4554, %v4536
    %v5563 = vpack.c.b16 %v4555, %v4537
    %v5564 = vpack.c.b16 %v4556, %v4538
    %v5565 = vpack.c.b16 %v4557, %v4539
    %v5566 = vpack.c.b16 %v4558, %v4540
    %v5567 = vpack.c.b16 %v4559, %v4541
    %v5568 = vpack.c.b16 %v4560, %v4542
    %v5569 = vpack.c.b16 %v4561, %v4543
    %6578 = vmatprep.subr.bf16.mxu0 %v4563
    %6579 = vmatpush1.bf16.msra.mxu0 %v4562
    %6580 = vmatprep.subr.bf16.mxu0 %v4581
    %6581 = vmatpush1.bf16.msra.mxu0 %v4580
    %6582 = vmatprep.subr.bf16.mxu0 %v4599
    %6583 = vmatpush1.bf16.msra.mxu0 %v4598
    %6584 = vmatprep.subr.bf16.mxu0 %v4617
    %6585 = vmatpush1.bf16.msra.mxu0 %v4616
    %6586 = vmatprep.subr.bf16.mxu0 %v4635
    %6587 = vmatpush1.bf16.msra.mxu0 %v4634
    %6588 = vmatprep.subr.bf16.mxu0 %v4653
    %6589 = vmatpush1.bf16.msra.mxu0 %v4652
    %6590 = vmatprep.subr.bf16.mxu0 %v4671
    %6591 = vmatpush1.bf16.msra.mxu0 %v4670
    %6592 = vmatprep.subr.bf16.mxu0 %v4689
    %6593 = vmatpush1.bf16.msra.mxu0 %v4688
    %6594 = vmatprep.subr.bf16.mxu0 %v4707
    %6595 = vmatpush1.bf16.msra.mxu0 %v4706
    %6596 = vmatprep.subr.bf16.mxu0 %v4725
    %6597 = vmatpush1.bf16.msra.mxu0 %v4724
    %6598 = vmatprep.subr.bf16.mxu0 %v4743
    %6599 = vmatpush1.bf16.msra.mxu0 %v4742
    %6600 = vmatprep.subr.bf16.mxu0 %v4761
    %6601 = vmatpush1.bf16.msra.mxu0 %v4760
    %6602 = vmatprep.subr.bf16.mxu0 %v4779
    %6603 = vmatpush1.bf16.msra.mxu0 %v4778
    %6604 = vmatprep.subr.bf16.mxu0 %v4797
    %6605 = vmatpush1.bf16.msra.mxu0 %v4796
    %6606 = vmatprep.subr.bf16.mxu0 %v4815
    %6607 = vmatpush1.bf16.msra.mxu0 %v4814
    %6608 = vmatprep.subr.bf16.mxu0 %v4833
    %6609 = vmatpush1.bf16.msra.mxu0 %v4832
    %6610 = vmatprep.mubr.bf16.mxu0 %v524
    %6611 = vmatmul.mubr.bf16.gmra.mrb[0].mxu0 %v523
    %v6612 = vpop.f32.mrb[0].mxu0
    %v6613 = vadd.f32 0.0, %v6612
    %v6614 = vpop.f32.mrb[0].mxu0
    %v6615 = vadd.f32 0.0, %v6614
    %v6616 = vpop.f32.mrb[0].mxu0
    %v6617 = vpop.f32.mrb[0].mxu0
    %6618 = vdwg.mxu0
    %6619 = vmatprep.subr.bf16.mxu0 %v4851
    %6620 = vmatpush1.bf16.msra.mxu0 %v4850
    %6621 = vmatprep.subr.bf16.mxu0 %v4869
    %6622 = vmatpush1.bf16.msra.mxu0 %v4868
    %6623 = vmatprep.subr.bf16.mxu0 %v4887
    %6624 = vmatpush1.bf16.msra.mxu0 %v4886
    %6625 = vmatprep.subr.bf16.mxu0 %v4905
    %6626 = vmatpush1.bf16.msra.mxu0 %v4904
    %6627 = vmatprep.subr.bf16.mxu0 %v4923
    %6628 = vmatpush1.bf16.msra.mxu0 %v4922
    %6629 = vmatprep.subr.bf16.mxu0 %v4941
    %6630 = vmatpush1.bf16.msra.mxu0 %v4940
    %6631 = vmatprep.subr.bf16.mxu0 %v4959
    %6632 = vmatpush1.bf16.msra.mxu0 %v4958
    %6633 = vmatprep.subr.bf16.mxu0 %v4977
    %6634 = vmatpush1.bf16.msra.mxu0 %v4976
    %6635 = vmatprep.subr.bf16.mxu0 %v4995
    %6636 = vmatpush1.bf16.msra.mxu0 %v4994
    %6637 = vmatprep.subr.bf16.mxu0 %v5013
    %6638 = vmatpush1.bf16.msra.mxu0 %v5012
    %6639 = vmatprep.subr.bf16.mxu0 %v5031
    %6640 = vmatpush1.bf16.msra.mxu0 %v5030
    %6641 = vmatprep.subr.bf16.mxu0 %v5049
    %6642 = vmatpush1.bf16.msra.mxu0 %v5048
    %6643 = vmatprep.subr.bf16.mxu0 %v5067
    %6644 = vmatpush1.bf16.msra.mxu0 %v5066
    %6645 = vmatprep.subr.bf16.mxu0 %v5085
    %6646 = vmatpush1.bf16.msra.mxu0 %v5084
    %6647 = vmatprep.subr.bf16.mxu0 %v5103
    %6648 = vmatpush1.bf16.msra.mxu0 %v5102
    %6649 = vmatprep.subr.bf16.mxu0 %v5121
    %6650 = vmatpush1.bf16.msra.mxu0 %v5120
    %6651 = vmatprep.mubr.bf16.mxu0 %v526
    %6652 = vmatmul.mubr.bf16.gmra.mrb[0].mxu0 %v525
    %v6653 = vpop.f32.mrb[0].mxu0
    %v6654 = vadd.f32 %v6613, %v6653
    %v6655 = vpop.f32.mrb[0].mxu0
    %v6656 = vadd.f32 %v6615, %v6655
    %v6657 = vpop.f32.mrb[0].mxu0
    %v6658 = vpop.f32.mrb[0].mxu0
    %6659 = vdwg.mxu0
    %6660 = vmatprep.subr.bf16.mxu0 %v5139
    %6661 = vmatpush1.bf16.msra.mxu0 %v5138
    %6662 = vmatprep.subr.bf16.mxu0 %v5157
    %6663 = vmatpush1.bf16.msra.mxu0 %v5156
    %6664 = vmatprep.subr.bf16.mxu0 %v5175
    %6665 = vmatpush1.bf16.msra.mxu0 %v5174
    %6666 = vmatprep.subr.bf16.mxu0 %v5193
    %6667 = vmatpush1.bf16.msra.mxu0 %v5192
    %6668 = vmatprep.subr.bf16.mxu0 %v5211
    %6669 = vmatpush1.bf16.msra.mxu0 %v5210
    %6670 = vmatprep.subr.bf16.mxu0 %v5229
    %6671 = vmatpush1.bf16.msra.mxu0 %v5228
    %6672 = vmatprep.subr.bf16.mxu0 %v5247
    %6673 = vmatpush1.bf16.msra.mxu0 %v5246
    %6674 = vmatprep.subr.bf16.mxu0 %v5265
    %6675 = vmatpush1.bf16.msra.mxu0 %v5264
    %6676 = vmatprep.subr.bf16.mxu0 %v5283
    %6677 = vmatpush1.bf16.msra.mxu0 %v5282
    %6678 = vmatprep.subr.bf16.mxu0 %v5301
    %6679 = vmatpush1.bf16.msra.mxu0 %v5300
    %6680 = vmatprep.subr.bf16.mxu0 %v5319
    %6681 = vmatpush1.bf16.msra.mxu0 %v5318
    %6682 = vmatprep.subr.bf16.mxu0 %v5337
    %6683 = vmatpush1.bf16.msra.mxu0 %v5336
    %6684 = vmatprep.subr.bf16.mxu0 %v5355
    %6685 = vmatpush1.bf16.msra.mxu0 %v5354
    %6686 = vmatprep.subr.bf16.mxu0 %v5373
    %6687 = vmatpush1.bf16.msra.mxu0 %v5372
    %6688 = vmatprep.subr.bf16.mxu0 %v5391
    %6689 = vmatpush1.bf16.msra.mxu0 %v5390
    %6690 = vmatprep.subr.bf16.mxu0 %v5409
    %6691 = vmatpush1.bf16.msra.mxu0 %v5408
    %6692 = vmatprep.mubr.bf16.mxu0 %v528
    %6693 = vmatmul.mubr.bf16.gmra.mrb[0].mxu0 %v527
    %v6694 = vpop.f32.mrb[0].mxu0
    %v6695 = vadd.f32 %v6654, %v6694
    %v6696 = vpop.f32.mrb[0].mxu0
    %v6697 = vadd.f32 %v6656, %v6696
    %v6698 = vpop.f32.mrb[0].mxu0
    %v6699 = vpop.f32.mrb[0].mxu0
    %6700 = vdwg.mxu0
    %6701 = vmatprep.subr.bf16.mxu0 %v5427
    %6702 = vmatpush1.bf16.msra.mxu0 %v5426
    %6703 = vmatprep.subr.bf16.mxu0 %v5445
    %6704 = vmatpush1.bf16.msra.mxu0 %v5444
    %6705 = vmatprep.subr.bf16.mxu0 %v5463
    %6706 = vmatpush1.bf16.msra.mxu0 %v5462
    %6707 = vmatprep.subr.bf16.mxu0 %v5481
    %6708 = vmatpush1.bf16.msra.mxu0 %v5480
    %6709 = vmatprep.subr.bf16.mxu0 %v5499
    %6710 = vmatpush1.bf16.msra.mxu0 %v5498
    %6711 = vmatprep.subr.bf16.mxu0 %v5517
    %6712 = vmatpush1.bf16.msra.mxu0 %v5516
    %6713 = vmatprep.subr.bf16.mxu0 %v5535
    %6714 = vmatpush1.bf16.msra.mxu0 %v5534
    %6715 = vmatprep.subr.bf16.mxu0 %v5553
    %6716 = vmatpush1.bf16.msra.mxu0 %v5552
    %6717 = vmatprep.subr.bf16.mxu0 0
    %6718 = vmatpush1.bf16.msra.mxu0 0
    %6719 = vmatprep.subr.bf16.mxu0 0
    %6720 = vmatpush1.bf16.msra.mxu0 0
    %6721 = vmatprep.subr.bf16.mxu0 0
    %6722 = vmatpush1.bf16.msra.mxu0 0
    %6723 = vmatprep.subr.bf16.mxu0 0
    %6724 = vmatpush1.bf16.msra.mxu0 0
    %6725 = vmatprep.subr.bf16.mxu0 0
    %6726 = vmatpush1.bf16.msra.mxu0 0
    %6727 = vmatprep.subr.bf16.mxu0 0
    %6728 = vmatpush1.bf16.msra.mxu0 0
    %6729 = vmatprep.subr.bf16.mxu0 0
    %6730 = vmatpush1.bf16.msra.mxu0 0
    %6731 = vmatprep.subr.bf16.mxu0 0
    %6732 = vmatpush1.bf16.msra.mxu0 0
    %6733 = vmatprep.mubr.bf16.mxu0 0
    %6734 = vmatmul.mubr.bf16.gmra.mrb[0].mxu0 %v529
    %v6735 = vpop.f32.mrb[0].mxu0
    %v6736 = vadd.f32 %v6695, %v6735
    %v6737 = vpop.f32.mrb[0].mxu0
    %v6738 = vadd.f32 %v6697, %v6737
    %v6739 = vpop.f32.mrb[0].mxu0
    %v6740 = vpop.f32.mrb[0].mxu0
    %6741 = vdwg.mxu0
    %6742 = vmatprep.subr.bf16.mxu0 %v4565
    %6743 = vmatpush1.bf16.msra.mxu0 %v4564
    %6744 = vmatprep.subr.bf16.mxu0 %v4583
    %6745 = vmatpush1.bf16.msra.mxu0 %v4582
    %6746 = vmatprep.subr.bf16.mxu0 %v4601
    %6747 = vmatpush1.bf16.msra.mxu0 %v4600
    %6748 = vmatprep.subr.bf16.mxu0 %v4619
    %6749 = vmatpush1.bf16.msra.mxu0 %v4618
    %6750 = vmatprep.subr.bf16.mxu0 %v4637
    %6751 = vmatpush1.bf16.msra.mxu0 %v4636
    %6752 = vmatprep.subr.bf16.mxu0 %v4655
    %6753 = vmatpush1.bf16.msra.mxu0 %v4654
    %6754 = vmatprep.subr.bf16.mxu0 %v4673
    %6755 = vmatpush1.bf16.msra.mxu0 %v4672
    %6756 = vmatprep.subr.bf16.mxu0 %v4691
    %6757 = vmatpush1.bf16.msra.mxu0 %v4690
    %6758 = vmatprep.subr.bf16.mxu0 %v4709
    %6759 = vmatpush1.bf16.msra.mxu0 %v4708
    %6760 = vmatprep.subr.bf16.mxu0 %v4727
    %6761 = vmatpush1.bf16.msra.mxu0 %v4726
    %6762 = vmatprep.subr.bf16.mxu0 %v4745
    %6763 = vmatpush1.bf16.msra.mxu0 %v4744
    %6764 = vmatprep.subr.bf16.mxu0 %v4763
    %6765 = vmatpush1.bf16.msra.mxu0 %v4762
    %6766 = vmatprep.subr.bf16.mxu0 %v4781
    %6767 = vmatpush1.bf16.msra.mxu0 %v4780
    %6768 = vmatprep.subr.bf16.mxu0 %v4799
    %6769 = vmatpush1.bf16.msra.mxu0 %v4798
    %6770 = vmatprep.subr.bf16.mxu0 %v4817
    %6771 = vmatpush1.bf16.msra.mxu0 %v4816
    %6772 = vmatprep.subr.bf16.mxu0 %v4835
    %6773 = vmatpush1.bf16.msra.mxu0 %v4834
    %6774 = vmatprep.mubr.bf16.mxu0 %v524
    %6775 = vmatmul.mubr.bf16.gmra.mrb[0].mxu0 %v523
    %v6776 = vpop.f32.mrb[0].mxu0
    %v6777 = vadd.f32 0.0, %v6776
    %v6778 = vpop.f32.mrb[0].mxu0
    %v6779 = vadd.f32 0.0, %v6778
    %v6780 = vpop.f32.mrb[0].mxu0
    %v6781 = vpop.f32.mrb[0].mxu0
    %6782 = vdwg.mxu0
    %6783 = vmatprep.subr.bf16.mxu0 %v4853
    %6784 = vmatpush1.bf16.msra.mxu0 %v4852
    %6785 = vmatprep.subr.bf16.mxu0 %v4871
    %6786 = vmatpush1.bf16.msra.mxu0 %v4870
    %6787 = vmatprep.subr.bf16.mxu0 %v4889
    %6788 = vmatpush1.bf16.msra.mxu0 %v4888
    %6789 = vmatprep.subr.bf16.mxu0 %v4907
    %6790 = vmatpush1.bf16.msra.mxu0 %v4906
    %6791 = vmatprep.subr.bf16.mxu0 %v4925
    %6792 = vmatpush1.bf16.msra.mxu0 %v4924
    %6793 = vmatprep.subr.bf16.mxu0 %v4943
    %6794 = vmatpush1.bf16.msra.mxu0 %v4942
    %6795 = vmatprep.subr.bf16.mxu0 %v4961
    %6796 = vmatpush1.bf16.msra.mxu0 %v4960
    %6797 = vmatprep.subr.bf16.mxu0 %v4979
    %6798 = vmatpush1.bf16.msra.mxu0 %v4978
    %6799 = vmatprep.subr.bf16.mxu0 %v4997
    %6800 = vmatpush1.bf16.msra.mxu0 %v4996
    %6801 = vmatprep.subr.bf16.mxu0 %v5015
    %6802 = vmatpush1.bf16.msra.mxu0 %v5014
    %6803 = vmatprep.subr.bf16.mxu0 %v5033
    %6804 = vmatpush1.bf16.msra.mxu0 %v5032
    %6805 = vmatprep.subr.bf16.mxu0 %v5051
    %6806 = vmatpush1.bf16.msra.mxu0 %v5050
    %6807 = vmatprep.subr.bf16.mxu0 %v5069
    %6808 = vmatpush1.bf16.msra.mxu0 %v5068
    %6809 = vmatprep.subr.bf16.mxu0 %v5087
    %6810 = vmatpush1.bf16.msra.mxu0 %v5086
    %6811 = vmatprep.subr.bf16.mxu0 %v5105
    %6812 = vmatpush1.bf16.msra.mxu0 %v5104
    %6813 = vmatprep.subr.bf16.mxu0 %v5123
    %6814 = vmatpush1.bf16.msra.mxu0 %v5122
    %6815 = vmatprep.mubr.bf16.mxu0 %v526
    %6816 = vmatmul.mubr.bf16.gmra.mrb[0].mxu0 %v525
    %v6817 = vpop.f32.mrb[0].mxu0
    %v6818 = vadd.f32 %v6777, %v6817
    %v6819 = vpop.f32.mrb[0].mxu0
    %v6820 = vadd.f32 %v6779, %v6819
    %v6821 = vpop.f32.mrb[0].mxu0
    %v6822 = vpop.f32.mrb[0].mxu0
    %6823 = vdwg.mxu0
    %6824 = vmatprep.subr.bf16.mxu0 %v5141
    %6825 = vmatpush1.bf16.msra.mxu0 %v5140
    %6826 = vmatprep.subr.bf16.mxu0 %v5159
    %6827 = vmatpush1.bf16.msra.mxu0 %v5158
    %6828 = vmatprep.subr.bf16.mxu0 %v5177
    %6829 = vmatpush1.bf16.msra.mxu0 %v5176
    %6830 = vmatprep.subr.bf16.mxu0 %v5195
    %6831 = vmatpush1.bf16.msra.mxu0 %v5194
    %6832 = vmatprep.subr.bf16.mxu0 %v5213
    %6833 = vmatpush1.bf16.msra.mxu0 %v5212
    %6834 = vmatprep.subr.bf16.mxu0 %v5231
    %6835 = vmatpush1.bf16.msra.mxu0 %v5230
    %6836 = vmatprep.subr.bf16.mxu0 %v5249
    %6837 = vmatpush1.bf16.msra.mxu0 %v5248
    %6838 = vmatprep.subr.bf16.mxu0 %v5267
    %6839 = vmatpush1.bf16.msra.mxu0 %v5266
    %6840 = vmatprep.subr.bf16.mxu0 %v5285
    %6841 = vmatpush1.bf16.msra.mxu0 %v5284
    %6842 = vmatprep.subr.bf16.mxu0 %v5303
    %6843 = vmatpush1.bf16.msra.mxu0 %v5302
    %6844 = vmatprep.subr.bf16.mxu0 %v5321
    %6845 = vmatpush1.bf16.msra.mxu0 %v5320
    %6846 = vmatprep.subr.bf16.mxu0 %v5339
    %6847 = vmatpush1.bf16.msra.mxu0 %v5338
    %6848 = vmatprep.subr.bf16.mxu0 %v5357
    %6849 = vmatpush1.bf16.msra.mxu0 %v5356
    %6850 = vmatprep.subr.bf16.mxu0 %v5375
    %6851 = vmatpush1.bf16.msra.mxu0 %v5374
    %6852 = vmatprep.subr.bf16.mxu0 %v5393
    %6853 = vmatpush1.bf16.msra.mxu0 %v5392
    %6854 = vmatprep.subr.bf16.mxu0 %v5411
    %6855 = vmatpush1.bf16.msra.mxu0 %v5410
    %6856 = vmatprep.mubr.bf16.mxu0 %v528
    %6857 = vmatmul.mubr.bf16.gmra.mrb[0].mxu0 %v527
    %v6858 = vpop.f32.mrb[0].mxu0
    %v6859 = vadd.f32 %v6818, %v6858
    %v6860 = vpop.f32.mrb[0].mxu0
    %v6861 = vadd.f32 %v6820, %v6860
    %v6862 = vpop.f32.mrb[0].mxu0
    %v6863 = vpop.f32.mrb[0].mxu0
    %6864 = vdwg.mxu0
    %6865 = vmatprep.subr.bf16.mxu0 %v5429
    %6866 = vmatpush1.bf16.msra.mxu0 %v5428
    %6867 = vmatprep.subr.bf16.mxu0 %v5447
    %6868 = vmatpush1.bf16.msra.mxu0 %v5446
    %6869 = vmatprep.subr.bf16.mxu0 %v5465
    %6870 = vmatpush1.bf16.msra.mxu0 %v5464
    %6871 = vmatprep.subr.bf16.mxu0 %v5483
    %6872 = vmatpush1.bf16.msra.mxu0 %v5482
    %6873 = vmatprep.subr.bf16.mxu0 %v5501
    %6874 = vmatpush1.bf16.msra.mxu0 %v5500
    %6875 = vmatprep.subr.bf16.mxu0 %v5519
    %6876 = vmatpush1.bf16.msra.mxu0 %v5518
    %6877 = vmatprep.subr.bf16.mxu0 %v5537
    %6878 = vmatpush1.bf16.msra.mxu0 %v5536
    %6879 = vmatprep.subr.bf16.mxu0 %v5555
    %6880 = vmatpush1.bf16.msra.mxu0 %v5554
    %6881 = vmatprep.subr.bf16.mxu0 0
    %6882 = vmatpush1.bf16.msra.mxu0 0
    %6883 = vmatprep.subr.bf16.mxu0 0
    %6884 = vmatpush1.bf16.msra.mxu0 0
    %6885 = vmatprep.subr.bf16.mxu0 0
    %6886 = vmatpush1.bf16.msra.mxu0 0
    %6887 = vmatprep.subr.bf16.mxu0 0
    %6888 = vmatpush1.bf16.msra.mxu0 0
    %6889 = vmatprep.subr.bf16.mxu0 0
    %6890 = vmatpush1.bf16.msra.mxu0 0
    %6891 = vmatprep.subr.bf16.mxu0 0
    %6892 = vmatpush1.bf16.msra.mxu0 0
    %6893 = vmatprep.subr.bf16.mxu0 0
    %6894 = vmatpush1.bf16.msra.mxu0 0
    %6895 = vmatprep.subr.bf16.mxu0 0
    %6896 = vmatpush1.bf16.msra.mxu0 0
    %6897 = vmatprep.mubr.bf16.mxu0 0
    %6898 = vmatmul.mubr.bf16.gmra.mrb[0].mxu0 %v529
    %v6899 = vpop.f32.mrb[0].mxu0
    %v6900 = vadd.f32 %v6859, %v6899
    %v6901 = vpop.f32.mrb[0].mxu0
    %v6902 = vadd.f32 %v6861, %v6901
    %v6903 = vpop.f32.mrb[0].mxu0
    %v6904 = vpop.f32.mrb[0].mxu0
    %6905 = vdwg.mxu0
    %6906 = vmatprep.subr.bf16.mxu0 %v4567
    %6907 = vmatpush1.bf16.msra.mxu0 %v4566
    %6908 = vmatprep.subr.bf16.mxu0 %v4585
    %6909 = vmatpush1.bf16.msra.mxu0 %v4584
    %6910 = vmatprep.subr.bf16.mxu0 %v4603
    %6911 = vmatpush1.bf16.msra.mxu0 %v4602
    %6912 = vmatprep.subr.bf16.mxu0 %v4621
    %6913 = vmatpush1.bf16.msra.mxu0 %v4620
    %6914 = vmatprep.subr.bf16.mxu0 %v4639
    %6915 = vmatpush1.bf16.msra.mxu0 %v4638
    %6916 = vmatprep.subr.bf16.mxu0 %v4657
    %6917 = vmatpush1.bf16.msra.mxu0 %v4656
    %6918 = vmatprep.subr.bf16.mxu0 %v4675
    %6919 = vmatpush1.bf16.msra.mxu0 %v4674
    %6920 = vmatprep.subr.bf16.mxu0 %v4693
    %6921 = vmatpush1.bf16.msra.mxu0 %v4692
    %6922 = vmatprep.subr.bf16.mxu0 %v4711
    %6923 = vmatpush1.bf16.msra.mxu0 %v4710
    %6924 = vmatprep.subr.bf16.mxu0 %v4729
    %6925 = vmatpush1.bf16.msra.mxu0 %v4728
    %6926 = vmatprep.subr.bf16.mxu0 %v4747
    %6927 = vmatpush1.bf16.msra.mxu0 %v4746
    %6928 = vmatprep.subr.bf16.mxu0 %v4765
    %6929 = vmatpush1.bf16.msra.mxu0 %v4764
    %6930 = vmatprep.subr.bf16.mxu0 %v4783
    %6931 = vmatpush1.bf16.msra.mxu0 %v4782
    %6932 = vmatprep.subr.bf16.mxu0 %v4801
    %6933 = vmatpush1.bf16.msra.mxu0 %v4800
    %6934 = vmatprep.subr.bf16.mxu0 %v4819
    %6935 = vmatpush1.bf16.msra.mxu0 %v4818
    %6936 = vmatprep.subr.bf16.mxu0 %v4837
    %6937 = vmatpush1.bf16.msra.mxu0 %v4836
    %6938 = vmatprep.mubr.bf16.mxu0 %v524
    %6939 = vmatmul.mubr.bf16.gmra.mrb[0].mxu0 %v523
    %v6940 = vpop.f32.mrb[0].mxu0
    %v6941 = vadd.f32 0.0, %v6940
    %v6942 = vpop.f32.mrb[0].mxu0
    %v6943 = vadd.f32 0.0, %v6942
    %v6944 = vpop.f32.mrb[0].mxu0
    %v6945 = vpop.f32.mrb[0].mxu0
    %6946 = vdwg.mxu0
    %6947 = vmatprep.subr.bf16.mxu0 %v4855
    %6948 = vmatpush1.bf16.msra.mxu0 %v4854
    %6949 = vmatprep.subr.bf16.mxu0 %v4873
    %6950 = vmatpush1.bf16.msra.mxu0 %v4872
    %6951 = vmatprep.subr.bf16.mxu0 %v4891
    %6952 = vmatpush1.bf16.msra.mxu0 %v4890
    %6953 = vmatprep.subr.bf16.mxu0 %v4909
    %6954 = vmatpush1.bf16.msra.mxu0 %v4908
    %6955 = vmatprep.subr.bf16.mxu0 %v4927
    %6956 = vmatpush1.bf16.msra.mxu0 %v4926
    %6957 = vmatprep.subr.bf16.mxu0 %v4945
    %6958 = vmatpush1.bf16.msra.mxu0 %v4944
    %6959 = vmatprep.subr.bf16.mxu0 %v4963
    %6960 = vmatpush1.bf16.msra.mxu0 %v4962
    %6961 = vmatprep.subr.bf16.mxu0 %v4981
    %6962 = vmatpush1.bf16.msra.mxu0 %v4980
    %6963 = vmatprep.subr.bf16.mxu0 %v4999
    %6964 = vmatpush1.bf16.msra.mxu0 %v4998
    %6965 = vmatprep.subr.bf16.mxu0 %v5017
    %6966 = vmatpush1.bf16.msra.mxu0 %v5016
    %6967 = vmatprep.subr.bf16.mxu0 %v5035
    %6968 = vmatpush1.bf16.msra.mxu0 %v5034
    %6969 = vmatprep.subr.bf16.mxu0 %v5053
    %6970 = vmatpush1.bf16.msra.mxu0 %v5052
    %6971 = vmatprep.subr.bf16.mxu0 %v5071
    %6972 = vmatpush1.bf16.msra.mxu0 %v5070
    %6973 = vmatprep.subr.bf16.mxu0 %v5089
    %6974 = vmatpush1.bf16.msra.mxu0 %v5088
    %6975 = vmatprep.subr.bf16.mxu0 %v5107
    %6976 = vmatpush1.bf16.msra.mxu0 %v5106
    %6977 = vmatprep.subr.bf16.mxu0 %v5125
    %6978 = vmatpush1.bf16.msra.mxu0 %v5124
    %6979 = vmatprep.mubr.bf16.mxu0 %v526
    %6980 = vmatmul.mubr.bf16.gmra.mrb[0].mxu0 %v525
    %v6981 = vpop.f32.mrb[0].mxu0
    %v6982 = vadd.f32 %v6941, %v6981
    %v6983 = vpop.f32.mrb[0].mxu0
    %v6984 = vadd.f32 %v6943, %v6983
    %v6985 = vpop.f32.mrb[0].mxu0
    %v6986 = vpop.f32.mrb[0].mxu0
    %6987 = vdwg.mxu0
    %6988 = vmatprep.subr.bf16.mxu0 %v5143
    %6989 = vmatpush1.bf16.msra.mxu0 %v5142
    %6990 = vmatprep.subr.bf16.mxu0 %v5161
    %6991 = vmatpush1.bf16.msra.mxu0 %v5160
    %6992 = vmatprep.subr.bf16.mxu0 %v5179
    %6993 = vmatpush1.bf16.msra.mxu0 %v5178
    %6994 = vmatprep.subr.bf16.mxu0 %v5197
    %6995 = vmatpush1.bf16.msra.mxu0 %v5196
    %6996 = vmatprep.subr.bf16.mxu0 %v5215
    %6997 = vmatpush1.bf16.msra.mxu0 %v5214
    %6998 = vmatprep.subr.bf16.mxu0 %v5233
    %6999 = vmatpush1.bf16.msra.mxu0 %v5232
    %7000 = vmatprep.subr.bf16.mxu0 %v5251
    %7001 = vmatpush1.bf16.msra.mxu0 %v5250
    %7002 = vmatprep.subr.bf16.mxu0 %v5269
    %7003 = vmatpush1.bf16.msra.mxu0 %v5268
    %7004 = vmatprep.subr.bf16.mxu0 %v5287
    %7005 = vmatpush1.bf16.msra.mxu0 %v5286
    %7006 = vmatprep.subr.bf16.mxu0 %v5305
    %7007 = vmatpush1.bf16.msra.mxu0 %v5304
    %7008 = vmatprep.subr.bf16.mxu0 %v5323
    %7009 = vmatpush1.bf16.msra.mxu0 %v5322
    %7010 = vmatprep.subr.bf16.mxu0 %v5341
    %7011 = vmatpush1.bf16.msra.mxu0 %v5340
    %7012 = vmatprep.subr.bf16.mxu0 %v5359
    %7013 = vmatpush1.bf16.msra.mxu0 %v5358
    %7014 = vmatprep.subr.bf16.mxu0 %v5377
    %7015 = vmatpush1.bf16.msra.mxu0 %v5376
    %7016 = vmatprep.subr.bf16.mxu0 %v5395
    %7017 = vmatpush1.bf16.msra.mxu0 %v5394
    %7018 = vmatprep.subr.bf16.mxu0 %v5413
    %7019 = vmatpush1.bf16.msra.mxu0 %v5412
    %7020 = vmatprep.mubr.bf16.mxu0 %v528
    %7021 = vmatmul.mubr.bf16.gmra.mrb[0].mxu0 %v527
    %v7022 = vpop.f32.mrb[0].mxu0
    %v7023 = vadd.f32 %v6982, %v7022
    %v7024 = vpop.f32.mrb[0].mxu0
    %v7025 = vadd.f32 %v6984, %v7024
    %v7026 = vpop.f32.mrb[0].mxu0
    %v7027 = vpop.f32.mrb[0].mxu0
    %7028 = vdwg.mxu0
    %7029 = vmatprep.subr.bf16.mxu0 %v5431
    %7030 = vmatpush1.bf16.msra.mxu0 %v5430
    %7031 = vmatprep.subr.bf16.mxu0 %v5449
    %7032 = vmatpush1.bf16.msra.mxu0 %v5448
    %7033 = vmatprep.subr.bf16.mxu0 %v5467
    %7034 = vmatpush1.bf16.msra.mxu0 %v5466
    %7035 = vmatprep.subr.bf16.mxu0 %v5485
    %7036 = vmatpush1.bf16.msra.mxu0 %v5484
    %7037 = vmatprep.subr.bf16.mxu0 %v5503
    %7038 = vmatpush1.bf16.msra.mxu0 %v5502
    %7039 = vmatprep.subr.bf16.mxu0 %v5521
    %7040 = vmatpush1.bf16.msra.mxu0 %v5520
    %7041 = vmatprep.subr.bf16.mxu0 %v5539
    %7042 = vmatpush1.bf16.msra.mxu0 %v5538
    %7043 = vmatprep.subr.bf16.mxu0 %v5557
    %7044 = vmatpush1.bf16.msra.mxu0 %v5556
    %7045 = vmatprep.subr.bf16.mxu0 0
    %7046 = vmatpush1.bf16.msra.mxu0 0
    %7047 = vmatprep.subr.bf16.mxu0 0
    %7048 = vmatpush1.bf16.msra.mxu0 0
    %7049 = vmatprep.subr.bf16.mxu0 0
    %7050 = vmatpush1.bf16.msra.mxu0 0
    %7051 = vmatprep.subr.bf16.mxu0 0
    %7052 = vmatpush1.bf16.msra.mxu0 0
    %7053 = vmatprep.subr.bf16.mxu0 0
    %7054 = vmatpush1.bf16.msra.mxu0 0
    %7055 = vmatprep.subr.bf16.mxu0 0
    %7056 = vmatpush1.bf16.msra.mxu0 0
    %7057 = vmatprep.subr.bf16.mxu0 0
    %7058 = vmatpush1.bf16.msra.mxu0 0
    %7059 = vmatprep.subr.bf16.mxu0 0
    %7060 = vmatpush1.bf16.msra.mxu0 0
    %7061 = vmatprep.mubr.bf16.mxu0 0
    %7062 = vmatmul.mubr.bf16.gmra.mrb[0].mxu0 %v529
    %v7063 = vpop.f32.mrb[0].mxu0
    %v7064 = vadd.f32 %v7023, %v7063
    %v7065 = vpop.f32.mrb[0].mxu0
    %v7066 = vadd.f32 %v7025, %v7065
    %v7067 = vpop.f32.mrb[0].mxu0
    %v7068 = vpop.f32.mrb[0].mxu0
    %7069 = vdwg.mxu0
    %7070 = vmatprep.subr.bf16.mxu0 %v4569
    %7071 = vmatpush1.bf16.msra.mxu0 %v4568
    %7072 = vmatprep.subr.bf16.mxu0 %v4587
    %7073 = vmatpush1.bf16.msra.mxu0 %v4586
    %7074 = vmatprep.subr.bf16.mxu0 %v4605
    %7075 = vmatpush1.bf16.msra.mxu0 %v4604
    %7076 = vmatprep.subr.bf16.mxu0 %v4623
    %7077 = vmatpush1.bf16.msra.mxu0 %v4622
    %7078 = vmatprep.subr.bf16.mxu0 %v4641
    %7079 = vmatpush1.bf16.msra.mxu0 %v4640
    %7080 = vmatprep.subr.bf16.mxu0 %v4659
    %7081 = vmatpush1.bf16.msra.mxu0 %v4658
    %7082 = vmatprep.subr.bf16.mxu0 %v4677
    %7083 = vmatpush1.bf16.msra.mxu0 %v4676
    %7084 = vmatprep.subr.bf16.mxu0 %v4695
    %7085 = vmatpush1.bf16.msra.mxu0 %v4694
    %7086 = vmatprep.subr.bf16.mxu0 %v4713
    %7087 = vmatpush1.bf16.msra.mxu0 %v4712
    %7088 = vmatprep.subr.bf16.mxu0 %v4731
    %7089 = vmatpush1.bf16.msra.mxu0 %v4730
    %7090 = vmatprep.subr.bf16.mxu0 %v4749
    %7091 = vmatpush1.bf16.msra.mxu0 %v4748
    %7092 = vmatprep.subr.bf16.mxu0 %v4767
    %7093 = vmatpush1.bf16.msra.mxu0 %v4766
    %7094 = vmatprep.subr.bf16.mxu0 %v4785
    %7095 = vmatpush1.bf16.msra.mxu0 %v4784
    %7096 = vmatprep.subr.bf16.mxu0 %v4803
    %7097 = vmatpush1.bf16.msra.mxu0 %v4802
    %7098 = vmatprep.subr.bf16.mxu0 %v4821
    %7099 = vmatpush1.bf16.msra.mxu0 %v4820
    %7100 = vmatprep.subr.bf16.mxu0 %v4839
    %7101 = vmatpush1.bf16.msra.mxu0 %v4838
    %7102 = vmatprep.mubr.bf16.mxu0 %v524
    %7103 = vmatmul.mubr.bf16.gmra.mrb[0].mxu0 %v523
    %v7104 = vpop.f32.mrb[0].mxu0
    %v7105 = vadd.f32 0.0, %v7104
    %v7106 = vpop.f32.mrb[0].mxu0
    %v7107 = vadd.f32 0.0, %v7106
    %v7108 = vpop.f32.mrb[0].mxu0
    %v7109 = vpop.f32.mrb[0].mxu0
    %7110 = vdwg.mxu0
    %7111 = vmatprep.subr.bf16.mxu0 %v4857
    %7112 = vmatpush1.bf16.msra.mxu0 %v4856
    %7113 = vmatprep.subr.bf16.mxu0 %v4875
    %7114 = vmatpush1.bf16.msra.mxu0 %v4874
    %7115 = vmatprep.subr.bf16.mxu0 %v4893
    %7116 = vmatpush1.bf16.msra.mxu0 %v4892
    %7117 = vmatprep.subr.bf16.mxu0 %v4911
    %7118 = vmatpush1.bf16.msra.mxu0 %v4910
    %7119 = vmatprep.subr.bf16.mxu0 %v4929
    %7120 = vmatpush1.bf16.msra.mxu0 %v4928
    %7121 = vmatprep.subr.bf16.mxu0 %v4947
    %7122 = vmatpush1.bf16.msra.mxu0 %v4946
    %7123 = vmatprep.subr.bf16.mxu0 %v4965
    %7124 = vmatpush1.bf16.msra.mxu0 %v4964
    %7125 = vmatprep.subr.bf16.mxu0 %v4983
    %7126 = vmatpush1.bf16.msra.mxu0 %v4982
    %7127 = vmatprep.subr.bf16.mxu0 %v5001
    %7128 = vmatpush1.bf16.msra.mxu0 %v5000
    %7129 = vmatprep.subr.bf16.mxu0 %v5019
    %7130 = vmatpush1.bf16.msra.mxu0 %v5018
    %7131 = vmatprep.subr.bf16.mxu0 %v5037
    %7132 = vmatpush1.bf16.msra.mxu0 %v5036
    %7133 = vmatprep.subr.bf16.mxu0 %v5055
    %7134 = vmatpush1.bf16.msra.mxu0 %v5054
    %7135 = vmatprep.subr.bf16.mxu0 %v5073
    %7136 = vmatpush1.bf16.msra.mxu0 %v5072
    %7137 = vmatprep.subr.bf16.mxu0 %v5091
    %7138 = vmatpush1.bf16.msra.mxu0 %v5090
    %7139 = vmatprep.subr.bf16.mxu0 %v5109
    %7140 = vmatpush1.bf16.msra.mxu0 %v5108
    %7141 = vmatprep.subr.bf16.mxu0 %v5127
    %7142 = vmatpush1.bf16.msra.mxu0 %v5126
    %7143 = vmatprep.mubr.bf16.mxu0 %v526
    %7144 = vmatmul.mubr.bf16.gmra.mrb[0].mxu0 %v525
    %v7145 = vpop.f32.mrb[0].mxu0
    %v7146 = vadd.f32 %v7105, %v7145
    %v7147 = vpop.f32.mrb[0].mxu0
    %v7148 = vadd.f32 %v7107, %v7147
    %v7149 = vpop.f32.mrb[0].mxu0
    %v7150 = vpop.f32.mrb[0].mxu0
    %7151 = vdwg.mxu0
    %7152 = vmatprep.subr.bf16.mxu0 %v5145
    %7153 = vmatpush1.bf16.msra.mxu0 %v5144
    %7154 = vmatprep.subr.bf16.mxu0 %v5163
    %7155 = vmatpush1.bf16.msra.mxu0 %v5162
    %7156 = vmatprep.subr.bf16.mxu0 %v5181
    %7157 = vmatpush1.bf16.msra.mxu0 %v5180
    %7158 = vmatprep.subr.bf16.mxu0 %v5199
    %7159 = vmatpush1.bf16.msra.mxu0 %v5198
    %7160 = vmatprep.subr.bf16.mxu0 %v5217
    %7161 = vmatpush1.bf16.msra.mxu0 %v5216
    %7162 = vmatprep.subr.bf16.mxu0 %v5235
    %7163 = vmatpush1.bf16.msra.mxu0 %v5234
    %7164 = vmatprep.subr.bf16.mxu0 %v5253
    %7165 = vmatpush1.bf16.msra.mxu0 %v5252
    %7166 = vmatprep.subr.bf16.mxu0 %v5271
    %7167 = vmatpush1.bf16.msra.mxu0 %v5270
    %7168 = vmatprep.subr.bf16.mxu0 %v5289
    %7169 = vmatpush1.bf16.msra.mxu0 %v5288
    %7170 = vmatprep.subr.bf16.mxu0 %v5307
    %7171 = vmatpush1.bf16.msra.mxu0 %v5306
    %7172 = vmatprep.subr.bf16.mxu0 %v5325
    %7173 = vmatpush1.bf16.msra.mxu0 %v5324
    %7174 = vmatprep.subr.bf16.mxu0 %v5343
    %7175 = vmatpush1.bf16.msra.mxu0 %v5342
    %7176 = vmatprep.subr.bf16.mxu0 %v5361
    %7177 = vmatpush1.bf16.msra.mxu0 %v5360
    %7178 = vmatprep.subr.bf16.mxu0 %v5379
    %7179 = vmatpush1.bf16.msra.mxu0 %v5378
    %7180 = vmatprep.subr.bf16.mxu0 %v5397
    %7181 = vmatpush1.bf16.msra.mxu0 %v5396
    %7182 = vmatprep.subr.bf16.mxu0 %v5415
    %7183 = vmatpush1.bf16.msra.mxu0 %v5414
    %7184 = vmatprep.mubr.bf16.mxu0 %v528
    %7185 = vmatmul.mubr.bf16.gmra.mrb[0].mxu0 %v527
    %v7186 = vpop.f32.mrb[0].mxu0
    %v7187 = vadd.f32 %v7146, %v7186
    %v7188 = vpop.f32.mrb[0].mxu0
    %v7189 = vadd.f32 %v7148, %v7188
    %v7190 = vpop.f32.mrb[0].mxu0
    %v7191 = vpop.f32.mrb[0].mxu0
    %7192 = vdwg.mxu0
    %7193 = vmatprep.subr.bf16.mxu0 %v5433
    %7194 = vmatpush1.bf16.msra.mxu0 %v5432
    %7195 = vmatprep.subr.bf16.mxu0 %v5451
    %7196 = vmatpush1.bf16.msra.mxu0 %v5450
    %7197 = vmatprep.subr.bf16.mxu0 %v5469
    %7198 = vmatpush1.bf16.msra.mxu0 %v5468
    %7199 = vmatprep.subr.bf16.mxu0 %v5487
    %7200 = vmatpush1.bf16.msra.mxu0 %v5486
    %7201 = vmatprep.subr.bf16.mxu0 %v5505
    %7202 = vmatpush1.bf16.msra.mxu0 %v5504
    %7203 = vmatprep.subr.bf16.mxu0 %v5523
    %7204 = vmatpush1.bf16.msra.mxu0 %v5522
    %7205 = vmatprep.subr.bf16.mxu0 %v5541
    %7206 = vmatpush1.bf16.msra.mxu0 %v5540
    %7207 = vmatprep.subr.bf16.mxu0 %v5559
    %7208 = vmatpush1.bf16.msra.mxu0 %v5558
    %7209 = vmatprep.subr.bf16.mxu0 0
    %7210 = vmatpush1.bf16.msra.mxu0 0
    %7211 = vmatprep.subr.bf16.mxu0 0
    %7212 = vmatpush1.bf16.msra.mxu0 0
    %7213 = vmatprep.subr.bf16.mxu0 0
    %7214 = vmatpush1.bf16.msra.mxu0 0
    %7215 = vmatprep.subr.bf16.mxu0 0
    %7216 = vmatpush1.bf16.msra.mxu0 0
    %7217 = vmatprep.subr.bf16.mxu0 0
    %7218 = vmatpush1.bf16.msra.mxu0 0
    %7219 = vmatprep.subr.bf16.mxu0 0
    %7220 = vmatpush1.bf16.msra.mxu0 0
    %7221 = vmatprep.subr.bf16.mxu0 0
    %7222 = vmatpush1.bf16.msra.mxu0 0
    %7223 = vmatprep.subr.bf16.mxu0 0
    %7224 = vmatpush1.bf16.msra.mxu0 0
    %7225 = vmatprep.mubr.bf16.mxu0 0
    %7226 = vmatmul.mubr.bf16.gmra.mrb[0].mxu0 %v529
    %v7227 = vpop.f32.mrb[0].mxu0
    %v7228 = vadd.f32 %v7187, %v7227
    %v7229 = vpop.f32.mrb[0].mxu0
    %v7230 = vadd.f32 %v7189, %v7229
    %v7231 = vpop.f32.mrb[0].mxu0
    %v7232 = vpop.f32.mrb[0].mxu0
    %7233 = vdwg.mxu0
    %7234 = vmatprep.subr.bf16.mxu0 %v4571
    %7235 = vmatpush1.bf16.msra.mxu0 %v4570
    %7236 = vmatprep.subr.bf16.mxu0 %v4589
    %7237 = vmatpush1.bf16.msra.mxu0 %v4588
    %7238 = vmatprep.subr.bf16.mxu0 %v4607
    %7239 = vmatpush1.bf16.msra.mxu0 %v4606
    %7240 = vmatprep.subr.bf16.mxu0 %v4625
    %7241 = vmatpush1.bf16.msra.mxu0 %v4624
    %7242 = vmatprep.subr.bf16.mxu0 %v4643
    %7243 = vmatpush1.bf16.msra.mxu0 %v4642
    %7244 = vmatprep.subr.bf16.mxu0 %v4661
    %7245 = vmatpush1.bf16.msra.mxu0 %v4660
    %7246 = vmatprep.subr.bf16.mxu0 %v4679
    %7247 = vmatpush1.bf16.msra.mxu0 %v4678
    %7248 = vmatprep.subr.bf16.mxu0 %v4697
    %7249 = vmatpush1.bf16.msra.mxu0 %v4696
    %7250 = vmatprep.subr.bf16.mxu0 %v4715
    %7251 = vmatpush1.bf16.msra.mxu0 %v4714
    %7252 = vmatprep.subr.bf16.mxu0 %v4733
    %7253 = vmatpush1.bf16.msra.mxu0 %v4732
    %7254 = vmatprep.subr.bf16.mxu0 %v4751
    %7255 = vmatpush1.bf16.msra.mxu0 %v4750
    %7256 = vmatprep.subr.bf16.mxu0 %v4769
    %7257 = vmatpush1.bf16.msra.mxu0 %v4768
    %7258 = vmatprep.subr.bf16.mxu0 %v4787
    %7259 = vmatpush1.bf16.msra.mxu0 %v4786
    %7260 = vmatprep.subr.bf16.mxu0 %v4805
    %7261 = vmatpush1.bf16.msra.mxu0 %v4804
    %7262 = vmatprep.subr.bf16.mxu0 %v4823
    %7263 = vmatpush1.bf16.msra.mxu0 %v4822
    %7264 = vmatprep.subr.bf16.mxu0 %v4841
    %7265 = vmatpush1.bf16.msra.mxu0 %v4840
    %7266 = vmatprep.mubr.bf16.mxu0 %v524
    %7267 = vmatmul.mubr.bf16.gmra.mrb[0].mxu0 %v523
    %v7268 = vpop.f32.mrb[0].mxu0
    %v7269 = vadd.f32 0.0, %v7268
    %v7270 = vpop.f32.mrb[0].mxu0
    %v7271 = vadd.f32 0.0, %v7270
    %v7272 = vpop.f32.mrb[0].mxu0
    %v7273 = vpop.f32.mrb[0].mxu0
    %7274 = vdwg.mxu0
    %7275 = vmatprep.subr.bf16.mxu0 %v4859
    %7276 = vmatpush1.bf16.msra.mxu0 %v4858
    %7277 = vmatprep.subr.bf16.mxu0 %v4877
    %7278 = vmatpush1.bf16.msra.mxu0 %v4876
    %7279 = vmatprep.subr.bf16.mxu0 %v4895
    %7280 = vmatpush1.bf16.msra.mxu0 %v4894
    %7281 = vmatprep.subr.bf16.mxu0 %v4913
    %7282 = vmatpush1.bf16.msra.mxu0 %v4912
    %7283 = vmatprep.subr.bf16.mxu0 %v4931
    %7284 = vmatpush1.bf16.msra.mxu0 %v4930
    %7285 = vmatprep.subr.bf16.mxu0 %v4949
    %7286 = vmatpush1.bf16.msra.mxu0 %v4948
    %7287 = vmatprep.subr.bf16.mxu0 %v4967
    %7288 = vmatpush1.bf16.msra.mxu0 %v4966
    %7289 = vmatprep.subr.bf16.mxu0 %v4985
    %7290 = vmatpush1.bf16.msra.mxu0 %v4984
    %7291 = vmatprep.subr.bf16.mxu0 %v5003
    %7292 = vmatpush1.bf16.msra.mxu0 %v5002
    %7293 = vmatprep.subr.bf16.mxu0 %v5021
    %7294 = vmatpush1.bf16.msra.mxu0 %v5020
    %7295 = vmatprep.subr.bf16.mxu0 %v5039
    %7296 = vmatpush1.bf16.msra.mxu0 %v5038
    %7297 = vmatprep.subr.bf16.mxu0 %v5057
    %7298 = vmatpush1.bf16.msra.mxu0 %v5056
    %7299 = vmatprep.subr.bf16.mxu0 %v5075
    %7300 = vmatpush1.bf16.msra.mxu0 %v5074
    %7301 = vmatprep.subr.bf16.mxu0 %v5093
    %7302 = vmatpush1.bf16.msra.mxu0 %v5092
    %7303 = vmatprep.subr.bf16.mxu0 %v5111
    %7304 = vmatpush1.bf16.msra.mxu0 %v5110
    %7305 = vmatprep.subr.bf16.mxu0 %v5129
    %7306 = vmatpush1.bf16.msra.mxu0 %v5128
    %7307 = vmatprep.mubr.bf16.mxu0 %v526
    %7308 = vmatmul.mubr.bf16.gmra.mrb[0].mxu0 %v525
    %v7309 = vpop.f32.mrb[0].mxu0
    %v7310 = vadd.f32 %v7269, %v7309
    %v7311 = vpop.f32.mrb[0].mxu0
    %v7312 = vadd.f32 %v7271, %v7311
    %v7313 = vpop.f32.mrb[0].mxu0
    %v7314 = vpop.f32.mrb[0].mxu0
    %7315 = vdwg.mxu0
    %7316 = vmatprep.subr.bf16.mxu0 %v5147
    %7317 = vmatpush1.bf16.msra.mxu0 %v5146
    %7318 = vmatprep.subr.bf16.mxu0 %v5165
    %7319 = vmatpush1.bf16.msra.mxu0 %v5164
    %7320 = vmatprep.subr.bf16.mxu0 %v5183
    %7321 = vmatpush1.bf16.msra.mxu0 %v5182
    %7322 = vmatprep.subr.bf16.mxu0 %v5201
    %7323 = vmatpush1.bf16.msra.mxu0 %v5200
    %7324 = vmatprep.subr.bf16.mxu0 %v5219
    %7325 = vmatpush1.bf16.msra.mxu0 %v5218
    %7326 = vmatprep.subr.bf16.mxu0 %v5237
    %7327 = vmatpush1.bf16.msra.mxu0 %v5236
    %7328 = vmatprep.subr.bf16.mxu0 %v5255
    %7329 = vmatpush1.bf16.msra.mxu0 %v5254
    %7330 = vmatprep.subr.bf16.mxu0 %v5273
    %7331 = vmatpush1.bf16.msra.mxu0 %v5272
    %7332 = vmatprep.subr.bf16.mxu0 %v5291
    %7333 = vmatpush1.bf16.msra.mxu0 %v5290
    %7334 = vmatprep.subr.bf16.mxu0 %v5309
    %7335 = vmatpush1.bf16.msra.mxu0 %v5308
    %7336 = vmatprep.subr.bf16.mxu0 %v5327
    %7337 = vmatpush1.bf16.msra.mxu0 %v5326
    %7338 = vmatprep.subr.bf16.mxu0 %v5345
    %7339 = vmatpush1.bf16.msra.mxu0 %v5344
    %7340 = vmatprep.subr.bf16.mxu0 %v5363
    %7341 = vmatpush1.bf16.msra.mxu0 %v5362
    %7342 = vmatprep.subr.bf16.mxu0 %v5381
    %7343 = vmatpush1.bf16.msra.mxu0 %v5380
    %7344 = vmatprep.subr.bf16.mxu0 %v5399
    %7345 = vmatpush1.bf16.msra.mxu0 %v5398
    %7346 = vmatprep.subr.bf16.mxu0 %v5417
    %7347 = vmatpush1.bf16.msra.mxu0 %v5416
    %7348 = vmatprep.mubr.bf16.mxu0 %v528
    %7349 = vmatmul.mubr.bf16.gmra.mrb[0].mxu0 %v527
    %v7350 = vpop.f32.mrb[0].mxu0
    %v7351 = vadd.f32 %v7310, %v7350
    %v7352 = vpop.f32.mrb[0].mxu0
    %v7353 = vadd.f32 %v7312, %v7352
    %v7354 = vpop.f32.mrb[0].mxu0
    %v7355 = vpop.f32.mrb[0].mxu0
    %7356 = vdwg.mxu0
    %7357 = vmatprep.subr.bf16.mxu0 %v5435
    %7358 = vmatpush1.bf16.msra.mxu0 %v5434
    %7359 = vmatprep.subr.bf16.mxu0 %v5453
    %7360 = vmatpush1.bf16.msra.mxu0 %v5452
    %7361 = vmatprep.subr.bf16.mxu0 %v5471
    %7362 = vmatpush1.bf16.msra.mxu0 %v5470
    %7363 = vmatprep.subr.bf16.mxu0 %v5489
    %7364 = vmatpush1.bf16.msra.mxu0 %v5488
    %7365 = vmatprep.subr.bf16.mxu0 %v5507
    %7366 = vmatpush1.bf16.msra.mxu0 %v5506
    %7367 = vmatprep.subr.bf16.mxu0 %v5525
    %7368 = vmatpush1.bf16.msra.mxu0 %v5524
    %7369 = vmatprep.subr.bf16.mxu0 %v5543
    %7370 = vmatpush1.bf16.msra.mxu0 %v5542
    %7371 = vmatprep.subr.bf16.mxu0 %v5561
    %7372 = vmatpush1.bf16.msra.mxu0 %v5560
    %7373 = vmatprep.subr.bf16.mxu0 0
    %7374 = vmatpush1.bf16.msra.mxu0 0
    %7375 = vmatprep.subr.bf16.mxu0 0
    %7376 = vmatpush1.bf16.msra.mxu0 0
    %7377 = vmatprep.subr.bf16.mxu0 0
    %7378 = vmatpush1.bf16.msra.mxu0 0
    %7379 = vmatprep.subr.bf16.mxu0 0
    %7380 = vmatpush1.bf16.msra.mxu0 0
    %7381 = vmatprep.subr.bf16.mxu0 0
    %7382 = vmatpush1.bf16.msra.mxu0 0
    %7383 = vmatprep.subr.bf16.mxu0 0
    %7384 = vmatpush1.bf16.msra.mxu0 0
    %7385 = vmatprep.subr.bf16.mxu0 0
    %7386 = vmatpush1.bf16.msra.mxu0 0
    %7387 = vmatprep.subr.bf16.mxu0 0
    %7388 = vmatpush1.bf16.msra.mxu0 0
    %7389 = vmatprep.mubr.bf16.mxu0 0
    %7390 = vmatmul.mubr.bf16.gmra.mrb[0].mxu0 %v529
    %v7391 = vpop.f32.mrb[0].mxu0
    %v7392 = vadd.f32 %v7351, %v7391
    %v7393 = vpop.f32.mrb[0].mxu0
    %v7394 = vadd.f32 %v7353, %v7393
    %v7395 = vpop.f32.mrb[0].mxu0
    %v7396 = vpop.f32.mrb[0].mxu0
    %7397 = vdwg.mxu0
    %7398 = vmatprep.subr.bf16.mxu0 %v4573
    %7399 = vmatpush1.bf16.msra.mxu0 %v4572
    %7400 = vmatprep.subr.bf16.mxu0 %v4591
    %7401 = vmatpush1.bf16.msra.mxu0 %v4590
    %7402 = vmatprep.subr.bf16.mxu0 %v4609
    %7403 = vmatpush1.bf16.msra.mxu0 %v4608
    %7404 = vmatprep.subr.bf16.mxu0 %v4627
    %7405 = vmatpush1.bf16.msra.mxu0 %v4626
    %7406 = vmatprep.subr.bf16.mxu0 %v4645
    %7407 = vmatpush1.bf16.msra.mxu0 %v4644
    %7408 = vmatprep.subr.bf16.mxu0 %v4663
    %7409 = vmatpush1.bf16.msra.mxu0 %v4662
    %7410 = vmatprep.subr.bf16.mxu0 %v4681
    %7411 = vmatpush1.bf16.msra.mxu0 %v4680
    %7412 = vmatprep.subr.bf16.mxu0 %v4699
    %7413 = vmatpush1.bf16.msra.mxu0 %v4698
    %7414 = vmatprep.subr.bf16.mxu0 %v4717
    %7415 = vmatpush1.bf16.msra.mxu0 %v4716
    %7416 = vmatprep.subr.bf16.mxu0 %v4735
    %7417 = vmatpush1.bf16.msra.mxu0 %v4734
    %7418 = vmatprep.subr.bf16.mxu0 %v4753
    %7419 = vmatpush1.bf16.msra.mxu0 %v4752
    %7420 = vmatprep.subr.bf16.mxu0 %v4771
    %7421 = vmatpush1.bf16.msra.mxu0 %v4770
    %7422 = vmatprep.subr.bf16.mxu0 %v4789
    %7423 = vmatpush1.bf16.msra.mxu0 %v4788
    %7424 = vmatprep.subr.bf16.mxu0 %v4807
    %7425 = vmatpush1.bf16.msra.mxu0 %v4806
    %7426 = vmatprep.subr.bf16.mxu0 %v4825
    %7427 = vmatpush1.bf16.msra.mxu0 %v4824
    %7428 = vmatprep.subr.bf16.mxu0 %v4843
    %7429 = vmatpush1.bf16.msra.mxu0 %v4842
    %7430 = vmatprep.mubr.bf16.mxu0 %v524
    %7431 = vmatmul.mubr.bf16.gmra.mrb[0].mxu0 %v523
    %v7432 = vpop.f32.mrb[0].mxu0
    %v7433 = vadd.f32 0.0, %v7432
    %v7434 = vpop.f32.mrb[0].mxu0
    %v7435 = vadd.f32 0.0, %v7434
    %v7436 = vpop.f32.mrb[0].mxu0
    %v7437 = vpop.f32.mrb[0].mxu0
    %7438 = vdwg.mxu0
    %7439 = vmatprep.subr.bf16.mxu0 %v4861
    %7440 = vmatpush1.bf16.msra.mxu0 %v4860
    %7441 = vmatprep.subr.bf16.mxu0 %v4879
    %7442 = vmatpush1.bf16.msra.mxu0 %v4878
    %7443 = vmatprep.subr.bf16.mxu0 %v4897
    %7444 = vmatpush1.bf16.msra.mxu0 %v4896
    %7445 = vmatprep.subr.bf16.mxu0 %v4915
    %7446 = vmatpush1.bf16.msra.mxu0 %v4914
    %7447 = vmatprep.subr.bf16.mxu0 %v4933
    %7448 = vmatpush1.bf16.msra.mxu0 %v4932
    %7449 = vmatprep.subr.bf16.mxu0 %v4951
    %7450 = vmatpush1.bf16.msra.mxu0 %v4950
    %7451 = vmatprep.subr.bf16.mxu0 %v4969
    %7452 = vmatpush1.bf16.msra.mxu0 %v4968
    %7453 = vmatprep.subr.bf16.mxu0 %v4987
    %7454 = vmatpush1.bf16.msra.mxu0 %v4986
    %7455 = vmatprep.subr.bf16.mxu0 %v5005
    %7456 = vmatpush1.bf16.msra.mxu0 %v5004
    %7457 = vmatprep.subr.bf16.mxu0 %v5023
    %7458 = vmatpush1.bf16.msra.mxu0 %v5022
    %7459 = vmatprep.subr.bf16.mxu0 %v5041
    %7460 = vmatpush1.bf16.msra.mxu0 %v5040
    %7461 = vmatprep.subr.bf16.mxu0 %v5059
    %7462 = vmatpush1.bf16.msra.mxu0 %v5058
    %7463 = vmatprep.subr.bf16.mxu0 %v5077
    %7464 = vmatpush1.bf16.msra.mxu0 %v5076
    %7465 = vmatprep.subr.bf16.mxu0 %v5095
    %7466 = vmatpush1.bf16.msra.mxu0 %v5094
    %7467 = vmatprep.subr.bf16.mxu0 %v5113
    %7468 = vmatpush1.bf16.msra.mxu0 %v5112
    %7469 = vmatprep.subr.bf16.mxu0 %v5131
    %7470 = vmatpush1.bf16.msra.mxu0 %v5130
    %7471 = vmatprep.mubr.bf16.mxu0 %v526
    %7472 = vmatmul.mubr.bf16.gmra.mrb[0].mxu0 %v525
    %v7473 = vpop.f32.mrb[0].mxu0
    %v7474 = vadd.f32 %v7433, %v7473
    %v7475 = vpop.f32.mrb[0].mxu0
    %v7476 = vadd.f32 %v7435, %v7475
    %v7477 = vpop.f32.mrb[0].mxu0
    %v7478 = vpop.f32.mrb[0].mxu0
    %7479 = vdwg.mxu0
    %7480 = vmatprep.subr.bf16.mxu0 %v5149
    %7481 = vmatpush1.bf16.msra.mxu0 %v5148
    %7482 = vmatprep.subr.bf16.mxu0 %v5167
    %7483 = vmatpush1.bf16.msra.mxu0 %v5166
    %7484 = vmatprep.subr.bf16.mxu0 %v5185
    %7485 = vmatpush1.bf16.msra.mxu0 %v5184
    %7486 = vmatprep.subr.bf16.mxu0 %v5203
    %7487 = vmatpush1.bf16.msra.mxu0 %v5202
    %7488 = vmatprep.subr.bf16.mxu0 %v5221
    %7489 = vmatpush1.bf16.msra.mxu0 %v5220
    %7490 = vmatprep.subr.bf16.mxu0 %v5239
    %7491 = vmatpush1.bf16.msra.mxu0 %v5238
    %7492 = vmatprep.subr.bf16.mxu0 %v5257
    %7493 = vmatpush1.bf16.msra.mxu0 %v5256
    %7494 = vmatprep.subr.bf16.mxu0 %v5275
    %7495 = vmatpush1.bf16.msra.mxu0 %v5274
    %7496 = vmatprep.subr.bf16.mxu0 %v5293
    %7497 = vmatpush1.bf16.msra.mxu0 %v5292
    %7498 = vmatprep.subr.bf16.mxu0 %v5311
    %7499 = vmatpush1.bf16.msra.mxu0 %v5310
    %7500 = vmatprep.subr.bf16.mxu0 %v5329
    %7501 = vmatpush1.bf16.msra.mxu0 %v5328
    %7502 = vmatprep.subr.bf16.mxu0 %v5347
    %7503 = vmatpush1.bf16.msra.mxu0 %v5346
    %7504 = vmatprep.subr.bf16.mxu0 %v5365
    %7505 = vmatpush1.bf16.msra.mxu0 %v5364
    %7506 = vmatprep.subr.bf16.mxu0 %v5383
    %7507 = vmatpush1.bf16.msra.mxu0 %v5382
    %7508 = vmatprep.subr.bf16.mxu0 %v5401
    %7509 = vmatpush1.bf16.msra.mxu0 %v5400
    %7510 = vmatprep.subr.bf16.mxu0 %v5419
    %7511 = vmatpush1.bf16.msra.mxu0 %v5418
    %7512 = vmatprep.mubr.bf16.mxu0 %v528
    %7513 = vmatmul.mubr.bf16.gmra.mrb[0].mxu0 %v527
    %v7514 = vpop.f32.mrb[0].mxu0
    %v7515 = vadd.f32 %v7474, %v7514
    %v7516 = vpop.f32.mrb[0].mxu0
    %v7517 = vadd.f32 %v7476, %v7516
    %v7518 = vpop.f32.mrb[0].mxu0
    %v7519 = vpop.f32.mrb[0].mxu0
    %7520 = vdwg.mxu0
    %7521 = vmatprep.subr.bf16.mxu0 %v5437
    %7522 = vmatpush1.bf16.msra.mxu0 %v5436
    %7523 = vmatprep.subr.bf16.mxu0 %v5455
    %7524 = vmatpush1.bf16.msra.mxu0 %v5454
    %7525 = vmatprep.subr.bf16.mxu0 %v5473
    %7526 = vmatpush1.bf16.msra.mxu0 %v5472
    %7527 = vmatprep.subr.bf16.mxu0 %v5491
    %7528 = vmatpush1.bf16.msra.mxu0 %v5490
    %7529 = vmatprep.subr.bf16.mxu0 %v5509
    %7530 = vmatpush1.bf16.msra.mxu0 %v5508
    %7531 = vmatprep.subr.bf16.mxu0 %v5527
    %7532 = vmatpush1.bf16.msra.mxu0 %v5526
    %7533 = vmatprep.subr.bf16.mxu0 %v5545
    %7534 = vmatpush1.bf16.msra.mxu0 %v5544
    %7535 = vmatprep.subr.bf16.mxu0 %v5563
    %7536 = vmatpush1.bf16.msra.mxu0 %v5562
    %7537 = vmatprep.subr.bf16.mxu0 0
    %7538 = vmatpush1.bf16.msra.mxu0 0
    %7539 = vmatprep.subr.bf16.mxu0 0
    %7540 = vmatpush1.bf16.msra.mxu0 0
    %7541 = vmatprep.subr.bf16.mxu0 0
    %7542 = vmatpush1.bf16.msra.mxu0 0
    %7543 = vmatprep.subr.bf16.mxu0 0
    %7544 = vmatpush1.bf16.msra.mxu0 0
    %7545 = vmatprep.subr.bf16.mxu0 0
    %7546 = vmatpush1.bf16.msra.mxu0 0
    %7547 = vmatprep.subr.bf16.mxu0 0
    %7548 = vmatpush1.bf16.msra.mxu0 0
    %7549 = vmatprep.subr.bf16.mxu0 0
    %7550 = vmatpush1.bf16.msra.mxu0 0
    %7551 = vmatprep.subr.bf16.mxu0 0
    %7552 = vmatpush1.bf16.msra.mxu0 0
    %7553 = vmatprep.mubr.bf16.mxu0 0
    %7554 = vmatmul.mubr.bf16.gmra.mrb[0].mxu0 %v529
    %v7555 = vpop.f32.mrb[0].mxu0
    %v7556 = vadd.f32 %v7515, %v7555
    %v7557 = vpop.f32.mrb[0].mxu0
    %v7558 = vadd.f32 %v7517, %v7557
    %v7559 = vpop.f32.mrb[0].mxu0
    %v7560 = vpop.f32.mrb[0].mxu0
    %7561 = vdwg.mxu0
    %7562 = vmatprep.subr.bf16.mxu0 %v4575
    %7563 = vmatpush1.bf16.msra.mxu0 %v4574
    %7564 = vmatprep.subr.bf16.mxu0 %v4593
    %7565 = vmatpush1.bf16.msra.mxu0 %v4592
    %7566 = vmatprep.subr.bf16.mxu0 %v4611
    %7567 = vmatpush1.bf16.msra.mxu0 %v4610
    %7568 = vmatprep.subr.bf16.mxu0 %v4629
    %7569 = vmatpush1.bf16.msra.mxu0 %v4628
    %7570 = vmatprep.subr.bf16.mxu0 %v4647
    %7571 = vmatpush1.bf16.msra.mxu0 %v4646
    %7572 = vmatprep.subr.bf16.mxu0 %v4665
    %7573 = vmatpush1.bf16.msra.mxu0 %v4664
    %7574 = vmatprep.subr.bf16.mxu0 %v4683
    %7575 = vmatpush1.bf16.msra.mxu0 %v4682
    %7576 = vmatprep.subr.bf16.mxu0 %v4701
    %7577 = vmatpush1.bf16.msra.mxu0 %v4700
    %7578 = vmatprep.subr.bf16.mxu0 %v4719
    %7579 = vmatpush1.bf16.msra.mxu0 %v4718
    %7580 = vmatprep.subr.bf16.mxu0 %v4737
    %7581 = vmatpush1.bf16.msra.mxu0 %v4736
    %7582 = vmatprep.subr.bf16.mxu0 %v4755
    %7583 = vmatpush1.bf16.msra.mxu0 %v4754
    %7584 = vmatprep.subr.bf16.mxu0 %v4773
    %7585 = vmatpush1.bf16.msra.mxu0 %v4772
    %7586 = vmatprep.subr.bf16.mxu0 %v4791
    %7587 = vmatpush1.bf16.msra.mxu0 %v4790
    %7588 = vmatprep.subr.bf16.mxu0 %v4809
    %7589 = vmatpush1.bf16.msra.mxu0 %v4808
    %7590 = vmatprep.subr.bf16.mxu0 %v4827
    %7591 = vmatpush1.bf16.msra.mxu0 %v4826
    %7592 = vmatprep.subr.bf16.mxu0 %v4845
    %7593 = vmatpush1.bf16.msra.mxu0 %v4844
    %7594 = vmatprep.mubr.bf16.mxu0 %v524
    %7595 = vmatmul.mubr.bf16.gmra.mrb[0].mxu0 %v523
    %v7596 = vpop.f32.mrb[0].mxu0
    %v7597 = vadd.f32 0.0, %v7596
    %v7598 = vpop.f32.mrb[0].mxu0
    %v7599 = vadd.f32 0.0, %v7598
    %v7600 = vpop.f32.mrb[0].mxu0
    %v7601 = vpop.f32.mrb[0].mxu0
    %7602 = vdwg.mxu0
    %7603 = vmatprep.subr.bf16.mxu0 %v4863
    %7604 = vmatpush1.bf16.msra.mxu0 %v4862
    %7605 = vmatprep.subr.bf16.mxu0 %v4881
    %7606 = vmatpush1.bf16.msra.mxu0 %v4880
    %7607 = vmatprep.subr.bf16.mxu0 %v4899
    %7608 = vmatpush1.bf16.msra.mxu0 %v4898
    %7609 = vmatprep.subr.bf16.mxu0 %v4917
    %7610 = vmatpush1.bf16.msra.mxu0 %v4916
    %7611 = vmatprep.subr.bf16.mxu0 %v4935
    %7612 = vmatpush1.bf16.msra.mxu0 %v4934
    %7613 = vmatprep.subr.bf16.mxu0 %v4953
    %7614 = vmatpush1.bf16.msra.mxu0 %v4952
    %7615 = vmatprep.subr.bf16.mxu0 %v4971
    %7616 = vmatpush1.bf16.msra.mxu0 %v4970
    %7617 = vmatprep.subr.bf16.mxu0 %v4989
    %7618 = vmatpush1.bf16.msra.mxu0 %v4988
    %7619 = vmatprep.subr.bf16.mxu0 %v5007
    %7620 = vmatpush1.bf16.msra.mxu0 %v5006
    %7621 = vmatprep.subr.bf16.mxu0 %v5025
    %7622 = vmatpush1.bf16.msra.mxu0 %v5024
    %7623 = vmatprep.subr.bf16.mxu0 %v5043
    %7624 = vmatpush1.bf16.msra.mxu0 %v5042
    %7625 = vmatprep.subr.bf16.mxu0 %v5061
    %7626 = vmatpush1.bf16.msra.mxu0 %v5060
    %7627 = vmatprep.subr.bf16.mxu0 %v5079
    %7628 = vmatpush1.bf16.msra.mxu0 %v5078
    %7629 = vmatprep.subr.bf16.mxu0 %v5097
    %7630 = vmatpush1.bf16.msra.mxu0 %v5096
    %7631 = vmatprep.subr.bf16.mxu0 %v5115
    %7632 = vmatpush1.bf16.msra.mxu0 %v5114
    %7633 = vmatprep.subr.bf16.mxu0 %v5133
    %7634 = vmatpush1.bf16.msra.mxu0 %v5132
    %7635 = vmatprep.mubr.bf16.mxu0 %v526
    %7636 = vmatmul.mubr.bf16.gmra.mrb[0].mxu0 %v525
    %v7637 = vpop.f32.mrb[0].mxu0
    %v7638 = vadd.f32 %v7597, %v7637
    %v7639 = vpop.f32.mrb[0].mxu0
    %v7640 = vadd.f32 %v7599, %v7639
    %v7641 = vpop.f32.mrb[0].mxu0
    %v7642 = vpop.f32.mrb[0].mxu0
    %7643 = vdwg.mxu0
    %7644 = vmatprep.subr.bf16.mxu0 %v5151
    %7645 = vmatpush1.bf16.msra.mxu0 %v5150
    %7646 = vmatprep.subr.bf16.mxu0 %v5169
    %7647 = vmatpush1.bf16.msra.mxu0 %v5168
    %7648 = vmatprep.subr.bf16.mxu0 %v5187
    %7649 = vmatpush1.bf16.msra.mxu0 %v5186
    %7650 = vmatprep.subr.bf16.mxu0 %v5205
    %7651 = vmatpush1.bf16.msra.mxu0 %v5204
    %7652 = vmatprep.subr.bf16.mxu0 %v5223
    %7653 = vmatpush1.bf16.msra.mxu0 %v5222
    %7654 = vmatprep.subr.bf16.mxu0 %v5241
    %7655 = vmatpush1.bf16.msra.mxu0 %v5240
    %7656 = vmatprep.subr.bf16.mxu0 %v5259
    %7657 = vmatpush1.bf16.msra.mxu0 %v5258
    %7658 = vmatprep.subr.bf16.mxu0 %v5277
    %7659 = vmatpush1.bf16.msra.mxu0 %v5276
    %7660 = vmatprep.subr.bf16.mxu0 %v5295
    %7661 = vmatpush1.bf16.msra.mxu0 %v5294
    %7662 = vmatprep.subr.bf16.mxu0 %v5313
    %7663 = vmatpush1.bf16.msra.mxu0 %v5312
    %7664 = vmatprep.subr.bf16.mxu0 %v5331
    %7665 = vmatpush1.bf16.msra.mxu0 %v5330
    %7666 = vmatprep.subr.bf16.mxu0 %v5349
    %7667 = vmatpush1.bf16.msra.mxu0 %v5348
    %7668 = vmatprep.subr.bf16.mxu0 %v5367
    %7669 = vmatpush1.bf16.msra.mxu0 %v5366
    %7670 = vmatprep.subr.bf16.mxu0 %v5385
    %7671 = vmatpush1.bf16.msra.mxu0 %v5384
    %7672 = vmatprep.subr.bf16.mxu0 %v5403
    %7673 = vmatpush1.bf16.msra.mxu0 %v5402
    %7674 = vmatprep.subr.bf16.mxu0 %v5421
    %7675 = vmatpush1.bf16.msra.mxu0 %v5420
    %7676 = vmatprep.mubr.bf16.mxu0 %v528
    %7677 = vmatmul.mubr.bf16.gmra.mrb[0].mxu0 %v527
    %v7678 = vpop.f32.mrb[0].mxu0
    %v7679 = vadd.f32 %v7638, %v7678
    %v7680 = vpop.f32.mrb[0].mxu0
    %v7681 = vadd.f32 %v7640, %v7680
    %v7682 = vpop.f32.mrb[0].mxu0
    %v7683 = vpop.f32.mrb[0].mxu0
    %7684 = vdwg.mxu0
    %7685 = vmatprep.subr.bf16.mxu0 %v5439
    %7686 = vmatpush1.bf16.msra.mxu0 %v5438
    %7687 = vmatprep.subr.bf16.mxu0 %v5457
    %7688 = vmatpush1.bf16.msra.mxu0 %v5456
    %7689 = vmatprep.subr.bf16.mxu0 %v5475
    %7690 = vmatpush1.bf16.msra.mxu0 %v5474
    %7691 = vmatprep.subr.bf16.mxu0 %v5493
    %7692 = vmatpush1.bf16.msra.mxu0 %v5492
    %7693 = vmatprep.subr.bf16.mxu0 %v5511
    %7694 = vmatpush1.bf16.msra.mxu0 %v5510
    %7695 = vmatprep.subr.bf16.mxu0 %v5529
    %7696 = vmatpush1.bf16.msra.mxu0 %v5528
    %7697 = vmatprep.subr.bf16.mxu0 %v5547
    %7698 = vmatpush1.bf16.msra.mxu0 %v5546
    %7699 = vmatprep.subr.bf16.mxu0 %v5565
    %7700 = vmatpush1.bf16.msra.mxu0 %v5564
    %7701 = vmatprep.subr.bf16.mxu0 0
    %7702 = vmatpush1.bf16.msra.mxu0 0
    %7703 = vmatprep.subr.bf16.mxu0 0
    %7704 = vmatpush1.bf16.msra.mxu0 0
    %7705 = vmatprep.subr.bf16.mxu0 0
    %7706 = vmatpush1.bf16.msra.mxu0 0
    %7707 = vmatprep.subr.bf16.mxu0 0
    %7708 = vmatpush1.bf16.msra.mxu0 0
    %7709 = vmatprep.subr.bf16.mxu0 0
    %7710 = vmatpush1.bf16.msra.mxu0 0
    %7711 = vmatprep.subr.bf16.mxu0 0
    %7712 = vmatpush1.bf16.msra.mxu0 0
    %7713 = vmatprep.subr.bf16.mxu0 0
    %7714 = vmatpush1.bf16.msra.mxu0 0
    %7715 = vmatprep.subr.bf16.mxu0 0
    %7716 = vmatpush1.bf16.msra.mxu0 0
    %7717 = vmatprep.mubr.bf16.mxu0 0
    %7718 = vmatmul.mubr.bf16.gmra.mrb[0].mxu0 %v529
    %v7719 = vpop.f32.mrb[0].mxu0
    %v7720 = vadd.f32 %v7679, %v7719
    %v7721 = vpop.f32.mrb[0].mxu0
    %v7722 = vadd.f32 %v7681, %v7721
    %v7723 = vpop.f32.mrb[0].mxu0
    %v7724 = vpop.f32.mrb[0].mxu0
    %7725 = vdwg.mxu0
    %7726 = vmatprep.subr.bf16.mxu0 %v4577
    %7727 = vmatpush1.bf16.msra.mxu0 %v4576
    %7728 = vmatprep.subr.bf16.mxu0 %v4595
    %7729 = vmatpush1.bf16.msra.mxu0 %v4594
    %7730 = vmatprep.subr.bf16.mxu0 %v4613
    %7731 = vmatpush1.bf16.msra.mxu0 %v4612
    %7732 = vmatprep.subr.bf16.mxu0 %v4631
    %7733 = vmatpush1.bf16.msra.mxu0 %v4630
    %7734 = vmatprep.subr.bf16.mxu0 %v4649
    %7735 = vmatpush1.bf16.msra.mxu0 %v4648
    %7736 = vmatprep.subr.bf16.mxu0 %v4667
    %7737 = vmatpush1.bf16.msra.mxu0 %v4666
    %7738 = vmatprep.subr.bf16.mxu0 %v4685
    %7739 = vmatpush1.bf16.msra.mxu0 %v4684
    %7740 = vmatprep.subr.bf16.mxu0 %v4703
    %7741 = vmatpush1.bf16.msra.mxu0 %v4702
    %7742 = vmatprep.subr.bf16.mxu0 %v4721
    %7743 = vmatpush1.bf16.msra.mxu0 %v4720
    %7744 = vmatprep.subr.bf16.mxu0 %v4739
    %7745 = vmatpush1.bf16.msra.mxu0 %v4738
    %7746 = vmatprep.subr.bf16.mxu0 %v4757
    %7747 = vmatpush1.bf16.msra.mxu0 %v4756
    %7748 = vmatprep.subr.bf16.mxu0 %v4775
    %7749 = vmatpush1.bf16.msra.mxu0 %v4774
    %7750 = vmatprep.subr.bf16.mxu0 %v4793
    %7751 = vmatpush1.bf16.msra.mxu0 %v4792
    %7752 = vmatprep.subr.bf16.mxu0 %v4811
    %7753 = vmatpush1.bf16.msra.mxu0 %v4810
    %7754 = vmatprep.subr.bf16.mxu0 %v4829
    %7755 = vmatpush1.bf16.msra.mxu0 %v4828
    %7756 = vmatprep.subr.bf16.mxu0 %v4847
    %7757 = vmatpush1.bf16.msra.mxu0 %v4846
    %7758 = vmatprep.mubr.bf16.mxu0 %v524
    %7759 = vmatmul.mubr.bf16.gmra.mrb[0].mxu0 %v523
    %v7760 = vpop.f32.mrb[0].mxu0
    %v7761 = vadd.f32 0.0, %v7760
    %v7762 = vpop.f32.mrb[0].mxu0
    %v7763 = vadd.f32 0.0, %v7762
    %v7764 = vpop.f32.mrb[0].mxu0
    %v7765 = vpop.f32.mrb[0].mxu0
    %7766 = vdwg.mxu0
    %7767 = vmatprep.subr.bf16.mxu0 %v4865
    %7768 = vmatpush1.bf16.msra.mxu0 %v4864
    %7769 = vmatprep.subr.bf16.mxu0 %v4883
    %7770 = vmatpush1.bf16.msra.mxu0 %v4882
    %7771 = vmatprep.subr.bf16.mxu0 %v4901
    %7772 = vmatpush1.bf16.msra.mxu0 %v4900
    %7773 = vmatprep.subr.bf16.mxu0 %v4919
    %7774 = vmatpush1.bf16.msra.mxu0 %v4918
    %7775 = vmatprep.subr.bf16.mxu0 %v4937
    %7776 = vmatpush1.bf16.msra.mxu0 %v4936
    %7777 = vmatprep.subr.bf16.mxu0 %v4955
    %7778 = vmatpush1.bf16.msra.mxu0 %v4954
    %7779 = vmatprep.subr.bf16.mxu0 %v4973
    %7780 = vmatpush1.bf16.msra.mxu0 %v4972
    %7781 = vmatprep.subr.bf16.mxu0 %v4991
    %7782 = vmatpush1.bf16.msra.mxu0 %v4990
    %7783 = vmatprep.subr.bf16.mxu0 %v5009
    %7784 = vmatpush1.bf16.msra.mxu0 %v5008
    %7785 = vmatprep.subr.bf16.mxu0 %v5027
    %7786 = vmatpush1.bf16.msra.mxu0 %v5026
    %7787 = vmatprep.subr.bf16.mxu0 %v5045
    %7788 = vmatpush1.bf16.msra.mxu0 %v5044
    %7789 = vmatprep.subr.bf16.mxu0 %v5063
    %7790 = vmatpush1.bf16.msra.mxu0 %v5062
    %7791 = vmatprep.subr.bf16.mxu0 %v5081
    %7792 = vmatpush1.bf16.msra.mxu0 %v5080
    %7793 = vmatprep.subr.bf16.mxu0 %v5099
    %7794 = vmatpush1.bf16.msra.mxu0 %v5098
    %7795 = vmatprep.subr.bf16.mxu0 %v5117
    %7796 = vmatpush1.bf16.msra.mxu0 %v5116
    %7797 = vmatprep.subr.bf16.mxu0 %v5135
    %7798 = vmatpush1.bf16.msra.mxu0 %v5134
    %7799 = vmatprep.mubr.bf16.mxu0 %v526
    %7800 = vmatmul.mubr.bf16.gmra.mrb[0].mxu0 %v525
    %v7801 = vpop.f32.mrb[0].mxu0
    %v7802 = vadd.f32 %v7761, %v7801
    %v7803 = vpop.f32.mrb[0].mxu0
    %v7804 = vadd.f32 %v7763, %v7803
    %v7805 = vpop.f32.mrb[0].mxu0
    %v7806 = vpop.f32.mrb[0].mxu0
    %7807 = vdwg.mxu0
    %7808 = vmatprep.subr.bf16.mxu0 %v5153
    %7809 = vmatpush1.bf16.msra.mxu0 %v5152
    %7810 = vmatprep.subr.bf16.mxu0 %v5171
    %7811 = vmatpush1.bf16.msra.mxu0 %v5170
    %7812 = vmatprep.subr.bf16.mxu0 %v5189
    %7813 = vmatpush1.bf16.msra.mxu0 %v5188
    %7814 = vmatprep.subr.bf16.mxu0 %v5207
    %7815 = vmatpush1.bf16.msra.mxu0 %v5206
    %7816 = vmatprep.subr.bf16.mxu0 %v5225
    %7817 = vmatpush1.bf16.msra.mxu0 %v5224
    %7818 = vmatprep.subr.bf16.mxu0 %v5243
    %7819 = vmatpush1.bf16.msra.mxu0 %v5242
    %7820 = vmatprep.subr.bf16.mxu0 %v5261
    %7821 = vmatpush1.bf16.msra.mxu0 %v5260
    %7822 = vmatprep.subr.bf16.mxu0 %v5279
    %7823 = vmatpush1.bf16.msra.mxu0 %v5278
    %7824 = vmatprep.subr.bf16.mxu0 %v5297
    %7825 = vmatpush1.bf16.msra.mxu0 %v5296
    %7826 = vmatprep.subr.bf16.mxu0 %v5315
    %7827 = vmatpush1.bf16.msra.mxu0 %v5314
    %7828 = vmatprep.subr.bf16.mxu0 %v5333
    %7829 = vmatpush1.bf16.msra.mxu0 %v5332
    %7830 = vmatprep.subr.bf16.mxu0 %v5351
    %7831 = vmatpush1.bf16.msra.mxu0 %v5350
    %7832 = vmatprep.subr.bf16.mxu0 %v5369
    %7833 = vmatpush1.bf16.msra.mxu0 %v5368
    %7834 = vmatprep.subr.bf16.mxu0 %v5387
    %7835 = vmatpush1.bf16.msra.mxu0 %v5386
    %7836 = vmatprep.subr.bf16.mxu0 %v5405
    %7837 = vmatpush1.bf16.msra.mxu0 %v5404
    %7838 = vmatprep.subr.bf16.mxu0 %v5423
    %7839 = vmatpush1.bf16.msra.mxu0 %v5422
    %7840 = vmatprep.mubr.bf16.mxu0 %v528
    %7841 = vmatmul.mubr.bf16.gmra.mrb[0].mxu0 %v527
    %v7842 = vpop.f32.mrb[0].mxu0
    %v7843 = vadd.f32 %v7802, %v7842
    %v7844 = vpop.f32.mrb[0].mxu0
    %v7845 = vadd.f32 %v7804, %v7844
    %v7846 = vpop.f32.mrb[0].mxu0
    %v7847 = vpop.f32.mrb[0].mxu0
    %7848 = vdwg.mxu0
    %7849 = vmatprep.subr.bf16.mxu0 %v5441
    %7850 = vmatpush1.bf16.msra.mxu0 %v5440
    %7851 = vmatprep.subr.bf16.mxu0 %v5459
    %7852 = vmatpush1.bf16.msra.mxu0 %v5458
    %7853 = vmatprep.subr.bf16.mxu0 %v5477
    %7854 = vmatpush1.bf16.msra.mxu0 %v5476
    %7855 = vmatprep.subr.bf16.mxu0 %v5495
    %7856 = vmatpush1.bf16.msra.mxu0 %v5494
    %7857 = vmatprep.subr.bf16.mxu0 %v5513
    %7858 = vmatpush1.bf16.msra.mxu0 %v5512
    %7859 = vmatprep.subr.bf16.mxu0 %v5531
    %7860 = vmatpush1.bf16.msra.mxu0 %v5530
    %7861 = vmatprep.subr.bf16.mxu0 %v5549
    %7862 = vmatpush1.bf16.msra.mxu0 %v5548
    %7863 = vmatprep.subr.bf16.mxu0 %v5567
    %7864 = vmatpush1.bf16.msra.mxu0 %v5566
    %7865 = vmatprep.subr.bf16.mxu0 0
    %7866 = vmatpush1.bf16.msra.mxu0 0
    %7867 = vmatprep.subr.bf16.mxu0 0
    %7868 = vmatpush1.bf16.msra.mxu0 0
    %7869 = vmatprep.subr.bf16.mxu0 0
    %7870 = vmatpush1.bf16.msra.mxu0 0
    %7871 = vmatprep.subr.bf16.mxu0 0
    %7872 = vmatpush1.bf16.msra.mxu0 0
    %7873 = vmatprep.subr.bf16.mxu0 0
    %7874 = vmatpush1.bf16.msra.mxu0 0
    %7875 = vmatprep.subr.bf16.mxu0 0
    %7876 = vmatpush1.bf16.msra.mxu0 0
    %7877 = vmatprep.subr.bf16.mxu0 0
    %7878 = vmatpush1.bf16.msra.mxu0 0
    %7879 = vmatprep.subr.bf16.mxu0 0
    %7880 = vmatpush1.bf16.msra.mxu0 0
    %7881 = vmatprep.mubr.bf16.mxu0 0
    %7882 = vmatmul.mubr.bf16.gmra.mrb[0].mxu0 %v529
    %v7883 = vpop.f32.mrb[0].mxu0
    %v7884 = vadd.f32 %v7843, %v7883
    %v7885 = vpop.f32.mrb[0].mxu0
    %v7886 = vadd.f32 %v7845, %v7885
    %v7887 = vpop.f32.mrb[0].mxu0
    %v7888 = vpop.f32.mrb[0].mxu0
    %7889 = vdwg.mxu0
    %7890 = vmatprep.subr.bf16.mxu0 %v4579
    %7891 = vmatpush1.bf16.msra.mxu0 %v4578
    %7892 = vmatprep.subr.bf16.mxu0 %v4597
    %7893 = vmatpush1.bf16.msra.mxu0 %v4596
    %7894 = vmatprep.subr.bf16.mxu0 %v4615
    %7895 = vmatpush1.bf16.msra.mxu0 %v4614
    %7896 = vmatprep.subr.bf16.mxu0 %v4633
    %7897 = vmatpush1.bf16.msra.mxu0 %v4632
    %7898 = vmatprep.subr.bf16.mxu0 %v4651
    %7899 = vmatpush1.bf16.msra.mxu0 %v4650
    %7900 = vmatprep.subr.bf16.mxu0 %v4669
    %7901 = vmatpush1.bf16.msra.mxu0 %v4668
    %7902 = vmatprep.subr.bf16.mxu0 %v4687
    %7903 = vmatpush1.bf16.msra.mxu0 %v4686
    %7904 = vmatprep.subr.bf16.mxu0 %v4705
    %7905 = vmatpush1.bf16.msra.mxu0 %v4704
    %7906 = vmatprep.subr.bf16.mxu0 %v4723
    %7907 = vmatpush1.bf16.msra.mxu0 %v4722
    %7908 = vmatprep.subr.bf16.mxu0 %v4741
    %7909 = vmatpush1.bf16.msra.mxu0 %v4740
    %7910 = vmatprep.subr.bf16.mxu0 %v4759
    %7911 = vmatpush1.bf16.msra.mxu0 %v4758
    %7912 = vmatprep.subr.bf16.mxu0 %v4777
    %7913 = vmatpush1.bf16.msra.mxu0 %v4776
    %7914 = vmatprep.subr.bf16.mxu0 %v4795
    %7915 = vmatpush1.bf16.msra.mxu0 %v4794
    %7916 = vmatprep.subr.bf16.mxu0 %v4813
    %7917 = vmatpush1.bf16.msra.mxu0 %v4812
    %7918 = vmatprep.subr.bf16.mxu0 %v4831
    %7919 = vmatpush1.bf16.msra.mxu0 %v4830
    %7920 = vmatprep.subr.bf16.mxu0 %v4849
    %7921 = vmatpush1.bf16.msra.mxu0 %v4848
    %7922 = vmatprep.mubr.bf16.mxu0 %v524
    %7923 = vmatmul.mubr.bf16.gmra.mrb[0].mxu0 %v523
    %v7924 = vpop.f32.mrb[0].mxu0
    %v7925 = vadd.f32 0.0, %v7924
    %v7926 = vpop.f32.mrb[0].mxu0
    %v7927 = vadd.f32 0.0, %v7926
    %v7928 = vpop.f32.mrb[0].mxu0
    %v7929 = vpop.f32.mrb[0].mxu0
    %7930 = vdwg.mxu0
    %7931 = vmatprep.subr.bf16.mxu0 %v4867
    %7932 = vmatpush1.bf16.msra.mxu0 %v4866
    %7933 = vmatprep.subr.bf16.mxu0 %v4885
    %7934 = vmatpush1.bf16.msra.mxu0 %v4884
    %7935 = vmatprep.subr.bf16.mxu0 %v4903
    %7936 = vmatpush1.bf16.msra.mxu0 %v4902
    %7937 = vmatprep.subr.bf16.mxu0 %v4921
    %7938 = vmatpush1.bf16.msra.mxu0 %v4920
    %7939 = vmatprep.subr.bf16.mxu0 %v4939
    %7940 = vmatpush1.bf16.msra.mxu0 %v4938
    %7941 = vmatprep.subr.bf16.mxu0 %v4957
    %7942 = vmatpush1.bf16.msra.mxu0 %v4956
    %7943 = vmatprep.subr.bf16.mxu0 %v4975
    %7944 = vmatpush1.bf16.msra.mxu0 %v4974
    %7945 = vmatprep.subr.bf16.mxu0 %v4993
    %7946 = vmatpush1.bf16.msra.mxu0 %v4992
    %7947 = vmatprep.subr.bf16.mxu0 %v5011
    %7948 = vmatpush1.bf16.msra.mxu0 %v5010
    %7949 = vmatprep.subr.bf16.mxu0 %v5029
    %7950 = vmatpush1.bf16.msra.mxu0 %v5028
    %7951 = vmatprep.subr.bf16.mxu0 %v5047
    %7952 = vmatpush1.bf16.msra.mxu0 %v5046
    %7953 = vmatprep.subr.bf16.mxu0 %v5065
    %7954 = vmatpush1.bf16.msra.mxu0 %v5064
    %7955 = vmatprep.subr.bf16.mxu0 %v5083
    %7956 = vmatpush1.bf16.msra.mxu0 %v5082
    %7957 = vmatprep.subr.bf16.mxu0 %v5101
    %7958 = vmatpush1.bf16.msra.mxu0 %v5100
    %7959 = vmatprep.subr.bf16.mxu0 %v5119
    %7960 = vmatpush1.bf16.msra.mxu0 %v5118
    %7961 = vmatprep.subr.bf16.mxu0 %v5137
    %7962 = vmatpush1.bf16.msra.mxu0 %v5136
    %7963 = vmatprep.mubr.bf16.mxu0 %v526
    %7964 = vmatmul.mubr.bf16.gmra.mrb[0].mxu0 %v525
    %v7965 = vpop.f32.mrb[0].mxu0
    %v7966 = vadd.f32 %v7925, %v7965
    %v7967 = vpop.f32.mrb[0].mxu0
    %v7968 = vadd.f32 %v7927, %v7967
    %v7969 = vpop.f32.mrb[0].mxu0
    %v7970 = vpop.f32.mrb[0].mxu0
    %7971 = vdwg.mxu0
    %7972 = vmatprep.subr.bf16.mxu0 %v5155
    %7973 = vmatpush1.bf16.msra.mxu0 %v5154
    %7974 = vmatprep.subr.bf16.mxu0 %v5173
    %7975 = vmatpush1.bf16.msra.mxu0 %v5172
    %7976 = vmatprep.subr.bf16.mxu0 %v5191
    %7977 = vmatpush1.bf16.msra.mxu0 %v5190
    %7978 = vmatprep.subr.bf16.mxu0 %v5209
    %7979 = vmatpush1.bf16.msra.mxu0 %v5208
    %7980 = vmatprep.subr.bf16.mxu0 %v5227
    %7981 = vmatpush1.bf16.msra.mxu0 %v5226
    %7982 = vmatprep.subr.bf16.mxu0 %v5245
    %7983 = vmatpush1.bf16.msra.mxu0 %v5244
    %7984 = vmatprep.subr.bf16.mxu0 %v5263
    %7985 = vmatpush1.bf16.msra.mxu0 %v5262
    %7986 = vmatprep.subr.bf16.mxu0 %v5281
    %7987 = vmatpush1.bf16.msra.mxu0 %v5280
    %7988 = vmatprep.subr.bf16.mxu0 %v5299
    %7989 = vmatpush1.bf16.msra.mxu0 %v5298
    %7990 = vmatprep.subr.bf16.mxu0 %v5317
    %7991 = vmatpush1.bf16.msra.mxu0 %v5316
    %7992 = vmatprep.subr.bf16.mxu0 %v5335
    %7993 = vmatpush1.bf16.msra.mxu0 %v5334
    %7994 = vmatprep.subr.bf16.mxu0 %v5353
    %7995 = vmatpush1.bf16.msra.mxu0 %v5352
    %7996 = vmatprep.subr.bf16.mxu0 %v5371
    %7997 = vmatpush1.bf16.msra.mxu0 %v5370
    %7998 = vmatprep.subr.bf16.mxu0 %v5389
    %7999 = vmatpush1.bf16.msra.mxu0 %v5388
    %8000 = vmatprep.subr.bf16.mxu0 %v5407
    %8001 = vmatpush1.bf16.msra.mxu0 %v5406
    %8002 = vmatprep.subr.bf16.mxu0 %v5425
    %8003 = vmatpush1.bf16.msra.mxu0 %v5424
    %8004 = vmatprep.mubr.bf16.mxu0 %v528
    %8005 = vmatmul.mubr.bf16.gmra.mrb[0].mxu0 %v527
    %v8006 = vpop.f32.mrb[0].mxu0
    %v8007 = vadd.f32 %v7966, %v8006
    %v8008 = vpop.f32.mrb[0].mxu0
    %v8009 = vadd.f32 %v7968, %v8008
    %v8010 = vpop.f32.mrb[0].mxu0
    %v8011 = vpop.f32.mrb[0].mxu0
    %8012 = vdwg.mxu0
    %8013 = vmatprep.subr.bf16.mxu0 %v5443
    %8014 = vmatpush1.bf16.msra.mxu0 %v5442
    %8015 = vmatprep.subr.bf16.mxu0 %v5461
    %8016 = vmatpush1.bf16.msra.mxu0 %v5460
    %8017 = vmatprep.subr.bf16.mxu0 %v5479
    %8018 = vmatpush1.bf16.msra.mxu0 %v5478
    %8019 = vmatprep.subr.bf16.mxu0 %v5497
    %8020 = vmatpush1.bf16.msra.mxu0 %v5496
    %8021 = vmatprep.subr.bf16.mxu0 %v5515
    %8022 = vmatpush1.bf16.msra.mxu0 %v5514
    %8023 = vmatprep.subr.bf16.mxu0 %v5533
    %8024 = vmatpush1.bf16.msra.mxu0 %v5532
    %8025 = vmatprep.subr.bf16.mxu0 %v5551
    %8026 = vmatpush1.bf16.msra.mxu0 %v5550
    %8027 = vmatprep.subr.bf16.mxu0 %v5569
    %8028 = vmatpush1.bf16.msra.mxu0 %v5568
    %8029 = vmatprep.subr.bf16.mxu0 0
    %8030 = vmatpush1.bf16.msra.mxu0 0
    %8031 = vmatprep.subr.bf16.mxu0 0
    %8032 = vmatpush1.bf16.msra.mxu0 0
    %8033 = vmatprep.subr.bf16.mxu0 0
    %8034 = vmatpush1.bf16.msra.mxu0 0
    %8035 = vmatprep.subr.bf16.mxu0 0
    %8036 = vmatpush1.bf16.msra.mxu0 0
    %8037 = vmatprep.subr.bf16.mxu0 0
    %8038 = vmatpush1.bf16.msra.mxu0 0
    %8039 = vmatprep.subr.bf16.mxu0 0
    %8040 = vmatpush1.bf16.msra.mxu0 0
    %8041 = vmatprep.subr.bf16.mxu0 0
    %8042 = vmatpush1.bf16.msra.mxu0 0
    %8043 = vmatprep.subr.bf16.mxu0 0
    %8044 = vmatpush1.bf16.msra.mxu0 0
    %8045 = vmatprep.mubr.bf16.mxu0 0
    %8046 = vmatmul.mubr.bf16.gmra.mrb[0].mxu0 %v529
    %v8047 = vpop.f32.mrb[0].mxu0
    %v8048 = vadd.f32 %v8007, %v8047
    %v8049 = vpop.f32.mrb[0].mxu0
    %v8050 = vadd.f32 %v8009, %v8049
    %v8051 = vpop.f32.mrb[0].mxu0
    %v8052 = vpop.f32.mrb[0].mxu0
    %8053 = vdwg.mxu0
    %v8054 = vpack.c.bf16 %v6900, %v6736
    %v8055 = vpack.c.bf16 %v6902, %v6738
    %v8056 = vpack.c.bf16 %v7228, %v7064
    %v8057 = vpack.c.bf16 %v7230, %v7066
    %v8058 = vpack.c.bf16 %v7556, %v7392
    %v8059 = vpack.c.bf16 %v7558, %v7394
    %v8060 = vpack.c.bf16 %v7884, %v7720
    %v8061 = vpack.c.bf16 %v7886, %v7722
    %v8062 = vpack.c.bf16 %v8048, %v8048
    %v8063 = vpack.c.bf16 %v8050, %v8050
    %v8064 = vld [vmem:[#allocation7] sm:$0xf]
    %v8065 = vld [vmem:[#allocation7 + $0x4] sm:$0xf]
    %v8068 = vunpack.c.l.b16 %v8064
    %v8069 = vunpack.c.l.b16 %v8065
    %v8070 = vpack.c.b16 %v8069, %v8068
    %vm8071 = vcmask 588800
    %v8073 = vsel %vm8071, %v8070, 0
    %vm8075 = vcmask 1043456
    %v8077 = vsel %vm8075, %v8062, 0
    %v8080 = vsel %vm8075, %v8063, 0
    %8082 = vmatprep.subr.bf16.mxu0 %v8055
    %8083 = vmatpush1.bf16.msra.mxu0 %v8054
    %8084 = vmatprep.subr.bf16.mxu0 %v8057
    %8085 = vmatpush1.bf16.msra.mxu0 %v8056
    %8086 = vmatprep.subr.bf16.mxu0 %v8059
    %8087 = vmatpush1.bf16.msra.mxu0 %v8058
    %8088 = vmatprep.subr.bf16.mxu0 %v8061
    %8089 = vmatpush1.bf16.msra.mxu0 %v8060
    %8090 = vmatprep.subr.bf16.mxu0 %v8080
    %8091 = vmatpush1.bf16.msra.mxu0 %v8077
    %8092 = vmatprep.subr.bf16.mxu0 0
    %8093 = vmatpush1.bf16.msra.mxu0 0
    %8094 = vmatprep.subr.bf16.mxu0 0
    %8095 = vmatpush1.bf16.msra.mxu0 0
    %8096 = vmatprep.subr.bf16.mxu0 0
    %8097 = vmatpush1.bf16.msra.mxu0 0
    %8098 = vmatprep.subr.bf16.mxu0 0
    %8099 = vmatpush1.bf16.msra.mxu0 0
    %8100 = vmatprep.subr.bf16.mxu0 0
    %8101 = vmatpush1.bf16.msra.mxu0 0
    %8102 = vmatprep.subr.bf16.mxu0 0
    %8103 = vmatpush1.bf16.msra.mxu0 0
    %8104 = vmatprep.subr.bf16.mxu0 0
    %8105 = vmatpush1.bf16.msra.mxu0 0
    %8106 = vmatprep.subr.bf16.mxu0 0
    %8107 = vmatpush1.bf16.msra.mxu0 0
    %8108 = vmatprep.subr.bf16.mxu0 0
    %8109 = vmatpush1.bf16.msra.mxu0 0
    %8110 = vmatprep.subr.bf16.mxu0 0
    %8111 = vmatpush1.bf16.msra.mxu0 0
    %8112 = vmatprep.subr.bf16.mxu0 0
    %8113 = vmatpush1.bf16.msra.mxu0 0
    %8114 = vmatprep.mubr.bf16.mxu0 0
    %8115 = vmatmul.mubr.bf16.gmra.mrb[0].mxu0 %v8073
    %v8116 = vpop.f32.mrb[0].mxu0
    %v8117 = vadd.f32 0.0, %v8116
    %v8118 = vpop.f32.mrb[0].mxu0
    %v8119 = vadd.f32 0.0, %v8118
    %v8120 = vpop.f32.mrb[0].mxu0
    %v8121 = vadd.f32 0.0, %v8120
    %v8122 = vpop.f32.mrb[0].mxu0
    %v8123 = vadd.f32 0.0, %v8122
    %8124 = vdwg.mxu0
    %v8125 = vld [vmem:[%s6] sm:$0xff]
    %v8126 = vld [vmem:[%s6 + $0x8] sm:$0xff]
    %v8127 = vld [vmem:[%s7] sm:$0xff]
    %v8128 = vld [vmem:[%s7 + $0x8] sm:$0xff]
    %v8129 = vadd.f32 %v8117, %v8119
    %8130 = vadd.xlane.f32.xlu0 %v8129
    %v8131 = vpop.xlane.xlu0 %8130
    %v8132 = vadd.f32 %v8121, %v8123
    %8133 = vadd.xlane.f32.xlu0 %v8132
    %v8134 = vpop.xlane.xlu0 %8133
    %v8135 = vmul.f32 %v8131, 0.0069444445
    %v8136 = vmul.f32 %v8134, 0.0069444445
    %v8137 = vmul.f32 %v8117, %v8117
    %v8138 = vmul.f32 %v8119, %v8119
    %v8139 = vmul.f32 %v8121, %v8121
    %v8140 = vmul.f32 %v8123, %v8123
    %v8141 = vadd.f32 %v8137, %v8138
    %8142 = vadd.xlane.f32.xlu0 %v8141
    %v8143 = vpop.xlane.xlu0 %8142
    %v8144 = vadd.f32 %v8139, %v8140
    %8145 = vadd.xlane.f32.xlu0 %v8144
    %v8146 = vpop.xlane.xlu0 %8145
    %v8147 = vmul.f32 %v8143, 0.0069444445
    %v8148 = vmul.f32 %v8146, 0.0069444445
    %v8149 = vmul.f32 %v8135, %v8135
    %v8150 = vmul.f32 %v8136, %v8136
    %v8151 = vsub.f32 %v8147, %v8149
    %v8152 = vsub.f32 %v8148, %v8150
    %v8153 = vmax.f32 %v8151, 0.0
    %v8154 = vmax.f32 %v8152, 0.0
    %v8155 = vsub.f32 %v8117, %v8135
    %v8156 = vsub.f32 %v8119, %v8135
    %v8157 = vsub.f32 %v8121, %v8136
    %v8158 = vsub.f32 %v8123, %v8136
    %v8159 = vadd.f32 %v8153, 1e-05
    %v8160 = vadd.f32 %v8154, 1e-05
    %v8161 = vrsqrt.pop %v8159
    %v8162 = vrsqrt.pop %v8160
    %v8163 = vmul.f32 %v8155, %v8161
    %v8164 = vmul.f32 %v8156, %v8161
    %v8165 = vmul.f32 %v8157, %v8162
    %v8166 = vmul.f32 %v8158, %v8162
    %8168 = vset.pattern.permute.xlu0 0
    %8169 = vperm.xlu0 %8168, %v8125
    %v8170 = vpop.permute.xlu0 %8169
    %8173 = vset.pattern.permute.xlu0 0
    %8174 = vperm.xlu0 %8173, %v8126
    %v8175 = vpop.permute.xlu0 %8174
    %v8177 = vmul.f32 %v8163, %v8170
    %v8178 = vmul.f32 %v8164, %v8170
    %v8179 = vmul.f32 %v8165, %v8175
    %v8180 = vmul.f32 %v8166, %v8175
    %8182 = vset.pattern.permute.xlu0 0
    %8183 = vperm.xlu0 %8182, %v8127
    %v8184 = vpop.permute.xlu0 %8183
    %8187 = vset.pattern.permute.xlu0 0
    %8188 = vperm.xlu0 %8187, %v8128
    %v8189 = vpop.permute.xlu0 %8188
    %v8191 = vadd.f32 %v8177, %v8184
    %v8192 = vadd.f32 %v8178, %v8184
    %v8193 = vadd.f32 %v8179, %v8189
    %v8194 = vadd.f32 %v8180, %v8189
    %v8195 = vmax.f32 %v8191, 0.0
    %v8196 = vmax.f32 %v8192, 0.0
    %v8197 = vmax.f32 %v8193, 0.0
    %v8198 = vmax.f32 %v8194, 0.0
    %v8199 = vpack.c.bf16 %v8197, %v8195
    %v8200 = vpack.c.bf16 %v8198, %v8196
    %v8201 = vld [vmem:[#allocation11] sm:$0xff]
    %v8202 = vld [vmem:[#allocation11 + $0x8] sm:$0xff]
    %v8203 = vld [vmem:[#allocation11 + $0x10] sm:$0xff]
    %v8204 = vld [vmem:[#allocation11 + $0x18] sm:$0xff]
    %v8205 = vld [vmem:[#allocation11 + $0x20] sm:$0xf]
    %v8206 = vld [vmem:[#allocation11 + $0x24] sm:$0xff]
    %v8207 = vld [vmem:[#allocation11 + $0x2c] sm:$0xff]
    %v8208 = vld [vmem:[#allocation11 + $0x34] sm:$0xff]
    %v8209 = vld [vmem:[#allocation11 + $0x3c] sm:$0xff]
    %v8210 = vld [vmem:[#allocation11 + $0x44] sm:$0xf]
    %v8211 = vld [vmem:[#allocation11 + $0x48] sm:$0xff]
    %v8212 = vld [vmem:[#allocation11 + $0x50] sm:$0xff]
    %v8213 = vld [vmem:[#allocation11 + $0x58] sm:$0xff]
    %v8214 = vld [vmem:[#allocation11 + $0x60] sm:$0xff]
    %v8215 = vld [vmem:[#allocation11 + $0x68] sm:$0xf]
    %v8216 = vld [vmem:[#allocation11 + $0x6c] sm:$0xff]
    %v8217 = vld [vmem:[#allocation11 + $0x74] sm:$0xff]
    %v8218 = vld [vmem:[#allocation11 + $0x7c] sm:$0xff]
    %v8219 = vld [vmem:[#allocation11 + $0x84] sm:$0xff]
    %v8220 = vld [vmem:[#allocation11 + $0x8c] sm:$0xf]
    %v8221 = vld [vmem:[#allocation11 + $0x90] sm:$0xff]
    %v8222 = vld [vmem:[#allocation11 + $0x98] sm:$0xff]
    %v8223 = vld [vmem:[#allocation11 + $0xa0] sm:$0xff]
    %v8224 = vld [vmem:[#allocation11 + $0xa8] sm:$0xff]
    %v8225 = vld [vmem:[#allocation11 + $0xb0] sm:$0xf]
    %v8226 = vld [vmem:[#allocation11 + $0xb4] sm:$0xff]
    %v8227 = vld [vmem:[#allocation11 + $0xbc] sm:$0xff]
    %v8228 = vld [vmem:[#allocation11 + $0xc4] sm:$0xff]
    %v8229 = vld [vmem:[#allocation11 + $0xcc] sm:$0xff]
    %v8230 = vld [vmem:[#allocation11 + $0xd4] sm:$0xf]
    %v8231 = vld [vmem:[#allocation11 + $0xd8] sm:$0xff]
    %v8232 = vld [vmem:[#allocation11 + $0xe0] sm:$0xff]
    %v8233 = vld [vmem:[#allocation11 + $0xe8] sm:$0xff]
    %v8234 = vld [vmem:[#allocation11 + $0xf0] sm:$0xff]
    %v8235 = vld [vmem:[#allocation11 + $0xf8] sm:$0xf]
    %v8236 = vld [vmem:[#allocation11 + $0xfc] sm:$0xff]
    %v8237 = vld [vmem:[#allocation11 + $0x104] sm:$0xff]
    %v8238 = vld [vmem:[#allocation11 + $0x10c] sm:$0xff]
    %v8239 = vld [vmem:[#allocation11 + $0x114] sm:$0xff]
    %v8240 = vld [vmem:[#allocation11 + $0x11c] sm:$0xf]
    %v8241 = vld [vmem:[#allocation11 + $0x120] sm:$0xff]
    %v8242 = vld [vmem:[#allocation11 + $0x128] sm:$0xff]
    %v8243 = vld [vmem:[#allocation11 + $0x130] sm:$0xff]
    %v8244 = vld [vmem:[#allocation11 + $0x138] sm:$0xff]
    %v8245 = vld [vmem:[#allocation11 + $0x140] sm:$0xf]
    %v8246 = vld [vmem:[#allocation11 + $0x144] sm:$0xff]
    %v8247 = vld [vmem:[#allocation11 + $0x14c] sm:$0xff]
    %v8248 = vld [vmem:[#allocation11 + $0x154] sm:$0xff]
    %v8249 = vld [vmem:[#allocation11 + $0x15c] sm:$0xff]
    %v8250 = vld [vmem:[#allocation11 + $0x164] sm:$0xf]
    %v8251 = vld [vmem:[#allocation11 + $0x168] sm:$0xff]
    %v8252 = vld [vmem:[#allocation11 + $0x170] sm:$0xff]
    %v8253 = vld [vmem:[#allocation11 + $0x178] sm:$0xff]
    %v8254 = vld [vmem:[#allocation11 + $0x180] sm:$0xff]
    %v8255 = vld [vmem:[#allocation11 + $0x188] sm:$0xf]
    %v8256 = vld [vmem:[#allocation11 + $0x18c] sm:$0xff]
    %v8257 = vld [vmem:[#allocation11 + $0x194] sm:$0xff]
    %v8258 = vld [vmem:[#allocation11 + $0x19c] sm:$0xff]
    %v8259 = vld [vmem:[#allocation11 + $0x1a4] sm:$0xff]
    %v8260 = vld [vmem:[#allocation11 + $0x1ac] sm:$0xf]
    %v8261 = vld [vmem:[#allocation11 + $0x1b0] sm:$0xff]
    %v8262 = vld [vmem:[#allocation11 + $0x1b8] sm:$0xff]
    %v8263 = vld [vmem:[#allocation11 + $0x1c0] sm:$0xff]
    %v8264 = vld [vmem:[#allocation11 + $0x1c8] sm:$0xff]
    %v8265 = vld [vmem:[#allocation11 + $0x1d0] sm:$0xf]
    %v8266 = vld [vmem:[#allocation11 + $0x1d4] sm:$0xff]
    %v8267 = vld [vmem:[#allocation11 + $0x1dc] sm:$0xff]
    %v8268 = vld [vmem:[#allocation11 + $0x1e4] sm:$0xff]
    %v8269 = vld [vmem:[#allocation11 + $0x1ec] sm:$0xff]
    %v8270 = vld [vmem:[#allocation11 + $0x1f4] sm:$0xf]
    %v8271 = vld [vmem:[#allocation11 + $0x1f8] sm:$0xff]
    %v8272 = vld [vmem:[#allocation11 + $0x200] sm:$0xff]
    %v8273 = vld [vmem:[#allocation11 + $0x208] sm:$0xff]
    %v8274 = vld [vmem:[#allocation11 + $0x210] sm:$0xff]
    %v8275 = vld [vmem:[#allocation11 + $0x218] sm:$0xf]
    %v8276 = vld [vmem:[#allocation11 + $0x21c] sm:$0xff]
    %v8277 = vld [vmem:[#allocation11 + $0x224] sm:$0xff]
    %v8278 = vld [vmem:[#allocation11 + $0x22c] sm:$0xff]
    %v8279 = vld [vmem:[#allocation11 + $0x234] sm:$0xff]
    %v8280 = vld [vmem:[#allocation11 + $0x23c] sm:$0xf]
    %v8281 = vld [vmem:[#allocation11 + $0x240] sm:$0xff]
    %v8282 = vld [vmem:[#allocation11 + $0x248] sm:$0xff]
    %v8283 = vld [vmem:[#allocation11 + $0x250] sm:$0xff]
    %v8284 = vld [vmem:[#allocation11 + $0x258] sm:$0xff]
    %v8285 = vld [vmem:[#allocation11 + $0x260] sm:$0xf]
    %v8286 = vld [vmem:[#allocation11 + $0x264] sm:$0xff]
    %v8287 = vld [vmem:[#allocation11 + $0x26c] sm:$0xff]
    %v8288 = vld [vmem:[#allocation11 + $0x274] sm:$0xff]
    %v8289 = vld [vmem:[#allocation11 + $0x27c] sm:$0xff]
    %v8290 = vld [vmem:[#allocation11 + $0x284] sm:$0xf]
    %v8291 = vld [vmem:[#allocation11 + $0x288] sm:$0xff]
    %v8292 = vld [vmem:[#allocation11 + $0x290] sm:$0xff]
    %v8293 = vld [vmem:[#allocation11 + $0x298] sm:$0xff]
    %v8294 = vld [vmem:[#allocation11 + $0x2a0] sm:$0xff]
    %v8295 = vld [vmem:[#allocation11 + $0x2a8] sm:$0xf]
    %v8296 = vld [vmem:[#allocation11 + $0x2ac] sm:$0xff]
    %v8297 = vld [vmem:[#allocation11 + $0x2b4] sm:$0xff]
    %v8298 = vld [vmem:[#allocation11 + $0x2bc] sm:$0xff]
    %v8299 = vld [vmem:[#allocation11 + $0x2c4] sm:$0xff]
    %v8300 = vld [vmem:[#allocation11 + $0x2cc] sm:$0xf]
    %v8301 = vld [vmem:[#allocation11 + $0x2d0] sm:$0xff]
    %v8302 = vld [vmem:[#allocation11 + $0x2d8] sm:$0xff]
    %v8303 = vld [vmem:[#allocation11 + $0x2e0] sm:$0xff]
    %v8304 = vld [vmem:[#allocation11 + $0x2e8] sm:$0xff]
    %v8305 = vld [vmem:[#allocation11 + $0x2f0] sm:$0xf]
    %v8306 = vld [vmem:[#allocation11 + $0x2f4] sm:$0xff]
    %v8307 = vld [vmem:[#allocation11 + $0x2fc] sm:$0xff]
    %v8308 = vld [vmem:[#allocation11 + $0x304] sm:$0xff]
    %v8309 = vld [vmem:[#allocation11 + $0x30c] sm:$0xff]
    %v8310 = vld [vmem:[#allocation11 + $0x314] sm:$0xf]
    %v8311 = vld [vmem:[#allocation11 + $0x318] sm:$0xff]
    %v8312 = vld [vmem:[#allocation11 + $0x320] sm:$0xff]
    %v8313 = vld [vmem:[#allocation11 + $0x328] sm:$0xff]
    %v8314 = vld [vmem:[#allocation11 + $0x330] sm:$0xff]
    %v8315 = vld [vmem:[#allocation11 + $0x338] sm:$0xf]
    %v8316 = vld [vmem:[#allocation11 + $0x33c] sm:$0xff]
    %v8317 = vld [vmem:[#allocation11 + $0x344] sm:$0xff]
    %v8318 = vld [vmem:[#allocation11 + $0x34c] sm:$0xff]
    %v8319 = vld [vmem:[#allocation11 + $0x354] sm:$0xff]
    %v8320 = vld [vmem:[#allocation11 + $0x35c] sm:$0xf]
    %v8321 = vld [vmem:[#allocation11 + $0x360] sm:$0xff]
    %v8322 = vld [vmem:[#allocation11 + $0x368] sm:$0xff]
    %v8323 = vld [vmem:[#allocation11 + $0x370] sm:$0xff]
    %v8324 = vld [vmem:[#allocation11 + $0x378] sm:$0xff]
    %v8325 = vld [vmem:[#allocation11 + $0x380] sm:$0xf]
    %v8326 = vld [vmem:[#allocation11 + $0x384] sm:$0xff]
    %v8327 = vld [vmem:[#allocation11 + $0x38c] sm:$0xff]
    %v8328 = vld [vmem:[#allocation11 + $0x394] sm:$0xff]
    %v8329 = vld [vmem:[#allocation11 + $0x39c] sm:$0xff]
    %v8330 = vld [vmem:[#allocation11 + $0x3a4] sm:$0xf]
    %v8331 = vld [vmem:[#allocation11 + $0x3a8] sm:$0xff]
    %v8332 = vld [vmem:[#allocation11 + $0x3b0] sm:$0xff]
    %v8333 = vld [vmem:[#allocation11 + $0x3b8] sm:$0xff]
    %v8334 = vld [vmem:[#allocation11 + $0x3c0] sm:$0xff]
    %v8335 = vld [vmem:[#allocation11 + $0x3c8] sm:$0xf]
    %v8336 = vld [vmem:[#allocation11 + $0x3cc] sm:$0xff]
    %v8337 = vld [vmem:[#allocation11 + $0x3d4] sm:$0xff]
    %v8338 = vld [vmem:[#allocation11 + $0x3dc] sm:$0xff]
    %v8339 = vld [vmem:[#allocation11 + $0x3e4] sm:$0xff]
    %v8340 = vld [vmem:[#allocation11 + $0x3ec] sm:$0xf]
    %v8341 = vld [vmem:[#allocation11 + $0x3f0] sm:$0xff]
    %v8342 = vld [vmem:[#allocation11 + $0x3f8] sm:$0xff]
    %v8343 = vld [vmem:[#allocation11 + $0x400] sm:$0xff]
    %v8344 = vld [vmem:[#allocation11 + $0x408] sm:$0xff]
    %v8345 = vld [vmem:[#allocation11 + $0x410] sm:$0xf]
    %v8346 = vld [vmem:[#allocation11 + $0x414] sm:$0xff]
    %v8347 = vld [vmem:[#allocation11 + $0x41c] sm:$0xff]
    %v8348 = vld [vmem:[#allocation11 + $0x424] sm:$0xff]
    %v8349 = vld [vmem:[#allocation11 + $0x42c] sm:$0xff]
    %v8350 = vld [vmem:[#allocation11 + $0x434] sm:$0xf]
    %v8351 = vld [vmem:[#allocation11 + $0x438] sm:$0xff]
    %v8352 = vld [vmem:[#allocation11 + $0x440] sm:$0xff]
    %v8353 = vld [vmem:[#allocation11 + $0x448] sm:$0xff]
    %v8354 = vld [vmem:[#allocation11 + $0x450] sm:$0xff]
    %v8355 = vld [vmem:[#allocation11 + $0x458] sm:$0xf]
    %v8356 = vld [vmem:[#allocation11 + $0x45c] sm:$0xff]
    %v8357 = vld [vmem:[#allocation11 + $0x464] sm:$0xff]
    %v8358 = vld [vmem:[#allocation11 + $0x46c] sm:$0xff]
    %v8359 = vld [vmem:[#allocation11 + $0x474] sm:$0xff]
    %v8360 = vld [vmem:[#allocation11 + $0x47c] sm:$0xf]
    %v8521 = vunpack.c.l.b16 %v8201
    %v8522 = vunpack.c.h.b16 %v8201
    %v8523 = vunpack.c.l.b16 %v8202
    %v8524 = vunpack.c.h.b16 %v8202
    %v8525 = vunpack.c.l.b16 %v8203
    %v8526 = vunpack.c.h.b16 %v8203
    %v8527 = vunpack.c.l.b16 %v8204
    %v8528 = vunpack.c.h.b16 %v8204
    %v8529 = vunpack.c.l.b16 %v8205
    %v8530 = vunpack.c.l.b16 %v8206
    %v8531 = vunpack.c.h.b16 %v8206
    %v8532 = vunpack.c.l.b16 %v8207
    %v8533 = vunpack.c.h.b16 %v8207
    %v8534 = vunpack.c.l.b16 %v8208
    %v8535 = vunpack.c.h.b16 %v8208
    %v8536 = vunpack.c.l.b16 %v8209
    %v8537 = vunpack.c.h.b16 %v8209
    %v8538 = vunpack.c.l.b16 %v8210
    %v8539 = vunpack.c.l.b16 %v8211
    %v8540 = vunpack.c.h.b16 %v8211
    %v8541 = vunpack.c.l.b16 %v8212
    %v8542 = vunpack.c.h.b16 %v8212
    %v8543 = vunpack.c.l.b16 %v8213
    %v8544 = vunpack.c.h.b16 %v8213
    %v8545 = vunpack.c.l.b16 %v8214
    %v8546 = vunpack.c.h.b16 %v8214
    %v8547 = vunpack.c.l.b16 %v8215
    %v8548 = vunpack.c.l.b16 %v8216
    %v8549 = vunpack.c.h.b16 %v8216
    %v8550 = vunpack.c.l.b16 %v8217
    %v8551 = vunpack.c.h.b16 %v8217
    %v8552 = vunpack.c.l.b16 %v8218
    %v8553 = vunpack.c.h.b16 %v8218
    %v8554 = vunpack.c.l.b16 %v8219
    %v8555 = vunpack.c.h.b16 %v8219
    %v8556 = vunpack.c.l.b16 %v8220
    %v8557 = vunpack.c.l.b16 %v8221
    %v8558 = vunpack.c.h.b16 %v8221
    %v8559 = vunpack.c.l.b16 %v8222
    %v8560 = vunpack.c.h.b16 %v8222
    %v8561 = vunpack.c.l.b16 %v8223
    %v8562 = vunpack.c.h.b16 %v8223
    %v8563 = vunpack.c.l.b16 %v8224
    %v8564 = vunpack.c.h.b16 %v8224
    %v8565 = vunpack.c.l.b16 %v8225
    %v8566 = vunpack.c.l.b16 %v8226
    %v8567 = vunpack.c.h.b16 %v8226
    %v8568 = vunpack.c.l.b16 %v8227
    %v8569 = vunpack.c.h.b16 %v8227
    %v8570 = vunpack.c.l.b16 %v8228
    %v8571 = vunpack.c.h.b16 %v8228
    %v8572 = vunpack.c.l.b16 %v8229
    %v8573 = vunpack.c.h.b16 %v8229
    %v8574 = vunpack.c.l.b16 %v8230
    %v8575 = vunpack.c.l.b16 %v8231
    %v8576 = vunpack.c.h.b16 %v8231
    %v8577 = vunpack.c.l.b16 %v8232
    %v8578 = vunpack.c.h.b16 %v8232
    %v8579 = vunpack.c.l.b16 %v8233
    %v8580 = vunpack.c.h.b16 %v8233
    %v8581 = vunpack.c.l.b16 %v8234
    %v8582 = vunpack.c.h.b16 %v8234
    %v8583 = vunpack.c.l.b16 %v8235
    %v8584 = vunpack.c.l.b16 %v8236
    %v8585 = vunpack.c.h.b16 %v8236
    %v8586 = vunpack.c.l.b16 %v8237
    %v8587 = vunpack.c.h.b16 %v8237
    %v8588 = vunpack.c.l.b16 %v8238
    %v8589 = vunpack.c.h.b16 %v8238
    %v8590 = vunpack.c.l.b16 %v8239
    %v8591 = vunpack.c.h.b16 %v8239
    %v8592 = vunpack.c.l.b16 %v8240
    %v8593 = vunpack.c.l.b16 %v8241
    %v8594 = vunpack.c.h.b16 %v8241
    %v8595 = vunpack.c.l.b16 %v8242
    %v8596 = vunpack.c.h.b16 %v8242
    %v8597 = vunpack.c.l.b16 %v8243
    %v8598 = vunpack.c.h.b16 %v8243
    %v8599 = vunpack.c.l.b16 %v8244
    %v8600 = vunpack.c.h.b16 %v8244
    %v8601 = vunpack.c.l.b16 %v8245
    %v8602 = vunpack.c.l.b16 %v8246
    %v8603 = vunpack.c.h.b16 %v8246
    %v8604 = vunpack.c.l.b16 %v8247
    %v8605 = vunpack.c.h.b16 %v8247
    %v8606 = vunpack.c.l.b16 %v8248
    %v8607 = vunpack.c.h.b16 %v8248
    %v8608 = vunpack.c.l.b16 %v8249
    %v8609 = vunpack.c.h.b16 %v8249
    %v8610 = vunpack.c.l.b16 %v8250
    %v8611 = vunpack.c.l.b16 %v8251
    %v8612 = vunpack.c.h.b16 %v8251
    %v8613 = vunpack.c.l.b16 %v8252
    %v8614 = vunpack.c.h.b16 %v8252
    %v8615 = vunpack.c.l.b16 %v8253
    %v8616 = vunpack.c.h.b16 %v8253
    %v8617 = vunpack.c.l.b16 %v8254
    %v8618 = vunpack.c.h.b16 %v8254
    %v8619 = vunpack.c.l.b16 %v8255
    %v8620 = vunpack.c.l.b16 %v8256
    %v8621 = vunpack.c.h.b16 %v8256
    %v8622 = vunpack.c.l.b16 %v8257
    %v8623 = vunpack.c.h.b16 %v8257
    %v8624 = vunpack.c.l.b16 %v8258
    %v8625 = vunpack.c.h.b16 %v8258
    %v8626 = vunpack.c.l.b16 %v8259
    %v8627 = vunpack.c.h.b16 %v8259
    %v8628 = vunpack.c.l.b16 %v8260
    %v8629 = vunpack.c.l.b16 %v8261
    %v8630 = vunpack.c.h.b16 %v8261
    %v8631 = vunpack.c.l.b16 %v8262
    %v8632 = vunpack.c.h.b16 %v8262
    %v8633 = vunpack.c.l.b16 %v8263
    %v8634 = vunpack.c.h.b16 %v8263
    %v8635 = vunpack.c.l.b16 %v8264
    %v8636 = vunpack.c.h.b16 %v8264
    %v8637 = vunpack.c.l.b16 %v8265
    %v8638 = vunpack.c.l.b16 %v8266
    %v8639 = vunpack.c.h.b16 %v8266
    %v8640 = vunpack.c.l.b16 %v8267
    %v8641 = vunpack.c.h.b16 %v8267
    %v8642 = vunpack.c.l.b16 %v8268
    %v8643 = vunpack.c.h.b16 %v8268
    %v8644 = vunpack.c.l.b16 %v8269
    %v8645 = vunpack.c.h.b16 %v8269
    %v8646 = vunpack.c.l.b16 %v8270
    %v8647 = vunpack.c.l.b16 %v8271
    %v8648 = vunpack.c.h.b16 %v8271
    %v8649 = vunpack.c.l.b16 %v8272
    %v8650 = vunpack.c.h.b16 %v8272
    %v8651 = vunpack.c.l.b16 %v8273
    %v8652 = vunpack.c.h.b16 %v8273
    %v8653 = vunpack.c.l.b16 %v8274
    %v8654 = vunpack.c.h.b16 %v8274
    %v8655 = vunpack.c.l.b16 %v8275
    %v8656 = vunpack.c.l.b16 %v8276
    %v8657 = vunpack.c.h.b16 %v8276
    %v8658 = vunpack.c.l.b16 %v8277
    %v8659 = vunpack.c.h.b16 %v8277
    %v8660 = vunpack.c.l.b16 %v8278
    %v8661 = vunpack.c.h.b16 %v8278
    %v8662 = vunpack.c.l.b16 %v8279
    %v8663 = vunpack.c.h.b16 %v8279
    %v8664 = vunpack.c.l.b16 %v8280
    %v8665 = vunpack.c.l.b16 %v8281
    %v8666 = vunpack.c.h.b16 %v8281
    %v8667 = vunpack.c.l.b16 %v8282
    %v8668 = vunpack.c.h.b16 %v8282
    %v8669 = vunpack.c.l.b16 %v8283
    %v8670 = vunpack.c.h.b16 %v8283
    %v8671 = vunpack.c.l.b16 %v8284
    %v8672 = vunpack.c.h.b16 %v8284
    %v8673 = vunpack.c.l.b16 %v8285
    %v8674 = vunpack.c.l.b16 %v8286
    %v8675 = vunpack.c.h.b16 %v8286
    %v8676 = vunpack.c.l.b16 %v8287
    %v8677 = vunpack.c.h.b16 %v8287
    %v8678 = vunpack.c.l.b16 %v8288
    %v8679 = vunpack.c.h.b16 %v8288
    %v8680 = vunpack.c.l.b16 %v8289
    %v8681 = vunpack.c.h.b16 %v8289
    %v8682 = vunpack.c.l.b16 %v8290
    %v8683 = vunpack.c.l.b16 %v8291
    %v8684 = vunpack.c.h.b16 %v8291
    %v8685 = vunpack.c.l.b16 %v8292
    %v8686 = vunpack.c.h.b16 %v8292
    %v8687 = vunpack.c.l.b16 %v8293
    %v8688 = vunpack.c.h.b16 %v8293
    %v8689 = vunpack.c.l.b16 %v8294
    %v8690 = vunpack.c.h.b16 %v8294
    %v8691 = vunpack.c.l.b16 %v8295
    %v8692 = vunpack.c.l.b16 %v8296
    %v8693 = vunpack.c.h.b16 %v8296
    %v8694 = vunpack.c.l.b16 %v8297
    %v8695 = vunpack.c.h.b16 %v8297
    %v8696 = vunpack.c.l.b16 %v8298
    %v8697 = vunpack.c.h.b16 %v8298
    %v8698 = vunpack.c.l.b16 %v8299
    %v8699 = vunpack.c.h.b16 %v8299
    %v8700 = vunpack.c.l.b16 %v8300
    %v8701 = vunpack.c.l.b16 %v8301
    %v8702 = vunpack.c.h.b16 %v8301
    %v8703 = vunpack.c.l.b16 %v8302
    %v8704 = vunpack.c.h.b16 %v8302
    %v8705 = vunpack.c.l.b16 %v8303
    %v8706 = vunpack.c.h.b16 %v8303
    %v8707 = vunpack.c.l.b16 %v8304
    %v8708 = vunpack.c.h.b16 %v8304
    %v8709 = vunpack.c.l.b16 %v8305
    %v8710 = vunpack.c.l.b16 %v8306
    %v8711 = vunpack.c.h.b16 %v8306
    %v8712 = vunpack.c.l.b16 %v8307
    %v8713 = vunpack.c.h.b16 %v8307
    %v8714 = vunpack.c.l.b16 %v8308
    %v8715 = vunpack.c.h.b16 %v8308
    %v8716 = vunpack.c.l.b16 %v8309
    %v8717 = vunpack.c.h.b16 %v8309
    %v8718 = vunpack.c.l.b16 %v8310
    %v8719 = vunpack.c.l.b16 %v8311
    %v8720 = vunpack.c.h.b16 %v8311
    %v8721 = vunpack.c.l.b16 %v8312
    %v8722 = vunpack.c.h.b16 %v8312
    %v8723 = vunpack.c.l.b16 %v8313
    %v8724 = vunpack.c.h.b16 %v8313
    %v8725 = vunpack.c.l.b16 %v8314
    %v8726 = vunpack.c.h.b16 %v8314
    %v8727 = vunpack.c.l.b16 %v8315
    %v8728 = vunpack.c.l.b16 %v8316
    %v8729 = vunpack.c.h.b16 %v8316
    %v8730 = vunpack.c.l.b16 %v8317
    %v8731 = vunpack.c.h.b16 %v8317
    %v8732 = vunpack.c.l.b16 %v8318
    %v8733 = vunpack.c.h.b16 %v8318
    %v8734 = vunpack.c.l.b16 %v8319
    %v8735 = vunpack.c.h.b16 %v8319
    %v8736 = vunpack.c.l.b16 %v8320
    %v8737 = vunpack.c.l.b16 %v8321
    %v8738 = vunpack.c.h.b16 %v8321
    %v8739 = vunpack.c.l.b16 %v8322
    %v8740 = vunpack.c.h.b16 %v8322
    %v8741 = vunpack.c.l.b16 %v8323
    %v8742 = vunpack.c.h.b16 %v8323
    %v8743 = vunpack.c.l.b16 %v8324
    %v8744 = vunpack.c.h.b16 %v8324
    %v8745 = vunpack.c.l.b16 %v8325
    %v8746 = vunpack.c.l.b16 %v8326
    %v8747 = vunpack.c.h.b16 %v8326
    %v8748 = vunpack.c.l.b16 %v8327
    %v8749 = vunpack.c.h.b16 %v8327
    %v8750 = vunpack.c.l.b16 %v8328
    %v8751 = vunpack.c.h.b16 %v8328
    %v8752 = vunpack.c.l.b16 %v8329
    %v8753 = vunpack.c.h.b16 %v8329
    %v8754 = vunpack.c.l.b16 %v8330
    %v8755 = vunpack.c.l.b16 %v8331
    %v8756 = vunpack.c.h.b16 %v8331
    %v8757 = vunpack.c.l.b16 %v8332
    %v8758 = vunpack.c.h.b16 %v8332
    %v8759 = vunpack.c.l.b16 %v8333
    %v8760 = vunpack.c.h.b16 %v8333
    %v8761 = vunpack.c.l.b16 %v8334
    %v8762 = vunpack.c.h.b16 %v8334
    %v8763 = vunpack.c.l.b16 %v8335
    %v8764 = vunpack.c.l.b16 %v8336
    %v8765 = vunpack.c.h.b16 %v8336
    %v8766 = vunpack.c.l.b16 %v8337
    %v8767 = vunpack.c.h.b16 %v8337
    %v8768 = vunpack.c.l.b16 %v8338
    %v8769 = vunpack.c.h.b16 %v8338
    %v8770 = vunpack.c.l.b16 %v8339
    %v8771 = vunpack.c.h.b16 %v8339
    %v8772 = vunpack.c.l.b16 %v8340
    %v8773 = vunpack.c.l.b16 %v8341
    %v8774 = vunpack.c.h.b16 %v8341
    %v8775 = vunpack.c.l.b16 %v8342
    %v8776 = vunpack.c.h.b16 %v8342
    %v8777 = vunpack.c.l.b16 %v8343
    %v8778 = vunpack.c.h.b16 %v8343
    %v8779 = vunpack.c.l.b16 %v8344
    %v8780 = vunpack.c.h.b16 %v8344
    %v8781 = vunpack.c.l.b16 %v8345
    %v8782 = vunpack.c.l.b16 %v8346
    %v8783 = vunpack.c.h.b16 %v8346
    %v8784 = vunpack.c.l.b16 %v8347
    %v8785 = vunpack.c.h.b16 %v8347
    %v8786 = vunpack.c.l.b16 %v8348
    %v8787 = vunpack.c.h.b16 %v8348
    %v8788 = vunpack.c.l.b16 %v8349
    %v8789 = vunpack.c.h.b16 %v8349
    %v8790 = vunpack.c.l.b16 %v8350
    %v8791 = vunpack.c.l.b16 %v8351
    %v8792 = vunpack.c.h.b16 %v8351
    %v8793 = vunpack.c.l.b16 %v8352
    %v8794 = vunpack.c.h.b16 %v8352
    %v8795 = vunpack.c.l.b16 %v8353
    %v8796 = vunpack.c.h.b16 %v8353
    %v8797 = vunpack.c.l.b16 %v8354
    %v8798 = vunpack.c.h.b16 %v8354
    %v8799 = vunpack.c.l.b16 %v8355
    %v8800 = vunpack.c.l.b16 %v8356
    %v8801 = vunpack.c.h.b16 %v8356
    %v8802 = vunpack.c.l.b16 %v8357
    %v8803 = vunpack.c.h.b16 %v8357
    %v8804 = vunpack.c.l.b16 %v8358
    %v8805 = vunpack.c.h.b16 %v8358
    %v8806 = vunpack.c.l.b16 %v8359
    %v8807 = vunpack.c.h.b16 %v8359
    %v8808 = vunpack.c.l.b16 %v8360
    %v8809 = vpack.c.b16 %v8530, %v8521
    %v8810 = vpack.c.b16 %v8531, %v8522
    %v8811 = vpack.c.b16 %v8532, %v8523
    %v8812 = vpack.c.b16 %v8533, %v8524
    %v8813 = vpack.c.b16 %v8534, %v8525
    %v8814 = vpack.c.b16 %v8535, %v8526
    %v8815 = vpack.c.b16 %v8536, %v8527
    %v8816 = vpack.c.b16 %v8537, %v8528
    %v8817 = vpack.c.b16 %v8538, %v8529
    %v8818 = vpack.c.b16 %v8548, %v8539
    %v8819 = vpack.c.b16 %v8549, %v8540
    %v8820 = vpack.c.b16 %v8550, %v8541
    %v8821 = vpack.c.b16 %v8551, %v8542
    %v8822 = vpack.c.b16 %v8552, %v8543
    %v8823 = vpack.c.b16 %v8553, %v8544
    %v8824 = vpack.c.b16 %v8554, %v8545
    %v8825 = vpack.c.b16 %v8555, %v8546
    %v8826 = vpack.c.b16 %v8556, %v8547
    %v8827 = vpack.c.b16 %v8566, %v8557
    %v8828 = vpack.c.b16 %v8567, %v8558
    %v8829 = vpack.c.b16 %v8568, %v8559
    %v8830 = vpack.c.b16 %v8569, %v8560
    %v8831 = vpack.c.b16 %v8570, %v8561
    %v8832 = vpack.c.b16 %v8571, %v8562
    %v8833 = vpack.c.b16 %v8572, %v8563
    %v8834 = vpack.c.b16 %v8573, %v8564
    %v8835 = vpack.c.b16 %v8574, %v8565
    %v8836 = vpack.c.b16 %v8584, %v8575
    %v8837 = vpack.c.b16 %v8585, %v8576
    %v8838 = vpack.c.b16 %v8586, %v8577
    %v8839 = vpack.c.b16 %v8587, %v8578
    %v8840 = vpack.c.b16 %v8588, %v8579
    %v8841 = vpack.c.b16 %v8589, %v8580
    %v8842 = vpack.c.b16 %v8590, %v8581
    %v8843 = vpack.c.b16 %v8591, %v8582
    %v8844 = vpack.c.b16 %v8592, %v8583
    %v8845 = vpack.c.b16 %v8602, %v8593
    %v8846 = vpack.c.b16 %v8603, %v8594
    %v8847 = vpack.c.b16 %v8604, %v8595
    %v8848 = vpack.c.b16 %v8605, %v8596
    %v8849 = vpack.c.b16 %v8606, %v8597
    %v8850 = vpack.c.b16 %v8607, %v8598
    %v8851 = vpack.c.b16 %v8608, %v8599
    %v8852 = vpack.c.b16 %v8609, %v8600
    %v8853 = vpack.c.b16 %v8610, %v8601
    %v8854 = vpack.c.b16 %v8620, %v8611
    %v8855 = vpack.c.b16 %v8621, %v8612
    %v8856 = vpack.c.b16 %v8622, %v8613
    %v8857 = vpack.c.b16 %v8623, %v8614
    %v8858 = vpack.c.b16 %v8624, %v8615
    %v8859 = vpack.c.b16 %v8625, %v8616
    %v8860 = vpack.c.b16 %v8626, %v8617
    %v8861 = vpack.c.b16 %v8627, %v8618
    %v8862 = vpack.c.b16 %v8628, %v8619
    %v8863 = vpack.c.b16 %v8638, %v8629
    %v8864 = vpack.c.b16 %v8639, %v8630
    %v8865 = vpack.c.b16 %v8640, %v8631
    %v8866 = vpack.c.b16 %v8641, %v8632
    %v8867 = vpack.c.b16 %v8642, %v8633
    %v8868 = vpack.c.b16 %v8643, %v8634
    %v8869 = vpack.c.b16 %v8644, %v8635
    %v8870 = vpack.c.b16 %v8645, %v8636
    %v8871 = vpack.c.b16 %v8646, %v8637
    %v8872 = vpack.c.b16 %v8656, %v8647
    %v8873 = vpack.c.b16 %v8657, %v8648
    %v8874 = vpack.c.b16 %v8658, %v8649
    %v8875 = vpack.c.b16 %v8659, %v8650
    %v8876 = vpack.c.b16 %v8660, %v8651
    %v8877 = vpack.c.b16 %v8661, %v8652
    %v8878 = vpack.c.b16 %v8662, %v8653
    %v8879 = vpack.c.b16 %v8663, %v8654
    %v8880 = vpack.c.b16 %v8664, %v8655
    %v8881 = vpack.c.b16 %v8674, %v8665
    %v8882 = vpack.c.b16 %v8675, %v8666
    %v8883 = vpack.c.b16 %v8676, %v8667
    %v8884 = vpack.c.b16 %v8677, %v8668
    %v8885 = vpack.c.b16 %v8678, %v8669
    %v8886 = vpack.c.b16 %v8679, %v8670
    %v8887 = vpack.c.b16 %v8680, %v8671
    %v8888 = vpack.c.b16 %v8681, %v8672
    %v8889 = vpack.c.b16 %v8682, %v8673
    %v8890 = vpack.c.b16 %v8692, %v8683
    %v8891 = vpack.c.b16 %v8693, %v8684
    %v8892 = vpack.c.b16 %v8694, %v8685
    %v8893 = vpack.c.b16 %v8695, %v8686
    %v8894 = vpack.c.b16 %v8696, %v8687
    %v8895 = vpack.c.b16 %v8697, %v8688
    %v8896 = vpack.c.b16 %v8698, %v8689
    %v8897 = vpack.c.b16 %v8699, %v8690
    %v8898 = vpack.c.b16 %v8700, %v8691
    %v8899 = vpack.c.b16 %v8710, %v8701
    %v8900 = vpack.c.b16 %v8711, %v8702
    %v8901 = vpack.c.b16 %v8712, %v8703
    %v8902 = vpack.c.b16 %v8713, %v8704
    %v8903 = vpack.c.b16 %v8714, %v8705
    %v8904 = vpack.c.b16 %v8715, %v8706
    %v8905 = vpack.c.b16 %v8716, %v8707
    %v8906 = vpack.c.b16 %v8717, %v8708
    %v8907 = vpack.c.b16 %v8718, %v8709
    %v8908 = vpack.c.b16 %v8728, %v8719
    %v8909 = vpack.c.b16 %v8729, %v8720
    %v8910 = vpack.c.b16 %v8730, %v8721
    %v8911 = vpack.c.b16 %v8731, %v8722
    %v8912 = vpack.c.b16 %v8732, %v8723
    %v8913 = vpack.c.b16 %v8733, %v8724
    %v8914 = vpack.c.b16 %v8734, %v8725
    %v8915 = vpack.c.b16 %v8735, %v8726
    %v8916 = vpack.c.b16 %v8736, %v8727
    %v8917 = vpack.c.b16 %v8746, %v8737
    %v8918 = vpack.c.b16 %v8747, %v8738
    %v8919 = vpack.c.b16 %v8748, %v8739
    %v8920 = vpack.c.b16 %v8749, %v8740
    %v8921 = vpack.c.b16 %v8750, %v8741
    %v8922 = vpack.c.b16 %v8751, %v8742
    %v8923 = vpack.c.b16 %v8752, %v8743
    %v8924 = vpack.c.b16 %v8753, %v8744
    %v8925 = vpack.c.b16 %v8754, %v8745
    %v8926 = vpack.c.b16 %v8764, %v8755
    %v8927 = vpack.c.b16 %v8765, %v8756
    %v8928 = vpack.c.b16 %v8766, %v8757
    %v8929 = vpack.c.b16 %v8767, %v8758
    %v8930 = vpack.c.b16 %v8768, %v8759
    %v8931 = vpack.c.b16 %v8769, %v8760
    %v8932 = vpack.c.b16 %v8770, %v8761
    %v8933 = vpack.c.b16 %v8771, %v8762
    %v8934 = vpack.c.b16 %v8772, %v8763
    %v8935 = vpack.c.b16 %v8782, %v8773
    %v8936 = vpack.c.b16 %v8783, %v8774
    %v8937 = vpack.c.b16 %v8784, %v8775
    %v8938 = vpack.c.b16 %v8785, %v8776
    %v8939 = vpack.c.b16 %v8786, %v8777
    %v8940 = vpack.c.b16 %v8787, %v8778
    %v8941 = vpack.c.b16 %v8788, %v8779
    %v8942 = vpack.c.b16 %v8789, %v8780
    %v8943 = vpack.c.b16 %v8790, %v8781
    %v8944 = vpack.c.b16 %v8800, %v8791
    %v8945 = vpack.c.b16 %v8801, %v8792
    %v8946 = vpack.c.b16 %v8802, %v8793
    %v8947 = vpack.c.b16 %v8803, %v8794
    %v8948 = vpack.c.b16 %v8804, %v8795
    %v8949 = vpack.c.b16 %v8805, %v8796
    %v8950 = vpack.c.b16 %v8806, %v8797
    %v8951 = vpack.c.b16 %v8807, %v8798
    %v8952 = vpack.c.b16 %v8808, %v8799
    %9097 = vmatprep.subr.bf16.mxu0 %v8810
    %9098 = vmatpush1.bf16.msra.mxu0 %v8809
    %9099 = vmatprep.subr.bf16.mxu0 %v8819
    %9100 = vmatpush1.bf16.msra.mxu0 %v8818
    %9101 = vmatprep.subr.bf16.mxu0 %v8828
    %9102 = vmatpush1.bf16.msra.mxu0 %v8827
    %9103 = vmatprep.subr.bf16.mxu0 %v8837
    %9104 = vmatpush1.bf16.msra.mxu0 %v8836
    %9105 = vmatprep.subr.bf16.mxu0 %v8846
    %9106 = vmatpush1.bf16.msra.mxu0 %v8845
    %9107 = vmatprep.subr.bf16.mxu0 %v8855
    %9108 = vmatpush1.bf16.msra.mxu0 %v8854
    %9109 = vmatprep.subr.bf16.mxu0 %v8864
    %9110 = vmatpush1.bf16.msra.mxu0 %v8863
    %9111 = vmatprep.subr.bf16.mxu0 %v8873
    %9112 = vmatpush1.bf16.msra.mxu0 %v8872
    %9113 = vmatprep.subr.bf16.mxu0 %v8882
    %9114 = vmatpush1.bf16.msra.mxu0 %v8881
    %9115 = vmatprep.subr.bf16.mxu0 %v8891
    %9116 = vmatpush1.bf16.msra.mxu0 %v8890
    %9117 = vmatprep.subr.bf16.mxu0 %v8900
    %9118 = vmatpush1.bf16.msra.mxu0 %v8899
    %9119 = vmatprep.subr.bf16.mxu0 %v8909
    %9120 = vmatpush1.bf16.msra.mxu0 %v8908
    %9121 = vmatprep.subr.bf16.mxu0 %v8918
    %9122 = vmatpush1.bf16.msra.mxu0 %v8917
    %9123 = vmatprep.subr.bf16.mxu0 %v8927
    %9124 = vmatpush1.bf16.msra.mxu0 %v8926
    %9125 = vmatprep.subr.bf16.mxu0 %v8936
    %9126 = vmatpush1.bf16.msra.mxu0 %v8935
    %9127 = vmatprep.subr.bf16.mxu0 %v8945
    %9128 = vmatpush1.bf16.msra.mxu0 %v8944
    %9129 = vmatprep.mubr.bf16.mxu0 %v8200
    %9130 = vmatmul.mubr.bf16.gmra.mrb[0].mxu0 %v8199
    %v9131 = vpop.f32.mrb[0].mxu0
    %v9132 = vadd.f32 0.0, %v9131
    %v9133 = vpop.f32.mrb[0].mxu0
    %v9134 = vadd.f32 0.0, %v9133
    %v9135 = vpop.f32.mrb[0].mxu0
    %v9136 = vadd.f32 0.0, %v9135
    %v9137 = vpop.f32.mrb[0].mxu0
    %v9138 = vadd.f32 0.0, %v9137
    %9139 = vdwg.mxu0
    %9140 = vmatprep.subr.bf16.mxu0 %v8812
    %9141 = vmatpush1.bf16.msra.mxu0 %v8811
    %9142 = vmatprep.subr.bf16.mxu0 %v8821
    %9143 = vmatpush1.bf16.msra.mxu0 %v8820
    %9144 = vmatprep.subr.bf16.mxu0 %v8830
    %9145 = vmatpush1.bf16.msra.mxu0 %v8829
    %9146 = vmatprep.subr.bf16.mxu0 %v8839
    %9147 = vmatpush1.bf16.msra.mxu0 %v8838
    %9148 = vmatprep.subr.bf16.mxu0 %v8848
    %9149 = vmatpush1.bf16.msra.mxu0 %v8847
    %9150 = vmatprep.subr.bf16.mxu0 %v8857
    %9151 = vmatpush1.bf16.msra.mxu0 %v8856
    %9152 = vmatprep.subr.bf16.mxu0 %v8866
    %9153 = vmatpush1.bf16.msra.mxu0 %v8865
    %9154 = vmatprep.subr.bf16.mxu0 %v8875
    %9155 = vmatpush1.bf16.msra.mxu0 %v8874
    %9156 = vmatprep.subr.bf16.mxu0 %v8884
    %9157 = vmatpush1.bf16.msra.mxu0 %v8883
    %9158 = vmatprep.subr.bf16.mxu0 %v8893
    %9159 = vmatpush1.bf16.msra.mxu0 %v8892
    %9160 = vmatprep.subr.bf16.mxu0 %v8902
    %9161 = vmatpush1.bf16.msra.mxu0 %v8901
    %9162 = vmatprep.subr.bf16.mxu0 %v8911
    %9163 = vmatpush1.bf16.msra.mxu0 %v8910
    %9164 = vmatprep.subr.bf16.mxu0 %v8920
    %9165 = vmatpush1.bf16.msra.mxu0 %v8919
    %9166 = vmatprep.subr.bf16.mxu0 %v8929
    %9167 = vmatpush1.bf16.msra.mxu0 %v8928
    %9168 = vmatprep.subr.bf16.mxu0 %v8938
    %9169 = vmatpush1.bf16.msra.mxu0 %v8937
    %9170 = vmatprep.subr.bf16.mxu0 %v8947
    %9171 = vmatpush1.bf16.msra.mxu0 %v8946
    %9172 = vmatprep.mubr.bf16.mxu0 %v8200
    %9173 = vmatmul.mubr.bf16.gmra.mrb[0].mxu0 %v8199
    %v9174 = vpop.f32.mrb[0].mxu0
    %v9175 = vadd.f32 0.0, %v9174
    %v9176 = vpop.f32.mrb[0].mxu0
    %v9177 = vadd.f32 0.0, %v9176
    %v9178 = vpop.f32.mrb[0].mxu0
    %v9179 = vadd.f32 0.0, %v9178
    %v9180 = vpop.f32.mrb[0].mxu0
    %v9181 = vadd.f32 0.0, %v9180
    %9182 = vdwg.mxu0
    %9183 = vmatprep.subr.bf16.mxu0 %v8814
    %9184 = vmatpush1.bf16.msra.mxu0 %v8813
    %9185 = vmatprep.subr.bf16.mxu0 %v8823
    %9186 = vmatpush1.bf16.msra.mxu0 %v8822
    %9187 = vmatprep.subr.bf16.mxu0 %v8832
    %9188 = vmatpush1.bf16.msra.mxu0 %v8831
    %9189 = vmatprep.subr.bf16.mxu0 %v8841
    %9190 = vmatpush1.bf16.msra.mxu0 %v8840
    %9191 = vmatprep.subr.bf16.mxu0 %v8850
    %9192 = vmatpush1.bf16.msra.mxu0 %v8849
    %9193 = vmatprep.subr.bf16.mxu0 %v8859
    %9194 = vmatpush1.bf16.msra.mxu0 %v8858
    %9195 = vmatprep.subr.bf16.mxu0 %v8868
    %9196 = vmatpush1.bf16.msra.mxu0 %v8867
    %9197 = vmatprep.subr.bf16.mxu0 %v8877
    %9198 = vmatpush1.bf16.msra.mxu0 %v8876
    %9199 = vmatprep.subr.bf16.mxu0 %v8886
    %9200 = vmatpush1.bf16.msra.mxu0 %v8885
    %9201 = vmatprep.subr.bf16.mxu0 %v8895
    %9202 = vmatpush1.bf16.msra.mxu0 %v8894
    %9203 = vmatprep.subr.bf16.mxu0 %v8904
    %9204 = vmatpush1.bf16.msra.mxu0 %v8903
    %9205 = vmatprep.subr.bf16.mxu0 %v8913
    %9206 = vmatpush1.bf16.msra.mxu0 %v8912
    %9207 = vmatprep.subr.bf16.mxu0 %v8922
    %9208 = vmatpush1.bf16.msra.mxu0 %v8921
    %9209 = vmatprep.subr.bf16.mxu0 %v8931
    %9210 = vmatpush1.bf16.msra.mxu0 %v8930
    %9211 = vmatprep.subr.bf16.mxu0 %v8940
    %9212 = vmatpush1.bf16.msra.mxu0 %v8939
    %9213 = vmatprep.subr.bf16.mxu0 %v8949
    %9214 = vmatpush1.bf16.msra.mxu0 %v8948
    %9215 = vmatprep.mubr.bf16.mxu0 %v8200
    %9216 = vmatmul.mubr.bf16.gmra.mrb[0].mxu0 %v8199
    %v9217 = vpop.f32.mrb[0].mxu0
    %v9218 = vadd.f32 0.0, %v9217
    %v9219 = vpop.f32.mrb[0].mxu0
    %v9220 = vadd.f32 0.0, %v9219
    %v9221 = vpop.f32.mrb[0].mxu0
    %v9222 = vadd.f32 0.0, %v9221
    %v9223 = vpop.f32.mrb[0].mxu0
    %v9224 = vadd.f32 0.0, %v9223
    %9225 = vdwg.mxu0
    %9226 = vmatprep.subr.bf16.mxu0 %v8816
    %9227 = vmatpush1.bf16.msra.mxu0 %v8815
    %9228 = vmatprep.subr.bf16.mxu0 %v8825
    %9229 = vmatpush1.bf16.msra.mxu0 %v8824
    %9230 = vmatprep.subr.bf16.mxu0 %v8834
    %9231 = vmatpush1.bf16.msra.mxu0 %v8833
    %9232 = vmatprep.subr.bf16.mxu0 %v8843
    %9233 = vmatpush1.bf16.msra.mxu0 %v8842
    %9234 = vmatprep.subr.bf16.mxu0 %v8852
    %9235 = vmatpush1.bf16.msra.mxu0 %v8851
    %9236 = vmatprep.subr.bf16.mxu0 %v8861
    %9237 = vmatpush1.bf16.msra.mxu0 %v8860
    %9238 = vmatprep.subr.bf16.mxu0 %v8870
    %9239 = vmatpush1.bf16.msra.mxu0 %v8869
    %9240 = vmatprep.subr.bf16.mxu0 %v8879
    %9241 = vmatpush1.bf16.msra.mxu0 %v8878
    %9242 = vmatprep.subr.bf16.mxu0 %v8888
    %9243 = vmatpush1.bf16.msra.mxu0 %v8887
    %9244 = vmatprep.subr.bf16.mxu0 %v8897
    %9245 = vmatpush1.bf16.msra.mxu0 %v8896
    %9246 = vmatprep.subr.bf16.mxu0 %v8906
    %9247 = vmatpush1.bf16.msra.mxu0 %v8905
    %9248 = vmatprep.subr.bf16.mxu0 %v8915
    %9249 = vmatpush1.bf16.msra.mxu0 %v8914
    %9250 = vmatprep.subr.bf16.mxu0 %v8924
    %9251 = vmatpush1.bf16.msra.mxu0 %v8923
    %9252 = vmatprep.subr.bf16.mxu0 %v8933
    %9253 = vmatpush1.bf16.msra.mxu0 %v8932
    %9254 = vmatprep.subr.bf16.mxu0 %v8942
    %9255 = vmatpush1.bf16.msra.mxu0 %v8941
    %9256 = vmatprep.subr.bf16.mxu0 %v8951
    %9257 = vmatpush1.bf16.msra.mxu0 %v8950
    %9258 = vmatprep.mubr.bf16.mxu0 %v8200
    %9259 = vmatmul.mubr.bf16.gmra.mrb[0].mxu0 %v8199
    %v9260 = vpop.f32.mrb[0].mxu0
    %v9261 = vadd.f32 0.0, %v9260
    %v9262 = vpop.f32.mrb[0].mxu0
    %v9263 = vadd.f32 0.0, %v9262
    %v9264 = vpop.f32.mrb[0].mxu0
    %v9265 = vadd.f32 0.0, %v9264
    %v9266 = vpop.f32.mrb[0].mxu0
    %v9267 = vadd.f32 0.0, %v9266
    %9268 = vdwg.mxu0
    %9269 = vmatprep.subr.bf16.mxu0 0
    %9270 = vmatpush1.bf16.msra.mxu0 %v8817
    %9271 = vmatprep.subr.bf16.mxu0 0
    %9272 = vmatpush1.bf16.msra.mxu0 %v8826
    %9273 = vmatprep.subr.bf16.mxu0 0
    %9274 = vmatpush1.bf16.msra.mxu0 %v8835
    %9275 = vmatprep.subr.bf16.mxu0 0
    %9276 = vmatpush1.bf16.msra.mxu0 %v8844
    %9277 = vmatprep.subr.bf16.mxu0 0
    %9278 = vmatpush1.bf16.msra.mxu0 %v8853
    %9279 = vmatprep.subr.bf16.mxu0 0
    %9280 = vmatpush1.bf16.msra.mxu0 %v8862
    %9281 = vmatprep.subr.bf16.mxu0 0
    %9282 = vmatpush1.bf16.msra.mxu0 %v8871
    %9283 = vmatprep.subr.bf16.mxu0 0
    %9284 = vmatpush1.bf16.msra.mxu0 %v8880
    %9285 = vmatprep.subr.bf16.mxu0 0
    %9286 = vmatpush1.bf16.msra.mxu0 %v8889
    %9287 = vmatprep.subr.bf16.mxu0 0
    %9288 = vmatpush1.bf16.msra.mxu0 %v8898
    %9289 = vmatprep.subr.bf16.mxu0 0
    %9290 = vmatpush1.bf16.msra.mxu0 %v8907
    %9291 = vmatprep.subr.bf16.mxu0 0
    %9292 = vmatpush1.bf16.msra.mxu0 %v8916
    %9293 = vmatprep.subr.bf16.mxu0 0
    %9294 = vmatpush1.bf16.msra.mxu0 %v8925
    %9295 = vmatprep.subr.bf16.mxu0 0
    %9296 = vmatpush1.bf16.msra.mxu0 %v8934
    %9297 = vmatprep.subr.bf16.mxu0 0
    %9298 = vmatpush1.bf16.msra.mxu0 %v8943
    %9299 = vmatprep.subr.bf16.mxu0 0
    %9300 = vmatpush1.bf16.msra.mxu0 %v8952
    %9301 = vmatprep.mubr.bf16.mxu0 %v8200
    %9302 = vmatmul.mubr.bf16.gmra.mrb[0].mxu0 %v8199
    %v9303 = vpop.f32.mrb[0].mxu0
    %v9304 = vadd.f32 0.0, %v9303
    %v9305 = vpop.f32.mrb[0].mxu0
    %v9306 = vpop.f32.mrb[0].mxu0
    %v9307 = vadd.f32 0.0, %v9306
    %v9308 = vpop.f32.mrb[0].mxu0
    %9309 = vdwg.mxu0
    %v9310 = vpack.c.bf16 %v9136, %v9132
    %v9311 = vpack.c.bf16 %v9138, %v9134
    %v9312 = vpack.c.bf16 %v9179, %v9175
    %v9313 = vpack.c.bf16 %v9181, %v9177
    %v9314 = vpack.c.bf16 %v9222, %v9218
    %v9315 = vpack.c.bf16 %v9224, %v9220
    %v9316 = vpack.c.bf16 %v9265, %v9261
    %v9317 = vpack.c.bf16 %v9267, %v9263
    %v9318 = vpack.c.bf16 %v9307, %v9304
    %v9319 = vld [vmem:[#allocation10] sm:$0xff]
    %v9320 = vld [vmem:[#allocation10 + $0x8] sm:$0xff]
    %v9323 = vunpack.c.l.b16 %v9319
    %v9324 = vunpack.c.h.b16 %v9319
    %v9325 = vunpack.c.l.b16 %v9320
    %v9326 = vunpack.c.h.b16 %v9320
    %v9327 = vpack.c.b16 %v9325, %v9323
    %v9328 = vpack.c.b16 %v9326, %v9324
    %vm9330 = vcmask 130048
    %v9332 = vsel %vm9330, %v9328, 0
    %9334 = vmatprep.subr.bf16.mxu0 0
    %9335 = vmatpush1.bf16.msra.mxu0 %v9310
    %9336 = vmatprep.subr.bf16.mxu0 0
    %9337 = vmatpush1.bf16.msra.mxu0 %v9311
    %9338 = vmatprep.subr.bf16.mxu0 0
    %9339 = vmatpush1.bf16.msra.mxu0 %v9312
    %9340 = vmatprep.subr.bf16.mxu0 0
    %9341 = vmatpush1.bf16.msra.mxu0 %v9313
    %9342 = vmatprep.subr.bf16.mxu0 0
    %9343 = vmatpush1.bf16.msra.mxu0 %v9314
    %9344 = vmatprep.subr.bf16.mxu0 0
    %9345 = vmatpush1.bf16.msra.mxu0 %v9315
    %9346 = vmatprep.subr.bf16.mxu0 0
    %9347 = vmatpush1.bf16.msra.mxu0 %v9316
    %9348 = vmatprep.subr.bf16.mxu0 0
    %9349 = vmatpush1.bf16.msra.mxu0 %v9317
    %9350 = vmatprep.subr.bf16.mxu0 0
    %9351 = vmatpush1.bf16.msra.mxu0 %v9318
    %9352 = vmatprep.subr.bf16.mxu0 0
    %9353 = vmatpush1.bf16.msra.mxu0 0
    %9354 = vmatprep.subr.bf16.mxu0 0
    %9355 = vmatpush1.bf16.msra.mxu0 0
    %9356 = vmatprep.subr.bf16.mxu0 0
    %9357 = vmatpush1.bf16.msra.mxu0 0
    %9358 = vmatprep.subr.bf16.mxu0 0
    %9359 = vmatpush1.bf16.msra.mxu0 0
    %9360 = vmatprep.subr.bf16.mxu0 0
    %9361 = vmatpush1.bf16.msra.mxu0 0
    %9362 = vmatprep.subr.bf16.mxu0 0
    %9363 = vmatpush1.bf16.msra.mxu0 0
    %9364 = vmatprep.subr.bf16.mxu0 0
    %9365 = vmatpush1.bf16.msra.mxu0 0
    %9366 = vmatprep.mubr.bf16.mxu0 %v9332
    %9367 = vmatmul.mubr.bf16.gmra.mrb[0].mxu0 %v9327
    %v9368 = vpop.f32.mrb[0].mxu0
    %v9369 = vadd.f32 0.0, %v9368
    %v9370 = vpop.f32.mrb[0].mxu0
    %v9371 = vpop.f32.mrb[0].mxu0
    %v9372 = vadd.f32 0.0, %v9371
    %v9373 = vpop.f32.mrb[0].mxu0
    %9374 = vdwg.mxu0
    %v9375 = vld [vmem:[%s10] sm:$0xff]
    %v9376 = vld [vmem:[%s10 + $0x8] sm:$0xff]
    %v9377 = vld [vmem:[%s11] sm:$0xff]
    %v9378 = vld [vmem:[%s11 + $0x8] sm:$0xff]
    %9379 = vadd.xlane.f32.xlu0 %v9369
    %v9380 = vpop.xlane.xlu0 %9379
    %9381 = vadd.xlane.f32.xlu0 %v9372
    %v9382 = vpop.xlane.xlu0 %9381
    %v9383 = vmul.f32 %v9380, 0.0625
    %v9384 = vmul.f32 %v9382, 0.0625
    %v9385 = vmul.f32 %v9369, %v9369
    %v9386 = vmul.f32 %v9372, %v9372
    %9387 = vadd.xlane.f32.xlu0 %v9385
    %v9388 = vpop.xlane.xlu0 %9387
    %9389 = vadd.xlane.f32.xlu0 %v9386
    %v9390 = vpop.xlane.xlu0 %9389
    %v9391 = vmul.f32 %v9388, 0.0625
    %v9392 = vmul.f32 %v9390, 0.0625
    %v9393 = vmul.f32 %v9383, %v9383
    %v9394 = vmul.f32 %v9384, %v9384
    %v9395 = vsub.f32 %v9391, %v9393
    %v9396 = vsub.f32 %v9392, %v9394
    %v9397 = vmax.f32 %v9395, 0.0
    %v9398 = vmax.f32 %v9396, 0.0
    %v9399 = vsub.f32 %v9369, %v9383
    %v9400 = vsub.f32 %v9372, %v9384
    %v9401 = vadd.f32 %v9397, 1e-05
    %v9402 = vadd.f32 %v9398, 1e-05
    %v9403 = vrsqrt.pop %v9401
    %v9404 = vrsqrt.pop %v9402
    %v9405 = vmul.f32 %v9399, %v9403
    %v9406 = vmul.f32 %v9400, %v9404
    %9408 = vset.pattern.permute.xlu0 0
    %9409 = vperm.xlu0 %9408, %v9375
    %v9410 = vpop.permute.xlu0 %9409
    %9413 = vset.pattern.permute.xlu0 0
    %9414 = vperm.xlu0 %9413, %v9376
    %v9415 = vpop.permute.xlu0 %9414
    %v9417 = vmul.f32 %v9405, %v9410
    %v9418 = vmul.f32 %v9406, %v9415
    %9420 = vset.pattern.permute.xlu0 0
    %9421 = vperm.xlu0 %9420, %v9377
    %v9422 = vpop.permute.xlu0 %9421
    %9425 = vset.pattern.permute.xlu0 0
    %9426 = vperm.xlu0 %9425, %v9378
    %v9427 = vpop.permute.xlu0 %9426
    %v9429 = vadd.f32 %v9417, %v9422
    %v9430 = vadd.f32 %v9418, %v9427
    %v9431 = vmax.f32 %v9429, 0.0
    %v9432 = vmax.f32 %v9430, 0.0
    %v9433 = vpack.c.bf16 %v9432, %v9431
    %v9434 = vld [vmem:[%s12] sm:$0xf]
    %v9435 = vld [vmem:[%s12 + $0x4] sm:$0xf]
    %v9436 = vld [vmem:[%s12 + $0x8] sm:$0xf]
    %v9437 = vld [vmem:[%s12 + $0xc] sm:$0xf]
    %v9438 = vld [vmem:[%s13] sm:$0xff]
    %v9439 = vld [vmem:[%s13 + $0x8] sm:$0xff]
    %v9440 = vld [vmem:[%s13 + $0x10] sm:$0xff]
    %v9441 = vld [vmem:[%s13 + $0x18] sm:$0xff]
    %9443 = vset.pattern.permute.xlu0 0
    %9444 = vperm.xlu0 %9443, %v9438
    %v9445 = vpop.permute.xlu0 %9444
    %9448 = vset.pattern.permute.xlu0 0
    %9449 = vperm.xlu0 %9448, %v9439
    %v9450 = vpop.permute.xlu0 %9449
    %9453 = vset.pattern.permute.xlu0 0
    %9454 = vperm.xlu0 %9453, %v9440
    %v9455 = vpop.permute.xlu0 %9454
    %9458 = vset.pattern.permute.xlu0 0
    %9459 = vperm.xlu0 %9458, %v9441
    %v9460 = vpop.permute.xlu0 %9459
    %v9466 = vunpack.c.l.b16 %v9434
    %v9467 = vunpack.c.l.b16 %v9435
    %v9468 = vunpack.c.l.b16 %v9436
    %v9469 = vunpack.c.l.b16 %v9437
    %v9470 = vpack.c.b16 %v9467, %v9466
    %v9471 = vpack.c.b16 %v9469, %v9468
    %v9473 = vsel %vm9330, %v9470, 0
    %v9476 = vsel %vm9330, %v9471, 0
    %9478 = vmatprep.subr.bf16.mxu0 0
    %9479 = vmatpush1.bf16.msra.mxu0 %v9433
    %9480 = vmatprep.subr.bf16.mxu0 0
    %9481 = vmatpush1.bf16.msra.mxu0 0
    %9482 = vmatprep.subr.bf16.mxu0 0
    %9483 = vmatpush1.bf16.msra.mxu0 0
    %9484 = vmatprep.subr.bf16.mxu0 0
    %9485 = vmatpush1.bf16.msra.mxu0 0
    %9486 = vmatprep.subr.bf16.mxu0 0
    %9487 = vmatpush1.bf16.msra.mxu0 0
    %9488 = vmatprep.subr.bf16.mxu0 0
    %9489 = vmatpush1.bf16.msra.mxu0 0
    %9490 = vmatprep.subr.bf16.mxu0 0
    %9491 = vmatpush1.bf16.msra.mxu0 0
    %9492 = vmatprep.subr.bf16.mxu0 0
    %9493 = vmatpush1.bf16.msra.mxu0 0
    %9494 = vmatprep.subr.bf16.mxu0 0
    %9495 = vmatpush1.bf16.msra.mxu0 0
    %9496 = vmatprep.subr.bf16.mxu0 0
    %9497 = vmatpush1.bf16.msra.mxu0 0
    %9498 = vmatprep.subr.bf16.mxu0 0
    %9499 = vmatpush1.bf16.msra.mxu0 0
    %9500 = vmatprep.subr.bf16.mxu0 0
    %9501 = vmatpush1.bf16.msra.mxu0 0
    %9502 = vmatprep.subr.bf16.mxu0 0
    %9503 = vmatpush1.bf16.msra.mxu0 0
    %9504 = vmatprep.subr.bf16.mxu0 0
    %9505 = vmatpush1.bf16.msra.mxu0 0
    %9506 = vmatprep.subr.bf16.mxu0 0
    %9507 = vmatpush1.bf16.msra.mxu0 0
    %9508 = vmatprep.subr.bf16.mxu0 0
    %9509 = vmatpush1.bf16.msra.mxu0 0
    %9510 = vmatprep.mubr.bf16.mxu0 0
    %9511 = vmatmul.mubr.bf16.gmra.mrb[0].mxu0 %v9473
    %v9512 = vpop.f32.mrb[0].mxu0
    %v9513 = vadd.f32 %v9445, %v9512
    %v9514 = vpop.f32.mrb[0].mxu0
    %v9515 = vpop.f32.mrb[0].mxu0
    %v9516 = vadd.f32 %v9450, %v9515
    %v9517 = vpop.f32.mrb[0].mxu0
    %9518 = vmatprep.mubr.bf16.mxu0 0
    %9519 = vmatmul.mubr.bf16.gmra.mrb[0].mxu0 %v9476
    %v9520 = vpop.f32.mrb[0].mxu0
    %v9521 = vadd.f32 %v9455, %v9520
    %v9522 = vpop.f32.mrb[0].mxu0
    %v9523 = vpop.f32.mrb[0].mxu0
    %v9524 = vadd.f32 %v9460, %v9523
    %v9525 = vpop.f32.mrb[0].mxu0
    %9526 = vdwg.mxu0
    %v9527 = vmax.f32 %v9513, 0.0
    %v9528 = vmax.f32 %v9516, 0.0
    %v9529 = vmax.f32 %v9521, 0.0
    %v9530 = vmax.f32 %v9524, 0.0
    %v9531 = vld [vmem:[#allocation13] sm:$0x3]
    %v9532 = vpack.c.bf16 %v9528, %v9527
    %v9533 = vpack.c.bf16 %v9530, %v9529
    %v9534 = vld [vmem:[%s15] sm:$0xf]
    %9536 = vset.pattern.permute.xlu0 0
    %9537 = vperm.xlu0 %9536, %v9534
    %v9538 = vpop.permute.xlu0 %9537
    %vm9540 = vcmask 261120
    %v9542 = vsel %vm9540, %v9531, 0
    %9544 = vmatprep.subr.bf16.mxu0 0
    %9545 = vmatpush1.bf16.msra.mxu0 %v9532
    %9546 = vmatprep.subr.bf16.mxu0 0
    %9547 = vmatpush1.bf16.msra.mxu0 %v9533
    %9548 = vmatprep.subr.bf16.mxu0 0
    %9549 = vmatpush1.bf16.msra.mxu0 0
    %9550 = vmatprep.subr.bf16.mxu0 0
    %9551 = vmatpush1.bf16.msra.mxu0 0
    %9552 = vmatprep.subr.bf16.mxu0 0
    %9553 = vmatpush1.bf16.msra.mxu0 0
    %9554 = vmatprep.subr.bf16.mxu0 0
    %9555 = vmatpush1.bf16.msra.mxu0 0
    %9556 = vmatprep.subr.bf16.mxu0 0
    %9557 = vmatpush1.bf16.msra.mxu0 0
    %9558 = vmatprep.subr.bf16.mxu0 0
    %9559 = vmatpush1.bf16.msra.mxu0 0
    %9560 = vmatprep.subr.bf16.mxu0 0
    %9561 = vmatpush1.bf16.msra.mxu0 0
    %9562 = vmatprep.subr.bf16.mxu0 0
    %9563 = vmatpush1.bf16.msra.mxu0 0
    %9564 = vmatprep.subr.bf16.mxu0 0
    %9565 = vmatpush1.bf16.msra.mxu0 0
    %9566 = vmatprep.subr.bf16.mxu0 0
    %9567 = vmatpush1.bf16.msra.mxu0 0
    %9568 = vmatprep.subr.bf16.mxu0 0
    %9569 = vmatpush1.bf16.msra.mxu0 0
    %9570 = vmatprep.subr.bf16.mxu0 0
    %9571 = vmatpush1.bf16.msra.mxu0 0
    %9572 = vmatprep.subr.bf16.mxu0 0
    %9573 = vmatpush1.bf16.msra.mxu0 0
    %9574 = vmatprep.subr.bf16.mxu0 0
    %9575 = vmatpush1.bf16.msra.mxu0 0
    %9576 = vmatprep.mubr.bf16.mxu0 0
    %9577 = vmatmul.mubr.bf16.gmra.mrb[0].mxu0 %v9542
    %v9578 = vpop.f32.mrb[0].mxu0
    %v9579 = vadd.f32 %v9538, %v9578
    %v9580 = vpop.f32.mrb[0].mxu0
    %v9581 = vpop.f32.mrb[0].mxu0
    %v9582 = vpop.f32.mrb[0].mxu0
    %9583 = vdwg.mxu0
    %v9584 = vmax.f32 %v9579, 0.0
    %9585 = vst [vmem:[#allocation14] sm:$0xf] %v9584
    // Predicated region
    $region94: #{tpu_custom_call.1} parent=1 // pred_check
      _
    $region95: #{tpu_custom_call.1} parent=1 // pred_check_branch
      %9587 = sbr.rel (0) target = $region97
    $region96: #{tpu_custom_call.1} parent=1 // pred_region
      %s9589 = ssub.s32 64, 64
      %9590 = vsyncadd [#allocation4], %s9589
      %s9592 = sshll.u32 [#allocation14], 4
      %s9593 = int_to_ptr.vmem [resolvable:$true] %s9592
      %9595 = dma.vmem_to_hbm [thread:$0]  %s9593, 64, %s16, [#allocation4]
    $region97: #{tpu_custom_call.1} parent=1 // pred_fallthru
      _
    // Predicated region
    $region98: #{tpu_custom_call.1} parent=1 // pred_check
      _
    $region99: #{tpu_custom_call.1} parent=1 // pred_check_branch
      %9597 = sbr.rel (0) target = $region101
    $region100: #{tpu_custom_call.1} parent=1 // pred_region
      %9598 = dma.done [#allocation4], 64
    $region101: #{tpu_custom_call.1} parent=1 // pred_fallthru
      _
    %9599 = vsyncpa [#allocation3], 1
    %9600 = vsyncpa [#allocation6], 1
    %9601 = vsyncpa [#allocation9], 1
    %9602 = vsyncpa [#allocation12], 1
    %9603 = vsyncpa [#allocation4], 1

</llo_original>
